<compile_context>
chip_gen: v7x
topology: tpu7x:2x2x1
jax: 0.10.0
libtpu: 0.0.40
codegen_flags: <defaults>
</compile_context>

<pallas_src>
import functools
import math

import jax
import jax.numpy as jnp
from jax.experimental import pallas as pl
from jax.experimental.pallas import tpu as pltpu


# --------------------------------------------------------------------------- #
# In-kernel helpers
# --------------------------------------------------------------------------- #
def _erf_approx(z):
    # Abramowitz & Stegun 7.1.26 rational approximation, |error| < 1.5e-7
    # (plus the EUP approximate-reciprocal error, well below test tolerance).
    a1, a2, a3, a4, a5 = 0.254829592, -0.284496736, 1.421413741, -1.453152027, 1.061405429
    p = 0.3275911
    az = jnp.abs(z)
    t = pl.reciprocal(1.0 + p * az, approx=True)          # EUP slot, not VALU
    poly = ((((a5 * t + a4) * t + a3) * t + a2) * t + a1) * t
    y = 1.0 - poly * jnp.exp(-az * az)
    return jnp.where(z >= 0.0, y, -y)


def _gelu_exact(x):
    return 0.5 * x * (1.0 + _erf_approx(x * (1.0 / math.sqrt(2.0))))


def _layernorm(x, w, b, eps):
    mu = jnp.mean(x, axis=-1, keepdims=True)
    xc = x - mu
    var = jnp.mean(xc * xc, axis=-1, keepdims=True)
    return xc * jax.lax.rsqrt(var + eps) * w + b


def _bf16(x):
    return x.astype(jnp.bfloat16)


# --------------------------------------------------------------------------- #
# Fused transformer-block kernel (TB batch elements per grid step)
# --------------------------------------------------------------------------- #
def _self_attention_block_kernel(x_ref,
                                 ln1w_ref, ln1b_ref,
                                 wqkv_ref, bqkv_ref,
                                 wo_ref, bo_ref,
                                 ln2w_ref, ln2b_ref,
                                 w1_ref, b1_ref,
                                 w2_ref, b2_ref,
                                 o_ref,
                                 ctx_ref,            # VMEM scratch (TB*S, E) f32
                                 *, num_heads, eps):
    TB, S, E = x_ref.shape
    R = TB * S
    HD = E // num_heads

    x = x_ref[...].reshape(R, E)                      # f32, leading-dim merge (free)

    # ---- LayerNorm 1 (pre-attention), f32 ----------------------------------
    xn = _layernorm(x, ln1w_ref[...], ln1b_ref[...], eps)

    # ---- fused QKV projection: one (R,E)@(E,3E) bf16 MXU matmul, f32 acc ----
    # (1/sqrt(HD) already folded into the Q columns at param-prep time)
    qkv = jnp.dot(_bf16(xn), wqkv_ref[...],
                  preferred_element_type=jnp.float32) + bqkv_ref[...]

    # ---- multi-head attention, batched over TB per head ---------------------
    # Each head's context goes into its column block of ctx_ref; a single
    # K=E output projection replaces num_heads K=HD projections.
    for h in range(num_heads):
        lo, hi = h * HD, (h + 1) * HD
        qh = _bf16(qkv[:, lo:hi]).reshape(TB, S, HD)
        kh = _bf16(qkv[:, E + lo:E + hi]).reshape(TB, S, HD)
        vh = _bf16(qkv[:, 2 * E + lo:2 * E + hi]).reshape(TB, S, HD)

        sc = jnp.einsum("bqd,bkd->bqk", qh, kh,
                        preferred_element_type=jnp.float32)     # (TB,S,S) f32
        sc = sc - jnp.max(sc, axis=-1, keepdims=True)
        pexp = jnp.exp(sc)
        inv_denom = pl.reciprocal(jnp.sum(pexp, axis=-1, keepdims=True),
                                  approx=True)
        pnorm = pexp * inv_denom
        ctx_h = jnp.einsum("bqk,bkd->bqd", _bf16(pnorm), vh,
                           preferred_element_type=jnp.float32)  # (TB,S,HD) f32
        ctx_ref[:, lo:hi] = ctx_h.reshape(R, HD)

    attn = jnp.dot(_bf16(ctx_ref[...]), wo_ref[...],
                   preferred_element_type=jnp.float32) + bo_ref[...]

    # ---- residual 1 (f32) ----------------------------------------------------
    x1 = x + attn

    # ---- LayerNorm 2 (f32) ---------------------------------------------------
    xn2 = _layernorm(x1, ln2w_ref[...], ln2b_ref[...], eps)

    # ---- MLP: Linear -> exact-erf GELU -> Linear, + residual 2 ---------------
    h1 = jnp.dot(_bf16(xn2), w1_ref[...],
                 preferred_element_type=jnp.float32) + b1_ref[...]
    g = _gelu_exact(h1)                                          # f32
    h2 = jnp.dot(_bf16(g), w2_ref[...],
                 preferred_element_type=jnp.float32) + b2_ref[...]

    o_ref[...] = (x1 + h2).reshape(TB, S, E).astype(o_ref.dtype)


# --------------------------------------------------------------------------- #
# Batch-tile selection: fill the MXU M dim, keep >=2 grid steps for v7x megacore
# --------------------------------------------------------------------------- #
def _choose_batch_tile(B, S, *, target_rows=256):
    divisors = [d for d in range(1, B + 1) if B % d == 0]
    for d in divisors:                       # smallest tile reaching target, grid >= 2
        if d * S >= target_rows and B // d >= 2:
            return d
    for d in divisors:                       # reach target even if grid == 1
        if d * S >= target_rows:
            return d
    for d in reversed(divisors):             # else: biggest tile keeping grid >= 2
        if B // d >= 2:
            return d
    return B


# --------------------------------------------------------------------------- #
# Wrapper
# --------------------------------------------------------------------------- #
def self_attention_forward(x, params, *, num_heads, eps=1e-5,
                           batch_tile=None, single_buffer_weights=True):
    """x: (B, S, E) float32.  params: kernel-layout parameter tuple (f32)."""
    (ln1w, ln1b, wqkv, bqkv, wo, bo, ln2w, ln2b, w1, b1, w2, b2) = params
    B, S, E = x.shape
    Hm = w1.shape[1]
    HD = E // num_heads

    TB = batch_tile if batch_tile is not None else _choose_batch_tile(B, S)
    assert B % TB == 0
    R = TB * S

    # Fold 1/sqrt(HD) into the Q columns of the fused QKV projection (one-time
    # param transform; removes the (S,S) score scaling from the kernel).
    scale = 1.0 / math.sqrt(HD)
    col_scale = jnp.concatenate([jnp.full((E,), scale, jnp.float32),
                                 jnp.ones((2 * E,), jnp.float32)])
    wqkv_s = _bf16(wqkv * col_scale[None, :])
    bqkv_s = (bqkv * col_scale[None, :]).astype(jnp.float32)
    # bf16 MXU weights (halves resident-weight VMEM); biases/LN params stay f32.
    wo_h, w1_h, w2_h = _bf16(wo), _bf16(w1), _bf16(w2)

    operands = (x, ln1w, ln1b, wqkv_s, bqkv_s, wo_h, bo,
                ln2w, ln2b, w1_h, b1, w2_h, b2)

    # Explicit VMEM budget: weights (x2 in case they end up double-buffered),
    # double-buffered x/out blocks, ctx scratch, and the in-flight intermediates.
    weight_bytes = sum(int(a.size) * a.dtype.itemsize for a in operands[1:])
    io_block_bytes = 2 * R * E * 4
    interm_bytes = R * (3 * E + Hm + 4 * E) * 4 + 2 * TB * S * S * 4
    vmem_needed = 2 * weight_bytes + 2 * io_block_bytes + R * E * 4 + interm_bytes
    vmem_limit = int(min(128 * 1024 * 1024,
                         max(32 * 1024 * 1024, vmem_needed + (8 << 20))))

    kernel = functools.partial(_self_attention_block_kernel,
                               num_heads=num_heads, eps=eps)

    def build_and_run(weight_mode):
        def rep(shape):
            # Replicated parameter block: constant index_map -> loaded once and
            # VMEM-resident across the (parallel) batch grid.  weight_mode=
            # pl.Buffered(1) single-buffers it (v7x 64 MiB VMEM budget).
            idx = lambda b: (0,) * len(shape)
            if weight_mode is None:
                return pl.BlockSpec(shape, idx)
            return pl.BlockSpec(shape, idx, pipeline_mode=weight_mode)

        return pl.pallas_call(
            kernel,
            out_shape=jax.ShapeDtypeStruct((B, S, E), jnp.float32),
            grid=(B // TB,),
            in_specs=[
                pl.BlockSpec((TB, S, E), lambda b: (b, 0, 0)),   # x
                rep((1, E)), rep((1, E)),                        # norm1 w/b
                rep((E, 3 * E)), rep((1, 3 * E)),                # fused QKV proj
                rep((E, E)), rep((1, E)),                        # attn out proj
                rep((1, E)), rep((1, E)),                        # norm2 w/b
                rep((E, Hm)), rep((1, Hm)),                      # mlp fc1
                rep((Hm, E)), rep((1, E)),                       # mlp fc2
            ],
            out_specs=pl.BlockSpec((TB, S, E), lambda b: (b, 0, 0)),
            scratch_shapes=[pltpu.VMEM((R, E), jnp.float32)],    # ctx (heads concat)
            compiler_params=pltpu.CompilerParams(
                dimension_semantics=("parallel",),
                vmem_limit_bytes=vmem_limit),
        )(*operands)

    if single_buffer_weights:
        try:
            return build_and_run(pl.Buffered(buffer_count=1))
        except Exception:
            # TODO(synk): jax build without BlockSpec.pipeline_mode support ->
            # fall back to default (double-buffered) weight blocks.
            pass
    return build_and_run(None)


# --------------------------------------------------------------------------- #
# Pure-JAX reference (mirrors PyTorch nn.MultiheadAttention / nn.GELU exactly)
# --------------------------------------------------------------------------- #
def reference_forward(x, params, *, num_heads, eps=1e-5):
    (ln1w, ln1b, wqkv, bqkv, wo, bo, ln2w, ln2b, w1, b1, w2, b2) = params
    B, S, E = x.shape
    HD = E // num_heads
    P = jax.lax.Precision.HIGHEST

    def ln(z, w, b):
        mu = jnp.mean(z, axis=-1, keepdims=True)
        var = jnp.mean((z - mu) ** 2, axis=-1, keepdims=True)
        return (z - mu) * jax.lax.rsqrt(var + eps) * w + b

    xn = ln(x, ln1w, ln1b)
    qkv = jnp.einsum("bse,ef->bsf", xn, wqkv, precision=P) + bqkv
    q, k, v = jnp.split(qkv, 3, axis=-1)
    q = q.reshape(B, S, num_heads, HD).transpose(0, 2, 1, 3)
    k = k.reshape(B, S, num_heads, HD).transpose(0, 2, 1, 3)
    v = v.reshape(B, S, num_heads, HD).transpose(0, 2, 1, 3)
    s = jnp.einsum("bhqd,bhkd->bhqk", q, k, precision=P) / math.sqrt(HD)
    a = jax.nn.softmax(s, axis=-1)
    ctx = jnp.einsum("bhqk,bhkd->bhqd", a, v, precision=P)
    ctx = ctx.transpose(0, 2, 1, 3).reshape(B, S, E)
    attn_out = jnp.einsum("bse,ef->bsf", ctx, wo, precision=P) + bo
    x1 = x + attn_out
    xn2 = ln(x1, ln2w, ln2b)
    h = jnp.einsum("bse,eh->bsh", xn2, w1, precision=P) + b1
    h = jax.nn.gelu(h, approximate=False)
    h = jnp.einsum("bsh,he->bse", h, w2, precision=P) + b2
    return x1 + h


# --------------------------------------------------------------------------- #
if __name__ == "__main__":
    key = jax.random.PRNGKey(0)
    B, S, E, NUM_HEADS, MLP_RATIO = 8, 8, 32, 4, 4
    H = int(E * MLP_RATIO)
    EPS = 1e-5

    keys = jax.random.split(key, 12)

    def rnd(k, shape, scale=0.1):
        return (scale * jax.random.normal(k, shape)).astype(jnp.float32)

    x = jax.random.normal(keys[0], (B, S, E), dtype=jnp.float32)

    # PyTorch-shaped parameters
    in_proj_w = rnd(keys[1], (3 * E, E))      # nn.MultiheadAttention.in_proj_weight
    in_proj_b = rnd(keys[2], (3 * E,))
    out_proj_w = rnd(keys[3], (E, E))         # out_proj.weight
    out_proj_b = rnd(keys[4], (E,))
    fc1_w = rnd(keys[5], (H, E))              # mlp[0].weight
    fc1_b = rnd(keys[6], (H,))
    fc2_w = rnd(keys[7], (E, H))              # mlp[2].weight
    fc2_b = rnd(keys[8], (E,))
    ln1_w = (1.0 + rnd(keys[9], (E,)))
    ln1_b = rnd(keys[10], (E,))
    ln2_w = (1.0 + rnd(keys[11], (E,)))
    ln2_b = jnp.zeros((E,), jnp.float32)

    # kernel-layout parameters (transposed weights, 2-D biases), all f32
    params = (
        ln1_w.reshape(1, E), ln1_b.reshape(1, E),
        in_proj_w.T, in_proj_b.reshape(1, 3 * E),
        out_proj_w.T, out_proj_b.reshape(1, E),
        ln2_w.reshape(1, E), ln2_b.reshape(1, E),
        fc1_w.T, fc1_b.reshape(1, H),
        fc2_w.T, fc2_b.reshape(1, E),
    )

    out = self_attention_forward(x, params, num_heads=NUM_HEADS, eps=EPS)
    out = jax.block_until_ready(out)

    ref = reference_forward(x, params, num_heads=NUM_HEADS, eps=EPS)
    ref = jax.block_until_ready(ref)

    assert out.shape == (B, S, E)
    # Tolerance sized for bf16 MXU operands (f32 accumulation) + EUP approximate
    # reciprocals; f32-statistics LayerNorm/softmax/GELU keep the error far below.
    max_err = float(jnp.max(jnp.abs(out - ref)))
    assert jnp.allclose(out, ref, atol=2e-2, rtol=2e-2), max_err
    print("KERNEL_OK")
</pallas_src>

<mosaic_0001>
module attributes {stable_mosaic.version = 11 : i64} {
  func.func @_self_attention_block_kernel(%arg0: i32, %arg1: memref<4x8x32xf32, #tpu.memory_space<vmem>>, %arg2: memref<1x32xf32, #tpu.memory_space<vmem>>, %arg3: memref<1x32xf32, #tpu.memory_space<vmem>>, %arg4: memref<32x96xbf16, #tpu.memory_space<vmem>>, %arg5: memref<1x96xf32, #tpu.memory_space<vmem>>, %arg6: memref<32x32xbf16, #tpu.memory_space<vmem>>, %arg7: memref<1x32xf32, #tpu.memory_space<vmem>>, %arg8: memref<1x32xf32, #tpu.memory_space<vmem>>, %arg9: memref<1x32xf32, #tpu.memory_space<vmem>>, %arg10: memref<32x128xbf16, #tpu.memory_space<vmem>>, %arg11: memref<1x128xf32, #tpu.memory_space<vmem>>, %arg12: memref<128x32xbf16, #tpu.memory_space<vmem>>, %arg13: memref<1x32xf32, #tpu.memory_space<vmem>>, %arg14: memref<4x8x32xf32, #tpu.memory_space<vmem>>, %arg15: memref<32x32xf32, #tpu.memory_space<vmem>>) attributes {dimension_semantics = [#tpu.dimension_semantics<parallel>], iteration_bounds = array<i64: 2>, scalar_prefetch = 0 : i64, scratch_operands = 1 : i64, tpu.core_type = #tpu.core_type<tc>, window_params = [{transform_indices = @transform_0, window_bounds = array<i64: 4, 8, 32>}, {pipeline_mode = #tpu.pipeline_mode<synchronous>, transform_indices = @transform_1, window_bounds = array<i64: 1, 32>}, {pipeline_mode = #tpu.pipeline_mode<synchronous>, transform_indices = @transform_2, window_bounds = array<i64: 1, 32>}, {pipeline_mode = #tpu.pipeline_mode<synchronous>, transform_indices = @transform_3, window_bounds = array<i64: 32, 96>}, {pipeline_mode = #tpu.pipeline_mode<synchronous>, transform_indices = @transform_4, window_bounds = array<i64: 1, 96>}, {pipeline_mode = #tpu.pipeline_mode<synchronous>, transform_indices = @transform_5, window_bounds = array<i64: 32, 32>}, {pipeline_mode = #tpu.pipeline_mode<synchronous>, transform_indices = @transform_6, window_bounds = array<i64: 1, 32>}, {pipeline_mode = #tpu.pipeline_mode<synchronous>, transform_indices = @transform_7, window_bounds = array<i64: 1, 32>}, {pipeline_mode = #tpu.pipeline_mode<synchronous>, transform_indices = @transform_8, window_bounds = array<i64: 1, 32>}, {pipeline_mode = #tpu.pipeline_mode<synchronous>, transform_indices = @transform_9, window_bounds = array<i64: 32, 128>}, {pipeline_mode = #tpu.pipeline_mode<synchronous>, transform_indices = @transform_10, window_bounds = array<i64: 1, 128>}, {pipeline_mode = #tpu.pipeline_mode<synchronous>, transform_indices = @transform_11, window_bounds = array<i64: 128, 32>}, {pipeline_mode = #tpu.pipeline_mode<synchronous>, transform_indices = @transform_12, window_bounds = array<i64: 1, 32>}, {transform_indices = @transform_13, window_bounds = array<i64: 4, 8, 32>}]} {
    %c0 = arith.constant 0 : index
    %c0_0 = arith.constant 0 : index
    %c0_1 = arith.constant 0 : index
    %0 = vector.load %arg1[%c0, %c0_0, %c0_1] : memref<4x8x32xf32, #tpu.memory_space<vmem>>, vector<4x8x32xf32>
    %1 = vector.shape_cast %0 : vector<4x8x32xf32> to vector<32x32xf32>
    %c0_2 = arith.constant 0 : index
    %c0_3 = arith.constant 0 : index
    %2 = vector.load %arg2[%c0_2, %c0_3] : memref<1x32xf32, #tpu.memory_space<vmem>>, vector<1x32xf32>
    %c0_4 = arith.constant 0 : index
    %c0_5 = arith.constant 0 : index
    %3 = vector.load %arg3[%c0_4, %c0_5] : memref<1x32xf32, #tpu.memory_space<vmem>>, vector<1x32xf32>
    %cst = arith.constant dense<0.000000e+00> : vector<32xf32>
    %4 = vector.multi_reduction <add>, %1, %cst [1] : vector<32x32xf32> to vector<32xf32>
    %5 = vector.shape_cast %4 : vector<32xf32> to vector<32x1xf32>
    %cst_6 = arith.constant 3.200000e+01 : f32
    %6 = vector.broadcast %cst_6 : f32 to vector<32x1xf32>
    %7 = arith.divf %5, %6 : vector<32x1xf32>
    %8 = vector.broadcast %7 : vector<32x1xf32> to vector<32x32xf32>
    %9 = arith.subf %1, %8 : vector<32x32xf32>
    %10 = arith.mulf %9, %9 : vector<32x32xf32>
    %cst_7 = arith.constant dense<0.000000e+00> : vector<32xf32>
    %11 = vector.multi_reduction <add>, %10, %cst_7 [1] : vector<32x32xf32> to vector<32xf32>
    %12 = vector.shape_cast %11 : vector<32xf32> to vector<32x1xf32>
    %cst_8 = arith.constant 3.200000e+01 : f32
    %13 = vector.broadcast %cst_8 : f32 to vector<32x1xf32>
    %14 = arith.divf %12, %13 : vector<32x1xf32>
    %cst_9 = arith.constant 9.99999974E-6 : f32
    %15 = vector.broadcast %cst_9 : f32 to vector<32x1xf32>
    %16 = arith.addf %14, %15 : vector<32x1xf32>
    %17 = math.rsqrt %16 : vector<32x1xf32>
    %18 = vector.broadcast %17 : vector<32x1xf32> to vector<32x32xf32>
    %19 = arith.mulf %9, %18 : vector<32x32xf32>
    %20 = vector.broadcast %2 : vector<1x32xf32> to vector<32x32xf32>
    %21 = arith.mulf %19, %20 : vector<32x32xf32>
    %22 = vector.broadcast %3 : vector<1x32xf32> to vector<32x32xf32>
    %23 = arith.addf %21, %22 : vector<32x32xf32>
    %24 = arith.truncf %23 : vector<32x32xf32> to vector<32x32xbf16>
    %c0_10 = arith.constant 0 : index
    %c0_11 = arith.constant 0 : index
    %25 = vector.load %arg4[%c0_10, %c0_11] : memref<32x96xbf16, #tpu.memory_space<vmem>>, vector<32x96xbf16>
    %cst_12 = arith.constant dense<0.000000e+00> : vector<32x96xf32>
    %26 = tpu.matmul %24, %25, %cst_12 {dimension_numbers = #tpu.dot_dimension_numbers<[1], [0], [0], [1], [0, 0, 1, 1], [], []>} : vector<32x32xbf16>, vector<32x96xbf16>, vector<32x96xf32> -> vector<32x96xf32>
    %c0_13 = arith.constant 0 : index
    %c0_14 = arith.constant 0 : index
    %27 = vector.load %arg5[%c0_13, %c0_14] : memref<1x96xf32, #tpu.memory_space<vmem>>, vector<1x96xf32>
    %28 = vector.broadcast %27 : vector<1x96xf32> to vector<32x96xf32>
    %29 = arith.addf %26, %28 : vector<32x96xf32>
    %30 = vector.extract_strided_slice %29 {offsets = [0, 0], sizes = [32, 8], strides = [1, 1]} : vector<32x96xf32> to vector<32x8xf32>
    %31 = arith.truncf %30 : vector<32x8xf32> to vector<32x8xbf16>
    %32 = vector.shape_cast %31 : vector<32x8xbf16> to vector<4x8x8xbf16>
    %33 = vector.extract_strided_slice %29 {offsets = [0, 32], sizes = [32, 8], strides = [1, 1]} : vector<32x96xf32> to vector<32x8xf32>
    %34 = arith.truncf %33 : vector<32x8xf32> to vector<32x8xbf16>
    %35 = vector.shape_cast %34 : vector<32x8xbf16> to vector<4x8x8xbf16>
    %36 = vector.extract_strided_slice %29 {offsets = [0, 64], sizes = [32, 8], strides = [1, 1]} : vector<32x96xf32> to vector<32x8xf32>
    %37 = arith.truncf %36 : vector<32x8xf32> to vector<32x8xbf16>
    %38 = vector.shape_cast %37 : vector<32x8xbf16> to vector<4x8x8xbf16>
    "tpu.trace_start"() <{level = 10 : i32, message = "bqd,bkd->bqk"}> : () -> ()
    %cst_15 = arith.constant dense<0.000000e+00> : vector<4x8x8xf32>
    %39 = tpu.matmul %32, %35, %cst_15 {dimension_numbers = #tpu.dot_dimension_numbers<[2], [2], [1], [1], [0, 0, 0, 1, 1, 1], [0], [0]>} : vector<4x8x8xbf16>, vector<4x8x8xbf16>, vector<4x8x8xf32> -> vector<4x8x8xf32>
    "tpu.trace_stop"() : () -> ()
    %cst_16 = arith.constant dense<0xFF800000> : vector<4x8xf32>
    %40 = vector.multi_reduction <maximumf>, %39, %cst_16 [2] : vector<4x8x8xf32> to vector<4x8xf32>
    %41 = vector.shape_cast %40 : vector<4x8xf32> to vector<4x8x1xf32>
    %42 = vector.broadcast %41 : vector<4x8x1xf32> to vector<4x8x8xf32>
    %43 = arith.subf %39, %42 : vector<4x8x8xf32>
    %44 = math.exp %43 : vector<4x8x8xf32>
    %cst_17 = arith.constant dense<0.000000e+00> : vector<4x8xf32>
    %45 = vector.multi_reduction <add>, %44, %cst_17 [2] : vector<4x8x8xf32> to vector<4x8xf32>
    %46 = vector.shape_cast %45 : vector<4x8xf32> to vector<4x8x1xf32>
    %47 = tpu.reciprocal %46 {approx = true} : vector<4x8x1xf32> -> vector<4x8x1xf32>
    %48 = vector.broadcast %47 : vector<4x8x1xf32> to vector<4x8x8xf32>
    %49 = arith.mulf %44, %48 : vector<4x8x8xf32>
    %50 = arith.truncf %49 : vector<4x8x8xf32> to vector<4x8x8xbf16>
    "tpu.trace_start"() <{level = 10 : i32, message = "bqk,bkd->bqd"}> : () -> ()
    %cst_18 = arith.constant dense<0.000000e+00> : vector<4x8x8xf32>
    %51 = tpu.matmul %50, %38, %cst_18 {dimension_numbers = #tpu.dot_dimension_numbers<[2], [1], [1], [2], [0, 0, 0, 1, 1, 2], [0], [0]>} : vector<4x8x8xbf16>, vector<4x8x8xbf16>, vector<4x8x8xf32> -> vector<4x8x8xf32>
    "tpu.trace_stop"() : () -> ()
    %52 = vector.shape_cast %51 : vector<4x8x8xf32> to vector<32x8xf32>
    %c0_19 = arith.constant 0 : index
    %c0_20 = arith.constant 0 : index
    %53 = vector.load %arg15[%c0_19, %c0_20] : memref<32x32xf32, #tpu.memory_space<vmem>>, vector<32x8xf32>
    tpu.vector_store %arg15[%c0_19, %c0_20], %52 {strides = array<i32>} : memref<32x32xf32, #tpu.memory_space<vmem>>, vector<32x8xf32>,
    %54 = vector.extract_strided_slice %29 {offsets = [0, 8], sizes = [32, 8], strides = [1, 1]} : vector<32x96xf32> to vector<32x8xf32>
    %55 = arith.truncf %54 : vector<32x8xf32> to vector<32x8xbf16>
    %56 = vector.shape_cast %55 : vector<32x8xbf16> to vector<4x8x8xbf16>
    %57 = vector.extract_strided_slice %29 {offsets = [0, 40], sizes = [32, 8], strides = [1, 1]} : vector<32x96xf32> to vector<32x8xf32>
    %58 = arith.truncf %57 : vector<32x8xf32> to vector<32x8xbf16>
    %59 = vector.shape_cast %58 : vector<32x8xbf16> to vector<4x8x8xbf16>
    %60 = vector.extract_strided_slice %29 {offsets = [0, 72], sizes = [32, 8], strides = [1, 1]} : vector<32x96xf32> to vector<32x8xf32>
    %61 = arith.truncf %60 : vector<32x8xf32> to vector<32x8xbf16>
    %62 = vector.shape_cast %61 : vector<32x8xbf16> to vector<4x8x8xbf16>
    "tpu.trace_start"() <{level = 10 : i32, message = "bqd,bkd->bqk"}> : () -> ()
    %cst_21 = arith.constant dense<0.000000e+00> : vector<4x8x8xf32>
    %63 = tpu.matmul %56, %59, %cst_21 {dimension_numbers = #tpu.dot_dimension_numbers<[2], [2], [1], [1], [0, 0, 0, 1, 1, 1], [0], [0]>} : vector<4x8x8xbf16>, vector<4x8x8xbf16>, vector<4x8x8xf32> -> vector<4x8x8xf32>
    "tpu.trace_stop"() : () -> ()
    %cst_22 = arith.constant dense<0xFF800000> : vector<4x8xf32>
    %64 = vector.multi_reduction <maximumf>, %63, %cst_22 [2] : vector<4x8x8xf32> to vector<4x8xf32>
    %65 = vector.shape_cast %64 : vector<4x8xf32> to vector<4x8x1xf32>
    %66 = vector.broadcast %65 : vector<4x8x1xf32> to vector<4x8x8xf32>
    %67 = arith.subf %63, %66 : vector<4x8x8xf32>
    %68 = math.exp %67 : vector<4x8x8xf32>
    %cst_23 = arith.constant dense<0.000000e+00> : vector<4x8xf32>
    %69 = vector.multi_reduction <add>, %68, %cst_23 [2] : vector<4x8x8xf32> to vector<4x8xf32>
    %70 = vector.shape_cast %69 : vector<4x8xf32> to vector<4x8x1xf32>
    %71 = tpu.reciprocal %70 {approx = true} : vector<4x8x1xf32> -> vector<4x8x1xf32>
    %72 = vector.broadcast %71 : vector<4x8x1xf32> to vector<4x8x8xf32>
    %73 = arith.mulf %68, %72 : vector<4x8x8xf32>
    %74 = arith.truncf %73 : vector<4x8x8xf32> to vector<4x8x8xbf16>
    "tpu.trace_start"() <{level = 10 : i32, message = "bqk,bkd->bqd"}> : () -> ()
    %cst_24 = arith.constant dense<0.000000e+00> : vector<4x8x8xf32>
    %75 = tpu.matmul %74, %62, %cst_24 {dimension_numbers = #tpu.dot_dimension_numbers<[2], [1], [1], [2], [0, 0, 0, 1, 1, 2], [0], [0]>} : vector<4x8x8xbf16>, vector<4x8x8xbf16>, vector<4x8x8xf32> -> vector<4x8x8xf32>
    "tpu.trace_stop"() : () -> ()
    %76 = vector.shape_cast %75 : vector<4x8x8xf32> to vector<32x8xf32>
    %c0_25 = arith.constant 0 : index
    %c8 = arith.constant 8 : index
    %77 = vector.load %arg15[%c0_25, %c8] : memref<32x32xf32, #tpu.memory_space<vmem>>, vector<32x8xf32>
    tpu.vector_store %arg15[%c0_25, %c8], %76 {strides = array<i32>} : memref<32x32xf32, #tpu.memory_space<vmem>>, vector<32x8xf32>,
    %78 = vector.extract_strided_slice %29 {offsets = [0, 16], sizes = [32, 8], strides = [1, 1]} : vector<32x96xf32> to vector<32x8xf32>
    %79 = arith.truncf %78 : vector<32x8xf32> to vector<32x8xbf16>
    %80 = vector.shape_cast %79 : vector<32x8xbf16> to vector<4x8x8xbf16>
    %81 = vector.extract_strided_slice %29 {offsets = [0, 48], sizes = [32, 8], strides = [1, 1]} : vector<32x96xf32> to vector<32x8xf32>
    %82 = arith.truncf %81 : vector<32x8xf32> to vector<32x8xbf16>
    %83 = vector.shape_cast %82 : vector<32x8xbf16> to vector<4x8x8xbf16>
    %84 = vector.extract_strided_slice %29 {offsets = [0, 80], sizes = [32, 8], strides = [1, 1]} : vector<32x96xf32> to vector<32x8xf32>
    %85 = arith.truncf %84 : vector<32x8xf32> to vector<32x8xbf16>
    %86 = vector.shape_cast %85 : vector<32x8xbf16> to vector<4x8x8xbf16>
    "tpu.trace_start"() <{level = 10 : i32, message = "bqd,bkd->bqk"}> : () -> ()
    %cst_26 = arith.constant dense<0.000000e+00> : vector<4x8x8xf32>
    %87 = tpu.matmul %80, %83, %cst_26 {dimension_numbers = #tpu.dot_dimension_numbers<[2], [2], [1], [1], [0, 0, 0, 1, 1, 1], [0], [0]>} : vector<4x8x8xbf16>, vector<4x8x8xbf16>, vector<4x8x8xf32> -> vector<4x8x8xf32>
    "tpu.trace_stop"() : () -> ()
    %cst_27 = arith.constant dense<0xFF800000> : vector<4x8xf32>
    %88 = vector.multi_reduction <maximumf>, %87, %cst_27 [2] : vector<4x8x8xf32> to vector<4x8xf32>
    %89 = vector.shape_cast %88 : vector<4x8xf32> to vector<4x8x1xf32>
    %90 = vector.broadcast %89 : vector<4x8x1xf32> to vector<4x8x8xf32>
    %91 = arith.subf %87, %90 : vector<4x8x8xf32>
    %92 = math.exp %91 : vector<4x8x8xf32>
    %cst_28 = arith.constant dense<0.000000e+00> : vector<4x8xf32>
    %93 = vector.multi_reduction <add>, %92, %cst_28 [2] : vector<4x8x8xf32> to vector<4x8xf32>
    %94 = vector.shape_cast %93 : vector<4x8xf32> to vector<4x8x1xf32>
    %95 = tpu.reciprocal %94 {approx = true} : vector<4x8x1xf32> -> vector<4x8x1xf32>
    %96 = vector.broadcast %95 : vector<4x8x1xf32> to vector<4x8x8xf32>
    %97 = arith.mulf %92, %96 : vector<4x8x8xf32>
    %98 = arith.truncf %97 : vector<4x8x8xf32> to vector<4x8x8xbf16>
    "tpu.trace_start"() <{level = 10 : i32, message = "bqk,bkd->bqd"}> : () -> ()
    %cst_29 = arith.constant dense<0.000000e+00> : vector<4x8x8xf32>
    %99 = tpu.matmul %98, %86, %cst_29 {dimension_numbers = #tpu.dot_dimension_numbers<[2], [1], [1], [2], [0, 0, 0, 1, 1, 2], [0], [0]>} : vector<4x8x8xbf16>, vector<4x8x8xbf16>, vector<4x8x8xf32> -> vector<4x8x8xf32>
    "tpu.trace_stop"() : () -> ()
    %100 = vector.shape_cast %99 : vector<4x8x8xf32> to vector<32x8xf32>
    %c0_30 = arith.constant 0 : index
    %c16 = arith.constant 16 : index
    %101 = vector.load %arg15[%c0_30, %c16] : memref<32x32xf32, #tpu.memory_space<vmem>>, vector<32x8xf32>
    tpu.vector_store %arg15[%c0_30, %c16], %100 {strides = array<i32>} : memref<32x32xf32, #tpu.memory_space<vmem>>, vector<32x8xf32>,
    %102 = vector.extract_strided_slice %29 {offsets = [0, 24], sizes = [32, 8], strides = [1, 1]} : vector<32x96xf32> to vector<32x8xf32>
    %103 = arith.truncf %102 : vector<32x8xf32> to vector<32x8xbf16>
    %104 = vector.shape_cast %103 : vector<32x8xbf16> to vector<4x8x8xbf16>
    %105 = vector.extract_strided_slice %29 {offsets = [0, 56], sizes = [32, 8], strides = [1, 1]} : vector<32x96xf32> to vector<32x8xf32>
    %106 = arith.truncf %105 : vector<32x8xf32> to vector<32x8xbf16>
    %107 = vector.shape_cast %106 : vector<32x8xbf16> to vector<4x8x8xbf16>
    %108 = vector.extract_strided_slice %29 {offsets = [0, 88], sizes = [32, 8], strides = [1, 1]} : vector<32x96xf32> to vector<32x8xf32>
    %109 = arith.truncf %108 : vector<32x8xf32> to vector<32x8xbf16>
    %110 = vector.shape_cast %109 : vector<32x8xbf16> to vector<4x8x8xbf16>
    "tpu.trace_start"() <{level = 10 : i32, message = "bqd,bkd->bqk"}> : () -> ()
    %cst_31 = arith.constant dense<0.000000e+00> : vector<4x8x8xf32>
    %111 = tpu.matmul %104, %107, %cst_31 {dimension_numbers = #tpu.dot_dimension_numbers<[2], [2], [1], [1], [0, 0, 0, 1, 1, 1], [0], [0]>} : vector<4x8x8xbf16>, vector<4x8x8xbf16>, vector<4x8x8xf32> -> vector<4x8x8xf32>
    "tpu.trace_stop"() : () -> ()
    %cst_32 = arith.constant dense<0xFF800000> : vector<4x8xf32>
    %112 = vector.multi_reduction <maximumf>, %111, %cst_32 [2] : vector<4x8x8xf32> to vector<4x8xf32>
    %113 = vector.shape_cast %112 : vector<4x8xf32> to vector<4x8x1xf32>
    %114 = vector.broadcast %113 : vector<4x8x1xf32> to vector<4x8x8xf32>
    %115 = arith.subf %111, %114 : vector<4x8x8xf32>
    %116 = math.exp %115 : vector<4x8x8xf32>
    %cst_33 = arith.constant dense<0.000000e+00> : vector<4x8xf32>
    %117 = vector.multi_reduction <add>, %116, %cst_33 [2] : vector<4x8x8xf32> to vector<4x8xf32>
    %118 = vector.shape_cast %117 : vector<4x8xf32> to vector<4x8x1xf32>
    %119 = tpu.reciprocal %118 {approx = true} : vector<4x8x1xf32> -> vector<4x8x1xf32>
    %120 = vector.broadcast %119 : vector<4x8x1xf32> to vector<4x8x8xf32>
    %121 = arith.mulf %116, %120 : vector<4x8x8xf32>
    %122 = arith.truncf %121 : vector<4x8x8xf32> to vector<4x8x8xbf16>
    "tpu.trace_start"() <{level = 10 : i32, message = "bqk,bkd->bqd"}> : () -> ()
    %cst_34 = arith.constant dense<0.000000e+00> : vector<4x8x8xf32>
    %123 = tpu.matmul %122, %110, %cst_34 {dimension_numbers = #tpu.dot_dimension_numbers<[2], [1], [1], [2], [0, 0, 0, 1, 1, 2], [0], [0]>} : vector<4x8x8xbf16>, vector<4x8x8xbf16>, vector<4x8x8xf32> -> vector<4x8x8xf32>
    "tpu.trace_stop"() : () -> ()
    %124 = vector.shape_cast %123 : vector<4x8x8xf32> to vector<32x8xf32>
    %c0_35 = arith.constant 0 : index
    %c24 = arith.constant 24 : index
    %125 = vector.load %arg15[%c0_35, %c24] : memref<32x32xf32, #tpu.memory_space<vmem>>, vector<32x8xf32>
    tpu.vector_store %arg15[%c0_35, %c24], %124 {strides = array<i32>} : memref<32x32xf32, #tpu.memory_space<vmem>>, vector<32x8xf32>,
    %c0_36 = arith.constant 0 : index
    %c0_37 = arith.constant 0 : index
    %126 = vector.load %arg15[%c0_36, %c0_37] : memref<32x32xf32, #tpu.memory_space<vmem>>, vector<32x32xf32>
    %127 = arith.truncf %126 : vector<32x32xf32> to vector<32x32xbf16>
    %c0_38 = arith.constant 0 : index
    %c0_39 = arith.constant 0 : index
    %128 = vector.load %arg6[%c0_38, %c0_39] : memref<32x32xbf16, #tpu.memory_space<vmem>>, vector<32x32xbf16>
    %cst_40 = arith.constant dense<0.000000e+00> : vector<32x32xf32>
    %129 = tpu.matmul %127, %128, %cst_40 {dimension_numbers = #tpu.dot_dimension_numbers<[1], [0], [0], [1], [0, 0, 1, 1], [], []>} : vector<32x32xbf16>, vector<32x32xbf16>, vector<32x32xf32> -> vector<32x32xf32>
    %c0_41 = arith.constant 0 : index
    %c0_42 = arith.constant 0 : index
    %130 = vector.load %arg7[%c0_41, %c0_42] : memref<1x32xf32, #tpu.memory_space<vmem>>, vector<1x32xf32>
    %131 = vector.broadcast %130 : vector<1x32xf32> to vector<32x32xf32>
    %132 = arith.addf %129, %131 : vector<32x32xf32>
    %133 = arith.addf %1, %132 : vector<32x32xf32>
    %c0_43 = arith.constant 0 : index
    %c0_44 = arith.constant 0 : index
    %134 = vector.load %arg8[%c0_43, %c0_44] : memref<1x32xf32, #tpu.memory_space<vmem>>, vector<1x32xf32>
    %c0_45 = arith.constant 0 : index
    %c0_46 = arith.constant 0 : index
    %135 = vector.load %arg9[%c0_45, %c0_46] : memref<1x32xf32, #tpu.memory_space<vmem>>, vector<1x32xf32>
    %cst_47 = arith.constant dense<0.000000e+00> : vector<32xf32>
    %136 = vector.multi_reduction <add>, %133, %cst_47 [1] : vector<32x32xf32> to vector<32xf32>
    %137 = vector.shape_cast %136 : vector<32xf32> to vector<32x1xf32>
    %cst_48 = arith.constant 3.200000e+01 : f32
    %138 = vector.broadcast %cst_48 : f32 to vector<32x1xf32>
    %139 = arith.divf %137, %138 : vector<32x1xf32>
    %140 = vector.broadcast %139 : vector<32x1xf32> to vector<32x32xf32>
    %141 = arith.subf %133, %140 : vector<32x32xf32>
    %142 = arith.mulf %141, %141 : vector<32x32xf32>
    %cst_49 = arith.constant dense<0.000000e+00> : vector<32xf32>
    %143 = vector.multi_reduction <add>, %142, %cst_49 [1] : vector<32x32xf32> to vector<32xf32>
    %144 = vector.shape_cast %143 : vector<32xf32> to vector<32x1xf32>
    %cst_50 = arith.constant 3.200000e+01 : f32
    %145 = vector.broadcast %cst_50 : f32 to vector<32x1xf32>
    %146 = arith.divf %144, %145 : vector<32x1xf32>
    %cst_51 = arith.constant 9.99999974E-6 : f32
    %147 = vector.broadcast %cst_51 : f32 to vector<32x1xf32>
    %148 = arith.addf %146, %147 : vector<32x1xf32>
    %149 = math.rsqrt %148 : vector<32x1xf32>
    %150 = vector.broadcast %149 : vector<32x1xf32> to vector<32x32xf32>
    %151 = arith.mulf %141, %150 : vector<32x32xf32>
    %152 = vector.broadcast %134 : vector<1x32xf32> to vector<32x32xf32>
    %153 = arith.mulf %151, %152 : vector<32x32xf32>
    %154 = vector.broadcast %135 : vector<1x32xf32> to vector<32x32xf32>
    %155 = arith.addf %153, %154 : vector<32x32xf32>
    %156 = arith.truncf %155 : vector<32x32xf32> to vector<32x32xbf16>
    %c0_52 = arith.constant 0 : index
    %c0_53 = arith.constant 0 : index
    %157 = vector.load %arg10[%c0_52, %c0_53] : memref<32x128xbf16, #tpu.memory_space<vmem>>, vector<32x128xbf16>
    %cst_54 = arith.constant dense<0.000000e+00> : vector<32x128xf32>
    %158 = tpu.matmul %156, %157, %cst_54 {dimension_numbers = #tpu.dot_dimension_numbers<[1], [0], [0], [1], [0, 0, 1, 1], [], []>} : vector<32x32xbf16>, vector<32x128xbf16>, vector<32x128xf32> -> vector<32x128xf32>
    %c0_55 = arith.constant 0 : index
    %c0_56 = arith.constant 0 : index
    %159 = vector.load %arg11[%c0_55, %c0_56] : memref<1x128xf32, #tpu.memory_space<vmem>>, vector<1x128xf32>
    %160 = vector.broadcast %159 : vector<1x128xf32> to vector<32x128xf32>
    %161 = arith.addf %158, %160 : vector<32x128xf32>
    %cst_57 = arith.constant 5.000000e-01 : f32
    %162 = vector.broadcast %cst_57 : f32 to vector<32x128xf32>
    %163 = arith.mulf %162, %161 : vector<32x128xf32>
    %cst_58 = arith.constant 0.707106769 : f32
    %164 = vector.broadcast %cst_58 : f32 to vector<32x128xf32>
    %165 = arith.mulf %161, %164 : vector<32x128xf32>
    %166 = math.absf %165 : vector<32x128xf32>
    %cst_59 = arith.constant 0.327591091 : f32
    %167 = vector.broadcast %cst_59 : f32 to vector<32x128xf32>
    %168 = arith.mulf %167, %166 : vector<32x128xf32>
    %cst_60 = arith.constant 1.000000e+00 : f32
    %169 = vector.broadcast %cst_60 : f32 to vector<32x128xf32>
    %170 = arith.addf %169, %168 : vector<32x128xf32>
    %171 = tpu.reciprocal %170 {approx = true} : vector<32x128xf32> -> vector<32x128xf32>
    %cst_61 = arith.constant 1.06140542 : f32
    %172 = vector.broadcast %cst_61 : f32 to vector<32x128xf32>
    %173 = arith.mulf %172, %171 : vector<32x128xf32>
    %cst_62 = arith.constant -1.45315206 : f32
    %174 = vector.broadcast %cst_62 : f32 to vector<32x128xf32>
    %175 = arith.addf %173, %174 : vector<32x128xf32>
    %176 = arith.mulf %175, %171 : vector<32x128xf32>
    %cst_63 = arith.constant 1.42141378 : f32
    %177 = vector.broadcast %cst_63 : f32 to vector<32x128xf32>
    %178 = arith.addf %176, %177 : vector<32x128xf32>
    %179 = arith.mulf %178, %171 : vector<32x128xf32>
    %cst_64 = arith.constant -0.284496725 : f32
    %180 = vector.broadcast %cst_64 : f32 to vector<32x128xf32>
    %181 = arith.addf %179, %180 : vector<32x128xf32>
    %182 = arith.mulf %181, %171 : vector<32x128xf32>
    %cst_65 = arith.constant 0.254829586 : f32
    %183 = vector.broadcast %cst_65 : f32 to vector<32x128xf32>
    %184 = arith.addf %182, %183 : vector<32x128xf32>
    %185 = arith.mulf %184, %171 : vector<32x128xf32>
    %cst_66 = arith.constant 0.000000e+00 : f32
    %186 = vector.broadcast %cst_66 : f32 to vector<32x128xf32>
    %187 = arith.subf %186, %166 : vector<32x128xf32>
    %188 = arith.mulf %187, %166 : vector<32x128xf32>
    %189 = math.exp %188 : vector<32x128xf32>
    %190 = arith.mulf %185, %189 : vector<32x128xf32>
    %cst_67 = arith.constant 1.000000e+00 : f32
    %191 = vector.broadcast %cst_67 : f32 to vector<32x128xf32>
    %192 = arith.subf %191, %190 : vector<32x128xf32>
    %cst_68 = arith.constant 0.000000e+00 : f32
    %193 = vector.broadcast %cst_68 : f32 to vector<32x128xf32>
    %194 = arith.cmpf oge, %165, %193 : vector<32x128xf32>
    %cst_69 = arith.constant 0.000000e+00 : f32
    %195 = vector.broadcast %cst_69 : f32 to vector<32x128xf32>
    %196 = arith.subf %195, %192 : vector<32x128xf32>
    %197 = arith.select %194, %192, %196 : vector<32x128xi1>, vector<32x128xf32>
    %cst_70 = arith.constant 1.000000e+00 : f32
    %198 = vector.broadcast %cst_70 : f32 to vector<32x128xf32>
    %199 = arith.addf %198, %197 : vector<32x128xf32>
    %200 = arith.mulf %163, %199 : vector<32x128xf32>
    %201 = arith.truncf %200 : vector<32x128xf32> to vector<32x128xbf16>
    %c0_71 = arith.constant 0 : index
    %c0_72 = arith.constant 0 : index
    %202 = vector.load %arg12[%c0_71, %c0_72] : memref<128x32xbf16, #tpu.memory_space<vmem>>, vector<128x32xbf16>
    %cst_73 = arith.constant dense<0.000000e+00> : vector<32x32xf32>
    %203 = tpu.matmul %201, %202, %cst_73 {dimension_numbers = #tpu.dot_dimension_numbers<[1], [0], [0], [1], [0, 0, 1, 1], [], []>} : vector<32x128xbf16>, vector<128x32xbf16>, vector<32x32xf32> -> vector<32x32xf32>
    %c0_74 = arith.constant 0 : index
    %c0_75 = arith.constant 0 : index
    %204 = vector.load %arg13[%c0_74, %c0_75] : memref<1x32xf32, #tpu.memory_space<vmem>>, vector<1x32xf32>
    %205 = vector.broadcast %204 : vector<1x32xf32> to vector<32x32xf32>
    %206 = arith.addf %203, %205 : vector<32x32xf32>
    %207 = arith.addf %133, %206 : vector<32x32xf32>
    %208 = vector.shape_cast %207 : vector<32x32xf32> to vector<4x8x32xf32>
    %c0_76 = arith.constant 0 : index
    %c0_77 = arith.constant 0 : index
    %c0_78 = arith.constant 0 : index
    %209 = vector.load %arg14[%c0_76, %c0_77, %c0_78] : memref<4x8x32xf32, #tpu.memory_space<vmem>>, vector<4x8x32xf32>
    tpu.vector_store %arg14[%c0_76, %c0_77, %c0_78], %208 {strides = array<i32>} : memref<4x8x32xf32, #tpu.memory_space<vmem>>, vector<4x8x32xf32>,
    return
  }
  func.func @transform_0(%arg0: i32) -> (i32, i32, i32) {
    %c0_i32 = arith.constant 0 : i32
    %c0_i32_0 = arith.constant 0 : i32
    %c0_i32_1 = arith.constant 0 : i32
    return %arg0, %c0_i32, %c0_i32_0 : i32, i32, i32
  }
  func.func @transform_1(%arg0: i32) -> (i32, i32) {
    %c0_i32 = arith.constant 0 : i32
    %c0_i32_0 = arith.constant 0 : i32
    %c0_i32_1 = arith.constant 0 : i32
    return %c0_i32, %c0_i32_0 : i32, i32
  }
  func.func @transform_2(%arg0: i32) -> (i32, i32) {
    %c0_i32 = arith.constant 0 : i32
    %c0_i32_0 = arith.constant 0 : i32
    %c0_i32_1 = arith.constant 0 : i32
    return %c0_i32, %c0_i32_0 : i32, i32
  }
  func.func @transform_3(%arg0: i32) -> (i32, i32) {
    %c0_i32 = arith.constant 0 : i32
    %c0_i32_0 = arith.constant 0 : i32
    %c0_i32_1 = arith.constant 0 : i32
    return %c0_i32, %c0_i32_0 : i32, i32
  }
  func.func @transform_4(%arg0: i32) -> (i32, i32) {
    %c0_i32 = arith.constant 0 : i32
    %c0_i32_0 = arith.constant 0 : i32
    %c0_i32_1 = arith.constant 0 : i32
    return %c0_i32, %c0_i32_0 : i32, i32
  }
  func.func @transform_5(%arg0: i32) -> (i32, i32) {
    %c0_i32 = arith.constant 0 : i32
    %c0_i32_0 = arith.constant 0 : i32
    %c0_i32_1 = arith.constant 0 : i32
    return %c0_i32, %c0_i32_0 : i32, i32
  }
  func.func @transform_6(%arg0: i32) -> (i32, i32) {
    %c0_i32 = arith.constant 0 : i32
    %c0_i32_0 = arith.constant 0 : i32
    %c0_i32_1 = arith.constant 0 : i32
    return %c0_i32, %c0_i32_0 : i32, i32
  }
  func.func @transform_7(%arg0: i32) -> (i32, i32) {
    %c0_i32 = arith.constant 0 : i32
    %c0_i32_0 = arith.constant 0 : i32
    %c0_i32_1 = arith.constant 0 : i32
    return %c0_i32, %c0_i32_0 : i32, i32
  }
  func.func @transform_8(%arg0: i32) -> (i32, i32) {
    %c0_i32 = arith.constant 0 : i32
    %c0_i32_0 = arith.constant 0 : i32
    %c0_i32_1 = arith.constant 0 : i32
    return %c0_i32, %c0_i32_0 : i32, i32
  }
  func.func @transform_9(%arg0: i32) -> (i32, i32) {
    %c0_i32 = arith.constant 0 : i32
    %c0_i32_0 = arith.constant 0 : i32
    %c0_i32_1 = arith.constant 0 : i32
    return %c0_i32, %c0_i32_0 : i32, i32
  }
  func.func @transform_10(%arg0: i32) -> (i32, i32) {
    %c0_i32 = arith.constant 0 : i32
    %c0_i32_0 = arith.constant 0 : i32
    %c0_i32_1 = arith.constant 0 : i32
    return %c0_i32, %c0_i32_0 : i32, i32
  }
  func.func @transform_11(%arg0: i32) -> (i32, i32) {
    %c0_i32 = arith.constant 0 : i32
    %c0_i32_0 = arith.constant 0 : i32
    %c0_i32_1 = arith.constant 0 : i32
    return %c0_i32, %c0_i32_0 : i32, i32
  }
  func.func @transform_12(%arg0: i32) -> (i32, i32) {
    %c0_i32 = arith.constant 0 : i32
    %c0_i32_0 = arith.constant 0 : i32
    %c0_i32_1 = arith.constant 0 : i32
    return %c0_i32, %c0_i32_0 : i32, i32
  }
  func.func @transform_13(%arg0: i32) -> (i32, i32, i32) {
    %c0_i32 = arith.constant 0 : i32
    %c0_i32_0 = arith.constant 0 : i32
    %c0_i32_1 = arith.constant 0 : i32
    return %arg0, %c0_i32, %c0_i32_0 : i32, i32, i32
  }
}

module attributes {stable_mosaic.version = 11 : i64} {
  func.func @_self_attention_block_kernel(%arg0: i32, %arg1: memref<4x8x32xf32, #tpu.memory_space<vmem>>, %arg2: memref<1x32xf32, #tpu.memory_space<vmem>>, %arg3: memref<1x32xf32, #tpu.memory_space<vmem>>, %arg4: memref<32x96xbf16, #tpu.memory_space<vmem>>, %arg5: memref<1x96xf32, #tpu.memory_space<vmem>>, %arg6: memref<32x32xbf16, #tpu.memory_space<vmem>>, %arg7: memref<1x32xf32, #tpu.memory_space<vmem>>, %arg8: memref<1x32xf32, #tpu.memory_space<vmem>>, %arg9: memref<1x32xf32, #tpu.memory_space<vmem>>, %arg10: memref<32x128xbf16, #tpu.memory_space<vmem>>, %arg11: memref<1x128xf32, #tpu.memory_space<vmem>>, %arg12: memref<128x32xbf16, #tpu.memory_space<vmem>>, %arg13: memref<1x32xf32, #tpu.memory_space<vmem>>, %arg14: memref<4x8x32xf32, #tpu.memory_space<vmem>>, %arg15: memref<32x32xf32, #tpu.memory_space<vmem>>) attributes {dimension_semantics = [#tpu.dimension_semantics<parallel>], iteration_bounds = array<i64: 2>, scalar_prefetch = 0 : i64, scratch_operands = 1 : i64, tpu.core_type = #tpu.core_type<tc>, window_params = [{transform_indices = @transform_0, window_bounds = array<i64: 4, 8, 32>}, {pipeline_mode = #tpu.pipeline_mode<synchronous>, transform_indices = @transform_1, window_bounds = array<i64: 1, 32>}, {pipeline_mode = #tpu.pipeline_mode<synchronous>, transform_indices = @transform_2, window_bounds = array<i64: 1, 32>}, {pipeline_mode = #tpu.pipeline_mode<synchronous>, transform_indices = @transform_3, window_bounds = array<i64: 32, 96>}, {pipeline_mode = #tpu.pipeline_mode<synchronous>, transform_indices = @transform_4, window_bounds = array<i64: 1, 96>}, {pipeline_mode = #tpu.pipeline_mode<synchronous>, transform_indices = @transform_5, window_bounds = array<i64: 32, 32>}, {pipeline_mode = #tpu.pipeline_mode<synchronous>, transform_indices = @transform_6, window_bounds = array<i64: 1, 32>}, {pipeline_mode = #tpu.pipeline_mode<synchronous>, transform_indices = @transform_7, window_bounds = array<i64: 1, 32>}, {pipeline_mode = #tpu.pipeline_mode<synchronous>, transform_indices = @transform_8, window_bounds = array<i64: 1, 32>}, {pipeline_mode = #tpu.pipeline_mode<synchronous>, transform_indices = @transform_9, window_bounds = array<i64: 32, 128>}, {pipeline_mode = #tpu.pipeline_mode<synchronous>, transform_indices = @transform_10, window_bounds = array<i64: 1, 128>}, {pipeline_mode = #tpu.pipeline_mode<synchronous>, transform_indices = @transform_11, window_bounds = array<i64: 128, 32>}, {pipeline_mode = #tpu.pipeline_mode<synchronous>, transform_indices = @transform_12, window_bounds = array<i64: 1, 32>}, {transform_indices = @transform_13, window_bounds = array<i64: 4, 8, 32>}]} {
    %c0 = arith.constant 0 : index
    %c0_0 = arith.constant 0 : index
    %c0_1 = arith.constant 0 : index
    %0 = vector.load %arg1[%c0, %c0_0, %c0_1] : memref<4x8x32xf32, #tpu.memory_space<vmem>>, vector<4x8x32xf32>
    %1 = vector.shape_cast %0 : vector<4x8x32xf32> to vector<32x32xf32>
    %c0_2 = arith.constant 0 : index
    %c0_3 = arith.constant 0 : index
    %2 = vector.load %arg2[%c0_2, %c0_3] : memref<1x32xf32, #tpu.memory_space<vmem>>, vector<1x32xf32>
    %c0_4 = arith.constant 0 : index
    %c0_5 = arith.constant 0 : index
    %3 = vector.load %arg3[%c0_4, %c0_5] : memref<1x32xf32, #tpu.memory_space<vmem>>, vector<1x32xf32>
    %cst = arith.constant dense<0.000000e+00> : vector<32xf32>
    %4 = vector.multi_reduction <add>, %1, %cst [1] : vector<32x32xf32> to vector<32xf32>
    %5 = vector.shape_cast %4 : vector<32xf32> to vector<32x1xf32>
    %cst_6 = arith.constant 3.200000e+01 : f32
    %6 = vector.broadcast %cst_6 : f32 to vector<32x1xf32>
    %7 = arith.divf %5, %6 : vector<32x1xf32>
    %8 = vector.broadcast %7 : vector<32x1xf32> to vector<32x32xf32>
    %9 = arith.subf %1, %8 : vector<32x32xf32>
    %10 = arith.mulf %9, %9 : vector<32x32xf32>
    %cst_7 = arith.constant dense<0.000000e+00> : vector<32xf32>
    %11 = vector.multi_reduction <add>, %10, %cst_7 [1] : vector<32x32xf32> to vector<32xf32>
    %12 = vector.shape_cast %11 : vector<32xf32> to vector<32x1xf32>
    %cst_8 = arith.constant 3.200000e+01 : f32
    %13 = vector.broadcast %cst_8 : f32 to vector<32x1xf32>
    %14 = arith.divf %12, %13 : vector<32x1xf32>
    %cst_9 = arith.constant 9.99999974E-6 : f32
    %15 = vector.broadcast %cst_9 : f32 to vector<32x1xf32>
    %16 = arith.addf %14, %15 : vector<32x1xf32>
    %17 = math.rsqrt %16 : vector<32x1xf32>
    %18 = vector.broadcast %17 : vector<32x1xf32> to vector<32x32xf32>
    %19 = arith.mulf %9, %18 : vector<32x32xf32>
    %20 = vector.broadcast %2 : vector<1x32xf32> to vector<32x32xf32>
    %21 = arith.mulf %19, %20 : vector<32x32xf32>
    %22 = vector.broadcast %3 : vector<1x32xf32> to vector<32x32xf32>
    %23 = arith.addf %21, %22 : vector<32x32xf32>
    %24 = arith.truncf %23 : vector<32x32xf32> to vector<32x32xbf16>
    %c0_10 = arith.constant 0 : index
    %c0_11 = arith.constant 0 : index
    %25 = vector.load %arg4[%c0_10, %c0_11] : memref<32x96xbf16, #tpu.memory_space<vmem>>, vector<32x96xbf16>
    %cst_12 = arith.constant dense<0.000000e+00> : vector<32x96xf32>
    %26 = tpu.matmul %24, %25, %cst_12 {dimension_numbers = #tpu.dot_dimension_numbers<[1], [0], [0], [1], [0, 0, 1, 1], [], []>} : vector<32x32xbf16>, vector<32x96xbf16>, vector<32x96xf32> -> vector<32x96xf32>
    %c0_13 = arith.constant 0 : index
    %c0_14 = arith.constant 0 : index
    %27 = vector.load %arg5[%c0_13, %c0_14] : memref<1x96xf32, #tpu.memory_space<vmem>>, vector<1x96xf32>
    %28 = vector.broadcast %27 : vector<1x96xf32> to vector<32x96xf32>
    %29 = arith.addf %26, %28 : vector<32x96xf32>
    %30 = vector.extract_strided_slice %29 {offsets = [0, 0], sizes = [32, 8], strides = [1, 1]} : vector<32x96xf32> to vector<32x8xf32>
    %31 = arith.truncf %30 : vector<32x8xf32> to vector<32x8xbf16>
    %32 = vector.shape_cast %31 : vector<32x8xbf16> to vector<4x8x8xbf16>
    %33 = vector.extract_strided_slice %29 {offsets = [0, 32], sizes = [32, 8], strides = [1, 1]} : vector<32x96xf32> to vector<32x8xf32>
    %34 = arith.truncf %33 : vector<32x8xf32> to vector<32x8xbf16>
    %35 = vector.shape_cast %34 : vector<32x8xbf16> to vector<4x8x8xbf16>
    %36 = vector.extract_strided_slice %29 {offsets = [0, 64], sizes = [32, 8], strides = [1, 1]} : vector<32x96xf32> to vector<32x8xf32>
    %37 = arith.truncf %36 : vector<32x8xf32> to vector<32x8xbf16>
    %38 = vector.shape_cast %37 : vector<32x8xbf16> to vector<4x8x8xbf16>
    "tpu.trace_start"() <{level = 10 : i32, message = "bqd,bkd->bqk"}> : () -> ()
    %cst_15 = arith.constant dense<0.000000e+00> : vector<4x8x8xf32>
    %39 = tpu.matmul %32, %35, %cst_15 {dimension_numbers = #tpu.dot_dimension_numbers<[2], [2], [1], [1], [0, 0, 0, 1, 1, 1], [0], [0]>} : vector<4x8x8xbf16>, vector<4x8x8xbf16>, vector<4x8x8xf32> -> vector<4x8x8xf32>
    "tpu.trace_stop"() : () -> ()
    %cst_16 = arith.constant dense<0xFF800000> : vector<4x8xf32>
    %40 = vector.multi_reduction <maximumf>, %39, %cst_16 [2] : vector<4x8x8xf32> to vector<4x8xf32>
    %41 = vector.shape_cast %40 : vector<4x8xf32> to vector<4x8x1xf32>
    %42 = vector.broadcast %41 : vector<4x8x1xf32> to vector<4x8x8xf32>
    %43 = arith.subf %39, %42 : vector<4x8x8xf32>
    %44 = math.exp %43 : vector<4x8x8xf32>
    %cst_17 = arith.constant dense<0.000000e+00> : vector<4x8xf32>
    %45 = vector.multi_reduction <add>, %44, %cst_17 [2] : vector<4x8x8xf32> to vector<4x8xf32>
    %46 = vector.shape_cast %45 : vector<4x8xf32> to vector<4x8x1xf32>
    %47 = tpu.reciprocal %46 {approx = true} : vector<4x8x1xf32> -> vector<4x8x1xf32>
    %48 = vector.broadcast %47 : vector<4x8x1xf32> to vector<4x8x8xf32>
    %49 = arith.mulf %44, %48 : vector<4x8x8xf32>
    %50 = arith.truncf %49 : vector<4x8x8xf32> to vector<4x8x8xbf16>
    "tpu.trace_start"() <{level = 10 : i32, message = "bqk,bkd->bqd"}> : () -> ()
    %cst_18 = arith.constant dense<0.000000e+00> : vector<4x8x8xf32>
    %51 = tpu.matmul %50, %38, %cst_18 {dimension_numbers = #tpu.dot_dimension_numbers<[2], [1], [1], [2], [0, 0, 0, 1, 1, 2], [0], [0]>} : vector<4x8x8xbf16>, vector<4x8x8xbf16>, vector<4x8x8xf32> -> vector<4x8x8xf32>
    "tpu.trace_stop"() : () -> ()
    %52 = vector.shape_cast %51 : vector<4x8x8xf32> to vector<32x8xf32>
    %c0_19 = arith.constant 0 : index
    %c0_20 = arith.constant 0 : index
    %53 = vector.load %arg15[%c0_19, %c0_20] : memref<32x32xf32, #tpu.memory_space<vmem>>, vector<32x8xf32>
    tpu.vector_store %arg15[%c0_19, %c0_20], %52 {strides = array<i32>} : memref<32x32xf32, #tpu.memory_space<vmem>>, vector<32x8xf32>,
    %54 = vector.extract_strided_slice %29 {offsets = [0, 8], sizes = [32, 8], strides = [1, 1]} : vector<32x96xf32> to vector<32x8xf32>
    %55 = arith.truncf %54 : vector<32x8xf32> to vector<32x8xbf16>
    %56 = vector.shape_cast %55 : vector<32x8xbf16> to vector<4x8x8xbf16>
    %57 = vector.extract_strided_slice %29 {offsets = [0, 40], sizes = [32, 8], strides = [1, 1]} : vector<32x96xf32> to vector<32x8xf32>
    %58 = arith.truncf %57 : vector<32x8xf32> to vector<32x8xbf16>
    %59 = vector.shape_cast %58 : vector<32x8xbf16> to vector<4x8x8xbf16>
    %60 = vector.extract_strided_slice %29 {offsets = [0, 72], sizes = [32, 8], strides = [1, 1]} : vector<32x96xf32> to vector<32x8xf32>
    %61 = arith.truncf %60 : vector<32x8xf32> to vector<32x8xbf16>
    %62 = vector.shape_cast %61 : vector<32x8xbf16> to vector<4x8x8xbf16>
    "tpu.trace_start"() <{level = 10 : i32, message = "bqd,bkd->bqk"}> : () -> ()
    %cst_21 = arith.constant dense<0.000000e+00> : vector<4x8x8xf32>
    %63 = tpu.matmul %56, %59, %cst_21 {dimension_numbers = #tpu.dot_dimension_numbers<[2], [2], [1], [1], [0, 0, 0, 1, 1, 1], [0], [0]>} : vector<4x8x8xbf16>, vector<4x8x8xbf16>, vector<4x8x8xf32> -> vector<4x8x8xf32>
    "tpu.trace_stop"() : () -> ()
    %cst_22 = arith.constant dense<0xFF800000> : vector<4x8xf32>
    %64 = vector.multi_reduction <maximumf>, %63, %cst_22 [2] : vector<4x8x8xf32> to vector<4x8xf32>
    %65 = vector.shape_cast %64 : vector<4x8xf32> to vector<4x8x1xf32>
    %66 = vector.broadcast %65 : vector<4x8x1xf32> to vector<4x8x8xf32>
    %67 = arith.subf %63, %66 : vector<4x8x8xf32>
    %68 = math.exp %67 : vector<4x8x8xf32>
    %cst_23 = arith.constant dense<0.000000e+00> : vector<4x8xf32>
    %69 = vector.multi_reduction <add>, %68, %cst_23 [2] : vector<4x8x8xf32> to vector<4x8xf32>
    %70 = vector.shape_cast %69 : vector<4x8xf32> to vector<4x8x1xf32>
    %71 = tpu.reciprocal %70 {approx = true} : vector<4x8x1xf32> -> vector<4x8x1xf32>
    %72 = vector.broadcast %71 : vector<4x8x1xf32> to vector<4x8x8xf32>
    %73 = arith.mulf %68, %72 : vector<4x8x8xf32>
    %74 = arith.truncf %73 : vector<4x8x8xf32> to vector<4x8x8xbf16>
    "tpu.trace_start"() <{level = 10 : i32, message = "bqk,bkd->bqd"}> : () -> ()
    %cst_24 = arith.constant dense<0.000000e+00> : vector<4x8x8xf32>
    %75 = tpu.matmul %74, %62, %cst_24 {dimension_numbers = #tpu.dot_dimension_numbers<[2], [1], [1], [2], [0, 0, 0, 1, 1, 2], [0], [0]>} : vector<4x8x8xbf16>, vector<4x8x8xbf16>, vector<4x8x8xf32> -> vector<4x8x8xf32>
    "tpu.trace_stop"() : () -> ()
    %76 = vector.shape_cast %75 : vector<4x8x8xf32> to vector<32x8xf32>
    %c0_25 = arith.constant 0 : index
    %c8 = arith.constant 8 : index
    %77 = vector.load %arg15[%c0_25, %c8] : memref<32x32xf32, #tpu.memory_space<vmem>>, vector<32x8xf32>
    tpu.vector_store %arg15[%c0_25, %c8], %76 {strides = array<i32>} : memref<32x32xf32, #tpu.memory_space<vmem>>, vector<32x8xf32>,
    %78 = vector.extract_strided_slice %29 {offsets = [0, 16], sizes = [32, 8], strides = [1, 1]} : vector<32x96xf32> to vector<32x8xf32>
    %79 = arith.truncf %78 : vector<32x8xf32> to vector<32x8xbf16>
    %80 = vector.shape_cast %79 : vector<32x8xbf16> to vector<4x8x8xbf16>
    %81 = vector.extract_strided_slice %29 {offsets = [0, 48], sizes = [32, 8], strides = [1, 1]} : vector<32x96xf32> to vector<32x8xf32>
    %82 = arith.truncf %81 : vector<32x8xf32> to vector<32x8xbf16>
    %83 = vector.shape_cast %82 : vector<32x8xbf16> to vector<4x8x8xbf16>
    %84 = vector.extract_strided_slice %29 {offsets = [0, 80], sizes = [32, 8], strides = [1, 1]} : vector<32x96xf32> to vector<32x8xf32>
    %85 = arith.truncf %84 : vector<32x8xf32> to vector<32x8xbf16>
    %86 = vector.shape_cast %85 : vector<32x8xbf16> to vector<4x8x8xbf16>
    "tpu.trace_start"() <{level = 10 : i32, message = "bqd,bkd->bqk"}> : () -> ()
    %cst_26 = arith.constant dense<0.000000e+00> : vector<4x8x8xf32>
    %87 = tpu.matmul %80, %83, %cst_26 {dimension_numbers = #tpu.dot_dimension_numbers<[2], [2], [1], [1], [0, 0, 0, 1, 1, 1], [0], [0]>} : vector<4x8x8xbf16>, vector<4x8x8xbf16>, vector<4x8x8xf32> -> vector<4x8x8xf32>
    "tpu.trace_stop"() : () -> ()
    %cst_27 = arith.constant dense<0xFF800000> : vector<4x8xf32>
    %88 = vector.multi_reduction <maximumf>, %87, %cst_27 [2] : vector<4x8x8xf32> to vector<4x8xf32>
    %89 = vector.shape_cast %88 : vector<4x8xf32> to vector<4x8x1xf32>
    %90 = vector.broadcast %89 : vector<4x8x1xf32> to vector<4x8x8xf32>
    %91 = arith.subf %87, %90 : vector<4x8x8xf32>
    %92 = math.exp %91 : vector<4x8x8xf32>
    %cst_28 = arith.constant dense<0.000000e+00> : vector<4x8xf32>
    %93 = vector.multi_reduction <add>, %92, %cst_28 [2] : vector<4x8x8xf32> to vector<4x8xf32>
    %94 = vector.shape_cast %93 : vector<4x8xf32> to vector<4x8x1xf32>
    %95 = tpu.reciprocal %94 {approx = true} : vector<4x8x1xf32> -> vector<4x8x1xf32>
    %96 = vector.broadcast %95 : vector<4x8x1xf32> to vector<4x8x8xf32>
    %97 = arith.mulf %92, %96 : vector<4x8x8xf32>
    %98 = arith.truncf %97 : vector<4x8x8xf32> to vector<4x8x8xbf16>
    "tpu.trace_start"() <{level = 10 : i32, message = "bqk,bkd->bqd"}> : () -> ()
    %cst_29 = arith.constant dense<0.000000e+00> : vector<4x8x8xf32>
    %99 = tpu.matmul %98, %86, %cst_29 {dimension_numbers = #tpu.dot_dimension_numbers<[2], [1], [1], [2], [0, 0, 0, 1, 1, 2], [0], [0]>} : vector<4x8x8xbf16>, vector<4x8x8xbf16>, vector<4x8x8xf32> -> vector<4x8x8xf32>
    "tpu.trace_stop"() : () -> ()
    %100 = vector.shape_cast %99 : vector<4x8x8xf32> to vector<32x8xf32>
    %c0_30 = arith.constant 0 : index
    %c16 = arith.constant 16 : index
    %101 = vector.load %arg15[%c0_30, %c16] : memref<32x32xf32, #tpu.memory_space<vmem>>, vector<32x8xf32>
    tpu.vector_store %arg15[%c0_30, %c16], %100 {strides = array<i32>} : memref<32x32xf32, #tpu.memory_space<vmem>>, vector<32x8xf32>,
    %102 = vector.extract_strided_slice %29 {offsets = [0, 24], sizes = [32, 8], strides = [1, 1]} : vector<32x96xf32> to vector<32x8xf32>
    %103 = arith.truncf %102 : vector<32x8xf32> to vector<32x8xbf16>
    %104 = vector.shape_cast %103 : vector<32x8xbf16> to vector<4x8x8xbf16>
    %105 = vector.extract_strided_slice %29 {offsets = [0, 56], sizes = [32, 8], strides = [1, 1]} : vector<32x96xf32> to vector<32x8xf32>
    %106 = arith.truncf %105 : vector<32x8xf32> to vector<32x8xbf16>
    %107 = vector.shape_cast %106 : vector<32x8xbf16> to vector<4x8x8xbf16>
    %108 = vector.extract_strided_slice %29 {offsets = [0, 88], sizes = [32, 8], strides = [1, 1]} : vector<32x96xf32> to vector<32x8xf32>
    %109 = arith.truncf %108 : vector<32x8xf32> to vector<32x8xbf16>
    %110 = vector.shape_cast %109 : vector<32x8xbf16> to vector<4x8x8xbf16>
    "tpu.trace_start"() <{level = 10 : i32, message = "bqd,bkd->bqk"}> : () -> ()
    %cst_31 = arith.constant dense<0.000000e+00> : vector<4x8x8xf32>
    %111 = tpu.matmul %104, %107, %cst_31 {dimension_numbers = #tpu.dot_dimension_numbers<[2], [2], [1], [1], [0, 0, 0, 1, 1, 1], [0], [0]>} : vector<4x8x8xbf16>, vector<4x8x8xbf16>, vector<4x8x8xf32> -> vector<4x8x8xf32>
    "tpu.trace_stop"() : () -> ()
    %cst_32 = arith.constant dense<0xFF800000> : vector<4x8xf32>
    %112 = vector.multi_reduction <maximumf>, %111, %cst_32 [2] : vector<4x8x8xf32> to vector<4x8xf32>
    %113 = vector.shape_cast %112 : vector<4x8xf32> to vector<4x8x1xf32>
    %114 = vector.broadcast %113 : vector<4x8x1xf32> to vector<4x8x8xf32>
    %115 = arith.subf %111, %114 : vector<4x8x8xf32>
    %116 = math.exp %115 : vector<4x8x8xf32>
    %cst_33 = arith.constant dense<0.000000e+00> : vector<4x8xf32>
    %117 = vector.multi_reduction <add>, %116, %cst_33 [2] : vector<4x8x8xf32> to vector<4x8xf32>
    %118 = vector.shape_cast %117 : vector<4x8xf32> to vector<4x8x1xf32>
    %119 = tpu.reciprocal %118 {approx = true} : vector<4x8x1xf32> -> vector<4x8x1xf32>
    %120 = vector.broadcast %119 : vector<4x8x1xf32> to vector<4x8x8xf32>
    %121 = arith.mulf %116, %120 : vector<4x8x8xf32>
    %122 = arith.truncf %121 : vector<4x8x8xf32> to vector<4x8x8xbf16>
    "tpu.trace_start"() <{level = 10 : i32, message = "bqk,bkd->bqd"}> : () -> ()
    %cst_34 = arith.constant dense<0.000000e+00> : vector<4x8x8xf32>
    %123 = tpu.matmul %122, %110, %cst_34 {dimension_numbers = #tpu.dot_dimension_numbers<[2], [1], [1], [2], [0, 0, 0, 1, 1, 2], [0], [0]>} : vector<4x8x8xbf16>, vector<4x8x8xbf16>, vector<4x8x8xf32> -> vector<4x8x8xf32>
    "tpu.trace_stop"() : () -> ()
    %124 = vector.shape_cast %123 : vector<4x8x8xf32> to vector<32x8xf32>
    %c0_35 = arith.constant 0 : index
    %c24 = arith.constant 24 : index
    %125 = vector.load %arg15[%c0_35, %c24] : memref<32x32xf32, #tpu.memory_space<vmem>>, vector<32x8xf32>
    tpu.vector_store %arg15[%c0_35, %c24], %124 {strides = array<i32>} : memref<32x32xf32, #tpu.memory_space<vmem>>, vector<32x8xf32>,
    %c0_36 = arith.constant 0 : index
    %c0_37 = arith.constant 0 : index
    %126 = vector.load %arg15[%c0_36, %c0_37] : memref<32x32xf32, #tpu.memory_space<vmem>>, vector<32x32xf32>
    %127 = arith.truncf %126 : vector<32x32xf32> to vector<32x32xbf16>
    %c0_38 = arith.constant 0 : index
    %c0_39 = arith.constant 0 : index
    %128 = vector.load %arg6[%c0_38, %c0_39] : memref<32x32xbf16, #tpu.memory_space<vmem>>, vector<32x32xbf16>
    %cst_40 = arith.constant dense<0.000000e+00> : vector<32x32xf32>
    %129 = tpu.matmul %127, %128, %cst_40 {dimension_numbers = #tpu.dot_dimension_numbers<[1], [0], [0], [1], [0, 0, 1, 1], [], []>} : vector<32x32xbf16>, vector<32x32xbf16>, vector<32x32xf32> -> vector<32x32xf32>
    %c0_41 = arith.constant 0 : index
    %c0_42 = arith.constant 0 : index
    %130 = vector.load %arg7[%c0_41, %c0_42] : memref<1x32xf32, #tpu.memory_space<vmem>>, vector<1x32xf32>
    %131 = vector.broadcast %130 : vector<1x32xf32> to vector<32x32xf32>
    %132 = arith.addf %129, %131 : vector<32x32xf32>
    %133 = arith.addf %1, %132 : vector<32x32xf32>
    %c0_43 = arith.constant 0 : index
    %c0_44 = arith.constant 0 : index
    %134 = vector.load %arg8[%c0_43, %c0_44] : memref<1x32xf32, #tpu.memory_space<vmem>>, vector<1x32xf32>
    %c0_45 = arith.constant 0 : index
    %c0_46 = arith.constant 0 : index
    %135 = vector.load %arg9[%c0_45, %c0_46] : memref<1x32xf32, #tpu.memory_space<vmem>>, vector<1x32xf32>
    %cst_47 = arith.constant dense<0.000000e+00> : vector<32xf32>
    %136 = vector.multi_reduction <add>, %133, %cst_47 [1] : vector<32x32xf32> to vector<32xf32>
    %137 = vector.shape_cast %136 : vector<32xf32> to vector<32x1xf32>
    %cst_48 = arith.constant 3.200000e+01 : f32
    %138 = vector.broadcast %cst_48 : f32 to vector<32x1xf32>
    %139 = arith.divf %137, %138 : vector<32x1xf32>
    %140 = vector.broadcast %139 : vector<32x1xf32> to vector<32x32xf32>
    %141 = arith.subf %133, %140 : vector<32x32xf32>
    %142 = arith.mulf %141, %141 : vector<32x32xf32>
    %cst_49 = arith.constant dense<0.000000e+00> : vector<32xf32>
    %143 = vector.multi_reduction <add>, %142, %cst_49 [1] : vector<32x32xf32> to vector<32xf32>
    %144 = vector.shape_cast %143 : vector<32xf32> to vector<32x1xf32>
    %cst_50 = arith.constant 3.200000e+01 : f32
    %145 = vector.broadcast %cst_50 : f32 to vector<32x1xf32>
    %146 = arith.divf %144, %145 : vector<32x1xf32>
    %cst_51 = arith.constant 9.99999974E-6 : f32
    %147 = vector.broadcast %cst_51 : f32 to vector<32x1xf32>
    %148 = arith.addf %146, %147 : vector<32x1xf32>
    %149 = math.rsqrt %148 : vector<32x1xf32>
    %150 = vector.broadcast %149 : vector<32x1xf32> to vector<32x32xf32>
    %151 = arith.mulf %141, %150 : vector<32x32xf32>
    %152 = vector.broadcast %134 : vector<1x32xf32> to vector<32x32xf32>
    %153 = arith.mulf %151, %152 : vector<32x32xf32>
    %154 = vector.broadcast %135 : vector<1x32xf32> to vector<32x32xf32>
    %155 = arith.addf %153, %154 : vector<32x32xf32>
    %156 = arith.truncf %155 : vector<32x32xf32> to vector<32x32xbf16>
    %c0_52 = arith.constant 0 : index
    %c0_53 = arith.constant 0 : index
    %157 = vector.load %arg10[%c0_52, %c0_53] : memref<32x128xbf16, #tpu.memory_space<vmem>>, vector<32x128xbf16>
    %cst_54 = arith.constant dense<0.000000e+00> : vector<32x128xf32>
    %158 = tpu.matmul %156, %157, %cst_54 {dimension_numbers = #tpu.dot_dimension_numbers<[1], [0], [0], [1], [0, 0, 1, 1], [], []>} : vector<32x32xbf16>, vector<32x128xbf16>, vector<32x128xf32> -> vector<32x128xf32>
    %c0_55 = arith.constant 0 : index
    %c0_56 = arith.constant 0 : index
    %159 = vector.load %arg11[%c0_55, %c0_56] : memref<1x128xf32, #tpu.memory_space<vmem>>, vector<1x128xf32>
    %160 = vector.broadcast %159 : vector<1x128xf32> to vector<32x128xf32>
    %161 = arith.addf %158, %160 : vector<32x128xf32>
    %cst_57 = arith.constant 5.000000e-01 : f32
    %162 = vector.broadcast %cst_57 : f32 to vector<32x128xf32>
    %163 = arith.mulf %162, %161 : vector<32x128xf32>
    %cst_58 = arith.constant 0.707106769 : f32
    %164 = vector.broadcast %cst_58 : f32 to vector<32x128xf32>
    %165 = arith.mulf %161, %164 : vector<32x128xf32>
    %166 = math.absf %165 : vector<32x128xf32>
    %cst_59 = arith.constant 0.327591091 : f32
    %167 = vector.broadcast %cst_59 : f32 to vector<32x128xf32>
    %168 = arith.mulf %167, %166 : vector<32x128xf32>
    %cst_60 = arith.constant 1.000000e+00 : f32
    %169 = vector.broadcast %cst_60 : f32 to vector<32x128xf32>
    %170 = arith.addf %169, %168 : vector<32x128xf32>
    %171 = tpu.reciprocal %170 {approx = true} : vector<32x128xf32> -> vector<32x128xf32>
    %cst_61 = arith.constant 1.06140542 : f32
    %172 = vector.broadcast %cst_61 : f32 to vector<32x128xf32>
    %173 = arith.mulf %172, %171 : vector<32x128xf32>
    %cst_62 = arith.constant -1.45315206 : f32
    %174 = vector.broadcast %cst_62 : f32 to vector<32x128xf32>
    %175 = arith.addf %173, %174 : vector<32x128xf32>
    %176 = arith.mulf %175, %171 : vector<32x128xf32>
    %cst_63 = arith.constant 1.42141378 : f32
    %177 = vector.broadcast %cst_63 : f32 to vector<32x128xf32>
    %178 = arith.addf %176, %177 : vector<32x128xf32>
    %179 = arith.mulf %178, %171 : vector<32x128xf32>
    %cst_64 = arith.constant -0.284496725 : f32
    %180 = vector.broadcast %cst_64 : f32 to vector<32x128xf32>
    %181 = arith.addf %179, %180 : vector<32x128xf32>
    %182 = arith.mulf %181, %171 : vector<32x128xf32>
    %cst_65 = arith.constant 0.254829586 : f32
    %183 = vector.broadcast %cst_65 : f32 to vector<32x128xf32>
    %184 = arith.addf %182, %183 : vector<32x128xf32>
    %185 = arith.mulf %184, %171 : vector<32x128xf32>
    %cst_66 = arith.constant 0.000000e+00 : f32
    %186 = vector.broadcast %cst_66 : f32 to vector<32x128xf32>
    %187 = arith.subf %186, %166 : vector<32x128xf32>
    %188 = arith.mulf %187, %166 : vector<32x128xf32>
    %189 = math.exp %188 : vector<32x128xf32>
    %190 = arith.mulf %185, %189 : vector<32x128xf32>
    %cst_67 = arith.constant 1.000000e+00 : f32
    %191 = vector.broadcast %cst_67 : f32 to vector<32x128xf32>
    %192 = arith.subf %191, %190 : vector<32x128xf32>
    %cst_68 = arith.constant 0.000000e+00 : f32
    %193 = vector.broadcast %cst_68 : f32 to vector<32x128xf32>
    %194 = arith.cmpf oge, %165, %193 : vector<32x128xf32>
    %cst_69 = arith.constant 0.000000e+00 : f32
    %195 = vector.broadcast %cst_69 : f32 to vector<32x128xf32>
    %196 = arith.subf %195, %192 : vector<32x128xf32>
    %197 = arith.select %194, %192, %196 : vector<32x128xi1>, vector<32x128xf32>
    %cst_70 = arith.constant 1.000000e+00 : f32
    %198 = vector.broadcast %cst_70 : f32 to vector<32x128xf32>
    %199 = arith.addf %198, %197 : vector<32x128xf32>
    %200 = arith.mulf %163, %199 : vector<32x128xf32>
    %201 = arith.truncf %200 : vector<32x128xf32> to vector<32x128xbf16>
    %c0_71 = arith.constant 0 : index
    %c0_72 = arith.constant 0 : index
    %202 = vector.load %arg12[%c0_71, %c0_72] : memref<128x32xbf16, #tpu.memory_space<vmem>>, vector<128x32xbf16>
    %cst_73 = arith.constant dense<0.000000e+00> : vector<32x32xf32>
    %203 = tpu.matmul %201, %202, %cst_73 {dimension_numbers = #tpu.dot_dimension_numbers<[1], [0], [0], [1], [0, 0, 1, 1], [], []>} : vector<32x128xbf16>, vector<128x32xbf16>, vector<32x32xf32> -> vector<32x32xf32>
    %c0_74 = arith.constant 0 : index
    %c0_75 = arith.constant 0 : index
    %204 = vector.load %arg13[%c0_74, %c0_75] : memref<1x32xf32, #tpu.memory_space<vmem>>, vector<1x32xf32>
    %205 = vector.broadcast %204 : vector<1x32xf32> to vector<32x32xf32>
    %206 = arith.addf %203, %205 : vector<32x32xf32>
    %207 = arith.addf %133, %206 : vector<32x32xf32>
    %208 = vector.shape_cast %207 : vector<32x32xf32> to vector<4x8x32xf32>
    %c0_76 = arith.constant 0 : index
    %c0_77 = arith.constant 0 : index
    %c0_78 = arith.constant 0 : index
    %209 = vector.load %arg14[%c0_76, %c0_77, %c0_78] : memref<4x8x32xf32, #tpu.memory_space<vmem>>, vector<4x8x32xf32>
    tpu.vector_store %arg14[%c0_76, %c0_77, %c0_78], %208 {strides = array<i32>} : memref<4x8x32xf32, #tpu.memory_space<vmem>>, vector<4x8x32xf32>,
    return
  }
  func.func @transform_0(%arg0: i32) -> (i32, i32, i32) {
    %c0_i32 = arith.constant 0 : i32
    %c0_i32_0 = arith.constant 0 : i32
    %c0_i32_1 = arith.constant 0 : i32
    return %arg0, %c0_i32, %c0_i32_0 : i32, i32, i32
  }
  func.func @transform_1(%arg0: i32) -> (i32, i32) {
    %c0_i32 = arith.constant 0 : i32
    %c0_i32_0 = arith.constant 0 : i32
    %c0_i32_1 = arith.constant 0 : i32
    return %c0_i32, %c0_i32_0 : i32, i32
  }
  func.func @transform_2(%arg0: i32) -> (i32, i32) {
    %c0_i32 = arith.constant 0 : i32
    %c0_i32_0 = arith.constant 0 : i32
    %c0_i32_1 = arith.constant 0 : i32
    return %c0_i32, %c0_i32_0 : i32, i32
  }
  func.func @transform_3(%arg0: i32) -> (i32, i32) {
    %c0_i32 = arith.constant 0 : i32
    %c0_i32_0 = arith.constant 0 : i32
    %c0_i32_1 = arith.constant 0 : i32
    return %c0_i32, %c0_i32_0 : i32, i32
  }
  func.func @transform_4(%arg0: i32) -> (i32, i32) {
    %c0_i32 = arith.constant 0 : i32
    %c0_i32_0 = arith.constant 0 : i32
    %c0_i32_1 = arith.constant 0 : i32
    return %c0_i32, %c0_i32_0 : i32, i32
  }
  func.func @transform_5(%arg0: i32) -> (i32, i32) {
    %c0_i32 = arith.constant 0 : i32
    %c0_i32_0 = arith.constant 0 : i32
    %c0_i32_1 = arith.constant 0 : i32
    return %c0_i32, %c0_i32_0 : i32, i32
  }
  func.func @transform_6(%arg0: i32) -> (i32, i32) {
    %c0_i32 = arith.constant 0 : i32
    %c0_i32_0 = arith.constant 0 : i32
    %c0_i32_1 = arith.constant 0 : i32
    return %c0_i32, %c0_i32_0 : i32, i32
  }
  func.func @transform_7(%arg0: i32) -> (i32, i32) {
    %c0_i32 = arith.constant 0 : i32
    %c0_i32_0 = arith.constant 0 : i32
    %c0_i32_1 = arith.constant 0 : i32
    return %c0_i32, %c0_i32_0 : i32, i32
  }
  func.func @transform_8(%arg0: i32) -> (i32, i32) {
    %c0_i32 = arith.constant 0 : i32
    %c0_i32_0 = arith.constant 0 : i32
    %c0_i32_1 = arith.constant 0 : i32
    return %c0_i32, %c0_i32_0 : i32, i32
  }
  func.func @transform_9(%arg0: i32) -> (i32, i32) {
    %c0_i32 = arith.constant 0 : i32
    %c0_i32_0 = arith.constant 0 : i32
    %c0_i32_1 = arith.constant 0 : i32
    return %c0_i32, %c0_i32_0 : i32, i32
  }
  func.func @transform_10(%arg0: i32) -> (i32, i32) {
    %c0_i32 = arith.constant 0 : i32
    %c0_i32_0 = arith.constant 0 : i32
    %c0_i32_1 = arith.constant 0 : i32
    return %c0_i32, %c0_i32_0 : i32, i32
  }
  func.func @transform_11(%arg0: i32) -> (i32, i32) {
    %c0_i32 = arith.constant 0 : i32
    %c0_i32_0 = arith.constant 0 : i32
    %c0_i32_1 = arith.constant 0 : i32
    return %c0_i32, %c0_i32_0 : i32, i32
  }
  func.func @transform_12(%arg0: i32) -> (i32, i32) {
    %c0_i32 = arith.constant 0 : i32
    %c0_i32_0 = arith.constant 0 : i32
    %c0_i32_1 = arith.constant 0 : i32
    return %c0_i32, %c0_i32_0 : i32, i32
  }
  func.func @transform_13(%arg0: i32) -> (i32, i32, i32) {
    %c0_i32 = arith.constant 0 : i32
    %c0_i32_0 = arith.constant 0 : i32
    %c0_i32_1 = arith.constant 0 : i32
    return %arg0, %c0_i32, %c0_i32_0 : i32, i32, i32
  }
}

</mosaic_0001>

<llo_original>
// kernel: tpu_custom_call.1
$region0: #{tpu_custom_call.1}
  #allocation0 [shape = 'u32[]', space=smem, size = 0x4, offset = 0x4, fixed_abs, tag = 'smem constant byte address 0x4 - core index']
  #allocation1 [shape = 'u32[144,128]{1,0:T(1,128)}', space=vmem, size = 0x12000, scoped, tag = 'internal scratch']
  #allocation2 [shape = 'f32[32,32]{1,0:T(8,128)}', space=vmem, size = 0x4000, scoped, tag = 'scratch operand']
  %s0 = inlined_call_operand.vmem [shape: f32[8,8,32], index: 0, kind: input, shape index: {}]
  %s1 = inlined_call_operand.vmem [shape: f32[1,32], index: 1, kind: input, shape index: {}]
  %s2 = inlined_call_operand.vmem [shape: f32[1,32], index: 2, kind: input, shape index: {}]
  %s3 = inlined_call_operand.vmem [shape: bf16[32,96], index: 3, kind: input, shape index: {}]
  %s4 = inlined_call_operand.hbm [shape: f32[1,96], index: 4, kind: input, shape index: {}]
  %s5 = inlined_call_operand.hbm [shape: bf16[32,32], index: 5, kind: input, shape index: {}]
  %s6 = inlined_call_operand.hbm [shape: f32[1,32], index: 6, kind: input, shape index: {}]
  %s7 = inlined_call_operand.hbm [shape: f32[1,32], index: 7, kind: input, shape index: {}]
  %s8 = inlined_call_operand.hbm [shape: f32[1,32], index: 8, kind: input, shape index: {}]
  %s9 = inlined_call_operand.vmem [shape: bf16[32,128], index: 9, kind: input, shape index: {}]
  %s10 = inlined_call_operand.vmem [shape: f32[1,128], index: 10, kind: input, shape index: {}]
  %s11 = inlined_call_operand.vmem [shape: bf16[128,32], index: 11, kind: input, shape index: {}]
  %s12 = inlined_call_operand.vmem [shape: f32[1,32], index: 12, kind: input, shape index: {}]
  %s13 = inlined_call_operand.hbm [shape: f32[8,8,32], index: 13, kind: output, shape index: {}]
  %s14 = sld [smem:[#allocation0]]
  $region105: #{tpu_custom_call.1} parent=0
    _
  %s16 = ssub.s32 1, %s14
  %s17 = scalar_select 0, %s16, %s14
  $region1: #{tpu_custom_call.1} parent=0
    #allocation3 [shape = 'u8[512]{0}', space=vmem, size = 0x400, scoped, tag = 'input window, operand 4, single buffered']
    #allocation4 [shape = 's32[2]{0}', space=sflag, size = 0x8, scoped, tag = 'scoped memory for tpu_custom_call.1']
    #allocation5 [shape = 's32[2]{0}', space=sflag, size = 0x8, scoped, tag = 'scoped memory for tpu_custom_call.1']
    #allocation6 [shape = 'u8[8192]{0}', space=vmem, size = 0x2000, scoped, tag = 'input window, operand 5, single buffered']
    #allocation7 [shape = 's32[1]{0}', space=sflag, size = 0x4, scoped, tag = 'scoped memory for tpu_custom_call.1']
    #allocation8 [shape = 'u8[512]{0}', space=vmem, size = 0x400, scoped, tag = 'input window, operand 6, single buffered']
    #allocation9 [shape = 'u8[512]{0}', space=vmem, size = 0x400, scoped, tag = 'input window, operand 7, single buffered']
    #allocation10 [shape = 's32[1]{0}', space=sflag, size = 0x4, scoped, tag = 'scoped memory for tpu_custom_call.1']
    #allocation11 [shape = 'u8[512]{0}', space=vmem, size = 0x400, scoped, tag = 'input window, operand 8, single buffered']
    #allocation12 [shape = 'u8[32768]{0}', space=vmem, size = 0x8000, scoped, tag = 'output window, operand 0']
    %18 = vsyncpa [#allocation4], 0
    %19 = vsyncpa [#allocation7], 0
    %20 = vsyncpa [#allocation10], 0
    %21 = vsyncpa [#allocation5], 0
    %s22 = scalar_lea.sflag [#allocation5], 1
    %23 = vsyncpa %s22, 0
    loop: start=0, step=1, limit=4
    $region2: #{tpu_custom_call.1} parent=1 // loop_pre_header
      _
    $region3: #{tpu_custom_call.1} parent=1 // loop_header
      %s25 = sphi 0, %s29
      %p26 = scmp.ge.s32.totalorder %s25, 4
      %s35 = sphi 0, %s37
      %s38 = sphi 0, %s35
      %s39 = sphi 0, %s38
      %s55 = sphi 0, %s39
      %s59 = sphi 0, %s59
      %s61 = sphi 0, %s59
      %s62 = sphi 0, %s61
      %s76 = sphi 0, %s62
      %s80 = sphi 0, %s80
      %s82 = sphi 0, %s80
      %s83 = sphi 0, %s82
      %s97 = sphi 0, %s83
      %s101 = sphi 0, %s101
      %s103 = sphi 0, %s101
      %s104 = sphi 0, %s103
      %s118 = sphi 0, %s104
      %s122 = sphi 0, %s122
      %s124 = sphi 0, %s122
      %s125 = sphi 0, %s124
      %s139 = sphi 0, %s125
      %s143 = sphi 0, %s143
      %s145 = sphi 0, %s143
      %s146 = sphi 0, %s145
      %s160 = sphi 0, %s146
      %s164 = sphi 0, %s164
      %s166 = sphi 0, %s164
      %s167 = sphi 0, %s166
      %s181 = sphi 0, %s167
      %s185 = sphi 0, %s185
      %s187 = sphi 0, %s185
      %s188 = sphi 0, %s187
      %s202 = sphi 0, %s188
      %s206 = sphi 0, %s206
      %s208 = sphi 0, %s206
      %s209 = sphi 0, %s208
      %s223 = sphi 0, %s209
      %s227 = sphi 0, %s227
      %s229 = sphi 0, %s227
      %s230 = sphi 0, %s229
      %s244 = sphi 0, %s230
      %s248 = sphi 0, %s248
      %s250 = sphi 0, %s248
      %s251 = sphi 0, %s250
      %s265 = sphi 0, %s251
      %s269 = sphi 0, %s269
      %s271 = sphi 0, %s269
      %s272 = sphi 0, %s271
      %s286 = sphi 0, %s272
      %s290 = sphi 0, %s290
      %s292 = sphi 0, %s290
      %s293 = sphi 0, %s292
      %s307 = sphi 0, %s293
      %s313 = sphi 0, %s315
      %s316 = sphi 0, %s313
      %s317 = sphi 0, %s316
      %s333 = sphi 0, %s317
    $region4: #{tpu_custom_call.1} parent=1 // loop_header_branch
      %28 = sbr.rel (%p26) target = $region8
    $region5: #{tpu_custom_call.1} parent=1 // loop_body
      %s30 = ssub.s32 %s25, 1
      %s31 = ssub.s32 %s25, 2
      %s32 = sadd.s32 %s25, 1
      %s33 = ssub.s32 %s25, %s32
      %p34 = scmp.eq.s32.totalorder %s33, 0
      %s36 = sadd.s32 %s35, 1
      %s37 = scalar_select %p34, %s35, %s36
      %p40 = pneg %p34
      %p41 = scmp.eq.s32.totalorder %s25, 1
      %p42 = por %p40, %p41
      %p43 = scmp.ne.s32.totalorder %s35, %s38
      %p44 = scmp.eq.s32.totalorder %s25, 0
      %p45 = por %p43, %p44
      %p46 = scmp.ne.s32.totalorder %s35, %s38
      %p47 = scmp.eq.s32.totalorder %s30, 1
      %p48 = por %p46, %p47
      %p49 = scmp.ne.s32.totalorder %s38, %s39
      %p50 = scmp.eq.s32.totalorder %s30, 0
      %p51 = por %p49, %p50
      %p52 = scmp.ne.s32.totalorder %s38, %s39
      %p53 = scmp.eq.s32.totalorder %s31, 1
      %p54 = por %p52, %p53
      %p56 = scmp.ne.s32.totalorder %s39, %s55
      %p57 = scmp.eq.s32.totalorder %s31, 0
      %p58 = por %p56, %p57
      %s60 = sadd.s32 %s59, 1
      %p63 = scmp.eq.s32.totalorder %s25, 1
      %p64 = scmp.ne.s32.totalorder %s59, %s61
      %p65 = scmp.eq.s32.totalorder %s25, 0
      %p66 = por %p64, %p65
      %p67 = scmp.ne.s32.totalorder %s59, %s61
      %p68 = scmp.eq.s32.totalorder %s30, 1
      %p69 = por %p67, %p68
      %p70 = scmp.ne.s32.totalorder %s61, %s62
      %p71 = scmp.eq.s32.totalorder %s30, 0
      %p72 = por %p70, %p71
      %p73 = scmp.ne.s32.totalorder %s61, %s62
      %p74 = scmp.eq.s32.totalorder %s31, 1
      %p75 = por %p73, %p74
      %p77 = scmp.ne.s32.totalorder %s62, %s76
      %p78 = scmp.eq.s32.totalorder %s31, 0
      %p79 = por %p77, %p78
      %s81 = sadd.s32 %s80, 1
      %p84 = scmp.eq.s32.totalorder %s25, 1
      %p85 = scmp.ne.s32.totalorder %s80, %s82
      %p86 = scmp.eq.s32.totalorder %s25, 0
      %p87 = por %p85, %p86
      %p88 = scmp.ne.s32.totalorder %s80, %s82
      %p89 = scmp.eq.s32.totalorder %s30, 1
      %p90 = por %p88, %p89
      %p91 = scmp.ne.s32.totalorder %s82, %s83
      %p92 = scmp.eq.s32.totalorder %s30, 0
      %p93 = por %p91, %p92
      %p94 = scmp.ne.s32.totalorder %s82, %s83
      %p95 = scmp.eq.s32.totalorder %s31, 1
      %p96 = por %p94, %p95
      %p98 = scmp.ne.s32.totalorder %s83, %s97
      %p99 = scmp.eq.s32.totalorder %s31, 0
      %p100 = por %p98, %p99
      %s102 = sadd.s32 %s101, 1
      %p105 = scmp.eq.s32.totalorder %s25, 1
      %p106 = scmp.ne.s32.totalorder %s101, %s103
      %p107 = scmp.eq.s32.totalorder %s25, 0
      %p108 = por %p106, %p107
      %p109 = scmp.ne.s32.totalorder %s101, %s103
      %p110 = scmp.eq.s32.totalorder %s30, 1
      %p111 = por %p109, %p110
      %p112 = scmp.ne.s32.totalorder %s103, %s104
      %p113 = scmp.eq.s32.totalorder %s30, 0
      %p114 = por %p112, %p113
      %p115 = scmp.ne.s32.totalorder %s103, %s104
      %p116 = scmp.eq.s32.totalorder %s31, 1
      %p117 = por %p115, %p116
      %p119 = scmp.ne.s32.totalorder %s104, %s118
      %p120 = scmp.eq.s32.totalorder %s31, 0
      %p121 = por %p119, %p120
      %s123 = sadd.s32 %s122, 1
      %p126 = scmp.eq.s32.totalorder %s25, 1
      %p127 = scmp.ne.s32.totalorder %s122, %s124
      %p128 = scmp.eq.s32.totalorder %s25, 0
      %p129 = por %p127, %p128
      %p130 = scmp.ne.s32.totalorder %s122, %s124
      %p131 = scmp.eq.s32.totalorder %s30, 1
      %p132 = por %p130, %p131
      %p133 = scmp.ne.s32.totalorder %s124, %s125
      %p134 = scmp.eq.s32.totalorder %s30, 0
      %p135 = por %p133, %p134
      %p136 = scmp.ne.s32.totalorder %s124, %s125
      %p137 = scmp.eq.s32.totalorder %s31, 1
      %p138 = por %p136, %p137
      %p140 = scmp.ne.s32.totalorder %s125, %s139
      %p141 = scmp.eq.s32.totalorder %s31, 0
      %p142 = por %p140, %p141
      %s144 = sadd.s32 %s143, 1
      %p147 = scmp.eq.s32.totalorder %s25, 1
      %p148 = scmp.ne.s32.totalorder %s143, %s145
      %p149 = scmp.eq.s32.totalorder %s25, 0
      %p150 = por %p148, %p149
      %p151 = scmp.ne.s32.totalorder %s143, %s145
      %p152 = scmp.eq.s32.totalorder %s30, 1
      %p153 = por %p151, %p152
      %p154 = scmp.ne.s32.totalorder %s145, %s146
      %p155 = scmp.eq.s32.totalorder %s30, 0
      %p156 = por %p154, %p155
      %p157 = scmp.ne.s32.totalorder %s145, %s146
      %p158 = scmp.eq.s32.totalorder %s31, 1
      %p159 = por %p157, %p158
      %p161 = scmp.ne.s32.totalorder %s146, %s160
      %p162 = scmp.eq.s32.totalorder %s31, 0
      %p163 = por %p161, %p162
      %s165 = sadd.s32 %s164, 1
      %p168 = scmp.eq.s32.totalorder %s25, 1
      %p169 = scmp.ne.s32.totalorder %s164, %s166
      %p170 = scmp.eq.s32.totalorder %s25, 0
      %p171 = por %p169, %p170
      %p172 = scmp.ne.s32.totalorder %s164, %s166
      %p173 = scmp.eq.s32.totalorder %s30, 1
      %p174 = por %p172, %p173
      %p175 = scmp.ne.s32.totalorder %s166, %s167
      %p176 = scmp.eq.s32.totalorder %s30, 0
      %p177 = por %p175, %p176
      %p178 = scmp.ne.s32.totalorder %s166, %s167
      %p179 = scmp.eq.s32.totalorder %s31, 1
      %p180 = por %p178, %p179
      %p182 = scmp.ne.s32.totalorder %s167, %s181
      %p183 = scmp.eq.s32.totalorder %s31, 0
      %p184 = por %p182, %p183
      %s186 = sadd.s32 %s185, 1
      %p189 = scmp.eq.s32.totalorder %s25, 1
      %p190 = scmp.ne.s32.totalorder %s185, %s187
      %p191 = scmp.eq.s32.totalorder %s25, 0
      %p192 = por %p190, %p191
      %p193 = scmp.ne.s32.totalorder %s185, %s187
      %p194 = scmp.eq.s32.totalorder %s30, 1
      %p195 = por %p193, %p194
      %p196 = scmp.ne.s32.totalorder %s187, %s188
      %p197 = scmp.eq.s32.totalorder %s30, 0
      %p198 = por %p196, %p197
      %p199 = scmp.ne.s32.totalorder %s187, %s188
      %p200 = scmp.eq.s32.totalorder %s31, 1
      %p201 = por %p199, %p200
      %p203 = scmp.ne.s32.totalorder %s188, %s202
      %p204 = scmp.eq.s32.totalorder %s31, 0
      %p205 = por %p203, %p204
      %s207 = sadd.s32 %s206, 1
      %p210 = scmp.eq.s32.totalorder %s25, 1
      %p211 = scmp.ne.s32.totalorder %s206, %s208
      %p212 = scmp.eq.s32.totalorder %s25, 0
      %p213 = por %p211, %p212
      %p214 = scmp.ne.s32.totalorder %s206, %s208
      %p215 = scmp.eq.s32.totalorder %s30, 1
      %p216 = por %p214, %p215
      %p217 = scmp.ne.s32.totalorder %s208, %s209
      %p218 = scmp.eq.s32.totalorder %s30, 0
      %p219 = por %p217, %p218
      %p220 = scmp.ne.s32.totalorder %s208, %s209
      %p221 = scmp.eq.s32.totalorder %s31, 1
      %p222 = por %p220, %p221
      %p224 = scmp.ne.s32.totalorder %s209, %s223
      %p225 = scmp.eq.s32.totalorder %s31, 0
      %p226 = por %p224, %p225
      %s228 = sadd.s32 %s227, 1
      %p231 = scmp.eq.s32.totalorder %s25, 1
      %p232 = scmp.ne.s32.totalorder %s227, %s229
      %p233 = scmp.eq.s32.totalorder %s25, 0
      %p234 = por %p232, %p233
      %p235 = scmp.ne.s32.totalorder %s227, %s229
      %p236 = scmp.eq.s32.totalorder %s30, 1
      %p237 = por %p235, %p236
      %p238 = scmp.ne.s32.totalorder %s229, %s230
      %p239 = scmp.eq.s32.totalorder %s30, 0
      %p240 = por %p238, %p239
      %p241 = scmp.ne.s32.totalorder %s229, %s230
      %p242 = scmp.eq.s32.totalorder %s31, 1
      %p243 = por %p241, %p242
      %p245 = scmp.ne.s32.totalorder %s230, %s244
      %p246 = scmp.eq.s32.totalorder %s31, 0
      %p247 = por %p245, %p246
      %s249 = sadd.s32 %s248, 1
      %p252 = scmp.eq.s32.totalorder %s25, 1
      %p253 = scmp.ne.s32.totalorder %s248, %s250
      %p254 = scmp.eq.s32.totalorder %s25, 0
      %p255 = por %p253, %p254
      %p256 = scmp.ne.s32.totalorder %s248, %s250
      %p257 = scmp.eq.s32.totalorder %s30, 1
      %p258 = por %p256, %p257
      %p259 = scmp.ne.s32.totalorder %s250, %s251
      %p260 = scmp.eq.s32.totalorder %s30, 0
      %p261 = por %p259, %p260
      %p262 = scmp.ne.s32.totalorder %s250, %s251
      %p263 = scmp.eq.s32.totalorder %s31, 1
      %p264 = por %p262, %p263
      %p266 = scmp.ne.s32.totalorder %s251, %s265
      %p267 = scmp.eq.s32.totalorder %s31, 0
      %p268 = por %p266, %p267
      %s270 = sadd.s32 %s269, 1
      %p273 = scmp.eq.s32.totalorder %s25, 1
      %p274 = scmp.ne.s32.totalorder %s269, %s271
      %p275 = scmp.eq.s32.totalorder %s25, 0
      %p276 = por %p274, %p275
      %p277 = scmp.ne.s32.totalorder %s269, %s271
      %p278 = scmp.eq.s32.totalorder %s30, 1
      %p279 = por %p277, %p278
      %p280 = scmp.ne.s32.totalorder %s271, %s272
      %p281 = scmp.eq.s32.totalorder %s30, 0
      %p282 = por %p280, %p281
      %p283 = scmp.ne.s32.totalorder %s271, %s272
      %p284 = scmp.eq.s32.totalorder %s31, 1
      %p285 = por %p283, %p284
      %p287 = scmp.ne.s32.totalorder %s272, %s286
      %p288 = scmp.eq.s32.totalorder %s31, 0
      %p289 = por %p287, %p288
      %s291 = sadd.s32 %s290, 1
      %p294 = scmp.eq.s32.totalorder %s25, 1
      %p295 = scmp.ne.s32.totalorder %s290, %s292
      %p296 = scmp.eq.s32.totalorder %s25, 0
      %p297 = por %p295, %p296
      %p298 = scmp.ne.s32.totalorder %s290, %s292
      %p299 = scmp.eq.s32.totalorder %s30, 1
      %p300 = por %p298, %p299
      %p301 = scmp.ne.s32.totalorder %s292, %s293
      %p302 = scmp.eq.s32.totalorder %s30, 0
      %p303 = por %p301, %p302
      %p304 = scmp.ne.s32.totalorder %s292, %s293
      %p305 = scmp.eq.s32.totalorder %s31, 1
      %p306 = por %p304, %p305
      %p308 = scmp.ne.s32.totalorder %s293, %s307
      %p309 = scmp.eq.s32.totalorder %s31, 0
      %p310 = por %p308, %p309
      %s311 = ssub.s32 %s25, %s32
      %p312 = scmp.eq.s32.totalorder %s311, 0
      %s314 = sadd.s32 %s313, 1
      %s315 = scalar_select %p312, %s313, %s314
      %p318 = pneg %p312
      %p319 = scmp.eq.s32.totalorder %s25, 1
      %p320 = por %p318, %p319
      %p321 = scmp.ne.s32.totalorder %s313, %s316
      %p322 = scmp.eq.s32.totalorder %s25, 0
      %p323 = por %p321, %p322
      %p324 = scmp.ne.s32.totalorder %s313, %s316
      %p325 = scmp.eq.s32.totalorder %s30, 1
      %p326 = por %p324, %p325
      %p327 = scmp.ne.s32.totalorder %s316, %s317
      %p328 = scmp.eq.s32.totalorder %s30, 0
      %p329 = por %p327, %p328
      %p330 = scmp.ne.s32.totalorder %s316, %s317
      %p331 = scmp.eq.s32.totalorder %s31, 1
      %p332 = por %p330, %p331
      %p334 = scmp.ne.s32.totalorder %s317, %s333
      %p335 = scmp.eq.s32.totalorder %s31, 0
      %p336 = por %p334, %p335
      %p337 = scmp.le.s32.totalorder 1, %s25
      %p338 = scmp.lt.s32.totalorder %s25, 3
      %p339 = pnand %p337, %p338
      %p340 = pneg %p339
      // Predicated region
      $region9: #{tpu_custom_call.1} parent=5 // pred_check
        _
      $region10: #{tpu_custom_call.1} parent=5 // pred_check_branch
        %342 = sbr.rel (%p339) target = $region12
      $region11: #{tpu_custom_call.1} parent=5 // pred_region
        %s343 = ssub.s32 %s25, 1
        // Predicated region
        $region13: #{tpu_custom_call.1} parent=11 // pred_check
          %p344 = pneg %p72
        $region14: #{tpu_custom_call.1} parent=11 // pred_check_branch
          %346 = sbr.rel (%p344) target = $region16
        $region15: #{tpu_custom_call.1} parent=11 // pred_region
          _
        $region16: #{tpu_custom_call.1} parent=11 // pred_fallthru
          _
        // Predicated region
        $region17: #{tpu_custom_call.1} parent=11 // pred_check
          %p347 = pneg %p93
        $region18: #{tpu_custom_call.1} parent=11 // pred_check_branch
          %349 = sbr.rel (%p347) target = $region20
        $region19: #{tpu_custom_call.1} parent=11 // pred_region
          _
        $region20: #{tpu_custom_call.1} parent=11 // pred_fallthru
          _
        // Predicated region
        $region21: #{tpu_custom_call.1} parent=11 // pred_check
          %p350 = pneg %p114
        $region22: #{tpu_custom_call.1} parent=11 // pred_check_branch
          %352 = sbr.rel (%p350) target = $region24
        $region23: #{tpu_custom_call.1} parent=11 // pred_region
          _
        $region24: #{tpu_custom_call.1} parent=11 // pred_fallthru
          _
        // Predicated region
        $region25: #{tpu_custom_call.1} parent=11 // pred_check
          %p353 = pneg %p135
        $region26: #{tpu_custom_call.1} parent=11 // pred_check_branch
          %355 = sbr.rel (%p353) target = $region28
        $region27: #{tpu_custom_call.1} parent=11 // pred_region
          %s357 = ssub.s32 16, 16
          %358 = vsyncadd [#allocation4], %s357
          %s360 = sshll.u32 [#allocation3], 4
          %s361 = int_to_ptr.vmem [resolvable:$true] %s360
          %363 = dma.hbm_to_vmem [thread:$0]  %s4, 16, %s361, [#allocation4]
        $region28: #{tpu_custom_call.1} parent=11 // pred_fallthru
          _
        // Predicated region
        $region29: #{tpu_custom_call.1} parent=11 // pred_check
          %p364 = pneg %p156
        $region30: #{tpu_custom_call.1} parent=11 // pred_check_branch
          %366 = sbr.rel (%p364) target = $region32
        $region31: #{tpu_custom_call.1} parent=11 // pred_region
          %s368 = ssub.s32 256, 256
          %369 = vsyncadd [#allocation7], %s368
          %s370 = sshll.u32 [#allocation6], 4
          %s371 = int_to_ptr.vmem [resolvable:$true] %s370
          %376 = dma.hbm_to_vmem [thread:$0]  %s5, 256, %s371, [#allocation7], 64, 64, 4
        $region32: #{tpu_custom_call.1} parent=11 // pred_fallthru
          _
        // Predicated region
        $region33: #{tpu_custom_call.1} parent=11 // pred_check
          %p377 = pneg %p177
        $region34: #{tpu_custom_call.1} parent=11 // pred_check_branch
          %379 = sbr.rel (%p377) target = $region36
        $region35: #{tpu_custom_call.1} parent=11 // pred_region
          %s381 = ssub.s32 16, 16
          %382 = vsyncadd [#allocation7], %s381
          %s384 = sshll.u32 [#allocation8], 4
          %s385 = int_to_ptr.vmem [resolvable:$true] %s384
          %387 = dma.hbm_to_vmem [thread:$0]  %s6, 16, %s385, [#allocation7]
        $region36: #{tpu_custom_call.1} parent=11 // pred_fallthru
          _
        // Predicated region
        $region37: #{tpu_custom_call.1} parent=11 // pred_check
          %p388 = pneg %p198
        $region38: #{tpu_custom_call.1} parent=11 // pred_check_branch
          %390 = sbr.rel (%p388) target = $region40
        $region39: #{tpu_custom_call.1} parent=11 // pred_region
          %s392 = ssub.s32 16, 16
          %393 = vsyncadd [#allocation10], %s392
          %s395 = sshll.u32 [#allocation9], 4
          %s396 = int_to_ptr.vmem [resolvable:$true] %s395
          %398 = dma.hbm_to_vmem [thread:$0]  %s7, 16, %s396, [#allocation10]
        $region40: #{tpu_custom_call.1} parent=11 // pred_fallthru
          _
        // Predicated region
        $region41: #{tpu_custom_call.1} parent=11 // pred_check
          %p399 = pneg %p219
        $region42: #{tpu_custom_call.1} parent=11 // pred_check_branch
          %401 = sbr.rel (%p399) target = $region44
        $region43: #{tpu_custom_call.1} parent=11 // pred_region
          %s403 = ssub.s32 16, 16
          %404 = vsyncadd [#allocation10], %s403
          %s406 = sshll.u32 [#allocation11], 4
          %s407 = int_to_ptr.vmem [resolvable:$true] %s406
          %409 = dma.hbm_to_vmem [thread:$0]  %s8, 16, %s407, [#allocation10]
        $region44: #{tpu_custom_call.1} parent=11 // pred_fallthru
          _
        // Predicated region
        $region45: #{tpu_custom_call.1} parent=11 // pred_check
          %p410 = pneg %p240
        $region46: #{tpu_custom_call.1} parent=11 // pred_check_branch
          %412 = sbr.rel (%p410) target = $region48
        $region47: #{tpu_custom_call.1} parent=11 // pred_region
          _
        $region48: #{tpu_custom_call.1} parent=11 // pred_fallthru
          _
        // Predicated region
        $region49: #{tpu_custom_call.1} parent=11 // pred_check
          %p413 = pneg %p261
        $region50: #{tpu_custom_call.1} parent=11 // pred_check_branch
          %415 = sbr.rel (%p413) target = $region52
        $region51: #{tpu_custom_call.1} parent=11 // pred_region
          _
        $region52: #{tpu_custom_call.1} parent=11 // pred_fallthru
          _
        // Predicated region
        $region53: #{tpu_custom_call.1} parent=11 // pred_check
          %p416 = pneg %p282
        $region54: #{tpu_custom_call.1} parent=11 // pred_check_branch
          %418 = sbr.rel (%p416) target = $region56
        $region55: #{tpu_custom_call.1} parent=11 // pred_region
          _
        $region56: #{tpu_custom_call.1} parent=11 // pred_fallthru
          _
        // Predicated region
        $region57: #{tpu_custom_call.1} parent=11 // pred_check
          %p419 = pneg %p303
        $region58: #{tpu_custom_call.1} parent=11 // pred_check_branch
          %421 = sbr.rel (%p419) target = $region60
        $region59: #{tpu_custom_call.1} parent=11 // pred_region
          _
        $region60: #{tpu_custom_call.1} parent=11 // pred_fallthru
          _
      $region12: #{tpu_custom_call.1} parent=5 // pred_fallthru
        _
      %p422 = scmp.lt.s32.totalorder %s25, 2
      // Predicated region
      $region61: #{tpu_custom_call.1} parent=5 // pred_check
        %p423 = pneg %p422
      $region62: #{tpu_custom_call.1} parent=5 // pred_check_branch
        %425 = sbr.rel (%p423) target = $region64
      $region63: #{tpu_custom_call.1} parent=5 // pred_region
        // Predicated region
        $region65: #{tpu_custom_call.1} parent=63 // pred_check
          %p426 = pneg %p45
        $region66: #{tpu_custom_call.1} parent=63 // pred_check_branch
          %428 = sbr.rel (%p426) target = $region68
        $region67: #{tpu_custom_call.1} parent=63 // pred_region
          %s429 = smul.u32 4, %s25
          %p430 = scmp.lt.s32.totalorder %s429, 7
          %s431 = scalar_select %p430, %s429, 7
          %s432 = smul.addr %s431, 8
          %s433 = scalar_lea.vmem %s0, %s432
          %s434 = smul.u32 4, %s25
        $region68: #{tpu_custom_call.1} parent=63 // pred_fallthru
          _
      $region64: #{tpu_custom_call.1} parent=5 // pred_fallthru
        _
      %p435 = scmp.le.s32.totalorder 1, %s25
      %p436 = scmp.lt.s32.totalorder %s25, 3
      %p437 = pnand %p435, %p436
      %p438 = pneg %p437
      // Predicated region
      $region69: #{tpu_custom_call.1} parent=5 // pred_check
        _
      $region70: #{tpu_custom_call.1} parent=5 // pred_check_branch
        %440 = sbr.rel (%p437) target = $region72
      $region71: #{tpu_custom_call.1} parent=5 // pred_region
        %s441 = ssub.s32 %s25, 1
        // Predicated region
        $region73: #{tpu_custom_call.1} parent=71 // pred_check
          %p442 = pneg %p135
        $region74: #{tpu_custom_call.1} parent=71 // pred_check_branch
          %444 = sbr.rel (%p442) target = $region76
        $region75: #{tpu_custom_call.1} parent=71 // pred_region
          %445 = dma.done [#allocation4], 16
        $region76: #{tpu_custom_call.1} parent=71 // pred_fallthru
          _
        // Predicated region
        $region77: #{tpu_custom_call.1} parent=71 // pred_check
          %p446 = pneg %p156
        $region78: #{tpu_custom_call.1} parent=71 // pred_check_branch
          %448 = sbr.rel (%p446) target = $region80
        $region79: #{tpu_custom_call.1} parent=71 // pred_region
          %449 = dma.done [#allocation7], 256
        $region80: #{tpu_custom_call.1} parent=71 // pred_fallthru
          _
        // Predicated region
        $region81: #{tpu_custom_call.1} parent=71 // pred_check
          %p450 = pneg %p177
        $region82: #{tpu_custom_call.1} parent=71 // pred_check_branch
          %452 = sbr.rel (%p450) target = $region84
        $region83: #{tpu_custom_call.1} parent=71 // pred_region
          %453 = dma.done [#allocation7], 16
        $region84: #{tpu_custom_call.1} parent=71 // pred_fallthru
          _
        // Predicated region
        $region85: #{tpu_custom_call.1} parent=71 // pred_check
          %p454 = pneg %p198
        $region86: #{tpu_custom_call.1} parent=71 // pred_check_branch
          %456 = sbr.rel (%p454) target = $region88
        $region87: #{tpu_custom_call.1} parent=71 // pred_region
          %457 = dma.done [#allocation10], 16
        $region88: #{tpu_custom_call.1} parent=71 // pred_fallthru
          _
        // Predicated region
        $region89: #{tpu_custom_call.1} parent=71 // pred_check
          %p458 = pneg %p219
        $region90: #{tpu_custom_call.1} parent=71 // pred_check_branch
          %460 = sbr.rel (%p458) target = $region92
        $region91: #{tpu_custom_call.1} parent=71 // pred_region
          %461 = dma.done [#allocation10], 16
        $region92: #{tpu_custom_call.1} parent=71 // pred_fallthru
          _
        %s462 = smul.u32 4, %s30
        %p463 = scmp.lt.s32.totalorder %s462, 7
        %s464 = scalar_select %p463, %s462, 7
        %s465 = smul.addr %s464, 8
        %s466 = scalar_lea.vmem %s0, %s465
        %p467 = pneg %p51
        %p468 = pneg %p48
        %p469 = pneg %p72
        %p470 = pneg %p69
        %p471 = pneg %p93
        %p472 = pneg %p90
        %p473 = pneg %p114
        %p474 = pneg %p111
        %p475 = pneg %p135
        %p476 = pneg %p132
        %p477 = pneg %p156
        %p478 = pneg %p153
        %p479 = pneg %p177
        %p480 = pneg %p174
        %p481 = pneg %p198
        %p482 = pneg %p195
        %p483 = pneg %p219
        %p484 = pneg %p216
        %p485 = pneg %p240
        %p486 = pneg %p237
        %p487 = pneg %p261
        %p488 = pneg %p258
        %p489 = pneg %p282
        %p490 = pneg %p279
        %p491 = pneg %p303
        %p492 = pneg %p300
        %p493 = pneg %p329
        %p494 = pneg %p326
        %s495 = sand.u32 %s316, 1
        %s496 = scalar_lea.sflag [#allocation5], %s495
        %s497 = sand.u32 %s316, 1
        %s498 = smul.addr %s497, 32
        %s499 = scalar_lea.vmem [#allocation12], %s498
        %s500 = smul.u32 4, %s30
        %p501 = scmp.lt.s32.totalorder %s500, 7
        %s502 = scalar_select %p501, %s500, 7
        %s503 = smul.addr %s502, 8
        %s504 = scalar_lea.vmem %s0, %s503
        %s505 = smul.u32 4, %s30
        %s506 = smul.u32 4, %s30
        %v508 = vld [vmem:[%s504] sm:$0xff]
        %v509 = vld [vmem:[%s504 + $0x8] sm:$0xff]
        %v510 = vld [vmem:[%s504 + $0x10] sm:$0xff]
        %v511 = vld [vmem:[%s504 + $0x18] sm:$0xff]
        %v512 = vld [vmem:[%s1] sm:$0x1]
        %v513 = vld [vmem:[%s2] sm:$0x1]
        %vm514 = vcmask 261120
        %v515 = vsel %vm514, %v508, 0.0
        %516 = vadd.xlane.f32.xlu0 %v515
        %v517 = vpop.xlane.xlu0 %516
        %v518 = vsel %vm514, %v509, 0.0
        %519 = vadd.xlane.f32.xlu0 %v518
        %v520 = vpop.xlane.xlu0 %519
        %v521 = vsel %vm514, %v510, 0.0
        %522 = vadd.xlane.f32.xlu0 %v521
        %v523 = vpop.xlane.xlu0 %522
        %v524 = vsel %vm514, %v511, 0.0
        %525 = vadd.xlane.f32.xlu0 %v524
        %v526 = vpop.xlane.xlu0 %525
        %v527 = vrcp.pop 32.0
        %v528 = vmul.f32 %v517, %v527
        %v529 = vmul.f32 %v520, %v527
        %v530 = vmul.f32 %v523, %v527
        %v531 = vmul.f32 %v526, %v527
        %v532 = vsub.f32 %v508, %v528
        %v533 = vsub.f32 %v509, %v529
        %v534 = vsub.f32 %v510, %v530
        %v535 = vsub.f32 %v511, %v531
        %v536 = vmul.f32 %v532, %v532
        %v537 = vmul.f32 %v533, %v533
        %v538 = vmul.f32 %v534, %v534
        %v539 = vmul.f32 %v535, %v535
        %v540 = vsel %vm514, %v536, 0.0
        %541 = vadd.xlane.f32.xlu0 %v540
        %v542 = vpop.xlane.xlu0 %541
        %v543 = vsel %vm514, %v537, 0.0
        %544 = vadd.xlane.f32.xlu0 %v543
        %v545 = vpop.xlane.xlu0 %544
        %v546 = vsel %vm514, %v538, 0.0
        %547 = vadd.xlane.f32.xlu0 %v546
        %v548 = vpop.xlane.xlu0 %547
        %v549 = vsel %vm514, %v539, 0.0
        %550 = vadd.xlane.f32.xlu0 %v549
        %v551 = vpop.xlane.xlu0 %550
        %v552 = vmul.f32 %v542, %v527
        %v553 = vmul.f32 %v545, %v527
        %v554 = vmul.f32 %v548, %v527
        %v555 = vmul.f32 %v551, %v527
        %v556 = vadd.f32 %v552, 1e-05
        %v557 = vadd.f32 %v553, 1e-05
        %v558 = vadd.f32 %v554, 1e-05
        %v559 = vadd.f32 %v555, 1e-05
        %v560 = vrsqrt.pop %v556
        %v561 = vrsqrt.pop %v557
        %v562 = vrsqrt.pop %v558
        %v563 = vrsqrt.pop %v559
        %v564 = vmul.f32 %v532, %v560
        %v565 = vmul.f32 %v533, %v561
        %v566 = vmul.f32 %v534, %v562
        %v567 = vmul.f32 %v535, %v563
        %v569 = vlaneseq
        %v570 = vshrl.u32 %v569, 7
        %v571 = vsub.s32 0, %v570
        %v572 = vrot.slane %v512, %v571
        %v574 = vmul.f32 %v564, %v572
        %v575 = vmul.f32 %v565, %v572
        %v576 = vmul.f32 %v566, %v572
        %v577 = vmul.f32 %v567, %v572
        %v579 = vlaneseq
        %v580 = vshrl.u32 %v579, 7
        %v581 = vsub.s32 0, %v580
        %v582 = vrot.slane %v513, %v581
        %v584 = vadd.f32 %v574, %v582
        %v585 = vadd.f32 %v575, %v582
        %v586 = vadd.f32 %v576, %v582
        %v587 = vadd.f32 %v577, %v582
        %v588 = vpack.c.bf16 %v585, %v584
        %v589 = vpack.c.bf16 %v587, %v586
        %v590 = vld [vmem:[%s3] sm:$0xf]
        %v591 = vld [vmem:[%s3 + $0x4] sm:$0xf]
        %v592 = vld [vmem:[%s3 + $0x8] sm:$0xf]
        %v593 = vld [vmem:[%s3 + $0xc] sm:$0xf]
        %v594 = vld [vmem:[#allocation3] sm:$0x1]
        %v596 = vlaneseq
        %v597 = vshrl.u32 %v596, 7
        %v598 = vsub.s32 0, %v597
        %v599 = vrot.slane %v594, %v598
        %v605 = vunpack.c.l.b16 %v590
        %v606 = vunpack.c.l.b16 %v591
        %v607 = vunpack.c.l.b16 %v592
        %v608 = vunpack.c.l.b16 %v593
        %v609 = vpack.c.b16 %v606, %v605
        %v610 = vpack.c.b16 %v608, %v607
        %v614 = vsel %vm514, %v588, 0
        %v617 = vsel %vm514, %v589, 0
        %619 = vmatprep.subr.bf16.mxu0 0
        %620 = vmatpush1.bf16.msra.mxu0 %v609
        %621 = vmatprep.subr.bf16.mxu0 0
        %622 = vmatpush1.bf16.msra.mxu0 %v610
        %623 = vmatprep.subr.bf16.mxu0 0
        %624 = vmatpush1.bf16.msra.mxu0 0
        %625 = vmatprep.subr.bf16.mxu0 0
        %626 = vmatpush1.bf16.msra.mxu0 0
        %627 = vmatprep.subr.bf16.mxu0 0
        %628 = vmatpush1.bf16.msra.mxu0 0
        %629 = vmatprep.subr.bf16.mxu0 0
        %630 = vmatpush1.bf16.msra.mxu0 0
        %631 = vmatprep.subr.bf16.mxu0 0
        %632 = vmatpush1.bf16.msra.mxu0 0
        %633 = vmatprep.subr.bf16.mxu0 0
        %634 = vmatpush1.bf16.msra.mxu0 0
        %635 = vmatprep.subr.bf16.mxu0 0
        %636 = vmatpush1.bf16.msra.mxu0 0
        %637 = vmatprep.subr.bf16.mxu0 0
        %638 = vmatpush1.bf16.msra.mxu0 0
        %639 = vmatprep.subr.bf16.mxu0 0
        %640 = vmatpush1.bf16.msra.mxu0 0
        %641 = vmatprep.subr.bf16.mxu0 0
        %642 = vmatpush1.bf16.msra.mxu0 0
        %643 = vmatprep.subr.bf16.mxu0 0
        %644 = vmatpush1.bf16.msra.mxu0 0
        %645 = vmatprep.subr.bf16.mxu0 0
        %646 = vmatpush1.bf16.msra.mxu0 0
        %647 = vmatprep.subr.bf16.mxu0 0
        %648 = vmatpush1.bf16.msra.mxu0 0
        %649 = vmatprep.subr.bf16.mxu0 0
        %650 = vmatpush1.bf16.msra.mxu0 0
        %651 = vmatprep.mubr.bf16.mxu0 0
        %652 = vmatmul.mubr.bf16.gmra.mrb[0].mxu0 %v614
        %v653 = vpop.f32.mrb[0].mxu0
        %v654 = vadd.f32 %v599, %v653
        %v655 = vpop.f32.mrb[0].mxu0
        %v656 = vpop.f32.mrb[0].mxu0
        %v657 = vadd.f32 %v599, %v656
        %v658 = vpop.f32.mrb[0].mxu0
        %659 = vmatprep.mubr.bf16.mxu0 0
        %660 = vmatmul.mubr.bf16.gmra.mrb[0].mxu0 %v617
        %v661 = vpop.f32.mrb[0].mxu0
        %v662 = vadd.f32 %v599, %v661
        %v663 = vpop.f32.mrb[0].mxu0
        %v664 = vpop.f32.mrb[0].mxu0
        %v665 = vadd.f32 %v599, %v664
        %v666 = vpop.f32.mrb[0].mxu0
        %667 = vdwg.mxu0
        %v668 = vpack.c.bf16 %v657, %v654
        %v669 = vpack.c.bf16 %v665, %v662
        %v672 = vunpack.c.l.b16 %v668
        %v673 = vunpack.c.h.b16 %v668
        %v674 = vunpack.c.l.b16 %v669
        %v675 = vunpack.c.h.b16 %v669
        %v676 = vpack.c.b16 %v672, %v672
        %v677 = vpack.c.b16 %v673, %v673
        %v678 = vpack.c.b16 %v674, %v674
        %v679 = vpack.c.b16 %v675, %v675
        %680 = vrot.lane.b32.xlu0 %v676, 96
        %v681 = vpop.permute.xlu0 %680
        %vm682 = vcmask 64512
        %v684 = vsel %vm682, %v676, 0
        %v687 = vsel %vm682, %v681, 0
        %689 = vmatprep.subr.bf16.mxu0 0
        %690 = vmatpush1.bf16.xpose.msra.mxu0 %v687
        %691 = vmatprep.subr.bf16.mxu0 0
        %692 = vmatpush1.bf16.xpose.msra.mxu0 0
        %693 = vmatprep.subr.bf16.mxu0 0
        %694 = vmatpush1.bf16.xpose.msra.mxu0 0
        %695 = vmatprep.subr.bf16.mxu0 0
        %696 = vmatpush1.bf16.xpose.msra.mxu0 0
        %697 = vmatprep.subr.bf16.mxu0 0
        %698 = vmatpush1.bf16.xpose.msra.mxu0 0
        %699 = vmatprep.subr.bf16.mxu0 0
        %700 = vmatpush1.bf16.xpose.msra.mxu0 0
        %701 = vmatprep.subr.bf16.mxu0 0
        %702 = vmatpush1.bf16.xpose.msra.mxu0 0
        %703 = vmatprep.subr.bf16.mxu0 0
        %704 = vmatpush1.bf16.xpose.msra.mxu0 0
        %705 = vmatprep.subr.bf16.mxu0 0
        %706 = vmatpush1.bf16.xpose.msra.mxu0 0
        %707 = vmatprep.subr.bf16.mxu0 0
        %708 = vmatpush1.bf16.xpose.msra.mxu0 0
        %709 = vmatprep.subr.bf16.mxu0 0
        %710 = vmatpush1.bf16.xpose.msra.mxu0 0
        %711 = vmatprep.subr.bf16.mxu0 0
        %712 = vmatpush1.bf16.xpose.msra.mxu0 0
        %713 = vmatprep.subr.bf16.mxu0 0
        %714 = vmatpush1.bf16.xpose.msra.mxu0 0
        %715 = vmatprep.subr.bf16.mxu0 0
        %716 = vmatpush1.bf16.xpose.msra.mxu0 0
        %717 = vmatprep.subr.bf16.mxu0 0
        %718 = vmatpush1.bf16.xpose.msra.mxu0 0
        %719 = vmatprep.subr.bf16.mxu0 0
        %720 = vmatpush1.bf16.xpose.msra.mxu0 0
        %721 = vmatprep.mubr.bf16.mxu0 0
        %722 = vmatmul.mubr.bf16.gmra.mrb[0].mxu0 %v684
        %v723 = vpop.f32.mrb[0].mxu0
        %v724 = vadd.f32 0.0, %v723
        %v725 = vpop.f32.mrb[0].mxu0
        %v726 = vpop.f32.mrb[0].mxu0
        %v727 = vpop.f32.mrb[0].mxu0
        %728 = vdwg.mxu0
        %729 = vrot.lane.b32.xlu0 %v677, 96
        %v730 = vpop.permute.xlu0 %729
        %v732 = vsel %vm682, %v677, 0
        %v735 = vsel %vm682, %v730, 0
        %737 = vmatprep.subr.bf16.mxu0 0
        %738 = vmatpush1.bf16.xpose.msra.mxu0 %v735
        %739 = vmatprep.subr.bf16.mxu0 0
        %740 = vmatpush1.bf16.xpose.msra.mxu0 0
        %741 = vmatprep.subr.bf16.mxu0 0
        %742 = vmatpush1.bf16.xpose.msra.mxu0 0
        %743 = vmatprep.subr.bf16.mxu0 0
        %744 = vmatpush1.bf16.xpose.msra.mxu0 0
        %745 = vmatprep.subr.bf16.mxu0 0
        %746 = vmatpush1.bf16.xpose.msra.mxu0 0
        %747 = vmatprep.subr.bf16.mxu0 0
        %748 = vmatpush1.bf16.xpose.msra.mxu0 0
        %749 = vmatprep.subr.bf16.mxu0 0
        %750 = vmatpush1.bf16.xpose.msra.mxu0 0
        %751 = vmatprep.subr.bf16.mxu0 0
        %752 = vmatpush1.bf16.xpose.msra.mxu0 0
        %753 = vmatprep.subr.bf16.mxu0 0
        %754 = vmatpush1.bf16.xpose.msra.mxu0 0
        %755 = vmatprep.subr.bf16.mxu0 0
        %756 = vmatpush1.bf16.xpose.msra.mxu0 0
        %757 = vmatprep.subr.bf16.mxu0 0
        %758 = vmatpush1.bf16.xpose.msra.mxu0 0
        %759 = vmatprep.subr.bf16.mxu0 0
        %760 = vmatpush1.bf16.xpose.msra.mxu0 0
        %761 = vmatprep.subr.bf16.mxu0 0
        %762 = vmatpush1.bf16.xpose.msra.mxu0 0
        %763 = vmatprep.subr.bf16.mxu0 0
        %764 = vmatpush1.bf16.xpose.msra.mxu0 0
        %765 = vmatprep.subr.bf16.mxu0 0
        %766 = vmatpush1.bf16.xpose.msra.mxu0 0
        %767 = vmatprep.subr.bf16.mxu0 0
        %768 = vmatpush1.bf16.xpose.msra.mxu0 0
        %769 = vmatprep.mubr.bf16.mxu0 0
        %770 = vmatmul.mubr.bf16.gmra.mrb[0].mxu0 %v732
        %v771 = vpop.f32.mrb[0].mxu0
        %v772 = vadd.f32 0.0, %v771
        %v773 = vpop.f32.mrb[0].mxu0
        %v774 = vpop.f32.mrb[0].mxu0
        %v775 = vpop.f32.mrb[0].mxu0
        %776 = vdwg.mxu0
        %777 = vrot.lane.b32.xlu0 %v678, 96
        %v778 = vpop.permute.xlu0 %777
        %v780 = vsel %vm682, %v678, 0
        %v783 = vsel %vm682, %v778, 0
        %785 = vmatprep.subr.bf16.mxu0 0
        %786 = vmatpush1.bf16.xpose.msra.mxu0 %v783
        %787 = vmatprep.subr.bf16.mxu0 0
        %788 = vmatpush1.bf16.xpose.msra.mxu0 0
        %789 = vmatprep.subr.bf16.mxu0 0
        %790 = vmatpush1.bf16.xpose.msra.mxu0 0
        %791 = vmatprep.subr.bf16.mxu0 0
        %792 = vmatpush1.bf16.xpose.msra.mxu0 0
        %793 = vmatprep.subr.bf16.mxu0 0
        %794 = vmatpush1.bf16.xpose.msra.mxu0 0
        %795 = vmatprep.subr.bf16.mxu0 0
        %796 = vmatpush1.bf16.xpose.msra.mxu0 0
        %797 = vmatprep.subr.bf16.mxu0 0
        %798 = vmatpush1.bf16.xpose.msra.mxu0 0
        %799 = vmatprep.subr.bf16.mxu0 0
        %800 = vmatpush1.bf16.xpose.msra.mxu0 0
        %801 = vmatprep.subr.bf16.mxu0 0
        %802 = vmatpush1.bf16.xpose.msra.mxu0 0
        %803 = vmatprep.subr.bf16.mxu0 0
        %804 = vmatpush1.bf16.xpose.msra.mxu0 0
        %805 = vmatprep.subr.bf16.mxu0 0
        %806 = vmatpush1.bf16.xpose.msra.mxu0 0
        %807 = vmatprep.subr.bf16.mxu0 0
        %808 = vmatpush1.bf16.xpose.msra.mxu0 0
        %809 = vmatprep.subr.bf16.mxu0 0
        %810 = vmatpush1.bf16.xpose.msra.mxu0 0
        %811 = vmatprep.subr.bf16.mxu0 0
        %812 = vmatpush1.bf16.xpose.msra.mxu0 0
        %813 = vmatprep.subr.bf16.mxu0 0
        %814 = vmatpush1.bf16.xpose.msra.mxu0 0
        %815 = vmatprep.subr.bf16.mxu0 0
        %816 = vmatpush1.bf16.xpose.msra.mxu0 0
        %817 = vmatprep.mubr.bf16.mxu0 0
        %818 = vmatmul.mubr.bf16.gmra.mrb[0].mxu0 %v780
        %v819 = vpop.f32.mrb[0].mxu0
        %v820 = vadd.f32 0.0, %v819
        %v821 = vpop.f32.mrb[0].mxu0
        %v822 = vpop.f32.mrb[0].mxu0
        %v823 = vpop.f32.mrb[0].mxu0
        %824 = vdwg.mxu0
        %825 = vrot.lane.b32.xlu0 %v679, 96
        %v826 = vpop.permute.xlu0 %825
        %v828 = vsel %vm682, %v679, 0
        %v831 = vsel %vm682, %v826, 0
        %833 = vmatprep.subr.bf16.mxu0 0
        %834 = vmatpush1.bf16.xpose.msra.mxu0 %v831
        %835 = vmatprep.subr.bf16.mxu0 0
        %836 = vmatpush1.bf16.xpose.msra.mxu0 0
        %837 = vmatprep.subr.bf16.mxu0 0
        %838 = vmatpush1.bf16.xpose.msra.mxu0 0
        %839 = vmatprep.subr.bf16.mxu0 0
        %840 = vmatpush1.bf16.xpose.msra.mxu0 0
        %841 = vmatprep.subr.bf16.mxu0 0
        %842 = vmatpush1.bf16.xpose.msra.mxu0 0
        %843 = vmatprep.subr.bf16.mxu0 0
        %844 = vmatpush1.bf16.xpose.msra.mxu0 0
        %845 = vmatprep.subr.bf16.mxu0 0
        %846 = vmatpush1.bf16.xpose.msra.mxu0 0
        %847 = vmatprep.subr.bf16.mxu0 0
        %848 = vmatpush1.bf16.xpose.msra.mxu0 0
        %849 = vmatprep.subr.bf16.mxu0 0
        %850 = vmatpush1.bf16.xpose.msra.mxu0 0
        %851 = vmatprep.subr.bf16.mxu0 0
        %852 = vmatpush1.bf16.xpose.msra.mxu0 0
        %853 = vmatprep.subr.bf16.mxu0 0
        %854 = vmatpush1.bf16.xpose.msra.mxu0 0
        %855 = vmatprep.subr.bf16.mxu0 0
        %856 = vmatpush1.bf16.xpose.msra.mxu0 0
        %857 = vmatprep.subr.bf16.mxu0 0
        %858 = vmatpush1.bf16.xpose.msra.mxu0 0
        %859 = vmatprep.subr.bf16.mxu0 0
        %860 = vmatpush1.bf16.xpose.msra.mxu0 0
        %861 = vmatprep.subr.bf16.mxu0 0
        %862 = vmatpush1.bf16.xpose.msra.mxu0 0
        %863 = vmatprep.subr.bf16.mxu0 0
        %864 = vmatpush1.bf16.xpose.msra.mxu0 0
        %865 = vmatprep.mubr.bf16.mxu0 0
        %866 = vmatmul.mubr.bf16.gmra.mrb[0].mxu0 %v828
        %v867 = vpop.f32.mrb[0].mxu0
        %v868 = vadd.f32 0.0, %v867
        %v869 = vpop.f32.mrb[0].mxu0
        %v870 = vpop.f32.mrb[0].mxu0
        %v871 = vpop.f32.mrb[0].mxu0
        %872 = vdwg.mxu0
        %v873 = vsel %vm682, %v724, -inf
        %874 = vmax.xlane.f32.xlu0 %v873
        %v875 = vpop.xlane.xlu0 %874
        %v876 = vsel %vm682, %v772, -inf
        %877 = vmax.xlane.f32.xlu0 %v876
        %v878 = vpop.xlane.xlu0 %877
        %v879 = vsel %vm682, %v820, -inf
        %880 = vmax.xlane.f32.xlu0 %v879
        %v881 = vpop.xlane.xlu0 %880
        %v882 = vsel %vm682, %v868, -inf
        %883 = vmax.xlane.f32.xlu0 %v882
        %v884 = vpop.xlane.xlu0 %883
        %v885 = vsub.f32 %v724, %v875
        %v886 = vsub.f32 %v772, %v878
        %v887 = vsub.f32 %v820, %v881
        %v888 = vsub.f32 %v868, %v884
        %v889 = vmul.f32 %v885, 1.442695
        %v890 = vpow.pop %v889
        %v891 = vmul.f32 %v886, 1.442695
        %v892 = vpow.pop %v891
        %v893 = vmul.f32 %v887, 1.442695
        %v894 = vpow.pop %v893
        %v895 = vmul.f32 %v888, 1.442695
        %v896 = vpow.pop %v895
        %v897 = vsel %vm682, %v890, 0.0
        %898 = vadd.xlane.f32.xlu0 %v897
        %v899 = vpop.xlane.xlu0 %898
        %v900 = vsel %vm682, %v892, 0.0
        %901 = vadd.xlane.f32.xlu0 %v900
        %v902 = vpop.xlane.xlu0 %901
        %v903 = vsel %vm682, %v894, 0.0
        %904 = vadd.xlane.f32.xlu0 %v903
        %v905 = vpop.xlane.xlu0 %904
        %v906 = vsel %vm682, %v896, 0.0
        %907 = vadd.xlane.f32.xlu0 %v906
        %v908 = vpop.xlane.xlu0 %907
        %v909 = vrcp.pop %v899
        %v910 = vrcp.pop %v902
        %v911 = vrcp.pop %v905
        %v912 = vrcp.pop %v908
        %v913 = vmul.f32 %v890, %v909
        %v914 = vmul.f32 %v892, %v910
        %v915 = vmul.f32 %v894, %v911
        %v916 = vmul.f32 %v896, %v912
        %v917 = vpack.c.bf16 %v913, %v913
        %v918 = vpack.c.bf16 %v914, %v914
        %v919 = vpack.c.bf16 %v915, %v915
        %v920 = vpack.c.bf16 %v916, %v916
        %921 = vrot.lane.b32.xlu0 %v676, 64
        %v922 = vpop.permute.xlu0 %921
        %v924 = vsel %vm682, %v917, 0
        %vm926 = vcmask 1043456
        %v928 = vsel %vm926, %v922, 0
        %930 = vmatprep.subr.bf16.mxu0 0
        %931 = vmatpush1.bf16.msra.mxu0 %v928
        %932 = vmatprep.subr.bf16.mxu0 0
        %933 = vmatpush1.bf16.msra.mxu0 0
        %934 = vmatprep.subr.bf16.mxu0 0
        %935 = vmatpush1.bf16.msra.mxu0 0
        %936 = vmatprep.subr.bf16.mxu0 0
        %937 = vmatpush1.bf16.msra.mxu0 0
        %938 = vmatprep.subr.bf16.mxu0 0
        %939 = vmatpush1.bf16.msra.mxu0 0
        %940 = vmatprep.subr.bf16.mxu0 0
        %941 = vmatpush1.bf16.msra.mxu0 0
        %942 = vmatprep.subr.bf16.mxu0 0
        %943 = vmatpush1.bf16.msra.mxu0 0
        %944 = vmatprep.subr.bf16.mxu0 0
        %945 = vmatpush1.bf16.msra.mxu0 0
        %946 = vmatprep.subr.bf16.mxu0 0
        %947 = vmatpush1.bf16.msra.mxu0 0
        %948 = vmatprep.subr.bf16.mxu0 0
        %949 = vmatpush1.bf16.msra.mxu0 0
        %950 = vmatprep.subr.bf16.mxu0 0
        %951 = vmatpush1.bf16.msra.mxu0 0
        %952 = vmatprep.subr.bf16.mxu0 0
        %953 = vmatpush1.bf16.msra.mxu0 0
        %954 = vmatprep.subr.bf16.mxu0 0
        %955 = vmatpush1.bf16.msra.mxu0 0
        %956 = vmatprep.subr.bf16.mxu0 0
        %957 = vmatpush1.bf16.msra.mxu0 0
        %958 = vmatprep.subr.bf16.mxu0 0
        %959 = vmatpush1.bf16.msra.mxu0 0
        %960 = vmatprep.subr.bf16.mxu0 0
        %961 = vmatpush1.bf16.msra.mxu0 0
        %962 = vmatprep.mubr.bf16.mxu0 0
        %963 = vmatmul.mubr.bf16.gmra.mrb[0].mxu0 %v924
        %v964 = vpop.f32.mrb[0].mxu0
        %v965 = vadd.f32 0.0, %v964
        %v966 = vpop.f32.mrb[0].mxu0
        %v967 = vpop.f32.mrb[0].mxu0
        %v968 = vpop.f32.mrb[0].mxu0
        %969 = vdwg.mxu0
        %970 = vrot.lane.b32.xlu0 %v677, 64
        %v971 = vpop.permute.xlu0 %970
        %v973 = vsel %vm682, %v918, 0
        %v976 = vsel %vm926, %v971, 0
        %978 = vmatprep.subr.bf16.mxu0 0
        %979 = vmatpush1.bf16.msra.mxu0 %v976
        %980 = vmatprep.subr.bf16.mxu0 0
        %981 = vmatpush1.bf16.msra.mxu0 0
        %982 = vmatprep.subr.bf16.mxu0 0
        %983 = vmatpush1.bf16.msra.mxu0 0
        %984 = vmatprep.subr.bf16.mxu0 0
        %985 = vmatpush1.bf16.msra.mxu0 0
        %986 = vmatprep.subr.bf16.mxu0 0
        %987 = vmatpush1.bf16.msra.mxu0 0
        %988 = vmatprep.subr.bf16.mxu0 0
        %989 = vmatpush1.bf16.msra.mxu0 0
        %990 = vmatprep.subr.bf16.mxu0 0
        %991 = vmatpush1.bf16.msra.mxu0 0
        %992 = vmatprep.subr.bf16.mxu0 0
        %993 = vmatpush1.bf16.msra.mxu0 0
        %994 = vmatprep.subr.bf16.mxu0 0
        %995 = vmatpush1.bf16.msra.mxu0 0
        %996 = vmatprep.subr.bf16.mxu0 0
        %997 = vmatpush1.bf16.msra.mxu0 0
        %998 = vmatprep.subr.bf16.mxu0 0
        %999 = vmatpush1.bf16.msra.mxu0 0
        %1000 = vmatprep.subr.bf16.mxu0 0
        %1001 = vmatpush1.bf16.msra.mxu0 0
        %1002 = vmatprep.subr.bf16.mxu0 0
        %1003 = vmatpush1.bf16.msra.mxu0 0
        %1004 = vmatprep.subr.bf16.mxu0 0
        %1005 = vmatpush1.bf16.msra.mxu0 0
        %1006 = vmatprep.subr.bf16.mxu0 0
        %1007 = vmatpush1.bf16.msra.mxu0 0
        %1008 = vmatprep.subr.bf16.mxu0 0
        %1009 = vmatpush1.bf16.msra.mxu0 0
        %1010 = vmatprep.mubr.bf16.mxu0 0
        %1011 = vmatmul.mubr.bf16.gmra.mrb[0].mxu0 %v973
        %v1012 = vpop.f32.mrb[0].mxu0
        %v1013 = vadd.f32 0.0, %v1012
        %v1014 = vpop.f32.mrb[0].mxu0
        %v1015 = vpop.f32.mrb[0].mxu0
        %v1016 = vpop.f32.mrb[0].mxu0
        %1017 = vdwg.mxu0
        %1018 = vrot.lane.b32.xlu0 %v678, 64
        %v1019 = vpop.permute.xlu0 %1018
        %v1021 = vsel %vm682, %v919, 0
        %v1024 = vsel %vm926, %v1019, 0
        %1026 = vmatprep.subr.bf16.mxu0 0
        %1027 = vmatpush1.bf16.msra.mxu0 %v1024
        %1028 = vmatprep.subr.bf16.mxu0 0
        %1029 = vmatpush1.bf16.msra.mxu0 0
        %1030 = vmatprep.subr.bf16.mxu0 0
        %1031 = vmatpush1.bf16.msra.mxu0 0
        %1032 = vmatprep.subr.bf16.mxu0 0
        %1033 = vmatpush1.bf16.msra.mxu0 0
        %1034 = vmatprep.subr.bf16.mxu0 0
        %1035 = vmatpush1.bf16.msra.mxu0 0
        %1036 = vmatprep.subr.bf16.mxu0 0
        %1037 = vmatpush1.bf16.msra.mxu0 0
        %1038 = vmatprep.subr.bf16.mxu0 0
        %1039 = vmatpush1.bf16.msra.mxu0 0
        %1040 = vmatprep.subr.bf16.mxu0 0
        %1041 = vmatpush1.bf16.msra.mxu0 0
        %1042 = vmatprep.subr.bf16.mxu0 0
        %1043 = vmatpush1.bf16.msra.mxu0 0
        %1044 = vmatprep.subr.bf16.mxu0 0
        %1045 = vmatpush1.bf16.msra.mxu0 0
        %1046 = vmatprep.subr.bf16.mxu0 0
        %1047 = vmatpush1.bf16.msra.mxu0 0
        %1048 = vmatprep.subr.bf16.mxu0 0
        %1049 = vmatpush1.bf16.msra.mxu0 0
        %1050 = vmatprep.subr.bf16.mxu0 0
        %1051 = vmatpush1.bf16.msra.mxu0 0
        %1052 = vmatprep.subr.bf16.mxu0 0
        %1053 = vmatpush1.bf16.msra.mxu0 0
        %1054 = vmatprep.subr.bf16.mxu0 0
        %1055 = vmatpush1.bf16.msra.mxu0 0
        %1056 = vmatprep.subr.bf16.mxu0 0
        %1057 = vmatpush1.bf16.msra.mxu0 0
        %1058 = vmatprep.mubr.bf16.mxu0 0
        %1059 = vmatmul.mubr.bf16.gmra.mrb[0].mxu0 %v1021
        %v1060 = vpop.f32.mrb[0].mxu0
        %v1061 = vadd.f32 0.0, %v1060
        %v1062 = vpop.f32.mrb[0].mxu0
        %v1063 = vpop.f32.mrb[0].mxu0
        %v1064 = vpop.f32.mrb[0].mxu0
        %1065 = vdwg.mxu0
        %1066 = vrot.lane.b32.xlu0 %v679, 64
        %v1067 = vpop.permute.xlu0 %1066
        %v1069 = vsel %vm682, %v920, 0
        %v1072 = vsel %vm926, %v1067, 0
        %1074 = vmatprep.subr.bf16.mxu0 0
        %1075 = vmatpush1.bf16.msra.mxu0 %v1072
        %1076 = vmatprep.subr.bf16.mxu0 0
        %1077 = vmatpush1.bf16.msra.mxu0 0
        %1078 = vmatprep.subr.bf16.mxu0 0
        %1079 = vmatpush1.bf16.msra.mxu0 0
        %1080 = vmatprep.subr.bf16.mxu0 0
        %1081 = vmatpush1.bf16.msra.mxu0 0
        %1082 = vmatprep.subr.bf16.mxu0 0
        %1083 = vmatpush1.bf16.msra.mxu0 0
        %1084 = vmatprep.subr.bf16.mxu0 0
        %1085 = vmatpush1.bf16.msra.mxu0 0
        %1086 = vmatprep.subr.bf16.mxu0 0
        %1087 = vmatpush1.bf16.msra.mxu0 0
        %1088 = vmatprep.subr.bf16.mxu0 0
        %1089 = vmatpush1.bf16.msra.mxu0 0
        %1090 = vmatprep.subr.bf16.mxu0 0
        %1091 = vmatpush1.bf16.msra.mxu0 0
        %1092 = vmatprep.subr.bf16.mxu0 0
        %1093 = vmatpush1.bf16.msra.mxu0 0
        %1094 = vmatprep.subr.bf16.mxu0 0
        %1095 = vmatpush1.bf16.msra.mxu0 0
        %1096 = vmatprep.subr.bf16.mxu0 0
        %1097 = vmatpush1.bf16.msra.mxu0 0
        %1098 = vmatprep.subr.bf16.mxu0 0
        %1099 = vmatpush1.bf16.msra.mxu0 0
        %1100 = vmatprep.subr.bf16.mxu0 0
        %1101 = vmatpush1.bf16.msra.mxu0 0
        %1102 = vmatprep.subr.bf16.mxu0 0
        %1103 = vmatpush1.bf16.msra.mxu0 0
        %1104 = vmatprep.subr.bf16.mxu0 0
        %1105 = vmatpush1.bf16.msra.mxu0 0
        %1106 = vmatprep.mubr.bf16.mxu0 0
        %1107 = vmatmul.mubr.bf16.gmra.mrb[0].mxu0 %v1069
        %v1108 = vpop.f32.mrb[0].mxu0
        %v1109 = vadd.f32 0.0, %v1108
        %v1110 = vpop.f32.mrb[0].mxu0
        %v1111 = vpop.f32.mrb[0].mxu0
        %v1112 = vpop.f32.mrb[0].mxu0
        %1113 = vdwg.mxu0
        %1114 = vst.msk [vmem:[#allocation2] sm:$0xff] %vm682, %v965
        %1115 = vst.msk [vmem:[#allocation2 + $0x8] sm:$0xff] %vm682, %v1013
        %1116 = vst.msk [vmem:[#allocation2 + $0x10] sm:$0xff] %vm682, %v1061
        %1117 = vst.msk [vmem:[#allocation2 + $0x18] sm:$0xff] %vm682, %v1109
        %1118 = vrot.lane.b32.xlu0 %v676, 120
        %v1119 = vpop.permute.xlu0 %1118
        %1120 = vrot.lane.b32.xlu0 %v676, 88
        %v1121 = vpop.permute.xlu0 %1120
        %v1123 = vsel %vm682, %v1119, 0
        %v1126 = vsel %vm682, %v1121, 0
        %1128 = vmatprep.subr.bf16.mxu0 0
        %1129 = vmatpush1.bf16.xpose.msra.mxu0 %v1126
        %1130 = vmatprep.subr.bf16.mxu0 0
        %1131 = vmatpush1.bf16.xpose.msra.mxu0 0
        %1132 = vmatprep.subr.bf16.mxu0 0
        %1133 = vmatpush1.bf16.xpose.msra.mxu0 0
        %1134 = vmatprep.subr.bf16.mxu0 0
        %1135 = vmatpush1.bf16.xpose.msra.mxu0 0
        %1136 = vmatprep.subr.bf16.mxu0 0
        %1137 = vmatpush1.bf16.xpose.msra.mxu0 0
        %1138 = vmatprep.subr.bf16.mxu0 0
        %1139 = vmatpush1.bf16.xpose.msra.mxu0 0
        %1140 = vmatprep.subr.bf16.mxu0 0
        %1141 = vmatpush1.bf16.xpose.msra.mxu0 0
        %1142 = vmatprep.subr.bf16.mxu0 0
        %1143 = vmatpush1.bf16.xpose.msra.mxu0 0
        %1144 = vmatprep.subr.bf16.mxu0 0
        %1145 = vmatpush1.bf16.xpose.msra.mxu0 0
        %1146 = vmatprep.subr.bf16.mxu0 0
        %1147 = vmatpush1.bf16.xpose.msra.mxu0 0
        %1148 = vmatprep.subr.bf16.mxu0 0
        %1149 = vmatpush1.bf16.xpose.msra.mxu0 0
        %1150 = vmatprep.subr.bf16.mxu0 0
        %1151 = vmatpush1.bf16.xpose.msra.mxu0 0
        %1152 = vmatprep.subr.bf16.mxu0 0
        %1153 = vmatpush1.bf16.xpose.msra.mxu0 0
        %1154 = vmatprep.subr.bf16.mxu0 0
        %1155 = vmatpush1.bf16.xpose.msra.mxu0 0
        %1156 = vmatprep.subr.bf16.mxu0 0
        %1157 = vmatpush1.bf16.xpose.msra.mxu0 0
        %1158 = vmatprep.subr.bf16.mxu0 0
        %1159 = vmatpush1.bf16.xpose.msra.mxu0 0
        %1160 = vmatprep.mubr.bf16.mxu0 0
        %1161 = vmatmul.mubr.bf16.gmra.mrb[0].mxu0 %v1123
        %v1162 = vpop.f32.mrb[0].mxu0
        %v1163 = vadd.f32 0.0, %v1162
        %v1164 = vpop.f32.mrb[0].mxu0
        %v1165 = vpop.f32.mrb[0].mxu0
        %v1166 = vpop.f32.mrb[0].mxu0
        %1167 = vdwg.mxu0
        %1168 = vrot.lane.b32.xlu0 %v677, 120
        %v1169 = vpop.permute.xlu0 %1168
        %1170 = vrot.lane.b32.xlu0 %v677, 88
        %v1171 = vpop.permute.xlu0 %1170
        %v1173 = vsel %vm682, %v1169, 0
        %v1176 = vsel %vm682, %v1171, 0
        %1178 = vmatprep.subr.bf16.mxu0 0
        %1179 = vmatpush1.bf16.xpose.msra.mxu0 %v1176
        %1180 = vmatprep.subr.bf16.mxu0 0
        %1181 = vmatpush1.bf16.xpose.msra.mxu0 0
        %1182 = vmatprep.subr.bf16.mxu0 0
        %1183 = vmatpush1.bf16.xpose.msra.mxu0 0
        %1184 = vmatprep.subr.bf16.mxu0 0
        %1185 = vmatpush1.bf16.xpose.msra.mxu0 0
        %1186 = vmatprep.subr.bf16.mxu0 0
        %1187 = vmatpush1.bf16.xpose.msra.mxu0 0
        %1188 = vmatprep.subr.bf16.mxu0 0
        %1189 = vmatpush1.bf16.xpose.msra.mxu0 0
        %1190 = vmatprep.subr.bf16.mxu0 0
        %1191 = vmatpush1.bf16.xpose.msra.mxu0 0
        %1192 = vmatprep.subr.bf16.mxu0 0
        %1193 = vmatpush1.bf16.xpose.msra.mxu0 0
        %1194 = vmatprep.subr.bf16.mxu0 0
        %1195 = vmatpush1.bf16.xpose.msra.mxu0 0
        %1196 = vmatprep.subr.bf16.mxu0 0
        %1197 = vmatpush1.bf16.xpose.msra.mxu0 0
        %1198 = vmatprep.subr.bf16.mxu0 0
        %1199 = vmatpush1.bf16.xpose.msra.mxu0 0
        %1200 = vmatprep.subr.bf16.mxu0 0
        %1201 = vmatpush1.bf16.xpose.msra.mxu0 0
        %1202 = vmatprep.subr.bf16.mxu0 0
        %1203 = vmatpush1.bf16.xpose.msra.mxu0 0
        %1204 = vmatprep.subr.bf16.mxu0 0
        %1205 = vmatpush1.bf16.xpose.msra.mxu0 0
        %1206 = vmatprep.subr.bf16.mxu0 0
        %1207 = vmatpush1.bf16.xpose.msra.mxu0 0
        %1208 = vmatprep.subr.bf16.mxu0 0
        %1209 = vmatpush1.bf16.xpose.msra.mxu0 0
        %1210 = vmatprep.mubr.bf16.mxu0 0
        %1211 = vmatmul.mubr.bf16.gmra.mrb[0].mxu0 %v1173
        %v1212 = vpop.f32.mrb[0].mxu0
        %v1213 = vadd.f32 0.0, %v1212
        %v1214 = vpop.f32.mrb[0].mxu0
        %v1215 = vpop.f32.mrb[0].mxu0
        %v1216 = vpop.f32.mrb[0].mxu0
        %1217 = vdwg.mxu0
        %1218 = vrot.lane.b32.xlu0 %v678, 120
        %v1219 = vpop.permute.xlu0 %1218
        %1220 = vrot.lane.b32.xlu0 %v678, 88
        %v1221 = vpop.permute.xlu0 %1220
        %v1223 = vsel %vm682, %v1219, 0
        %v1226 = vsel %vm682, %v1221, 0
        %1228 = vmatprep.subr.bf16.mxu0 0
        %1229 = vmatpush1.bf16.xpose.msra.mxu0 %v1226
        %1230 = vmatprep.subr.bf16.mxu0 0
        %1231 = vmatpush1.bf16.xpose.msra.mxu0 0
        %1232 = vmatprep.subr.bf16.mxu0 0
        %1233 = vmatpush1.bf16.xpose.msra.mxu0 0
        %1234 = vmatprep.subr.bf16.mxu0 0
        %1235 = vmatpush1.bf16.xpose.msra.mxu0 0
        %1236 = vmatprep.subr.bf16.mxu0 0
        %1237 = vmatpush1.bf16.xpose.msra.mxu0 0
        %1238 = vmatprep.subr.bf16.mxu0 0
        %1239 = vmatpush1.bf16.xpose.msra.mxu0 0
        %1240 = vmatprep.subr.bf16.mxu0 0
        %1241 = vmatpush1.bf16.xpose.msra.mxu0 0
        %1242 = vmatprep.subr.bf16.mxu0 0
        %1243 = vmatpush1.bf16.xpose.msra.mxu0 0
        %1244 = vmatprep.subr.bf16.mxu0 0
        %1245 = vmatpush1.bf16.xpose.msra.mxu0 0
        %1246 = vmatprep.subr.bf16.mxu0 0
        %1247 = vmatpush1.bf16.xpose.msra.mxu0 0
        %1248 = vmatprep.subr.bf16.mxu0 0
        %1249 = vmatpush1.bf16.xpose.msra.mxu0 0
        %1250 = vmatprep.subr.bf16.mxu0 0
        %1251 = vmatpush1.bf16.xpose.msra.mxu0 0
        %1252 = vmatprep.subr.bf16.mxu0 0
        %1253 = vmatpush1.bf16.xpose.msra.mxu0 0
        %1254 = vmatprep.subr.bf16.mxu0 0
        %1255 = vmatpush1.bf16.xpose.msra.mxu0 0
        %1256 = vmatprep.subr.bf16.mxu0 0
        %1257 = vmatpush1.bf16.xpose.msra.mxu0 0
        %1258 = vmatprep.subr.bf16.mxu0 0
        %1259 = vmatpush1.bf16.xpose.msra.mxu0 0
        %1260 = vmatprep.mubr.bf16.mxu0 0
        %1261 = vmatmul.mubr.bf16.gmra.mrb[0].mxu0 %v1223
        %v1262 = vpop.f32.mrb[0].mxu0
        %v1263 = vadd.f32 0.0, %v1262
        %v1264 = vpop.f32.mrb[0].mxu0
        %v1265 = vpop.f32.mrb[0].mxu0
        %v1266 = vpop.f32.mrb[0].mxu0
        %1267 = vdwg.mxu0
        %1268 = vrot.lane.b32.xlu0 %v679, 120
        %v1269 = vpop.permute.xlu0 %1268
        %1270 = vrot.lane.b32.xlu0 %v679, 88
        %v1271 = vpop.permute.xlu0 %1270
        %v1273 = vsel %vm682, %v1269, 0
        %v1276 = vsel %vm682, %v1271, 0
        %1278 = vmatprep.subr.bf16.mxu0 0
        %1279 = vmatpush1.bf16.xpose.msra.mxu0 %v1276
        %1280 = vmatprep.subr.bf16.mxu0 0
        %1281 = vmatpush1.bf16.xpose.msra.mxu0 0
        %1282 = vmatprep.subr.bf16.mxu0 0
        %1283 = vmatpush1.bf16.xpose.msra.mxu0 0
        %1284 = vmatprep.subr.bf16.mxu0 0
        %1285 = vmatpush1.bf16.xpose.msra.mxu0 0
        %1286 = vmatprep.subr.bf16.mxu0 0
        %1287 = vmatpush1.bf16.xpose.msra.mxu0 0
        %1288 = vmatprep.subr.bf16.mxu0 0
        %1289 = vmatpush1.bf16.xpose.msra.mxu0 0
        %1290 = vmatprep.subr.bf16.mxu0 0
        %1291 = vmatpush1.bf16.xpose.msra.mxu0 0
        %1292 = vmatprep.subr.bf16.mxu0 0
        %1293 = vmatpush1.bf16.xpose.msra.mxu0 0
        %1294 = vmatprep.subr.bf16.mxu0 0
        %1295 = vmatpush1.bf16.xpose.msra.mxu0 0
        %1296 = vmatprep.subr.bf16.mxu0 0
        %1297 = vmatpush1.bf16.xpose.msra.mxu0 0
        %1298 = vmatprep.subr.bf16.mxu0 0
        %1299 = vmatpush1.bf16.xpose.msra.mxu0 0
        %1300 = vmatprep.subr.bf16.mxu0 0
        %1301 = vmatpush1.bf16.xpose.msra.mxu0 0
        %1302 = vmatprep.subr.bf16.mxu0 0
        %1303 = vmatpush1.bf16.xpose.msra.mxu0 0
        %1304 = vmatprep.subr.bf16.mxu0 0
        %1305 = vmatpush1.bf16.xpose.msra.mxu0 0
        %1306 = vmatprep.subr.bf16.mxu0 0
        %1307 = vmatpush1.bf16.xpose.msra.mxu0 0
        %1308 = vmatprep.subr.bf16.mxu0 0
        %1309 = vmatpush1.bf16.xpose.msra.mxu0 0
        %1310 = vmatprep.mubr.bf16.mxu0 0
        %1311 = vmatmul.mubr.bf16.gmra.mrb[0].mxu0 %v1273
        %v1312 = vpop.f32.mrb[0].mxu0
        %v1313 = vadd.f32 0.0, %v1312
        %v1314 = vpop.f32.mrb[0].mxu0
        %v1315 = vpop.f32.mrb[0].mxu0
        %v1316 = vpop.f32.mrb[0].mxu0
        %1317 = vdwg.mxu0
        %v1318 = vsel %vm682, %v1163, -inf
        %1319 = vmax.xlane.f32.xlu0 %v1318
        %v1320 = vpop.xlane.xlu0 %1319
        %v1321 = vsel %vm682, %v1213, -inf
        %1322 = vmax.xlane.f32.xlu0 %v1321
        %v1323 = vpop.xlane.xlu0 %1322
        %v1324 = vsel %vm682, %v1263, -inf
        %1325 = vmax.xlane.f32.xlu0 %v1324
        %v1326 = vpop.xlane.xlu0 %1325
        %v1327 = vsel %vm682, %v1313, -inf
        %1328 = vmax.xlane.f32.xlu0 %v1327
        %v1329 = vpop.xlane.xlu0 %1328
        %v1330 = vsub.f32 %v1163, %v1320
        %v1331 = vsub.f32 %v1213, %v1323
        %v1332 = vsub.f32 %v1263, %v1326
        %v1333 = vsub.f32 %v1313, %v1329
        %v1334 = vmul.f32 %v1330, 1.442695
        %v1335 = vpow.pop %v1334
        %v1336 = vmul.f32 %v1331, 1.442695
        %v1337 = vpow.pop %v1336
        %v1338 = vmul.f32 %v1332, 1.442695
        %v1339 = vpow.pop %v1338
        %v1340 = vmul.f32 %v1333, 1.442695
        %v1341 = vpow.pop %v1340
        %v1342 = vsel %vm682, %v1335, 0.0
        %1343 = vadd.xlane.f32.xlu0 %v1342
        %v1344 = vpop.xlane.xlu0 %1343
        %v1345 = vsel %vm682, %v1337, 0.0
        %1346 = vadd.xlane.f32.xlu0 %v1345
        %v1347 = vpop.xlane.xlu0 %1346
        %v1348 = vsel %vm682, %v1339, 0.0
        %1349 = vadd.xlane.f32.xlu0 %v1348
        %v1350 = vpop.xlane.xlu0 %1349
        %v1351 = vsel %vm682, %v1341, 0.0
        %1352 = vadd.xlane.f32.xlu0 %v1351
        %v1353 = vpop.xlane.xlu0 %1352
        %v1354 = vrcp.pop %v1344
        %v1355 = vrcp.pop %v1347
        %v1356 = vrcp.pop %v1350
        %v1357 = vrcp.pop %v1353
        %v1358 = vmul.f32 %v1335, %v1354
        %v1359 = vmul.f32 %v1337, %v1355
        %v1360 = vmul.f32 %v1339, %v1356
        %v1361 = vmul.f32 %v1341, %v1357
        %v1362 = vpack.c.bf16 %v1358, %v1358
        %v1363 = vpack.c.bf16 %v1359, %v1359
        %v1364 = vpack.c.bf16 %v1360, %v1360
        %v1365 = vpack.c.bf16 %v1361, %v1361
        %1366 = vrot.lane.b32.xlu0 %v676, 56
        %v1367 = vpop.permute.xlu0 %1366
        %v1369 = vsel %vm682, %v1362, 0
        %v1372 = vsel %vm926, %v1367, 0
        %1374 = vmatprep.subr.bf16.mxu0 0
        %1375 = vmatpush1.bf16.msra.mxu0 %v1372
        %1376 = vmatprep.subr.bf16.mxu0 0
        %1377 = vmatpush1.bf16.msra.mxu0 0
        %1378 = vmatprep.subr.bf16.mxu0 0
        %1379 = vmatpush1.bf16.msra.mxu0 0
        %1380 = vmatprep.subr.bf16.mxu0 0
        %1381 = vmatpush1.bf16.msra.mxu0 0
        %1382 = vmatprep.subr.bf16.mxu0 0
        %1383 = vmatpush1.bf16.msra.mxu0 0
        %1384 = vmatprep.subr.bf16.mxu0 0
        %1385 = vmatpush1.bf16.msra.mxu0 0
        %1386 = vmatprep.subr.bf16.mxu0 0
        %1387 = vmatpush1.bf16.msra.mxu0 0
        %1388 = vmatprep.subr.bf16.mxu0 0
        %1389 = vmatpush1.bf16.msra.mxu0 0
        %1390 = vmatprep.subr.bf16.mxu0 0
        %1391 = vmatpush1.bf16.msra.mxu0 0
        %1392 = vmatprep.subr.bf16.mxu0 0
        %1393 = vmatpush1.bf16.msra.mxu0 0
        %1394 = vmatprep.subr.bf16.mxu0 0
        %1395 = vmatpush1.bf16.msra.mxu0 0
        %1396 = vmatprep.subr.bf16.mxu0 0
        %1397 = vmatpush1.bf16.msra.mxu0 0
        %1398 = vmatprep.subr.bf16.mxu0 0
        %1399 = vmatpush1.bf16.msra.mxu0 0
        %1400 = vmatprep.subr.bf16.mxu0 0
        %1401 = vmatpush1.bf16.msra.mxu0 0
        %1402 = vmatprep.subr.bf16.mxu0 0
        %1403 = vmatpush1.bf16.msra.mxu0 0
        %1404 = vmatprep.subr.bf16.mxu0 0
        %1405 = vmatpush1.bf16.msra.mxu0 0
        %1406 = vmatprep.mubr.bf16.mxu0 0
        %1407 = vmatmul.mubr.bf16.gmra.mrb[0].mxu0 %v1369
        %v1408 = vpop.f32.mrb[0].mxu0
        %v1409 = vadd.f32 0.0, %v1408
        %v1410 = vpop.f32.mrb[0].mxu0
        %v1411 = vpop.f32.mrb[0].mxu0
        %v1412 = vpop.f32.mrb[0].mxu0
        %1413 = vdwg.mxu0
        %1414 = vrot.lane.b32.xlu0 %v677, 56
        %v1415 = vpop.permute.xlu0 %1414
        %v1417 = vsel %vm682, %v1363, 0
        %v1420 = vsel %vm926, %v1415, 0
        %1422 = vmatprep.subr.bf16.mxu0 0
        %1423 = vmatpush1.bf16.msra.mxu0 %v1420
        %1424 = vmatprep.subr.bf16.mxu0 0
        %1425 = vmatpush1.bf16.msra.mxu0 0
        %1426 = vmatprep.subr.bf16.mxu0 0
        %1427 = vmatpush1.bf16.msra.mxu0 0
        %1428 = vmatprep.subr.bf16.mxu0 0
        %1429 = vmatpush1.bf16.msra.mxu0 0
        %1430 = vmatprep.subr.bf16.mxu0 0
        %1431 = vmatpush1.bf16.msra.mxu0 0
        %1432 = vmatprep.subr.bf16.mxu0 0
        %1433 = vmatpush1.bf16.msra.mxu0 0
        %1434 = vmatprep.subr.bf16.mxu0 0
        %1435 = vmatpush1.bf16.msra.mxu0 0
        %1436 = vmatprep.subr.bf16.mxu0 0
        %1437 = vmatpush1.bf16.msra.mxu0 0
        %1438 = vmatprep.subr.bf16.mxu0 0
        %1439 = vmatpush1.bf16.msra.mxu0 0
        %1440 = vmatprep.subr.bf16.mxu0 0
        %1441 = vmatpush1.bf16.msra.mxu0 0
        %1442 = vmatprep.subr.bf16.mxu0 0
        %1443 = vmatpush1.bf16.msra.mxu0 0
        %1444 = vmatprep.subr.bf16.mxu0 0
        %1445 = vmatpush1.bf16.msra.mxu0 0
        %1446 = vmatprep.subr.bf16.mxu0 0
        %1447 = vmatpush1.bf16.msra.mxu0 0
        %1448 = vmatprep.subr.bf16.mxu0 0
        %1449 = vmatpush1.bf16.msra.mxu0 0
        %1450 = vmatprep.subr.bf16.mxu0 0
        %1451 = vmatpush1.bf16.msra.mxu0 0
        %1452 = vmatprep.subr.bf16.mxu0 0
        %1453 = vmatpush1.bf16.msra.mxu0 0
        %1454 = vmatprep.mubr.bf16.mxu0 0
        %1455 = vmatmul.mubr.bf16.gmra.mrb[0].mxu0 %v1417
        %v1456 = vpop.f32.mrb[0].mxu0
        %v1457 = vadd.f32 0.0, %v1456
        %v1458 = vpop.f32.mrb[0].mxu0
        %v1459 = vpop.f32.mrb[0].mxu0
        %v1460 = vpop.f32.mrb[0].mxu0
        %1461 = vdwg.mxu0
        %1462 = vrot.lane.b32.xlu0 %v678, 56
        %v1463 = vpop.permute.xlu0 %1462
        %v1465 = vsel %vm682, %v1364, 0
        %v1468 = vsel %vm926, %v1463, 0
        %1470 = vmatprep.subr.bf16.mxu0 0
        %1471 = vmatpush1.bf16.msra.mxu0 %v1468
        %1472 = vmatprep.subr.bf16.mxu0 0
        %1473 = vmatpush1.bf16.msra.mxu0 0
        %1474 = vmatprep.subr.bf16.mxu0 0
        %1475 = vmatpush1.bf16.msra.mxu0 0
        %1476 = vmatprep.subr.bf16.mxu0 0
        %1477 = vmatpush1.bf16.msra.mxu0 0
        %1478 = vmatprep.subr.bf16.mxu0 0
        %1479 = vmatpush1.bf16.msra.mxu0 0
        %1480 = vmatprep.subr.bf16.mxu0 0
        %1481 = vmatpush1.bf16.msra.mxu0 0
        %1482 = vmatprep.subr.bf16.mxu0 0
        %1483 = vmatpush1.bf16.msra.mxu0 0
        %1484 = vmatprep.subr.bf16.mxu0 0
        %1485 = vmatpush1.bf16.msra.mxu0 0
        %1486 = vmatprep.subr.bf16.mxu0 0
        %1487 = vmatpush1.bf16.msra.mxu0 0
        %1488 = vmatprep.subr.bf16.mxu0 0
        %1489 = vmatpush1.bf16.msra.mxu0 0
        %1490 = vmatprep.subr.bf16.mxu0 0
        %1491 = vmatpush1.bf16.msra.mxu0 0
        %1492 = vmatprep.subr.bf16.mxu0 0
        %1493 = vmatpush1.bf16.msra.mxu0 0
        %1494 = vmatprep.subr.bf16.mxu0 0
        %1495 = vmatpush1.bf16.msra.mxu0 0
        %1496 = vmatprep.subr.bf16.mxu0 0
        %1497 = vmatpush1.bf16.msra.mxu0 0
        %1498 = vmatprep.subr.bf16.mxu0 0
        %1499 = vmatpush1.bf16.msra.mxu0 0
        %1500 = vmatprep.subr.bf16.mxu0 0
        %1501 = vmatpush1.bf16.msra.mxu0 0
        %1502 = vmatprep.mubr.bf16.mxu0 0
        %1503 = vmatmul.mubr.bf16.gmra.mrb[0].mxu0 %v1465
        %v1504 = vpop.f32.mrb[0].mxu0
        %v1505 = vadd.f32 0.0, %v1504
        %v1506 = vpop.f32.mrb[0].mxu0
        %v1507 = vpop.f32.mrb[0].mxu0
        %v1508 = vpop.f32.mrb[0].mxu0
        %1509 = vdwg.mxu0
        %1510 = vrot.lane.b32.xlu0 %v679, 56
        %v1511 = vpop.permute.xlu0 %1510
        %v1513 = vsel %vm682, %v1365, 0
        %v1516 = vsel %vm926, %v1511, 0
        %1518 = vmatprep.subr.bf16.mxu0 0
        %1519 = vmatpush1.bf16.msra.mxu0 %v1516
        %1520 = vmatprep.subr.bf16.mxu0 0
        %1521 = vmatpush1.bf16.msra.mxu0 0
        %1522 = vmatprep.subr.bf16.mxu0 0
        %1523 = vmatpush1.bf16.msra.mxu0 0
        %1524 = vmatprep.subr.bf16.mxu0 0
        %1525 = vmatpush1.bf16.msra.mxu0 0
        %1526 = vmatprep.subr.bf16.mxu0 0
        %1527 = vmatpush1.bf16.msra.mxu0 0
        %1528 = vmatprep.subr.bf16.mxu0 0
        %1529 = vmatpush1.bf16.msra.mxu0 0
        %1530 = vmatprep.subr.bf16.mxu0 0
        %1531 = vmatpush1.bf16.msra.mxu0 0
        %1532 = vmatprep.subr.bf16.mxu0 0
        %1533 = vmatpush1.bf16.msra.mxu0 0
        %1534 = vmatprep.subr.bf16.mxu0 0
        %1535 = vmatpush1.bf16.msra.mxu0 0
        %1536 = vmatprep.subr.bf16.mxu0 0
        %1537 = vmatpush1.bf16.msra.mxu0 0
        %1538 = vmatprep.subr.bf16.mxu0 0
        %1539 = vmatpush1.bf16.msra.mxu0 0
        %1540 = vmatprep.subr.bf16.mxu0 0
        %1541 = vmatpush1.bf16.msra.mxu0 0
        %1542 = vmatprep.subr.bf16.mxu0 0
        %1543 = vmatpush1.bf16.msra.mxu0 0
        %1544 = vmatprep.subr.bf16.mxu0 0
        %1545 = vmatpush1.bf16.msra.mxu0 0
        %1546 = vmatprep.subr.bf16.mxu0 0
        %1547 = vmatpush1.bf16.msra.mxu0 0
        %1548 = vmatprep.subr.bf16.mxu0 0
        %1549 = vmatpush1.bf16.msra.mxu0 0
        %1550 = vmatprep.mubr.bf16.mxu0 0
        %1551 = vmatmul.mubr.bf16.gmra.mrb[0].mxu0 %v1513
        %v1552 = vpop.f32.mrb[0].mxu0
        %v1553 = vadd.f32 0.0, %v1552
        %v1554 = vpop.f32.mrb[0].mxu0
        %v1555 = vpop.f32.mrb[0].mxu0
        %v1556 = vpop.f32.mrb[0].mxu0
        %1557 = vdwg.mxu0
        %1562 = vrot.lane.b32.xlu0 %v1409, 8
        %v1563 = vpop.permute.xlu0 %1562
        %1564 = vrot.lane.b32.xlu0 %v1457, 8
        %v1565 = vpop.permute.xlu0 %1564
        %1566 = vrot.lane.b32.xlu0 %v1505, 8
        %v1567 = vpop.permute.xlu0 %1566
        %1568 = vrot.lane.b32.xlu0 %v1553, 8
        %v1569 = vpop.permute.xlu0 %1568
        %vm1574 = vcmask 130112
        %1575 = vst.msk [vmem:[#allocation2] sm:$0xff] %vm1574, %v1563
        %1576 = vst.msk [vmem:[#allocation2 + $0x8] sm:$0xff] %vm1574, %v1565
        %1577 = vst.msk [vmem:[#allocation2 + $0x10] sm:$0xff] %vm1574, %v1567
        %1578 = vst.msk [vmem:[#allocation2 + $0x18] sm:$0xff] %vm1574, %v1569
        %1579 = vrot.lane.b32.xlu0 %v676, 112
        %v1580 = vpop.permute.xlu0 %1579
        %1581 = vrot.lane.b32.xlu0 %v676, 80
        %v1582 = vpop.permute.xlu0 %1581
        %v1584 = vsel %vm682, %v1580, 0
        %v1587 = vsel %vm682, %v1582, 0
        %1589 = vmatprep.subr.bf16.mxu0 0
        %1590 = vmatpush1.bf16.xpose.msra.mxu0 %v1587
        %1591 = vmatprep.subr.bf16.mxu0 0
        %1592 = vmatpush1.bf16.xpose.msra.mxu0 0
        %1593 = vmatprep.subr.bf16.mxu0 0
        %1594 = vmatpush1.bf16.xpose.msra.mxu0 0
        %1595 = vmatprep.subr.bf16.mxu0 0
        %1596 = vmatpush1.bf16.xpose.msra.mxu0 0
        %1597 = vmatprep.subr.bf16.mxu0 0
        %1598 = vmatpush1.bf16.xpose.msra.mxu0 0
        %1599 = vmatprep.subr.bf16.mxu0 0
        %1600 = vmatpush1.bf16.xpose.msra.mxu0 0
        %1601 = vmatprep.subr.bf16.mxu0 0
        %1602 = vmatpush1.bf16.xpose.msra.mxu0 0
        %1603 = vmatprep.subr.bf16.mxu0 0
        %1604 = vmatpush1.bf16.xpose.msra.mxu0 0
        %1605 = vmatprep.subr.bf16.mxu0 0
        %1606 = vmatpush1.bf16.xpose.msra.mxu0 0
        %1607 = vmatprep.subr.bf16.mxu0 0
        %1608 = vmatpush1.bf16.xpose.msra.mxu0 0
        %1609 = vmatprep.subr.bf16.mxu0 0
        %1610 = vmatpush1.bf16.xpose.msra.mxu0 0
        %1611 = vmatprep.subr.bf16.mxu0 0
        %1612 = vmatpush1.bf16.xpose.msra.mxu0 0
        %1613 = vmatprep.subr.bf16.mxu0 0
        %1614 = vmatpush1.bf16.xpose.msra.mxu0 0
        %1615 = vmatprep.subr.bf16.mxu0 0
        %1616 = vmatpush1.bf16.xpose.msra.mxu0 0
        %1617 = vmatprep.subr.bf16.mxu0 0
        %1618 = vmatpush1.bf16.xpose.msra.mxu0 0
        %1619 = vmatprep.subr.bf16.mxu0 0
        %1620 = vmatpush1.bf16.xpose.msra.mxu0 0
        %1621 = vmatprep.mubr.bf16.mxu0 0
        %1622 = vmatmul.mubr.bf16.gmra.mrb[0].mxu0 %v1584
        %v1623 = vpop.f32.mrb[0].mxu0
        %v1624 = vadd.f32 0.0, %v1623
        %v1625 = vpop.f32.mrb[0].mxu0
        %v1626 = vpop.f32.mrb[0].mxu0
        %v1627 = vpop.f32.mrb[0].mxu0
        %1628 = vdwg.mxu0
        %1629 = vrot.lane.b32.xlu0 %v677, 112
        %v1630 = vpop.permute.xlu0 %1629
        %1631 = vrot.lane.b32.xlu0 %v677, 80
        %v1632 = vpop.permute.xlu0 %1631
        %v1634 = vsel %vm682, %v1630, 0
        %v1637 = vsel %vm682, %v1632, 0
        %1639 = vmatprep.subr.bf16.mxu0 0
        %1640 = vmatpush1.bf16.xpose.msra.mxu0 %v1637
        %1641 = vmatprep.subr.bf16.mxu0 0
        %1642 = vmatpush1.bf16.xpose.msra.mxu0 0
        %1643 = vmatprep.subr.bf16.mxu0 0
        %1644 = vmatpush1.bf16.xpose.msra.mxu0 0
        %1645 = vmatprep.subr.bf16.mxu0 0
        %1646 = vmatpush1.bf16.xpose.msra.mxu0 0
        %1647 = vmatprep.subr.bf16.mxu0 0
        %1648 = vmatpush1.bf16.xpose.msra.mxu0 0
        %1649 = vmatprep.subr.bf16.mxu0 0
        %1650 = vmatpush1.bf16.xpose.msra.mxu0 0
        %1651 = vmatprep.subr.bf16.mxu0 0
        %1652 = vmatpush1.bf16.xpose.msra.mxu0 0
        %1653 = vmatprep.subr.bf16.mxu0 0
        %1654 = vmatpush1.bf16.xpose.msra.mxu0 0
        %1655 = vmatprep.subr.bf16.mxu0 0
        %1656 = vmatpush1.bf16.xpose.msra.mxu0 0
        %1657 = vmatprep.subr.bf16.mxu0 0
        %1658 = vmatpush1.bf16.xpose.msra.mxu0 0
        %1659 = vmatprep.subr.bf16.mxu0 0
        %1660 = vmatpush1.bf16.xpose.msra.mxu0 0
        %1661 = vmatprep.subr.bf16.mxu0 0
        %1662 = vmatpush1.bf16.xpose.msra.mxu0 0
        %1663 = vmatprep.subr.bf16.mxu0 0
        %1664 = vmatpush1.bf16.xpose.msra.mxu0 0
        %1665 = vmatprep.subr.bf16.mxu0 0
        %1666 = vmatpush1.bf16.xpose.msra.mxu0 0
        %1667 = vmatprep.subr.bf16.mxu0 0
        %1668 = vmatpush1.bf16.xpose.msra.mxu0 0
        %1669 = vmatprep.subr.bf16.mxu0 0
        %1670 = vmatpush1.bf16.xpose.msra.mxu0 0
        %1671 = vmatprep.mubr.bf16.mxu0 0
        %1672 = vmatmul.mubr.bf16.gmra.mrb[0].mxu0 %v1634
        %v1673 = vpop.f32.mrb[0].mxu0
        %v1674 = vadd.f32 0.0, %v1673
        %v1675 = vpop.f32.mrb[0].mxu0
        %v1676 = vpop.f32.mrb[0].mxu0
        %v1677 = vpop.f32.mrb[0].mxu0
        %1678 = vdwg.mxu0
        %1679 = vrot.lane.b32.xlu0 %v678, 112
        %v1680 = vpop.permute.xlu0 %1679
        %1681 = vrot.lane.b32.xlu0 %v678, 80
        %v1682 = vpop.permute.xlu0 %1681
        %v1684 = vsel %vm682, %v1680, 0
        %v1687 = vsel %vm682, %v1682, 0
        %1689 = vmatprep.subr.bf16.mxu0 0
        %1690 = vmatpush1.bf16.xpose.msra.mxu0 %v1687
        %1691 = vmatprep.subr.bf16.mxu0 0
        %1692 = vmatpush1.bf16.xpose.msra.mxu0 0
        %1693 = vmatprep.subr.bf16.mxu0 0
        %1694 = vmatpush1.bf16.xpose.msra.mxu0 0
        %1695 = vmatprep.subr.bf16.mxu0 0
        %1696 = vmatpush1.bf16.xpose.msra.mxu0 0
        %1697 = vmatprep.subr.bf16.mxu0 0
        %1698 = vmatpush1.bf16.xpose.msra.mxu0 0
        %1699 = vmatprep.subr.bf16.mxu0 0
        %1700 = vmatpush1.bf16.xpose.msra.mxu0 0
        %1701 = vmatprep.subr.bf16.mxu0 0
        %1702 = vmatpush1.bf16.xpose.msra.mxu0 0
        %1703 = vmatprep.subr.bf16.mxu0 0
        %1704 = vmatpush1.bf16.xpose.msra.mxu0 0
        %1705 = vmatprep.subr.bf16.mxu0 0
        %1706 = vmatpush1.bf16.xpose.msra.mxu0 0
        %1707 = vmatprep.subr.bf16.mxu0 0
        %1708 = vmatpush1.bf16.xpose.msra.mxu0 0
        %1709 = vmatprep.subr.bf16.mxu0 0
        %1710 = vmatpush1.bf16.xpose.msra.mxu0 0
        %1711 = vmatprep.subr.bf16.mxu0 0
        %1712 = vmatpush1.bf16.xpose.msra.mxu0 0
        %1713 = vmatprep.subr.bf16.mxu0 0
        %1714 = vmatpush1.bf16.xpose.msra.mxu0 0
        %1715 = vmatprep.subr.bf16.mxu0 0
        %1716 = vmatpush1.bf16.xpose.msra.mxu0 0
        %1717 = vmatprep.subr.bf16.mxu0 0
        %1718 = vmatpush1.bf16.xpose.msra.mxu0 0
        %1719 = vmatprep.subr.bf16.mxu0 0
        %1720 = vmatpush1.bf16.xpose.msra.mxu0 0
        %1721 = vmatprep.mubr.bf16.mxu0 0
        %1722 = vmatmul.mubr.bf16.gmra.mrb[0].mxu0 %v1684
        %v1723 = vpop.f32.mrb[0].mxu0
        %v1724 = vadd.f32 0.0, %v1723
        %v1725 = vpop.f32.mrb[0].mxu0
        %v1726 = vpop.f32.mrb[0].mxu0
        %v1727 = vpop.f32.mrb[0].mxu0
        %1728 = vdwg.mxu0
        %1729 = vrot.lane.b32.xlu0 %v679, 112
        %v1730 = vpop.permute.xlu0 %1729
        %1731 = vrot.lane.b32.xlu0 %v679, 80
        %v1732 = vpop.permute.xlu0 %1731
        %v1734 = vsel %vm682, %v1730, 0
        %v1737 = vsel %vm682, %v1732, 0
        %1739 = vmatprep.subr.bf16.mxu0 0
        %1740 = vmatpush1.bf16.xpose.msra.mxu0 %v1737
        %1741 = vmatprep.subr.bf16.mxu0 0
        %1742 = vmatpush1.bf16.xpose.msra.mxu0 0
        %1743 = vmatprep.subr.bf16.mxu0 0
        %1744 = vmatpush1.bf16.xpose.msra.mxu0 0
        %1745 = vmatprep.subr.bf16.mxu0 0
        %1746 = vmatpush1.bf16.xpose.msra.mxu0 0
        %1747 = vmatprep.subr.bf16.mxu0 0
        %1748 = vmatpush1.bf16.xpose.msra.mxu0 0
        %1749 = vmatprep.subr.bf16.mxu0 0
        %1750 = vmatpush1.bf16.xpose.msra.mxu0 0
        %1751 = vmatprep.subr.bf16.mxu0 0
        %1752 = vmatpush1.bf16.xpose.msra.mxu0 0
        %1753 = vmatprep.subr.bf16.mxu0 0
        %1754 = vmatpush1.bf16.xpose.msra.mxu0 0
        %1755 = vmatprep.subr.bf16.mxu0 0
        %1756 = vmatpush1.bf16.xpose.msra.mxu0 0
        %1757 = vmatprep.subr.bf16.mxu0 0
        %1758 = vmatpush1.bf16.xpose.msra.mxu0 0
        %1759 = vmatprep.subr.bf16.mxu0 0
        %1760 = vmatpush1.bf16.xpose.msra.mxu0 0
        %1761 = vmatprep.subr.bf16.mxu0 0
        %1762 = vmatpush1.bf16.xpose.msra.mxu0 0
        %1763 = vmatprep.subr.bf16.mxu0 0
        %1764 = vmatpush1.bf16.xpose.msra.mxu0 0
        %1765 = vmatprep.subr.bf16.mxu0 0
        %1766 = vmatpush1.bf16.xpose.msra.mxu0 0
        %1767 = vmatprep.subr.bf16.mxu0 0
        %1768 = vmatpush1.bf16.xpose.msra.mxu0 0
        %1769 = vmatprep.subr.bf16.mxu0 0
        %1770 = vmatpush1.bf16.xpose.msra.mxu0 0
        %1771 = vmatprep.mubr.bf16.mxu0 0
        %1772 = vmatmul.mubr.bf16.gmra.mrb[0].mxu0 %v1734
        %v1773 = vpop.f32.mrb[0].mxu0
        %v1774 = vadd.f32 0.0, %v1773
        %v1775 = vpop.f32.mrb[0].mxu0
        %v1776 = vpop.f32.mrb[0].mxu0
        %v1777 = vpop.f32.mrb[0].mxu0
        %1778 = vdwg.mxu0
        %v1779 = vsel %vm682, %v1624, -inf
        %1780 = vmax.xlane.f32.xlu0 %v1779
        %v1781 = vpop.xlane.xlu0 %1780
        %v1782 = vsel %vm682, %v1674, -inf
        %1783 = vmax.xlane.f32.xlu0 %v1782
        %v1784 = vpop.xlane.xlu0 %1783
        %v1785 = vsel %vm682, %v1724, -inf
        %1786 = vmax.xlane.f32.xlu0 %v1785
        %v1787 = vpop.xlane.xlu0 %1786
        %v1788 = vsel %vm682, %v1774, -inf
        %1789 = vmax.xlane.f32.xlu0 %v1788
        %v1790 = vpop.xlane.xlu0 %1789
        %v1791 = vsub.f32 %v1624, %v1781
        %v1792 = vsub.f32 %v1674, %v1784
        %v1793 = vsub.f32 %v1724, %v1787
        %v1794 = vsub.f32 %v1774, %v1790
        %v1795 = vmul.f32 %v1791, 1.442695
        %v1796 = vpow.pop %v1795
        %v1797 = vmul.f32 %v1792, 1.442695
        %v1798 = vpow.pop %v1797
        %v1799 = vmul.f32 %v1793, 1.442695
        %v1800 = vpow.pop %v1799
        %v1801 = vmul.f32 %v1794, 1.442695
        %v1802 = vpow.pop %v1801
        %v1803 = vsel %vm682, %v1796, 0.0
        %1804 = vadd.xlane.f32.xlu0 %v1803
        %v1805 = vpop.xlane.xlu0 %1804
        %v1806 = vsel %vm682, %v1798, 0.0
        %1807 = vadd.xlane.f32.xlu0 %v1806
        %v1808 = vpop.xlane.xlu0 %1807
        %v1809 = vsel %vm682, %v1800, 0.0
        %1810 = vadd.xlane.f32.xlu0 %v1809
        %v1811 = vpop.xlane.xlu0 %1810
        %v1812 = vsel %vm682, %v1802, 0.0
        %1813 = vadd.xlane.f32.xlu0 %v1812
        %v1814 = vpop.xlane.xlu0 %1813
        %v1815 = vrcp.pop %v1805
        %v1816 = vrcp.pop %v1808
        %v1817 = vrcp.pop %v1811
        %v1818 = vrcp.pop %v1814
        %v1819 = vmul.f32 %v1796, %v1815
        %v1820 = vmul.f32 %v1798, %v1816
        %v1821 = vmul.f32 %v1800, %v1817
        %v1822 = vmul.f32 %v1802, %v1818
        %v1823 = vpack.c.bf16 %v1819, %v1819
        %v1824 = vpack.c.bf16 %v1820, %v1820
        %v1825 = vpack.c.bf16 %v1821, %v1821
        %v1826 = vpack.c.bf16 %v1822, %v1822
        %1827 = vrot.lane.b32.xlu0 %v676, 48
        %v1828 = vpop.permute.xlu0 %1827
        %v1830 = vsel %vm682, %v1823, 0
        %v1833 = vsel %vm926, %v1828, 0
        %1835 = vmatprep.subr.bf16.mxu0 0
        %1836 = vmatpush1.bf16.msra.mxu0 %v1833
        %1837 = vmatprep.subr.bf16.mxu0 0
        %1838 = vmatpush1.bf16.msra.mxu0 0
        %1839 = vmatprep.subr.bf16.mxu0 0
        %1840 = vmatpush1.bf16.msra.mxu0 0
        %1841 = vmatprep.subr.bf16.mxu0 0
        %1842 = vmatpush1.bf16.msra.mxu0 0
        %1843 = vmatprep.subr.bf16.mxu0 0
        %1844 = vmatpush1.bf16.msra.mxu0 0
        %1845 = vmatprep.subr.bf16.mxu0 0
        %1846 = vmatpush1.bf16.msra.mxu0 0
        %1847 = vmatprep.subr.bf16.mxu0 0
        %1848 = vmatpush1.bf16.msra.mxu0 0
        %1849 = vmatprep.subr.bf16.mxu0 0
        %1850 = vmatpush1.bf16.msra.mxu0 0
        %1851 = vmatprep.subr.bf16.mxu0 0
        %1852 = vmatpush1.bf16.msra.mxu0 0
        %1853 = vmatprep.subr.bf16.mxu0 0
        %1854 = vmatpush1.bf16.msra.mxu0 0
        %1855 = vmatprep.subr.bf16.mxu0 0
        %1856 = vmatpush1.bf16.msra.mxu0 0
        %1857 = vmatprep.subr.bf16.mxu0 0
        %1858 = vmatpush1.bf16.msra.mxu0 0
        %1859 = vmatprep.subr.bf16.mxu0 0
        %1860 = vmatpush1.bf16.msra.mxu0 0
        %1861 = vmatprep.subr.bf16.mxu0 0
        %1862 = vmatpush1.bf16.msra.mxu0 0
        %1863 = vmatprep.subr.bf16.mxu0 0
        %1864 = vmatpush1.bf16.msra.mxu0 0
        %1865 = vmatprep.subr.bf16.mxu0 0
        %1866 = vmatpush1.bf16.msra.mxu0 0
        %1867 = vmatprep.mubr.bf16.mxu0 0
        %1868 = vmatmul.mubr.bf16.gmra.mrb[0].mxu0 %v1830
        %v1869 = vpop.f32.mrb[0].mxu0
        %v1870 = vadd.f32 0.0, %v1869
        %v1871 = vpop.f32.mrb[0].mxu0
        %v1872 = vpop.f32.mrb[0].mxu0
        %v1873 = vpop.f32.mrb[0].mxu0
        %1874 = vdwg.mxu0
        %1875 = vrot.lane.b32.xlu0 %v677, 48
        %v1876 = vpop.permute.xlu0 %1875
        %v1878 = vsel %vm682, %v1824, 0
        %v1881 = vsel %vm926, %v1876, 0
        %1883 = vmatprep.subr.bf16.mxu0 0
        %1884 = vmatpush1.bf16.msra.mxu0 %v1881
        %1885 = vmatprep.subr.bf16.mxu0 0
        %1886 = vmatpush1.bf16.msra.mxu0 0
        %1887 = vmatprep.subr.bf16.mxu0 0
        %1888 = vmatpush1.bf16.msra.mxu0 0
        %1889 = vmatprep.subr.bf16.mxu0 0
        %1890 = vmatpush1.bf16.msra.mxu0 0
        %1891 = vmatprep.subr.bf16.mxu0 0
        %1892 = vmatpush1.bf16.msra.mxu0 0
        %1893 = vmatprep.subr.bf16.mxu0 0
        %1894 = vmatpush1.bf16.msra.mxu0 0
        %1895 = vmatprep.subr.bf16.mxu0 0
        %1896 = vmatpush1.bf16.msra.mxu0 0
        %1897 = vmatprep.subr.bf16.mxu0 0
        %1898 = vmatpush1.bf16.msra.mxu0 0
        %1899 = vmatprep.subr.bf16.mxu0 0
        %1900 = vmatpush1.bf16.msra.mxu0 0
        %1901 = vmatprep.subr.bf16.mxu0 0
        %1902 = vmatpush1.bf16.msra.mxu0 0
        %1903 = vmatprep.subr.bf16.mxu0 0
        %1904 = vmatpush1.bf16.msra.mxu0 0
        %1905 = vmatprep.subr.bf16.mxu0 0
        %1906 = vmatpush1.bf16.msra.mxu0 0
        %1907 = vmatprep.subr.bf16.mxu0 0
        %1908 = vmatpush1.bf16.msra.mxu0 0
        %1909 = vmatprep.subr.bf16.mxu0 0
        %1910 = vmatpush1.bf16.msra.mxu0 0
        %1911 = vmatprep.subr.bf16.mxu0 0
        %1912 = vmatpush1.bf16.msra.mxu0 0
        %1913 = vmatprep.subr.bf16.mxu0 0
        %1914 = vmatpush1.bf16.msra.mxu0 0
        %1915 = vmatprep.mubr.bf16.mxu0 0
        %1916 = vmatmul.mubr.bf16.gmra.mrb[0].mxu0 %v1878
        %v1917 = vpop.f32.mrb[0].mxu0
        %v1918 = vadd.f32 0.0, %v1917
        %v1919 = vpop.f32.mrb[0].mxu0
        %v1920 = vpop.f32.mrb[0].mxu0
        %v1921 = vpop.f32.mrb[0].mxu0
        %1922 = vdwg.mxu0
        %1923 = vrot.lane.b32.xlu0 %v678, 48
        %v1924 = vpop.permute.xlu0 %1923
        %v1926 = vsel %vm682, %v1825, 0
        %v1929 = vsel %vm926, %v1924, 0
        %1931 = vmatprep.subr.bf16.mxu0 0
        %1932 = vmatpush1.bf16.msra.mxu0 %v1929
        %1933 = vmatprep.subr.bf16.mxu0 0
        %1934 = vmatpush1.bf16.msra.mxu0 0
        %1935 = vmatprep.subr.bf16.mxu0 0
        %1936 = vmatpush1.bf16.msra.mxu0 0
        %1937 = vmatprep.subr.bf16.mxu0 0
        %1938 = vmatpush1.bf16.msra.mxu0 0
        %1939 = vmatprep.subr.bf16.mxu0 0
        %1940 = vmatpush1.bf16.msra.mxu0 0
        %1941 = vmatprep.subr.bf16.mxu0 0
        %1942 = vmatpush1.bf16.msra.mxu0 0
        %1943 = vmatprep.subr.bf16.mxu0 0
        %1944 = vmatpush1.bf16.msra.mxu0 0
        %1945 = vmatprep.subr.bf16.mxu0 0
        %1946 = vmatpush1.bf16.msra.mxu0 0
        %1947 = vmatprep.subr.bf16.mxu0 0
        %1948 = vmatpush1.bf16.msra.mxu0 0
        %1949 = vmatprep.subr.bf16.mxu0 0
        %1950 = vmatpush1.bf16.msra.mxu0 0
        %1951 = vmatprep.subr.bf16.mxu0 0
        %1952 = vmatpush1.bf16.msra.mxu0 0
        %1953 = vmatprep.subr.bf16.mxu0 0
        %1954 = vmatpush1.bf16.msra.mxu0 0
        %1955 = vmatprep.subr.bf16.mxu0 0
        %1956 = vmatpush1.bf16.msra.mxu0 0
        %1957 = vmatprep.subr.bf16.mxu0 0
        %1958 = vmatpush1.bf16.msra.mxu0 0
        %1959 = vmatprep.subr.bf16.mxu0 0
        %1960 = vmatpush1.bf16.msra.mxu0 0
        %1961 = vmatprep.subr.bf16.mxu0 0
        %1962 = vmatpush1.bf16.msra.mxu0 0
        %1963 = vmatprep.mubr.bf16.mxu0 0
        %1964 = vmatmul.mubr.bf16.gmra.mrb[0].mxu0 %v1926
        %v1965 = vpop.f32.mrb[0].mxu0
        %v1966 = vadd.f32 0.0, %v1965
        %v1967 = vpop.f32.mrb[0].mxu0
        %v1968 = vpop.f32.mrb[0].mxu0
        %v1969 = vpop.f32.mrb[0].mxu0
        %1970 = vdwg.mxu0
        %1971 = vrot.lane.b32.xlu0 %v679, 48
        %v1972 = vpop.permute.xlu0 %1971
        %v1974 = vsel %vm682, %v1826, 0
        %v1977 = vsel %vm926, %v1972, 0
        %1979 = vmatprep.subr.bf16.mxu0 0
        %1980 = vmatpush1.bf16.msra.mxu0 %v1977
        %1981 = vmatprep.subr.bf16.mxu0 0
        %1982 = vmatpush1.bf16.msra.mxu0 0
        %1983 = vmatprep.subr.bf16.mxu0 0
        %1984 = vmatpush1.bf16.msra.mxu0 0
        %1985 = vmatprep.subr.bf16.mxu0 0
        %1986 = vmatpush1.bf16.msra.mxu0 0
        %1987 = vmatprep.subr.bf16.mxu0 0
        %1988 = vmatpush1.bf16.msra.mxu0 0
        %1989 = vmatprep.subr.bf16.mxu0 0
        %1990 = vmatpush1.bf16.msra.mxu0 0
        %1991 = vmatprep.subr.bf16.mxu0 0
        %1992 = vmatpush1.bf16.msra.mxu0 0
        %1993 = vmatprep.subr.bf16.mxu0 0
        %1994 = vmatpush1.bf16.msra.mxu0 0
        %1995 = vmatprep.subr.bf16.mxu0 0
        %1996 = vmatpush1.bf16.msra.mxu0 0
        %1997 = vmatprep.subr.bf16.mxu0 0
        %1998 = vmatpush1.bf16.msra.mxu0 0
        %1999 = vmatprep.subr.bf16.mxu0 0
        %2000 = vmatpush1.bf16.msra.mxu0 0
        %2001 = vmatprep.subr.bf16.mxu0 0
        %2002 = vmatpush1.bf16.msra.mxu0 0
        %2003 = vmatprep.subr.bf16.mxu0 0
        %2004 = vmatpush1.bf16.msra.mxu0 0
        %2005 = vmatprep.subr.bf16.mxu0 0
        %2006 = vmatpush1.bf16.msra.mxu0 0
        %2007 = vmatprep.subr.bf16.mxu0 0
        %2008 = vmatpush1.bf16.msra.mxu0 0
        %2009 = vmatprep.subr.bf16.mxu0 0
        %2010 = vmatpush1.bf16.msra.mxu0 0
        %2011 = vmatprep.mubr.bf16.mxu0 0
        %2012 = vmatmul.mubr.bf16.gmra.mrb[0].mxu0 %v1974
        %v2013 = vpop.f32.mrb[0].mxu0
        %v2014 = vadd.f32 0.0, %v2013
        %v2015 = vpop.f32.mrb[0].mxu0
        %v2016 = vpop.f32.mrb[0].mxu0
        %v2017 = vpop.f32.mrb[0].mxu0
        %2018 = vdwg.mxu0
        %2023 = vrot.lane.b32.xlu0 %v1870, 16
        %v2024 = vpop.permute.xlu0 %2023
        %2025 = vrot.lane.b32.xlu0 %v1918, 16
        %v2026 = vpop.permute.xlu0 %2025
        %2027 = vrot.lane.b32.xlu0 %v1966, 16
        %v2028 = vpop.permute.xlu0 %2027
        %2029 = vrot.lane.b32.xlu0 %v2014, 16
        %v2030 = vpop.permute.xlu0 %2029
        %vm2035 = vcmask 195712
        %2036 = vst.msk [vmem:[#allocation2] sm:$0xff] %vm2035, %v2024
        %2037 = vst.msk [vmem:[#allocation2 + $0x8] sm:$0xff] %vm2035, %v2026
        %2038 = vst.msk [vmem:[#allocation2 + $0x10] sm:$0xff] %vm2035, %v2028
        %2039 = vst.msk [vmem:[#allocation2 + $0x18] sm:$0xff] %vm2035, %v2030
        %2040 = vrot.lane.b32.xlu0 %v676, 104
        %v2041 = vpop.permute.xlu0 %2040
        %2042 = vrot.lane.b32.xlu0 %v676, 72
        %v2043 = vpop.permute.xlu0 %2042
        %v2045 = vsel %vm682, %v2041, 0
        %v2048 = vsel %vm682, %v2043, 0
        %2050 = vmatprep.subr.bf16.mxu0 0
        %2051 = vmatpush1.bf16.xpose.msra.mxu0 %v2048
        %2052 = vmatprep.subr.bf16.mxu0 0
        %2053 = vmatpush1.bf16.xpose.msra.mxu0 0
        %2054 = vmatprep.subr.bf16.mxu0 0
        %2055 = vmatpush1.bf16.xpose.msra.mxu0 0
        %2056 = vmatprep.subr.bf16.mxu0 0
        %2057 = vmatpush1.bf16.xpose.msra.mxu0 0
        %2058 = vmatprep.subr.bf16.mxu0 0
        %2059 = vmatpush1.bf16.xpose.msra.mxu0 0
        %2060 = vmatprep.subr.bf16.mxu0 0
        %2061 = vmatpush1.bf16.xpose.msra.mxu0 0
        %2062 = vmatprep.subr.bf16.mxu0 0
        %2063 = vmatpush1.bf16.xpose.msra.mxu0 0
        %2064 = vmatprep.subr.bf16.mxu0 0
        %2065 = vmatpush1.bf16.xpose.msra.mxu0 0
        %2066 = vmatprep.subr.bf16.mxu0 0
        %2067 = vmatpush1.bf16.xpose.msra.mxu0 0
        %2068 = vmatprep.subr.bf16.mxu0 0
        %2069 = vmatpush1.bf16.xpose.msra.mxu0 0
        %2070 = vmatprep.subr.bf16.mxu0 0
        %2071 = vmatpush1.bf16.xpose.msra.mxu0 0
        %2072 = vmatprep.subr.bf16.mxu0 0
        %2073 = vmatpush1.bf16.xpose.msra.mxu0 0
        %2074 = vmatprep.subr.bf16.mxu0 0
        %2075 = vmatpush1.bf16.xpose.msra.mxu0 0
        %2076 = vmatprep.subr.bf16.mxu0 0
        %2077 = vmatpush1.bf16.xpose.msra.mxu0 0
        %2078 = vmatprep.subr.bf16.mxu0 0
        %2079 = vmatpush1.bf16.xpose.msra.mxu0 0
        %2080 = vmatprep.subr.bf16.mxu0 0
        %2081 = vmatpush1.bf16.xpose.msra.mxu0 0
        %2082 = vmatprep.mubr.bf16.mxu0 0
        %2083 = vmatmul.mubr.bf16.gmra.mrb[0].mxu0 %v2045
        %v2084 = vpop.f32.mrb[0].mxu0
        %v2085 = vadd.f32 0.0, %v2084
        %v2086 = vpop.f32.mrb[0].mxu0
        %v2087 = vpop.f32.mrb[0].mxu0
        %v2088 = vpop.f32.mrb[0].mxu0
        %2089 = vdwg.mxu0
        %2090 = vrot.lane.b32.xlu0 %v677, 104
        %v2091 = vpop.permute.xlu0 %2090
        %2092 = vrot.lane.b32.xlu0 %v677, 72
        %v2093 = vpop.permute.xlu0 %2092
        %v2095 = vsel %vm682, %v2091, 0
        %v2098 = vsel %vm682, %v2093, 0
        %2100 = vmatprep.subr.bf16.mxu0 0
        %2101 = vmatpush1.bf16.xpose.msra.mxu0 %v2098
        %2102 = vmatprep.subr.bf16.mxu0 0
        %2103 = vmatpush1.bf16.xpose.msra.mxu0 0
        %2104 = vmatprep.subr.bf16.mxu0 0
        %2105 = vmatpush1.bf16.xpose.msra.mxu0 0
        %2106 = vmatprep.subr.bf16.mxu0 0
        %2107 = vmatpush1.bf16.xpose.msra.mxu0 0
        %2108 = vmatprep.subr.bf16.mxu0 0
        %2109 = vmatpush1.bf16.xpose.msra.mxu0 0
        %2110 = vmatprep.subr.bf16.mxu0 0
        %2111 = vmatpush1.bf16.xpose.msra.mxu0 0
        %2112 = vmatprep.subr.bf16.mxu0 0
        %2113 = vmatpush1.bf16.xpose.msra.mxu0 0
        %2114 = vmatprep.subr.bf16.mxu0 0
        %2115 = vmatpush1.bf16.xpose.msra.mxu0 0
        %2116 = vmatprep.subr.bf16.mxu0 0
        %2117 = vmatpush1.bf16.xpose.msra.mxu0 0
        %2118 = vmatprep.subr.bf16.mxu0 0
        %2119 = vmatpush1.bf16.xpose.msra.mxu0 0
        %2120 = vmatprep.subr.bf16.mxu0 0
        %2121 = vmatpush1.bf16.xpose.msra.mxu0 0
        %2122 = vmatprep.subr.bf16.mxu0 0
        %2123 = vmatpush1.bf16.xpose.msra.mxu0 0
        %2124 = vmatprep.subr.bf16.mxu0 0
        %2125 = vmatpush1.bf16.xpose.msra.mxu0 0
        %2126 = vmatprep.subr.bf16.mxu0 0
        %2127 = vmatpush1.bf16.xpose.msra.mxu0 0
        %2128 = vmatprep.subr.bf16.mxu0 0
        %2129 = vmatpush1.bf16.xpose.msra.mxu0 0
        %2130 = vmatprep.subr.bf16.mxu0 0
        %2131 = vmatpush1.bf16.xpose.msra.mxu0 0
        %2132 = vmatprep.mubr.bf16.mxu0 0
        %2133 = vmatmul.mubr.bf16.gmra.mrb[0].mxu0 %v2095
        %v2134 = vpop.f32.mrb[0].mxu0
        %v2135 = vadd.f32 0.0, %v2134
        %v2136 = vpop.f32.mrb[0].mxu0
        %v2137 = vpop.f32.mrb[0].mxu0
        %v2138 = vpop.f32.mrb[0].mxu0
        %2139 = vdwg.mxu0
        %2140 = vrot.lane.b32.xlu0 %v678, 104
        %v2141 = vpop.permute.xlu0 %2140
        %2142 = vrot.lane.b32.xlu0 %v678, 72
        %v2143 = vpop.permute.xlu0 %2142
        %v2145 = vsel %vm682, %v2141, 0
        %v2148 = vsel %vm682, %v2143, 0
        %2150 = vmatprep.subr.bf16.mxu0 0
        %2151 = vmatpush1.bf16.xpose.msra.mxu0 %v2148
        %2152 = vmatprep.subr.bf16.mxu0 0
        %2153 = vmatpush1.bf16.xpose.msra.mxu0 0
        %2154 = vmatprep.subr.bf16.mxu0 0
        %2155 = vmatpush1.bf16.xpose.msra.mxu0 0
        %2156 = vmatprep.subr.bf16.mxu0 0
        %2157 = vmatpush1.bf16.xpose.msra.mxu0 0
        %2158 = vmatprep.subr.bf16.mxu0 0
        %2159 = vmatpush1.bf16.xpose.msra.mxu0 0
        %2160 = vmatprep.subr.bf16.mxu0 0
        %2161 = vmatpush1.bf16.xpose.msra.mxu0 0
        %2162 = vmatprep.subr.bf16.mxu0 0
        %2163 = vmatpush1.bf16.xpose.msra.mxu0 0
        %2164 = vmatprep.subr.bf16.mxu0 0
        %2165 = vmatpush1.bf16.xpose.msra.mxu0 0
        %2166 = vmatprep.subr.bf16.mxu0 0
        %2167 = vmatpush1.bf16.xpose.msra.mxu0 0
        %2168 = vmatprep.subr.bf16.mxu0 0
        %2169 = vmatpush1.bf16.xpose.msra.mxu0 0
        %2170 = vmatprep.subr.bf16.mxu0 0
        %2171 = vmatpush1.bf16.xpose.msra.mxu0 0
        %2172 = vmatprep.subr.bf16.mxu0 0
        %2173 = vmatpush1.bf16.xpose.msra.mxu0 0
        %2174 = vmatprep.subr.bf16.mxu0 0
        %2175 = vmatpush1.bf16.xpose.msra.mxu0 0
        %2176 = vmatprep.subr.bf16.mxu0 0
        %2177 = vmatpush1.bf16.xpose.msra.mxu0 0
        %2178 = vmatprep.subr.bf16.mxu0 0
        %2179 = vmatpush1.bf16.xpose.msra.mxu0 0
        %2180 = vmatprep.subr.bf16.mxu0 0
        %2181 = vmatpush1.bf16.xpose.msra.mxu0 0
        %2182 = vmatprep.mubr.bf16.mxu0 0
        %2183 = vmatmul.mubr.bf16.gmra.mrb[0].mxu0 %v2145
        %v2184 = vpop.f32.mrb[0].mxu0
        %v2185 = vadd.f32 0.0, %v2184
        %v2186 = vpop.f32.mrb[0].mxu0
        %v2187 = vpop.f32.mrb[0].mxu0
        %v2188 = vpop.f32.mrb[0].mxu0
        %2189 = vdwg.mxu0
        %2190 = vrot.lane.b32.xlu0 %v679, 104
        %v2191 = vpop.permute.xlu0 %2190
        %2192 = vrot.lane.b32.xlu0 %v679, 72
        %v2193 = vpop.permute.xlu0 %2192
        %v2195 = vsel %vm682, %v2191, 0
        %v2198 = vsel %vm682, %v2193, 0
        %2200 = vmatprep.subr.bf16.mxu0 0
        %2201 = vmatpush1.bf16.xpose.msra.mxu0 %v2198
        %2202 = vmatprep.subr.bf16.mxu0 0
        %2203 = vmatpush1.bf16.xpose.msra.mxu0 0
        %2204 = vmatprep.subr.bf16.mxu0 0
        %2205 = vmatpush1.bf16.xpose.msra.mxu0 0
        %2206 = vmatprep.subr.bf16.mxu0 0
        %2207 = vmatpush1.bf16.xpose.msra.mxu0 0
        %2208 = vmatprep.subr.bf16.mxu0 0
        %2209 = vmatpush1.bf16.xpose.msra.mxu0 0
        %2210 = vmatprep.subr.bf16.mxu0 0
        %2211 = vmatpush1.bf16.xpose.msra.mxu0 0
        %2212 = vmatprep.subr.bf16.mxu0 0
        %2213 = vmatpush1.bf16.xpose.msra.mxu0 0
        %2214 = vmatprep.subr.bf16.mxu0 0
        %2215 = vmatpush1.bf16.xpose.msra.mxu0 0
        %2216 = vmatprep.subr.bf16.mxu0 0
        %2217 = vmatpush1.bf16.xpose.msra.mxu0 0
        %2218 = vmatprep.subr.bf16.mxu0 0
        %2219 = vmatpush1.bf16.xpose.msra.mxu0 0
        %2220 = vmatprep.subr.bf16.mxu0 0
        %2221 = vmatpush1.bf16.xpose.msra.mxu0 0
        %2222 = vmatprep.subr.bf16.mxu0 0
        %2223 = vmatpush1.bf16.xpose.msra.mxu0 0
        %2224 = vmatprep.subr.bf16.mxu0 0
        %2225 = vmatpush1.bf16.xpose.msra.mxu0 0
        %2226 = vmatprep.subr.bf16.mxu0 0
        %2227 = vmatpush1.bf16.xpose.msra.mxu0 0
        %2228 = vmatprep.subr.bf16.mxu0 0
        %2229 = vmatpush1.bf16.xpose.msra.mxu0 0
        %2230 = vmatprep.subr.bf16.mxu0 0
        %2231 = vmatpush1.bf16.xpose.msra.mxu0 0
        %2232 = vmatprep.mubr.bf16.mxu0 0
        %2233 = vmatmul.mubr.bf16.gmra.mrb[0].mxu0 %v2195
        %v2234 = vpop.f32.mrb[0].mxu0
        %v2235 = vadd.f32 0.0, %v2234
        %v2236 = vpop.f32.mrb[0].mxu0
        %v2237 = vpop.f32.mrb[0].mxu0
        %v2238 = vpop.f32.mrb[0].mxu0
        %2239 = vdwg.mxu0
        %v2240 = vsel %vm682, %v2085, -inf
        %2241 = vmax.xlane.f32.xlu0 %v2240
        %v2242 = vpop.xlane.xlu0 %2241
        %v2243 = vsel %vm682, %v2135, -inf
        %2244 = vmax.xlane.f32.xlu0 %v2243
        %v2245 = vpop.xlane.xlu0 %2244
        %v2246 = vsel %vm682, %v2185, -inf
        %2247 = vmax.xlane.f32.xlu0 %v2246
        %v2248 = vpop.xlane.xlu0 %2247
        %v2249 = vsel %vm682, %v2235, -inf
        %2250 = vmax.xlane.f32.xlu0 %v2249
        %v2251 = vpop.xlane.xlu0 %2250
        %v2252 = vsub.f32 %v2085, %v2242
        %v2253 = vsub.f32 %v2135, %v2245
        %v2254 = vsub.f32 %v2185, %v2248
        %v2255 = vsub.f32 %v2235, %v2251
        %v2256 = vmul.f32 %v2252, 1.442695
        %v2257 = vpow.pop %v2256
        %v2258 = vmul.f32 %v2253, 1.442695
        %v2259 = vpow.pop %v2258
        %v2260 = vmul.f32 %v2254, 1.442695
        %v2261 = vpow.pop %v2260
        %v2262 = vmul.f32 %v2255, 1.442695
        %v2263 = vpow.pop %v2262
        %v2264 = vsel %vm682, %v2257, 0.0
        %2265 = vadd.xlane.f32.xlu0 %v2264
        %v2266 = vpop.xlane.xlu0 %2265
        %v2267 = vsel %vm682, %v2259, 0.0
        %2268 = vadd.xlane.f32.xlu0 %v2267
        %v2269 = vpop.xlane.xlu0 %2268
        %v2270 = vsel %vm682, %v2261, 0.0
        %2271 = vadd.xlane.f32.xlu0 %v2270
        %v2272 = vpop.xlane.xlu0 %2271
        %v2273 = vsel %vm682, %v2263, 0.0
        %2274 = vadd.xlane.f32.xlu0 %v2273
        %v2275 = vpop.xlane.xlu0 %2274
        %v2276 = vrcp.pop %v2266
        %v2277 = vrcp.pop %v2269
        %v2278 = vrcp.pop %v2272
        %v2279 = vrcp.pop %v2275
        %v2280 = vmul.f32 %v2257, %v2276
        %v2281 = vmul.f32 %v2259, %v2277
        %v2282 = vmul.f32 %v2261, %v2278
        %v2283 = vmul.f32 %v2263, %v2279
        %v2284 = vpack.c.bf16 %v2280, %v2280
        %v2285 = vpack.c.bf16 %v2281, %v2281
        %v2286 = vpack.c.bf16 %v2282, %v2282
        %v2287 = vpack.c.bf16 %v2283, %v2283
        %2288 = vrot.lane.b32.xlu0 %v676, 40
        %v2289 = vpop.permute.xlu0 %2288
        %v2291 = vsel %vm682, %v2284, 0
        %v2294 = vsel %vm926, %v2289, 0
        %2296 = vmatprep.subr.bf16.mxu0 0
        %2297 = vmatpush1.bf16.msra.mxu0 %v2294
        %2298 = vmatprep.subr.bf16.mxu0 0
        %2299 = vmatpush1.bf16.msra.mxu0 0
        %2300 = vmatprep.subr.bf16.mxu0 0
        %2301 = vmatpush1.bf16.msra.mxu0 0
        %2302 = vmatprep.subr.bf16.mxu0 0
        %2303 = vmatpush1.bf16.msra.mxu0 0
        %2304 = vmatprep.subr.bf16.mxu0 0
        %2305 = vmatpush1.bf16.msra.mxu0 0
        %2306 = vmatprep.subr.bf16.mxu0 0
        %2307 = vmatpush1.bf16.msra.mxu0 0
        %2308 = vmatprep.subr.bf16.mxu0 0
        %2309 = vmatpush1.bf16.msra.mxu0 0
        %2310 = vmatprep.subr.bf16.mxu0 0
        %2311 = vmatpush1.bf16.msra.mxu0 0
        %2312 = vmatprep.subr.bf16.mxu0 0
        %2313 = vmatpush1.bf16.msra.mxu0 0
        %2314 = vmatprep.subr.bf16.mxu0 0
        %2315 = vmatpush1.bf16.msra.mxu0 0
        %2316 = vmatprep.subr.bf16.mxu0 0
        %2317 = vmatpush1.bf16.msra.mxu0 0
        %2318 = vmatprep.subr.bf16.mxu0 0
        %2319 = vmatpush1.bf16.msra.mxu0 0
        %2320 = vmatprep.subr.bf16.mxu0 0
        %2321 = vmatpush1.bf16.msra.mxu0 0
        %2322 = vmatprep.subr.bf16.mxu0 0
        %2323 = vmatpush1.bf16.msra.mxu0 0
        %2324 = vmatprep.subr.bf16.mxu0 0
        %2325 = vmatpush1.bf16.msra.mxu0 0
        %2326 = vmatprep.subr.bf16.mxu0 0
        %2327 = vmatpush1.bf16.msra.mxu0 0
        %2328 = vmatprep.mubr.bf16.mxu0 0
        %2329 = vmatmul.mubr.bf16.gmra.mrb[0].mxu0 %v2291
        %v2330 = vpop.f32.mrb[0].mxu0
        %v2331 = vadd.f32 0.0, %v2330
        %v2332 = vpop.f32.mrb[0].mxu0
        %v2333 = vpop.f32.mrb[0].mxu0
        %v2334 = vpop.f32.mrb[0].mxu0
        %2335 = vdwg.mxu0
        %2336 = vrot.lane.b32.xlu0 %v677, 40
        %v2337 = vpop.permute.xlu0 %2336
        %v2339 = vsel %vm682, %v2285, 0
        %v2342 = vsel %vm926, %v2337, 0
        %2344 = vmatprep.subr.bf16.mxu0 0
        %2345 = vmatpush1.bf16.msra.mxu0 %v2342
        %2346 = vmatprep.subr.bf16.mxu0 0
        %2347 = vmatpush1.bf16.msra.mxu0 0
        %2348 = vmatprep.subr.bf16.mxu0 0
        %2349 = vmatpush1.bf16.msra.mxu0 0
        %2350 = vmatprep.subr.bf16.mxu0 0
        %2351 = vmatpush1.bf16.msra.mxu0 0
        %2352 = vmatprep.subr.bf16.mxu0 0
        %2353 = vmatpush1.bf16.msra.mxu0 0
        %2354 = vmatprep.subr.bf16.mxu0 0
        %2355 = vmatpush1.bf16.msra.mxu0 0
        %2356 = vmatprep.subr.bf16.mxu0 0
        %2357 = vmatpush1.bf16.msra.mxu0 0
        %2358 = vmatprep.subr.bf16.mxu0 0
        %2359 = vmatpush1.bf16.msra.mxu0 0
        %2360 = vmatprep.subr.bf16.mxu0 0
        %2361 = vmatpush1.bf16.msra.mxu0 0
        %2362 = vmatprep.subr.bf16.mxu0 0
        %2363 = vmatpush1.bf16.msra.mxu0 0
        %2364 = vmatprep.subr.bf16.mxu0 0
        %2365 = vmatpush1.bf16.msra.mxu0 0
        %2366 = vmatprep.subr.bf16.mxu0 0
        %2367 = vmatpush1.bf16.msra.mxu0 0
        %2368 = vmatprep.subr.bf16.mxu0 0
        %2369 = vmatpush1.bf16.msra.mxu0 0
        %2370 = vmatprep.subr.bf16.mxu0 0
        %2371 = vmatpush1.bf16.msra.mxu0 0
        %2372 = vmatprep.subr.bf16.mxu0 0
        %2373 = vmatpush1.bf16.msra.mxu0 0
        %2374 = vmatprep.subr.bf16.mxu0 0
        %2375 = vmatpush1.bf16.msra.mxu0 0
        %2376 = vmatprep.mubr.bf16.mxu0 0
        %2377 = vmatmul.mubr.bf16.gmra.mrb[0].mxu0 %v2339
        %v2378 = vpop.f32.mrb[0].mxu0
        %v2379 = vadd.f32 0.0, %v2378
        %v2380 = vpop.f32.mrb[0].mxu0
        %v2381 = vpop.f32.mrb[0].mxu0
        %v2382 = vpop.f32.mrb[0].mxu0
        %2383 = vdwg.mxu0
        %2384 = vrot.lane.b32.xlu0 %v678, 40
        %v2385 = vpop.permute.xlu0 %2384
        %v2387 = vsel %vm682, %v2286, 0
        %v2390 = vsel %vm926, %v2385, 0
        %2392 = vmatprep.subr.bf16.mxu0 0
        %2393 = vmatpush1.bf16.msra.mxu0 %v2390
        %2394 = vmatprep.subr.bf16.mxu0 0
        %2395 = vmatpush1.bf16.msra.mxu0 0
        %2396 = vmatprep.subr.bf16.mxu0 0
        %2397 = vmatpush1.bf16.msra.mxu0 0
        %2398 = vmatprep.subr.bf16.mxu0 0
        %2399 = vmatpush1.bf16.msra.mxu0 0
        %2400 = vmatprep.subr.bf16.mxu0 0
        %2401 = vmatpush1.bf16.msra.mxu0 0
        %2402 = vmatprep.subr.bf16.mxu0 0
        %2403 = vmatpush1.bf16.msra.mxu0 0
        %2404 = vmatprep.subr.bf16.mxu0 0
        %2405 = vmatpush1.bf16.msra.mxu0 0
        %2406 = vmatprep.subr.bf16.mxu0 0
        %2407 = vmatpush1.bf16.msra.mxu0 0
        %2408 = vmatprep.subr.bf16.mxu0 0
        %2409 = vmatpush1.bf16.msra.mxu0 0
        %2410 = vmatprep.subr.bf16.mxu0 0
        %2411 = vmatpush1.bf16.msra.mxu0 0
        %2412 = vmatprep.subr.bf16.mxu0 0
        %2413 = vmatpush1.bf16.msra.mxu0 0
        %2414 = vmatprep.subr.bf16.mxu0 0
        %2415 = vmatpush1.bf16.msra.mxu0 0
        %2416 = vmatprep.subr.bf16.mxu0 0
        %2417 = vmatpush1.bf16.msra.mxu0 0
        %2418 = vmatprep.subr.bf16.mxu0 0
        %2419 = vmatpush1.bf16.msra.mxu0 0
        %2420 = vmatprep.subr.bf16.mxu0 0
        %2421 = vmatpush1.bf16.msra.mxu0 0
        %2422 = vmatprep.subr.bf16.mxu0 0
        %2423 = vmatpush1.bf16.msra.mxu0 0
        %2424 = vmatprep.mubr.bf16.mxu0 0
        %2425 = vmatmul.mubr.bf16.gmra.mrb[0].mxu0 %v2387
        %v2426 = vpop.f32.mrb[0].mxu0
        %v2427 = vadd.f32 0.0, %v2426
        %v2428 = vpop.f32.mrb[0].mxu0
        %v2429 = vpop.f32.mrb[0].mxu0
        %v2430 = vpop.f32.mrb[0].mxu0
        %2431 = vdwg.mxu0
        %2432 = vrot.lane.b32.xlu0 %v679, 40
        %v2433 = vpop.permute.xlu0 %2432
        %v2435 = vsel %vm682, %v2287, 0
        %v2438 = vsel %vm926, %v2433, 0
        %2440 = vmatprep.subr.bf16.mxu0 0
        %2441 = vmatpush1.bf16.msra.mxu0 %v2438
        %2442 = vmatprep.subr.bf16.mxu0 0
        %2443 = vmatpush1.bf16.msra.mxu0 0
        %2444 = vmatprep.subr.bf16.mxu0 0
        %2445 = vmatpush1.bf16.msra.mxu0 0
        %2446 = vmatprep.subr.bf16.mxu0 0
        %2447 = vmatpush1.bf16.msra.mxu0 0
        %2448 = vmatprep.subr.bf16.mxu0 0
        %2449 = vmatpush1.bf16.msra.mxu0 0
        %2450 = vmatprep.subr.bf16.mxu0 0
        %2451 = vmatpush1.bf16.msra.mxu0 0
        %2452 = vmatprep.subr.bf16.mxu0 0
        %2453 = vmatpush1.bf16.msra.mxu0 0
        %2454 = vmatprep.subr.bf16.mxu0 0
        %2455 = vmatpush1.bf16.msra.mxu0 0
        %2456 = vmatprep.subr.bf16.mxu0 0
        %2457 = vmatpush1.bf16.msra.mxu0 0
        %2458 = vmatprep.subr.bf16.mxu0 0
        %2459 = vmatpush1.bf16.msra.mxu0 0
        %2460 = vmatprep.subr.bf16.mxu0 0
        %2461 = vmatpush1.bf16.msra.mxu0 0
        %2462 = vmatprep.subr.bf16.mxu0 0
        %2463 = vmatpush1.bf16.msra.mxu0 0
        %2464 = vmatprep.subr.bf16.mxu0 0
        %2465 = vmatpush1.bf16.msra.mxu0 0
        %2466 = vmatprep.subr.bf16.mxu0 0
        %2467 = vmatpush1.bf16.msra.mxu0 0
        %2468 = vmatprep.subr.bf16.mxu0 0
        %2469 = vmatpush1.bf16.msra.mxu0 0
        %2470 = vmatprep.subr.bf16.mxu0 0
        %2471 = vmatpush1.bf16.msra.mxu0 0
        %2472 = vmatprep.mubr.bf16.mxu0 0
        %2473 = vmatmul.mubr.bf16.gmra.mrb[0].mxu0 %v2435
        %v2474 = vpop.f32.mrb[0].mxu0
        %v2475 = vadd.f32 0.0, %v2474
        %v2476 = vpop.f32.mrb[0].mxu0
        %v2477 = vpop.f32.mrb[0].mxu0
        %v2478 = vpop.f32.mrb[0].mxu0
        %2479 = vdwg.mxu0
        %2484 = vrot.lane.b32.xlu0 %v2331, 24
        %v2485 = vpop.permute.xlu0 %2484
        %2486 = vrot.lane.b32.xlu0 %v2379, 24
        %v2487 = vpop.permute.xlu0 %2486
        %2488 = vrot.lane.b32.xlu0 %v2427, 24
        %v2489 = vpop.permute.xlu0 %2488
        %2490 = vrot.lane.b32.xlu0 %v2475, 24
        %v2491 = vpop.permute.xlu0 %2490
        %vm2496 = vcmask 261312
        %2497 = vst.msk [vmem:[#allocation2] sm:$0xff] %vm2496, %v2485
        %2498 = vst.msk [vmem:[#allocation2 + $0x8] sm:$0xff] %vm2496, %v2487
        %2499 = vst.msk [vmem:[#allocation2 + $0x10] sm:$0xff] %vm2496, %v2489
        %2500 = vst.msk [vmem:[#allocation2 + $0x18] sm:$0xff] %vm2496, %v2491
        %v2501 = vld [vmem:[#allocation2] sm:$0xff]
        %v2502 = vld [vmem:[#allocation2 + $0x8] sm:$0xff]
        %v2503 = vld [vmem:[#allocation2 + $0x10] sm:$0xff]
        %v2504 = vld [vmem:[#allocation2 + $0x18] sm:$0xff]
        %v2505 = vpack.c.bf16 %v2502, %v2501
        %v2506 = vpack.c.bf16 %v2504, %v2503
        %v2507 = vld [vmem:[#allocation6] sm:$0xf]
        %v2508 = vld [vmem:[#allocation6 + $0x4] sm:$0xf]
        %v2509 = vld [vmem:[#allocation6 + $0x8] sm:$0xf]
        %v2510 = vld [vmem:[#allocation6 + $0xc] sm:$0xf]
        %v2511 = vld [vmem:[#allocation8] sm:$0x1]
        %v2513 = vlaneseq
        %v2514 = vshrl.u32 %v2513, 7
        %v2515 = vsub.s32 0, %v2514
        %v2516 = vrot.slane %v2511, %v2515
        %v2522 = vunpack.c.l.b16 %v2507
        %v2523 = vunpack.c.l.b16 %v2508
        %v2524 = vunpack.c.l.b16 %v2509
        %v2525 = vunpack.c.l.b16 %v2510
        %v2526 = vpack.c.b16 %v2523, %v2522
        %v2527 = vpack.c.b16 %v2525, %v2524
        %v2531 = vsel %vm514, %v2505, 0
        %v2534 = vsel %vm514, %v2506, 0
        %2536 = vmatprep.subr.bf16.mxu0 0
        %2537 = vmatpush1.bf16.msra.mxu0 %v2526
        %2538 = vmatprep.subr.bf16.mxu0 0
        %2539 = vmatpush1.bf16.msra.mxu0 %v2527
        %2540 = vmatprep.subr.bf16.mxu0 0
        %2541 = vmatpush1.bf16.msra.mxu0 0
        %2542 = vmatprep.subr.bf16.mxu0 0
        %2543 = vmatpush1.bf16.msra.mxu0 0
        %2544 = vmatprep.subr.bf16.mxu0 0
        %2545 = vmatpush1.bf16.msra.mxu0 0
        %2546 = vmatprep.subr.bf16.mxu0 0
        %2547 = vmatpush1.bf16.msra.mxu0 0
        %2548 = vmatprep.subr.bf16.mxu0 0
        %2549 = vmatpush1.bf16.msra.mxu0 0
        %2550 = vmatprep.subr.bf16.mxu0 0
        %2551 = vmatpush1.bf16.msra.mxu0 0
        %2552 = vmatprep.subr.bf16.mxu0 0
        %2553 = vmatpush1.bf16.msra.mxu0 0
        %2554 = vmatprep.subr.bf16.mxu0 0
        %2555 = vmatpush1.bf16.msra.mxu0 0
        %2556 = vmatprep.subr.bf16.mxu0 0
        %2557 = vmatpush1.bf16.msra.mxu0 0
        %2558 = vmatprep.subr.bf16.mxu0 0
        %2559 = vmatpush1.bf16.msra.mxu0 0
        %2560 = vmatprep.subr.bf16.mxu0 0
        %2561 = vmatpush1.bf16.msra.mxu0 0
        %2562 = vmatprep.subr.bf16.mxu0 0
        %2563 = vmatpush1.bf16.msra.mxu0 0
        %2564 = vmatprep.subr.bf16.mxu0 0
        %2565 = vmatpush1.bf16.msra.mxu0 0
        %2566 = vmatprep.subr.bf16.mxu0 0
        %2567 = vmatpush1.bf16.msra.mxu0 0
        %2568 = vmatprep.mubr.bf16.mxu0 0
        %2569 = vmatmul.mubr.bf16.gmra.mrb[0].mxu0 %v2531
        %v2570 = vpop.f32.mrb[0].mxu0
        %v2571 = vadd.f32 %v2516, %v2570
        %v2572 = vpop.f32.mrb[0].mxu0
        %v2573 = vpop.f32.mrb[0].mxu0
        %v2574 = vadd.f32 %v2516, %v2573
        %v2575 = vpop.f32.mrb[0].mxu0
        %2576 = vmatprep.mubr.bf16.mxu0 0
        %2577 = vmatmul.mubr.bf16.gmra.mrb[0].mxu0 %v2534
        %v2578 = vpop.f32.mrb[0].mxu0
        %v2579 = vadd.f32 %v2516, %v2578
        %v2580 = vpop.f32.mrb[0].mxu0
        %v2581 = vpop.f32.mrb[0].mxu0
        %v2582 = vadd.f32 %v2516, %v2581
        %v2583 = vpop.f32.mrb[0].mxu0
        %2584 = vdwg.mxu0
        %v2585 = vadd.f32 %v508, %v2571
        %v2586 = vadd.f32 %v509, %v2574
        %v2587 = vadd.f32 %v510, %v2579
        %v2588 = vadd.f32 %v511, %v2582
        %v2589 = vld [vmem:[#allocation9] sm:$0x1]
        %v2590 = vld [vmem:[#allocation11] sm:$0x1]
        %v2591 = vsel %vm514, %v2585, 0.0
        %2592 = vadd.xlane.f32.xlu0 %v2591
        %v2593 = vpop.xlane.xlu0 %2592
        %v2594 = vsel %vm514, %v2586, 0.0
        %2595 = vadd.xlane.f32.xlu0 %v2594
        %v2596 = vpop.xlane.xlu0 %2595
        %v2597 = vsel %vm514, %v2587, 0.0
        %2598 = vadd.xlane.f32.xlu0 %v2597
        %v2599 = vpop.xlane.xlu0 %2598
        %v2600 = vsel %vm514, %v2588, 0.0
        %2601 = vadd.xlane.f32.xlu0 %v2600
        %v2602 = vpop.xlane.xlu0 %2601
        %v2603 = vmul.f32 %v2593, %v527
        %v2604 = vmul.f32 %v2596, %v527
        %v2605 = vmul.f32 %v2599, %v527
        %v2606 = vmul.f32 %v2602, %v527
        %v2607 = vsub.f32 %v2585, %v2603
        %v2608 = vsub.f32 %v2586, %v2604
        %v2609 = vsub.f32 %v2587, %v2605
        %v2610 = vsub.f32 %v2588, %v2606
        %v2611 = vmul.f32 %v2607, %v2607
        %v2612 = vmul.f32 %v2608, %v2608
        %v2613 = vmul.f32 %v2609, %v2609
        %v2614 = vmul.f32 %v2610, %v2610
        %v2615 = vsel %vm514, %v2611, 0.0
        %2616 = vadd.xlane.f32.xlu0 %v2615
        %v2617 = vpop.xlane.xlu0 %2616
        %v2618 = vsel %vm514, %v2612, 0.0
        %2619 = vadd.xlane.f32.xlu0 %v2618
        %v2620 = vpop.xlane.xlu0 %2619
        %v2621 = vsel %vm514, %v2613, 0.0
        %2622 = vadd.xlane.f32.xlu0 %v2621
        %v2623 = vpop.xlane.xlu0 %2622
        %v2624 = vsel %vm514, %v2614, 0.0
        %2625 = vadd.xlane.f32.xlu0 %v2624
        %v2626 = vpop.xlane.xlu0 %2625
        %v2627 = vmul.f32 %v2617, %v527
        %v2628 = vmul.f32 %v2620, %v527
        %v2629 = vmul.f32 %v2623, %v527
        %v2630 = vmul.f32 %v2626, %v527
        %v2631 = vadd.f32 %v2627, 1e-05
        %v2632 = vadd.f32 %v2628, 1e-05
        %v2633 = vadd.f32 %v2629, 1e-05
        %v2634 = vadd.f32 %v2630, 1e-05
        %v2635 = vrsqrt.pop %v2631
        %v2636 = vrsqrt.pop %v2632
        %v2637 = vrsqrt.pop %v2633
        %v2638 = vrsqrt.pop %v2634
        %v2639 = vmul.f32 %v2607, %v2635
        %v2640 = vmul.f32 %v2608, %v2636
        %v2641 = vmul.f32 %v2609, %v2637
        %v2642 = vmul.f32 %v2610, %v2638
        %v2644 = vlaneseq
        %v2645 = vshrl.u32 %v2644, 7
        %v2646 = vsub.s32 0, %v2645
        %v2647 = vrot.slane %v2589, %v2646
        %v2649 = vmul.f32 %v2639, %v2647
        %v2650 = vmul.f32 %v2640, %v2647
        %v2651 = vmul.f32 %v2641, %v2647
        %v2652 = vmul.f32 %v2642, %v2647
        %v2654 = vlaneseq
        %v2655 = vshrl.u32 %v2654, 7
        %v2656 = vsub.s32 0, %v2655
        %v2657 = vrot.slane %v2590, %v2656
        %v2659 = vadd.f32 %v2649, %v2657
        %v2660 = vadd.f32 %v2650, %v2657
        %v2661 = vadd.f32 %v2651, %v2657
        %v2662 = vadd.f32 %v2652, %v2657
        %v2663 = vpack.c.bf16 %v2660, %v2659
        %v2664 = vpack.c.bf16 %v2662, %v2661
        %v2665 = vld [vmem:[%s9] sm:$0xf]
        %v2666 = vld [vmem:[%s9 + $0x4] sm:$0xf]
        %v2667 = vld [vmem:[%s9 + $0x8] sm:$0xf]
        %v2668 = vld [vmem:[%s9 + $0xc] sm:$0xf]
        %v2669 = vld [vmem:[%s10] sm:$0x1]
        %v2671 = vlaneseq
        %v2672 = vshrl.u32 %v2671, 7
        %v2673 = vsub.s32 0, %v2672
        %v2674 = vrot.slane %v2669, %v2673
        %v2680 = vunpack.c.l.b16 %v2665
        %v2681 = vunpack.c.l.b16 %v2666
        %v2682 = vunpack.c.l.b16 %v2667
        %v2683 = vunpack.c.l.b16 %v2668
        %v2684 = vpack.c.b16 %v2681, %v2680
        %v2685 = vpack.c.b16 %v2683, %v2682
        %v2689 = vsel %vm514, %v2663, 0
        %v2692 = vsel %vm514, %v2664, 0
        %2694 = vmatprep.subr.bf16.mxu0 0
        %2695 = vmatpush1.bf16.msra.mxu0 %v2684
        %2696 = vmatprep.subr.bf16.mxu0 0
        %2697 = vmatpush1.bf16.msra.mxu0 %v2685
        %2698 = vmatprep.subr.bf16.mxu0 0
        %2699 = vmatpush1.bf16.msra.mxu0 0
        %2700 = vmatprep.subr.bf16.mxu0 0
        %2701 = vmatpush1.bf16.msra.mxu0 0
        %2702 = vmatprep.subr.bf16.mxu0 0
        %2703 = vmatpush1.bf16.msra.mxu0 0
        %2704 = vmatprep.subr.bf16.mxu0 0
        %2705 = vmatpush1.bf16.msra.mxu0 0
        %2706 = vmatprep.subr.bf16.mxu0 0
        %2707 = vmatpush1.bf16.msra.mxu0 0
        %2708 = vmatprep.subr.bf16.mxu0 0
        %2709 = vmatpush1.bf16.msra.mxu0 0
        %2710 = vmatprep.subr.bf16.mxu0 0
        %2711 = vmatpush1.bf16.msra.mxu0 0
        %2712 = vmatprep.subr.bf16.mxu0 0
        %2713 = vmatpush1.bf16.msra.mxu0 0
        %2714 = vmatprep.subr.bf16.mxu0 0
        %2715 = vmatpush1.bf16.msra.mxu0 0
        %2716 = vmatprep.subr.bf16.mxu0 0
        %2717 = vmatpush1.bf16.msra.mxu0 0
        %2718 = vmatprep.subr.bf16.mxu0 0
        %2719 = vmatpush1.bf16.msra.mxu0 0
        %2720 = vmatprep.subr.bf16.mxu0 0
        %2721 = vmatpush1.bf16.msra.mxu0 0
        %2722 = vmatprep.subr.bf16.mxu0 0
        %2723 = vmatpush1.bf16.msra.mxu0 0
        %2724 = vmatprep.subr.bf16.mxu0 0
        %2725 = vmatpush1.bf16.msra.mxu0 0
        %2726 = vmatprep.mubr.bf16.mxu0 0
        %2727 = vmatmul.mubr.bf16.gmra.mrb[0].mxu0 %v2689
        %v2728 = vpop.f32.mrb[0].mxu0
        %v2729 = vadd.f32 %v2674, %v2728
        %v2730 = vpop.f32.mrb[0].mxu0
        %v2731 = vpop.f32.mrb[0].mxu0
        %v2732 = vadd.f32 %v2674, %v2731
        %v2733 = vpop.f32.mrb[0].mxu0
        %2734 = vmatprep.mubr.bf16.mxu0 0
        %2735 = vmatmul.mubr.bf16.gmra.mrb[0].mxu0 %v2692
        %v2736 = vpop.f32.mrb[0].mxu0
        %v2737 = vadd.f32 %v2674, %v2736
        %v2738 = vpop.f32.mrb[0].mxu0
        %v2739 = vpop.f32.mrb[0].mxu0
        %v2740 = vadd.f32 %v2674, %v2739
        %v2741 = vpop.f32.mrb[0].mxu0
        %2742 = vdwg.mxu0
        %v2743 = vmul.f32 %v2729, 0.5
        %v2744 = vmul.f32 %v2732, 0.5
        %v2745 = vmul.f32 %v2737, 0.5
        %v2746 = vmul.f32 %v2740, 0.5
        %v2747 = vmul.f32 %v2729, 0.70710677
        %v2748 = vmul.f32 %v2732, 0.70710677
        %v2749 = vmul.f32 %v2737, 0.70710677
        %v2750 = vmul.f32 %v2740, 0.70710677
        %v2751 = vand.u32 2147483647, %v2747
        %v2752 = vand.u32 2147483647, %v2748
        %v2753 = vand.u32 2147483647, %v2749
        %v2754 = vand.u32 2147483647, %v2750
        %v2755 = vmul.f32 %v2751, 0.3275911
        %v2756 = vmul.f32 %v2752, 0.3275911
        %v2757 = vmul.f32 %v2753, 0.3275911
        %v2758 = vmul.f32 %v2754, 0.3275911
        %v2759 = vadd.f32 %v2755, 1.0
        %v2760 = vadd.f32 %v2756, 1.0
        %v2761 = vadd.f32 %v2757, 1.0
        %v2762 = vadd.f32 %v2758, 1.0
        %v2763 = vrcp.pop %v2759
        %v2764 = vrcp.pop %v2760
        %v2765 = vrcp.pop %v2761
        %v2766 = vrcp.pop %v2762
        %v2767 = vmul.f32 %v2763, 1.0614054
        %v2768 = vmul.f32 %v2764, 1.0614054
        %v2769 = vmul.f32 %v2765, 1.0614054
        %v2770 = vmul.f32 %v2766, 1.0614054
        %v2771 = vadd.f32 %v2767, -1.4531521
        %v2772 = vadd.f32 %v2768, -1.4531521
        %v2773 = vadd.f32 %v2769, -1.4531521
        %v2774 = vadd.f32 %v2770, -1.4531521
        %v2775 = vmul.f32 %v2771, %v2763
        %v2776 = vmul.f32 %v2772, %v2764
        %v2777 = vmul.f32 %v2773, %v2765
        %v2778 = vmul.f32 %v2774, %v2766
        %v2779 = vadd.f32 %v2775, 1.4214138
        %v2780 = vadd.f32 %v2776, 1.4214138
        %v2781 = vadd.f32 %v2777, 1.4214138
        %v2782 = vadd.f32 %v2778, 1.4214138
        %v2783 = vmul.f32 %v2779, %v2763
        %v2784 = vmul.f32 %v2780, %v2764
        %v2785 = vmul.f32 %v2781, %v2765
        %v2786 = vmul.f32 %v2782, %v2766
        %v2787 = vadd.f32 %v2783, -0.28449672
        %v2788 = vadd.f32 %v2784, -0.28449672
        %v2789 = vadd.f32 %v2785, -0.28449672
        %v2790 = vadd.f32 %v2786, -0.28449672
        %v2791 = vmul.f32 %v2787, %v2763
        %v2792 = vmul.f32 %v2788, %v2764
        %v2793 = vmul.f32 %v2789, %v2765
        %v2794 = vmul.f32 %v2790, %v2766
        %v2795 = vadd.f32 %v2791, 0.2548296
        %v2796 = vadd.f32 %v2792, 0.2548296
        %v2797 = vadd.f32 %v2793, 0.2548296
        %v2798 = vadd.f32 %v2794, 0.2548296
        %v2799 = vmul.f32 %v2795, %v2763
        %v2800 = vmul.f32 %v2796, %v2764
        %v2801 = vmul.f32 %v2797, %v2765
        %v2802 = vmul.f32 %v2798, %v2766
        %v2803 = vsub.f32 0.0, %v2751
        %v2804 = vsub.f32 0.0, %v2752
        %v2805 = vsub.f32 0.0, %v2753
        %v2806 = vsub.f32 0.0, %v2754
        %v2807 = vmul.f32 %v2803, %v2751
        %v2808 = vmul.f32 %v2804, %v2752
        %v2809 = vmul.f32 %v2805, %v2753
        %v2810 = vmul.f32 %v2806, %v2754
        %v2811 = vmul.f32 %v2807, 1.442695
        %v2812 = vpow.pop %v2811
        %v2813 = vmul.f32 %v2808, 1.442695
        %v2814 = vpow.pop %v2813
        %v2815 = vmul.f32 %v2809, 1.442695
        %v2816 = vpow.pop %v2815
        %v2817 = vmul.f32 %v2810, 1.442695
        %v2818 = vpow.pop %v2817
        %v2819 = vmul.f32 %v2799, %v2812
        %v2820 = vmul.f32 %v2800, %v2814
        %v2821 = vmul.f32 %v2801, %v2816
        %v2822 = vmul.f32 %v2802, %v2818
        %v2823 = vsub.f32 1.0, %v2819
        %v2824 = vsub.f32 1.0, %v2820
        %v2825 = vsub.f32 1.0, %v2821
        %v2826 = vsub.f32 1.0, %v2822
        %vm2827 = vcmp.ge.f32.partialorder %v2747, 0.0
        %vm2828 = vcmp.ge.f32.partialorder %v2748, 0.0
        %vm2829 = vcmp.ge.f32.partialorder %v2749, 0.0
        %vm2830 = vcmp.ge.f32.partialorder %v2750, 0.0
        %v2831 = vsub.f32 0.0, %v2823
        %v2832 = vsub.f32 0.0, %v2824
        %v2833 = vsub.f32 0.0, %v2825
        %v2834 = vsub.f32 0.0, %v2826
        %v2835 = vsel %vm2827, %v2823, %v2831
        %v2836 = vsel %vm2828, %v2824, %v2832
        %v2837 = vsel %vm2829, %v2825, %v2833
        %v2838 = vsel %vm2830, %v2826, %v2834
        %v2839 = vadd.f32 %v2835, 1.0
        %v2840 = vadd.f32 %v2836, 1.0
        %v2841 = vadd.f32 %v2837, 1.0
        %v2842 = vadd.f32 %v2838, 1.0
        %v2843 = vmul.f32 %v2743, %v2839
        %v2844 = vmul.f32 %v2744, %v2840
        %v2845 = vmul.f32 %v2745, %v2841
        %v2846 = vmul.f32 %v2746, %v2842
        %v2847 = vpack.c.bf16 %v2844, %v2843
        %v2848 = vpack.c.bf16 %v2846, %v2845
        %v2849 = vld [vmem:[%s11] sm:$0xf]
        %v2850 = vld [vmem:[%s11 + $0x4] sm:$0xf]
        %v2851 = vld [vmem:[%s11 + $0x8] sm:$0xf]
        %v2852 = vld [vmem:[%s11 + $0xc] sm:$0xf]
        %v2853 = vld [vmem:[%s11 + $0x10] sm:$0xf]
        %v2854 = vld [vmem:[%s11 + $0x14] sm:$0xf]
        %v2855 = vld [vmem:[%s11 + $0x18] sm:$0xf]
        %v2856 = vld [vmem:[%s11 + $0x1c] sm:$0xf]
        %v2857 = vld [vmem:[%s11 + $0x20] sm:$0xf]
        %v2858 = vld [vmem:[%s11 + $0x24] sm:$0xf]
        %v2859 = vld [vmem:[%s11 + $0x28] sm:$0xf]
        %v2860 = vld [vmem:[%s11 + $0x2c] sm:$0xf]
        %v2861 = vld [vmem:[%s11 + $0x30] sm:$0xf]
        %v2862 = vld [vmem:[%s11 + $0x34] sm:$0xf]
        %v2863 = vld [vmem:[%s11 + $0x38] sm:$0xf]
        %v2864 = vld [vmem:[%s11 + $0x3c] sm:$0xf]
        %v2865 = vld [vmem:[%s12] sm:$0x1]
        %v2867 = vlaneseq
        %v2868 = vshrl.u32 %v2867, 7
        %v2869 = vsub.s32 0, %v2868
        %v2870 = vrot.slane %v2865, %v2869
        %v2888 = vunpack.c.l.b16 %v2849
        %v2889 = vunpack.c.l.b16 %v2850
        %v2890 = vunpack.c.l.b16 %v2851
        %v2891 = vunpack.c.l.b16 %v2852
        %v2892 = vunpack.c.l.b16 %v2853
        %v2893 = vunpack.c.l.b16 %v2854
        %v2894 = vunpack.c.l.b16 %v2855
        %v2895 = vunpack.c.l.b16 %v2856
        %v2896 = vunpack.c.l.b16 %v2857
        %v2897 = vunpack.c.l.b16 %v2858
        %v2898 = vunpack.c.l.b16 %v2859
        %v2899 = vunpack.c.l.b16 %v2860
        %v2900 = vunpack.c.l.b16 %v2861
        %v2901 = vunpack.c.l.b16 %v2862
        %v2902 = vunpack.c.l.b16 %v2863
        %v2903 = vunpack.c.l.b16 %v2864
        %v2904 = vpack.c.b16 %v2889, %v2888
        %v2905 = vpack.c.b16 %v2891, %v2890
        %v2906 = vpack.c.b16 %v2893, %v2892
        %v2907 = vpack.c.b16 %v2895, %v2894
        %v2908 = vpack.c.b16 %v2897, %v2896
        %v2909 = vpack.c.b16 %v2899, %v2898
        %v2910 = vpack.c.b16 %v2901, %v2900
        %v2911 = vpack.c.b16 %v2903, %v2902
        %2920 = vmatprep.subr.bf16.mxu0 0
        %2921 = vmatpush1.bf16.msra.mxu0 %v2904
        %2922 = vmatprep.subr.bf16.mxu0 0
        %2923 = vmatpush1.bf16.msra.mxu0 %v2905
        %2924 = vmatprep.subr.bf16.mxu0 0
        %2925 = vmatpush1.bf16.msra.mxu0 %v2906
        %2926 = vmatprep.subr.bf16.mxu0 0
        %2927 = vmatpush1.bf16.msra.mxu0 %v2907
        %2928 = vmatprep.subr.bf16.mxu0 0
        %2929 = vmatpush1.bf16.msra.mxu0 %v2908
        %2930 = vmatprep.subr.bf16.mxu0 0
        %2931 = vmatpush1.bf16.msra.mxu0 %v2909
        %2932 = vmatprep.subr.bf16.mxu0 0
        %2933 = vmatpush1.bf16.msra.mxu0 %v2910
        %2934 = vmatprep.subr.bf16.mxu0 0
        %2935 = vmatpush1.bf16.msra.mxu0 %v2911
        %2936 = vmatprep.subr.bf16.mxu0 0
        %2937 = vmatpush1.bf16.msra.mxu0 0
        %2938 = vmatprep.subr.bf16.mxu0 0
        %2939 = vmatpush1.bf16.msra.mxu0 0
        %2940 = vmatprep.subr.bf16.mxu0 0
        %2941 = vmatpush1.bf16.msra.mxu0 0
        %2942 = vmatprep.subr.bf16.mxu0 0
        %2943 = vmatpush1.bf16.msra.mxu0 0
        %2944 = vmatprep.subr.bf16.mxu0 0
        %2945 = vmatpush1.bf16.msra.mxu0 0
        %2946 = vmatprep.subr.bf16.mxu0 0
        %2947 = vmatpush1.bf16.msra.mxu0 0
        %2948 = vmatprep.subr.bf16.mxu0 0
        %2949 = vmatpush1.bf16.msra.mxu0 0
        %2950 = vmatprep.subr.bf16.mxu0 0
        %2951 = vmatpush1.bf16.msra.mxu0 0
        %2952 = vmatprep.mubr.bf16.mxu0 0
        %2953 = vmatmul.mubr.bf16.gmra.mrb[0].mxu0 %v2847
        %v2954 = vpop.f32.mrb[0].mxu0
        %v2955 = vadd.f32 %v2870, %v2954
        %v2956 = vpop.f32.mrb[0].mxu0
        %v2957 = vpop.f32.mrb[0].mxu0
        %v2958 = vadd.f32 %v2870, %v2957
        %v2959 = vpop.f32.mrb[0].mxu0
        %2960 = vmatprep.mubr.bf16.mxu0 0
        %2961 = vmatmul.mubr.bf16.gmra.mrb[0].mxu0 %v2848
        %v2962 = vpop.f32.mrb[0].mxu0
        %v2963 = vadd.f32 %v2870, %v2962
        %v2964 = vpop.f32.mrb[0].mxu0
        %v2965 = vpop.f32.mrb[0].mxu0
        %v2966 = vadd.f32 %v2870, %v2965
        %v2967 = vpop.f32.mrb[0].mxu0
        %2968 = vdwg.mxu0
        %v2969 = vadd.f32 %v2585, %v2955
        %v2970 = vadd.f32 %v2586, %v2958
        %v2971 = vadd.f32 %v2587, %v2963
        %v2972 = vadd.f32 %v2588, %v2966
        %2973 = vst.msk [vmem:[%s499] sm:$0xff] %vm514, %v2969
        %2974 = vst.msk [vmem:[%s499 + $0x8] sm:$0xff] %vm514, %v2970
        %2975 = vst.msk [vmem:[%s499 + $0x10] sm:$0xff] %vm514, %v2971
        %2976 = vst.msk [vmem:[%s499 + $0x18] sm:$0xff] %vm514, %v2972
        %s2977 = sand.u32 %s316, 1
        %s2978 = scalar_lea.sflag [#allocation5], %s2977
        %s2979 = sand.u32 %s316, 1
        %s2980 = smul.addr %s2979, 32
        %s2981 = scalar_lea.vmem [#allocation12], %s2980
        // Predicated region
        $region93: #{tpu_custom_call.1} parent=71 // pred_check
          %p2982 = pneg %p326
        $region94: #{tpu_custom_call.1} parent=71 // pred_check_branch
          %2984 = sbr.rel (%p2982) target = $region96
        $region95: #{tpu_custom_call.1} parent=71 // pred_region
          %s2985 = smul.u32 4, %s30
          %s2987 = ssub.s32 512, 512
          %2988 = vsyncadd %s2978, %s2987
          %s2989 = smul.addr %s2985, 128
          %s2990 = scalar_lea.hbm %s13, %s2989
          %s2991 = sshll.u32 %s2981, 4
          %s2992 = int_to_ptr.vmem [resolvable:$true] %s2991
          %2997 = dma.vmem_to_hbm [thread:$0]  %s2992, 512, %s2990, %s2978, 128, 128, 8
        $region96: #{tpu_custom_call.1} parent=71 // pred_fallthru
          _
      $region72: #{tpu_custom_call.1} parent=5 // pred_fallthru
        _
      %p2998 = scmp.le.s32.totalorder 2, %s25
      // Predicated region
      $region97: #{tpu_custom_call.1} parent=5 // pred_check
        %p2999 = pneg %p2998
      $region98: #{tpu_custom_call.1} parent=5 // pred_check_branch
        %3001 = sbr.rel (%p2999) target = $region100
      $region99: #{tpu_custom_call.1} parent=5 // pred_region
        %s3002 = ssub.s32 %s25, 2
        // Predicated region
        $region101: #{tpu_custom_call.1} parent=99 // pred_check
          %p3003 = pneg %p332
        $region102: #{tpu_custom_call.1} parent=99 // pred_check_branch
          %3005 = sbr.rel (%p3003) target = $region104
        $region103: #{tpu_custom_call.1} parent=99 // pred_region
          %s3006 = sand.u32 %s317, 1
          %s3007 = scalar_lea.sflag [#allocation5], %s3006
          %s3008 = sand.u32 %s317, 1
          %s3009 = smul.addr %s3008, 32
          %s3010 = scalar_lea.vmem [#allocation12], %s3009
          %3011 = dma.done %s3007, 512
        $region104: #{tpu_custom_call.1} parent=99 // pred_fallthru
          _
      $region100: #{tpu_custom_call.1} parent=5 // pred_fallthru
        _
    $region6: #{tpu_custom_call.1} parent=1 // loop_footer
      %s29 = sadd.s32 1, %s25
    $region7: #{tpu_custom_call.1} parent=1 // loop_footer_branch
      %24 = sbr.rel target = $region3
    $region8: #{tpu_custom_call.1} parent=1 // loop_exit
      _
    %3012 = vsyncpa [#allocation4], 1
    %s3013 = scalar_lea.sflag [#allocation4], 1
    %3014 = vsyncpa %s3013, 1
    %3015 = vsyncpa [#allocation7], 1
    %3016 = vsyncpa [#allocation10], 1
    %3017 = vsyncpa [#allocation5], 1
    %s3018 = scalar_lea.sflag [#allocation5], 1
    %3019 = vsyncpa %s3018, 1

// kernel: tpu_custom_call.1
$region0: #{tpu_custom_call.1}
  #allocation0 [shape = 'u32[]', space=smem, size = 0x4, offset = 0x4, fixed_abs, tag = 'smem constant byte address 0x4 - core index']
  #allocation1 [shape = 'u32[144,128]{1,0:T(1,128)}', space=vmem, size = 0x12000, scoped, tag = 'internal scratch']
  #allocation2 [shape = 'f32[32,32]{1,0:T(8,128)}', space=vmem, size = 0x4000, scoped, tag = 'scratch operand']
  %s0 = inlined_call_operand.vmem [shape: f32[8,8,32], index: 0, kind: input, shape index: {}]
  %s1 = inlined_call_operand.vmem [shape: f32[1,32], index: 1, kind: input, shape index: {}]
  %s2 = inlined_call_operand.vmem [shape: f32[1,32], index: 2, kind: input, shape index: {}]
  %s3 = inlined_call_operand.vmem [shape: bf16[32,96], index: 3, kind: input, shape index: {}]
  %s4 = inlined_call_operand.hbm [shape: f32[1,96], index: 4, kind: input, shape index: {}]
  %s5 = inlined_call_operand.hbm [shape: bf16[32,32], index: 5, kind: input, shape index: {}]
  %s6 = inlined_call_operand.hbm [shape: f32[1,32], index: 6, kind: input, shape index: {}]
  %s7 = inlined_call_operand.hbm [shape: f32[1,32], index: 7, kind: input, shape index: {}]
  %s8 = inlined_call_operand.hbm [shape: f32[1,32], index: 8, kind: input, shape index: {}]
  %s9 = inlined_call_operand.vmem [shape: bf16[32,128], index: 9, kind: input, shape index: {}]
  %s10 = inlined_call_operand.vmem [shape: f32[1,128], index: 10, kind: input, shape index: {}]
  %s11 = inlined_call_operand.vmem [shape: bf16[128,32], index: 11, kind: input, shape index: {}]
  %s12 = inlined_call_operand.vmem [shape: f32[1,32], index: 12, kind: input, shape index: {}]
  %s13 = inlined_call_operand.hbm [shape: f32[8,8,32], index: 13, kind: output, shape index: {}]
  %s14 = sld [smem:[#allocation0]]
  $region105: #{tpu_custom_call.1} parent=0
    _
  %s16 = ssub.s32 1, %s14
  %s17 = scalar_select 0, %s16, %s14
  $region1: #{tpu_custom_call.1} parent=0
    #allocation3 [shape = 'u8[512]{0}', space=vmem, size = 0x400, scoped, tag = 'input window, operand 4, single buffered']
    #allocation4 [shape = 's32[2]{0}', space=sflag, size = 0x8, scoped, tag = 'scoped memory for tpu_custom_call.1']
    #allocation5 [shape = 's32[2]{0}', space=sflag, size = 0x8, scoped, tag = 'scoped memory for tpu_custom_call.1']
    #allocation6 [shape = 'u8[8192]{0}', space=vmem, size = 0x2000, scoped, tag = 'input window, operand 5, single buffered']
    #allocation7 [shape = 's32[1]{0}', space=sflag, size = 0x4, scoped, tag = 'scoped memory for tpu_custom_call.1']
    #allocation8 [shape = 'u8[512]{0}', space=vmem, size = 0x400, scoped, tag = 'input window, operand 6, single buffered']
    #allocation9 [shape = 'u8[512]{0}', space=vmem, size = 0x400, scoped, tag = 'input window, operand 7, single buffered']
    #allocation10 [shape = 's32[1]{0}', space=sflag, size = 0x4, scoped, tag = 'scoped memory for tpu_custom_call.1']
    #allocation11 [shape = 'u8[512]{0}', space=vmem, size = 0x400, scoped, tag = 'input window, operand 8, single buffered']
    #allocation12 [shape = 'u8[32768]{0}', space=vmem, size = 0x8000, scoped, tag = 'output window, operand 0']
    %18 = vsyncpa [#allocation4], 0
    %19 = vsyncpa [#allocation7], 0
    %20 = vsyncpa [#allocation10], 0
    %21 = vsyncpa [#allocation5], 0
    %s22 = scalar_lea.sflag [#allocation5], 1
    %23 = vsyncpa %s22, 0
    loop: start=0, step=1, limit=4
    $region2: #{tpu_custom_call.1} parent=1 // loop_pre_header
      _
    $region3: #{tpu_custom_call.1} parent=1 // loop_header
      %s25 = sphi 0, %s29
      %p26 = scmp.ge.s32.totalorder %s25, 4
      %s35 = sphi 0, %s37
      %s38 = sphi 0, %s35
      %s39 = sphi 0, %s38
      %s55 = sphi 0, %s39
      %s59 = sphi 0, %s59
      %s61 = sphi 0, %s59
      %s62 = sphi 0, %s61
      %s76 = sphi 0, %s62
      %s80 = sphi 0, %s80
      %s82 = sphi 0, %s80
      %s83 = sphi 0, %s82
      %s97 = sphi 0, %s83
      %s101 = sphi 0, %s101
      %s103 = sphi 0, %s101
      %s104 = sphi 0, %s103
      %s118 = sphi 0, %s104
      %s122 = sphi 0, %s122
      %s124 = sphi 0, %s122
      %s125 = sphi 0, %s124
      %s139 = sphi 0, %s125
      %s143 = sphi 0, %s143
      %s145 = sphi 0, %s143
      %s146 = sphi 0, %s145
      %s160 = sphi 0, %s146
      %s164 = sphi 0, %s164
      %s166 = sphi 0, %s164
      %s167 = sphi 0, %s166
      %s181 = sphi 0, %s167
      %s185 = sphi 0, %s185
      %s187 = sphi 0, %s185
      %s188 = sphi 0, %s187
      %s202 = sphi 0, %s188
      %s206 = sphi 0, %s206
      %s208 = sphi 0, %s206
      %s209 = sphi 0, %s208
      %s223 = sphi 0, %s209
      %s227 = sphi 0, %s227
      %s229 = sphi 0, %s227
      %s230 = sphi 0, %s229
      %s244 = sphi 0, %s230
      %s248 = sphi 0, %s248
      %s250 = sphi 0, %s248
      %s251 = sphi 0, %s250
      %s265 = sphi 0, %s251
      %s269 = sphi 0, %s269
      %s271 = sphi 0, %s269
      %s272 = sphi 0, %s271
      %s286 = sphi 0, %s272
      %s290 = sphi 0, %s290
      %s292 = sphi 0, %s290
      %s293 = sphi 0, %s292
      %s307 = sphi 0, %s293
      %s313 = sphi 0, %s315
      %s316 = sphi 0, %s313
      %s317 = sphi 0, %s316
      %s333 = sphi 0, %s317
    $region4: #{tpu_custom_call.1} parent=1 // loop_header_branch
      %28 = sbr.rel (%p26) target = $region8
    $region5: #{tpu_custom_call.1} parent=1 // loop_body
      %s30 = ssub.s32 %s25, 1
      %s31 = ssub.s32 %s25, 2
      %s32 = sadd.s32 %s25, 1
      %s33 = ssub.s32 %s25, %s32
      %p34 = scmp.eq.s32.totalorder %s33, 0
      %s36 = sadd.s32 %s35, 1
      %s37 = scalar_select %p34, %s35, %s36
      %p40 = pneg %p34
      %p41 = scmp.eq.s32.totalorder %s25, 1
      %p42 = por %p40, %p41
      %p43 = scmp.ne.s32.totalorder %s35, %s38
      %p44 = scmp.eq.s32.totalorder %s25, 0
      %p45 = por %p43, %p44
      %p46 = scmp.ne.s32.totalorder %s35, %s38
      %p47 = scmp.eq.s32.totalorder %s30, 1
      %p48 = por %p46, %p47
      %p49 = scmp.ne.s32.totalorder %s38, %s39
      %p50 = scmp.eq.s32.totalorder %s30, 0
      %p51 = por %p49, %p50
      %p52 = scmp.ne.s32.totalorder %s38, %s39
      %p53 = scmp.eq.s32.totalorder %s31, 1
      %p54 = por %p52, %p53
      %p56 = scmp.ne.s32.totalorder %s39, %s55
      %p57 = scmp.eq.s32.totalorder %s31, 0
      %p58 = por %p56, %p57
      %s60 = sadd.s32 %s59, 1
      %p63 = scmp.eq.s32.totalorder %s25, 1
      %p64 = scmp.ne.s32.totalorder %s59, %s61
      %p65 = scmp.eq.s32.totalorder %s25, 0
      %p66 = por %p64, %p65
      %p67 = scmp.ne.s32.totalorder %s59, %s61
      %p68 = scmp.eq.s32.totalorder %s30, 1
      %p69 = por %p67, %p68
      %p70 = scmp.ne.s32.totalorder %s61, %s62
      %p71 = scmp.eq.s32.totalorder %s30, 0
      %p72 = por %p70, %p71
      %p73 = scmp.ne.s32.totalorder %s61, %s62
      %p74 = scmp.eq.s32.totalorder %s31, 1
      %p75 = por %p73, %p74
      %p77 = scmp.ne.s32.totalorder %s62, %s76
      %p78 = scmp.eq.s32.totalorder %s31, 0
      %p79 = por %p77, %p78
      %s81 = sadd.s32 %s80, 1
      %p84 = scmp.eq.s32.totalorder %s25, 1
      %p85 = scmp.ne.s32.totalorder %s80, %s82
      %p86 = scmp.eq.s32.totalorder %s25, 0
      %p87 = por %p85, %p86
      %p88 = scmp.ne.s32.totalorder %s80, %s82
      %p89 = scmp.eq.s32.totalorder %s30, 1
      %p90 = por %p88, %p89
      %p91 = scmp.ne.s32.totalorder %s82, %s83
      %p92 = scmp.eq.s32.totalorder %s30, 0
      %p93 = por %p91, %p92
      %p94 = scmp.ne.s32.totalorder %s82, %s83
      %p95 = scmp.eq.s32.totalorder %s31, 1
      %p96 = por %p94, %p95
      %p98 = scmp.ne.s32.totalorder %s83, %s97
      %p99 = scmp.eq.s32.totalorder %s31, 0
      %p100 = por %p98, %p99
      %s102 = sadd.s32 %s101, 1
      %p105 = scmp.eq.s32.totalorder %s25, 1
      %p106 = scmp.ne.s32.totalorder %s101, %s103
      %p107 = scmp.eq.s32.totalorder %s25, 0
      %p108 = por %p106, %p107
      %p109 = scmp.ne.s32.totalorder %s101, %s103
      %p110 = scmp.eq.s32.totalorder %s30, 1
      %p111 = por %p109, %p110
      %p112 = scmp.ne.s32.totalorder %s103, %s104
      %p113 = scmp.eq.s32.totalorder %s30, 0
      %p114 = por %p112, %p113
      %p115 = scmp.ne.s32.totalorder %s103, %s104
      %p116 = scmp.eq.s32.totalorder %s31, 1
      %p117 = por %p115, %p116
      %p119 = scmp.ne.s32.totalorder %s104, %s118
      %p120 = scmp.eq.s32.totalorder %s31, 0
      %p121 = por %p119, %p120
      %s123 = sadd.s32 %s122, 1
      %p126 = scmp.eq.s32.totalorder %s25, 1
      %p127 = scmp.ne.s32.totalorder %s122, %s124
      %p128 = scmp.eq.s32.totalorder %s25, 0
      %p129 = por %p127, %p128
      %p130 = scmp.ne.s32.totalorder %s122, %s124
      %p131 = scmp.eq.s32.totalorder %s30, 1
      %p132 = por %p130, %p131
      %p133 = scmp.ne.s32.totalorder %s124, %s125
      %p134 = scmp.eq.s32.totalorder %s30, 0
      %p135 = por %p133, %p134
      %p136 = scmp.ne.s32.totalorder %s124, %s125
      %p137 = scmp.eq.s32.totalorder %s31, 1
      %p138 = por %p136, %p137
      %p140 = scmp.ne.s32.totalorder %s125, %s139
      %p141 = scmp.eq.s32.totalorder %s31, 0
      %p142 = por %p140, %p141
      %s144 = sadd.s32 %s143, 1
      %p147 = scmp.eq.s32.totalorder %s25, 1
      %p148 = scmp.ne.s32.totalorder %s143, %s145
      %p149 = scmp.eq.s32.totalorder %s25, 0
      %p150 = por %p148, %p149
      %p151 = scmp.ne.s32.totalorder %s143, %s145
      %p152 = scmp.eq.s32.totalorder %s30, 1
      %p153 = por %p151, %p152
      %p154 = scmp.ne.s32.totalorder %s145, %s146
      %p155 = scmp.eq.s32.totalorder %s30, 0
      %p156 = por %p154, %p155
      %p157 = scmp.ne.s32.totalorder %s145, %s146
      %p158 = scmp.eq.s32.totalorder %s31, 1
      %p159 = por %p157, %p158
      %p161 = scmp.ne.s32.totalorder %s146, %s160
      %p162 = scmp.eq.s32.totalorder %s31, 0
      %p163 = por %p161, %p162
      %s165 = sadd.s32 %s164, 1
      %p168 = scmp.eq.s32.totalorder %s25, 1
      %p169 = scmp.ne.s32.totalorder %s164, %s166
      %p170 = scmp.eq.s32.totalorder %s25, 0
      %p171 = por %p169, %p170
      %p172 = scmp.ne.s32.totalorder %s164, %s166
      %p173 = scmp.eq.s32.totalorder %s30, 1
      %p174 = por %p172, %p173
      %p175 = scmp.ne.s32.totalorder %s166, %s167
      %p176 = scmp.eq.s32.totalorder %s30, 0
      %p177 = por %p175, %p176
      %p178 = scmp.ne.s32.totalorder %s166, %s167
      %p179 = scmp.eq.s32.totalorder %s31, 1
      %p180 = por %p178, %p179
      %p182 = scmp.ne.s32.totalorder %s167, %s181
      %p183 = scmp.eq.s32.totalorder %s31, 0
      %p184 = por %p182, %p183
      %s186 = sadd.s32 %s185, 1
      %p189 = scmp.eq.s32.totalorder %s25, 1
      %p190 = scmp.ne.s32.totalorder %s185, %s187
      %p191 = scmp.eq.s32.totalorder %s25, 0
      %p192 = por %p190, %p191
      %p193 = scmp.ne.s32.totalorder %s185, %s187
      %p194 = scmp.eq.s32.totalorder %s30, 1
      %p195 = por %p193, %p194
      %p196 = scmp.ne.s32.totalorder %s187, %s188
      %p197 = scmp.eq.s32.totalorder %s30, 0
      %p198 = por %p196, %p197
      %p199 = scmp.ne.s32.totalorder %s187, %s188
      %p200 = scmp.eq.s32.totalorder %s31, 1
      %p201 = por %p199, %p200
      %p203 = scmp.ne.s32.totalorder %s188, %s202
      %p204 = scmp.eq.s32.totalorder %s31, 0
      %p205 = por %p203, %p204
      %s207 = sadd.s32 %s206, 1
      %p210 = scmp.eq.s32.totalorder %s25, 1
      %p211 = scmp.ne.s32.totalorder %s206, %s208
      %p212 = scmp.eq.s32.totalorder %s25, 0
      %p213 = por %p211, %p212
      %p214 = scmp.ne.s32.totalorder %s206, %s208
      %p215 = scmp.eq.s32.totalorder %s30, 1
      %p216 = por %p214, %p215
      %p217 = scmp.ne.s32.totalorder %s208, %s209
      %p218 = scmp.eq.s32.totalorder %s30, 0
      %p219 = por %p217, %p218
      %p220 = scmp.ne.s32.totalorder %s208, %s209
      %p221 = scmp.eq.s32.totalorder %s31, 1
      %p222 = por %p220, %p221
      %p224 = scmp.ne.s32.totalorder %s209, %s223
      %p225 = scmp.eq.s32.totalorder %s31, 0
      %p226 = por %p224, %p225
      %s228 = sadd.s32 %s227, 1
      %p231 = scmp.eq.s32.totalorder %s25, 1
      %p232 = scmp.ne.s32.totalorder %s227, %s229
      %p233 = scmp.eq.s32.totalorder %s25, 0
      %p234 = por %p232, %p233
      %p235 = scmp.ne.s32.totalorder %s227, %s229
      %p236 = scmp.eq.s32.totalorder %s30, 1
      %p237 = por %p235, %p236
      %p238 = scmp.ne.s32.totalorder %s229, %s230
      %p239 = scmp.eq.s32.totalorder %s30, 0
      %p240 = por %p238, %p239
      %p241 = scmp.ne.s32.totalorder %s229, %s230
      %p242 = scmp.eq.s32.totalorder %s31, 1
      %p243 = por %p241, %p242
      %p245 = scmp.ne.s32.totalorder %s230, %s244
      %p246 = scmp.eq.s32.totalorder %s31, 0
      %p247 = por %p245, %p246
      %s249 = sadd.s32 %s248, 1
      %p252 = scmp.eq.s32.totalorder %s25, 1
      %p253 = scmp.ne.s32.totalorder %s248, %s250
      %p254 = scmp.eq.s32.totalorder %s25, 0
      %p255 = por %p253, %p254
      %p256 = scmp.ne.s32.totalorder %s248, %s250
      %p257 = scmp.eq.s32.totalorder %s30, 1
      %p258 = por %p256, %p257
      %p259 = scmp.ne.s32.totalorder %s250, %s251
      %p260 = scmp.eq.s32.totalorder %s30, 0
      %p261 = por %p259, %p260
      %p262 = scmp.ne.s32.totalorder %s250, %s251
      %p263 = scmp.eq.s32.totalorder %s31, 1
      %p264 = por %p262, %p263
      %p266 = scmp.ne.s32.totalorder %s251, %s265
      %p267 = scmp.eq.s32.totalorder %s31, 0
      %p268 = por %p266, %p267
      %s270 = sadd.s32 %s269, 1
      %p273 = scmp.eq.s32.totalorder %s25, 1
      %p274 = scmp.ne.s32.totalorder %s269, %s271
      %p275 = scmp.eq.s32.totalorder %s25, 0
      %p276 = por %p274, %p275
      %p277 = scmp.ne.s32.totalorder %s269, %s271
      %p278 = scmp.eq.s32.totalorder %s30, 1
      %p279 = por %p277, %p278
      %p280 = scmp.ne.s32.totalorder %s271, %s272
      %p281 = scmp.eq.s32.totalorder %s30, 0
      %p282 = por %p280, %p281
      %p283 = scmp.ne.s32.totalorder %s271, %s272
      %p284 = scmp.eq.s32.totalorder %s31, 1
      %p285 = por %p283, %p284
      %p287 = scmp.ne.s32.totalorder %s272, %s286
      %p288 = scmp.eq.s32.totalorder %s31, 0
      %p289 = por %p287, %p288
      %s291 = sadd.s32 %s290, 1
      %p294 = scmp.eq.s32.totalorder %s25, 1
      %p295 = scmp.ne.s32.totalorder %s290, %s292
      %p296 = scmp.eq.s32.totalorder %s25, 0
      %p297 = por %p295, %p296
      %p298 = scmp.ne.s32.totalorder %s290, %s292
      %p299 = scmp.eq.s32.totalorder %s30, 1
      %p300 = por %p298, %p299
      %p301 = scmp.ne.s32.totalorder %s292, %s293
      %p302 = scmp.eq.s32.totalorder %s30, 0
      %p303 = por %p301, %p302
      %p304 = scmp.ne.s32.totalorder %s292, %s293
      %p305 = scmp.eq.s32.totalorder %s31, 1
      %p306 = por %p304, %p305
      %p308 = scmp.ne.s32.totalorder %s293, %s307
      %p309 = scmp.eq.s32.totalorder %s31, 0
      %p310 = por %p308, %p309
      %s311 = ssub.s32 %s25, %s32
      %p312 = scmp.eq.s32.totalorder %s311, 0
      %s314 = sadd.s32 %s313, 1
      %s315 = scalar_select %p312, %s313, %s314
      %p318 = pneg %p312
      %p319 = scmp.eq.s32.totalorder %s25, 1
      %p320 = por %p318, %p319
      %p321 = scmp.ne.s32.totalorder %s313, %s316
      %p322 = scmp.eq.s32.totalorder %s25, 0
      %p323 = por %p321, %p322
      %p324 = scmp.ne.s32.totalorder %s313, %s316
      %p325 = scmp.eq.s32.totalorder %s30, 1
      %p326 = por %p324, %p325
      %p327 = scmp.ne.s32.totalorder %s316, %s317
      %p328 = scmp.eq.s32.totalorder %s30, 0
      %p329 = por %p327, %p328
      %p330 = scmp.ne.s32.totalorder %s316, %s317
      %p331 = scmp.eq.s32.totalorder %s31, 1
      %p332 = por %p330, %p331
      %p334 = scmp.ne.s32.totalorder %s317, %s333
      %p335 = scmp.eq.s32.totalorder %s31, 0
      %p336 = por %p334, %p335
      %p337 = scmp.le.s32.totalorder 1, %s25
      %p338 = scmp.lt.s32.totalorder %s25, 3
      %p339 = pnand %p337, %p338
      %p340 = pneg %p339
      // Predicated region
      $region9: #{tpu_custom_call.1} parent=5 // pred_check
        _
      $region10: #{tpu_custom_call.1} parent=5 // pred_check_branch
        %342 = sbr.rel (%p339) target = $region12
      $region11: #{tpu_custom_call.1} parent=5 // pred_region
        %s343 = ssub.s32 %s25, 1
        // Predicated region
        $region13: #{tpu_custom_call.1} parent=11 // pred_check
          %p344 = pneg %p72
        $region14: #{tpu_custom_call.1} parent=11 // pred_check_branch
          %346 = sbr.rel (%p344) target = $region16
        $region15: #{tpu_custom_call.1} parent=11 // pred_region
          _
        $region16: #{tpu_custom_call.1} parent=11 // pred_fallthru
          _
        // Predicated region
        $region17: #{tpu_custom_call.1} parent=11 // pred_check
          %p347 = pneg %p93
        $region18: #{tpu_custom_call.1} parent=11 // pred_check_branch
          %349 = sbr.rel (%p347) target = $region20
        $region19: #{tpu_custom_call.1} parent=11 // pred_region
          _
        $region20: #{tpu_custom_call.1} parent=11 // pred_fallthru
          _
        // Predicated region
        $region21: #{tpu_custom_call.1} parent=11 // pred_check
          %p350 = pneg %p114
        $region22: #{tpu_custom_call.1} parent=11 // pred_check_branch
          %352 = sbr.rel (%p350) target = $region24
        $region23: #{tpu_custom_call.1} parent=11 // pred_region
          _
        $region24: #{tpu_custom_call.1} parent=11 // pred_fallthru
          _
        // Predicated region
        $region25: #{tpu_custom_call.1} parent=11 // pred_check
          %p353 = pneg %p135
        $region26: #{tpu_custom_call.1} parent=11 // pred_check_branch
          %355 = sbr.rel (%p353) target = $region28
        $region27: #{tpu_custom_call.1} parent=11 // pred_region
          %s357 = ssub.s32 16, 16
          %358 = vsyncadd [#allocation4], %s357
          %s360 = sshll.u32 [#allocation3], 4
          %s361 = int_to_ptr.vmem [resolvable:$true] %s360
          %363 = dma.hbm_to_vmem [thread:$0]  %s4, 16, %s361, [#allocation4]
        $region28: #{tpu_custom_call.1} parent=11 // pred_fallthru
          _
        // Predicated region
        $region29: #{tpu_custom_call.1} parent=11 // pred_check
          %p364 = pneg %p156
        $region30: #{tpu_custom_call.1} parent=11 // pred_check_branch
          %366 = sbr.rel (%p364) target = $region32
        $region31: #{tpu_custom_call.1} parent=11 // pred_region
          %s368 = ssub.s32 256, 256
          %369 = vsyncadd [#allocation7], %s368
          %s370 = sshll.u32 [#allocation6], 4
          %s371 = int_to_ptr.vmem [resolvable:$true] %s370
          %376 = dma.hbm_to_vmem [thread:$0]  %s5, 256, %s371, [#allocation7], 64, 64, 4
        $region32: #{tpu_custom_call.1} parent=11 // pred_fallthru
          _
        // Predicated region
        $region33: #{tpu_custom_call.1} parent=11 // pred_check
          %p377 = pneg %p177
        $region34: #{tpu_custom_call.1} parent=11 // pred_check_branch
          %379 = sbr.rel (%p377) target = $region36
        $region35: #{tpu_custom_call.1} parent=11 // pred_region
          %s381 = ssub.s32 16, 16
          %382 = vsyncadd [#allocation7], %s381
          %s384 = sshll.u32 [#allocation8], 4
          %s385 = int_to_ptr.vmem [resolvable:$true] %s384
          %387 = dma.hbm_to_vmem [thread:$0]  %s6, 16, %s385, [#allocation7]
        $region36: #{tpu_custom_call.1} parent=11 // pred_fallthru
          _
        // Predicated region
        $region37: #{tpu_custom_call.1} parent=11 // pred_check
          %p388 = pneg %p198
        $region38: #{tpu_custom_call.1} parent=11 // pred_check_branch
          %390 = sbr.rel (%p388) target = $region40
        $region39: #{tpu_custom_call.1} parent=11 // pred_region
          %s392 = ssub.s32 16, 16
          %393 = vsyncadd [#allocation10], %s392
          %s395 = sshll.u32 [#allocation9], 4
          %s396 = int_to_ptr.vmem [resolvable:$true] %s395
          %398 = dma.hbm_to_vmem [thread:$0]  %s7, 16, %s396, [#allocation10]
        $region40: #{tpu_custom_call.1} parent=11 // pred_fallthru
          _
        // Predicated region
        $region41: #{tpu_custom_call.1} parent=11 // pred_check
          %p399 = pneg %p219
        $region42: #{tpu_custom_call.1} parent=11 // pred_check_branch
          %401 = sbr.rel (%p399) target = $region44
        $region43: #{tpu_custom_call.1} parent=11 // pred_region
          %s403 = ssub.s32 16, 16
          %404 = vsyncadd [#allocation10], %s403
          %s406 = sshll.u32 [#allocation11], 4
          %s407 = int_to_ptr.vmem [resolvable:$true] %s406
          %409 = dma.hbm_to_vmem [thread:$0]  %s8, 16, %s407, [#allocation10]
        $region44: #{tpu_custom_call.1} parent=11 // pred_fallthru
          _
        // Predicated region
        $region45: #{tpu_custom_call.1} parent=11 // pred_check
          %p410 = pneg %p240
        $region46: #{tpu_custom_call.1} parent=11 // pred_check_branch
          %412 = sbr.rel (%p410) target = $region48
        $region47: #{tpu_custom_call.1} parent=11 // pred_region
          _
        $region48: #{tpu_custom_call.1} parent=11 // pred_fallthru
          _
        // Predicated region
        $region49: #{tpu_custom_call.1} parent=11 // pred_check
          %p413 = pneg %p261
        $region50: #{tpu_custom_call.1} parent=11 // pred_check_branch
          %415 = sbr.rel (%p413) target = $region52
        $region51: #{tpu_custom_call.1} parent=11 // pred_region
          _
        $region52: #{tpu_custom_call.1} parent=11 // pred_fallthru
          _
        // Predicated region
        $region53: #{tpu_custom_call.1} parent=11 // pred_check
          %p416 = pneg %p282
        $region54: #{tpu_custom_call.1} parent=11 // pred_check_branch
          %418 = sbr.rel (%p416) target = $region56
        $region55: #{tpu_custom_call.1} parent=11 // pred_region
          _
        $region56: #{tpu_custom_call.1} parent=11 // pred_fallthru
          _
        // Predicated region
        $region57: #{tpu_custom_call.1} parent=11 // pred_check
          %p419 = pneg %p303
        $region58: #{tpu_custom_call.1} parent=11 // pred_check_branch
          %421 = sbr.rel (%p419) target = $region60
        $region59: #{tpu_custom_call.1} parent=11 // pred_region
          _
        $region60: #{tpu_custom_call.1} parent=11 // pred_fallthru
          _
      $region12: #{tpu_custom_call.1} parent=5 // pred_fallthru
        _
      %p422 = scmp.lt.s32.totalorder %s25, 2
      // Predicated region
      $region61: #{tpu_custom_call.1} parent=5 // pred_check
        %p423 = pneg %p422
      $region62: #{tpu_custom_call.1} parent=5 // pred_check_branch
        %425 = sbr.rel (%p423) target = $region64
      $region63: #{tpu_custom_call.1} parent=5 // pred_region
        // Predicated region
        $region65: #{tpu_custom_call.1} parent=63 // pred_check
          %p426 = pneg %p45
        $region66: #{tpu_custom_call.1} parent=63 // pred_check_branch
          %428 = sbr.rel (%p426) target = $region68
        $region67: #{tpu_custom_call.1} parent=63 // pred_region
          %s429 = smul.u32 4, %s25
          %p430 = scmp.lt.s32.totalorder %s429, 7
          %s431 = scalar_select %p430, %s429, 7
          %s432 = smul.addr %s431, 8
          %s433 = scalar_lea.vmem %s0, %s432
          %s434 = smul.u32 4, %s25
        $region68: #{tpu_custom_call.1} parent=63 // pred_fallthru
          _
      $region64: #{tpu_custom_call.1} parent=5 // pred_fallthru
        _
      %p435 = scmp.le.s32.totalorder 1, %s25
      %p436 = scmp.lt.s32.totalorder %s25, 3
      %p437 = pnand %p435, %p436
      %p438 = pneg %p437
      // Predicated region
      $region69: #{tpu_custom_call.1} parent=5 // pred_check
        _
      $region70: #{tpu_custom_call.1} parent=5 // pred_check_branch
        %440 = sbr.rel (%p437) target = $region72
      $region71: #{tpu_custom_call.1} parent=5 // pred_region
        %s441 = ssub.s32 %s25, 1
        // Predicated region
        $region73: #{tpu_custom_call.1} parent=71 // pred_check
          %p442 = pneg %p135
        $region74: #{tpu_custom_call.1} parent=71 // pred_check_branch
          %444 = sbr.rel (%p442) target = $region76
        $region75: #{tpu_custom_call.1} parent=71 // pred_region
          %445 = dma.done [#allocation4], 16
        $region76: #{tpu_custom_call.1} parent=71 // pred_fallthru
          _
        // Predicated region
        $region77: #{tpu_custom_call.1} parent=71 // pred_check
          %p446 = pneg %p156
        $region78: #{tpu_custom_call.1} parent=71 // pred_check_branch
          %448 = sbr.rel (%p446) target = $region80
        $region79: #{tpu_custom_call.1} parent=71 // pred_region
          %449 = dma.done [#allocation7], 256
        $region80: #{tpu_custom_call.1} parent=71 // pred_fallthru
          _
        // Predicated region
        $region81: #{tpu_custom_call.1} parent=71 // pred_check
          %p450 = pneg %p177
        $region82: #{tpu_custom_call.1} parent=71 // pred_check_branch
          %452 = sbr.rel (%p450) target = $region84
        $region83: #{tpu_custom_call.1} parent=71 // pred_region
          %453 = dma.done [#allocation7], 16
        $region84: #{tpu_custom_call.1} parent=71 // pred_fallthru
          _
        // Predicated region
        $region85: #{tpu_custom_call.1} parent=71 // pred_check
          %p454 = pneg %p198
        $region86: #{tpu_custom_call.1} parent=71 // pred_check_branch
          %456 = sbr.rel (%p454) target = $region88
        $region87: #{tpu_custom_call.1} parent=71 // pred_region
          %457 = dma.done [#allocation10], 16
        $region88: #{tpu_custom_call.1} parent=71 // pred_fallthru
          _
        // Predicated region
        $region89: #{tpu_custom_call.1} parent=71 // pred_check
          %p458 = pneg %p219
        $region90: #{tpu_custom_call.1} parent=71 // pred_check_branch
          %460 = sbr.rel (%p458) target = $region92
        $region91: #{tpu_custom_call.1} parent=71 // pred_region
          %461 = dma.done [#allocation10], 16
        $region92: #{tpu_custom_call.1} parent=71 // pred_fallthru
          _
        %s462 = smul.u32 4, %s30
        %p463 = scmp.lt.s32.totalorder %s462, 7
        %s464 = scalar_select %p463, %s462, 7
        %s465 = smul.addr %s464, 8
        %s466 = scalar_lea.vmem %s0, %s465
        %p467 = pneg %p51
        %p468 = pneg %p48
        %p469 = pneg %p72
        %p470 = pneg %p69
        %p471 = pneg %p93
        %p472 = pneg %p90
        %p473 = pneg %p114
        %p474 = pneg %p111
        %p475 = pneg %p135
        %p476 = pneg %p132
        %p477 = pneg %p156
        %p478 = pneg %p153
        %p479 = pneg %p177
        %p480 = pneg %p174
        %p481 = pneg %p198
        %p482 = pneg %p195
        %p483 = pneg %p219
        %p484 = pneg %p216
        %p485 = pneg %p240
        %p486 = pneg %p237
        %p487 = pneg %p261
        %p488 = pneg %p258
        %p489 = pneg %p282
        %p490 = pneg %p279
        %p491 = pneg %p303
        %p492 = pneg %p300
        %p493 = pneg %p329
        %p494 = pneg %p326
        %s495 = sand.u32 %s316, 1
        %s496 = scalar_lea.sflag [#allocation5], %s495
        %s497 = sand.u32 %s316, 1
        %s498 = smul.addr %s497, 32
        %s499 = scalar_lea.vmem [#allocation12], %s498
        %s500 = smul.u32 4, %s30
        %p501 = scmp.lt.s32.totalorder %s500, 7
        %s502 = scalar_select %p501, %s500, 7
        %s503 = smul.addr %s502, 8
        %s504 = scalar_lea.vmem %s0, %s503
        %s505 = smul.u32 4, %s30
        %s506 = smul.u32 4, %s30
        %v508 = vld [vmem:[%s504] sm:$0xff]
        %v509 = vld [vmem:[%s504 + $0x8] sm:$0xff]
        %v510 = vld [vmem:[%s504 + $0x10] sm:$0xff]
        %v511 = vld [vmem:[%s504 + $0x18] sm:$0xff]
        %v512 = vld [vmem:[%s1] sm:$0x1]
        %v513 = vld [vmem:[%s2] sm:$0x1]
        %vm514 = vcmask 261120
        %v515 = vsel %vm514, %v508, 0.0
        %516 = vadd.xlane.f32.xlu0 %v515
        %v517 = vpop.xlane.xlu0 %516
        %v518 = vsel %vm514, %v509, 0.0
        %519 = vadd.xlane.f32.xlu0 %v518
        %v520 = vpop.xlane.xlu0 %519
        %v521 = vsel %vm514, %v510, 0.0
        %522 = vadd.xlane.f32.xlu0 %v521
        %v523 = vpop.xlane.xlu0 %522
        %v524 = vsel %vm514, %v511, 0.0
        %525 = vadd.xlane.f32.xlu0 %v524
        %v526 = vpop.xlane.xlu0 %525
        %v527 = vrcp.pop 32.0
        %v528 = vmul.f32 %v517, %v527
        %v529 = vmul.f32 %v520, %v527
        %v530 = vmul.f32 %v523, %v527
        %v531 = vmul.f32 %v526, %v527
        %v532 = vsub.f32 %v508, %v528
        %v533 = vsub.f32 %v509, %v529
        %v534 = vsub.f32 %v510, %v530
        %v535 = vsub.f32 %v511, %v531
        %v536 = vmul.f32 %v532, %v532
        %v537 = vmul.f32 %v533, %v533
        %v538 = vmul.f32 %v534, %v534
        %v539 = vmul.f32 %v535, %v535
        %v540 = vsel %vm514, %v536, 0.0
        %541 = vadd.xlane.f32.xlu0 %v540
        %v542 = vpop.xlane.xlu0 %541
        %v543 = vsel %vm514, %v537, 0.0
        %544 = vadd.xlane.f32.xlu0 %v543
        %v545 = vpop.xlane.xlu0 %544
        %v546 = vsel %vm514, %v538, 0.0
        %547 = vadd.xlane.f32.xlu0 %v546
        %v548 = vpop.xlane.xlu0 %547
        %v549 = vsel %vm514, %v539, 0.0
        %550 = vadd.xlane.f32.xlu0 %v549
        %v551 = vpop.xlane.xlu0 %550
        %v552 = vmul.f32 %v542, %v527
        %v553 = vmul.f32 %v545, %v527
        %v554 = vmul.f32 %v548, %v527
        %v555 = vmul.f32 %v551, %v527
        %v556 = vadd.f32 %v552, 1e-05
        %v557 = vadd.f32 %v553, 1e-05
        %v558 = vadd.f32 %v554, 1e-05
        %v559 = vadd.f32 %v555, 1e-05
        %v560 = vrsqrt.pop %v556
        %v561 = vrsqrt.pop %v557
        %v562 = vrsqrt.pop %v558
        %v563 = vrsqrt.pop %v559
        %v564 = vmul.f32 %v532, %v560
        %v565 = vmul.f32 %v533, %v561
        %v566 = vmul.f32 %v534, %v562
        %v567 = vmul.f32 %v535, %v563
        %v569 = vlaneseq
        %v570 = vshrl.u32 %v569, 7
        %v571 = vsub.s32 0, %v570
        %v572 = vrot.slane %v512, %v571
        %v574 = vmul.f32 %v564, %v572
        %v575 = vmul.f32 %v565, %v572
        %v576 = vmul.f32 %v566, %v572
        %v577 = vmul.f32 %v567, %v572
        %v579 = vlaneseq
        %v580 = vshrl.u32 %v579, 7
        %v581 = vsub.s32 0, %v580
        %v582 = vrot.slane %v513, %v581
        %v584 = vadd.f32 %v574, %v582
        %v585 = vadd.f32 %v575, %v582
        %v586 = vadd.f32 %v576, %v582
        %v587 = vadd.f32 %v577, %v582
        %v588 = vpack.c.bf16 %v585, %v584
        %v589 = vpack.c.bf16 %v587, %v586
        %v590 = vld [vmem:[%s3] sm:$0xf]
        %v591 = vld [vmem:[%s3 + $0x4] sm:$0xf]
        %v592 = vld [vmem:[%s3 + $0x8] sm:$0xf]
        %v593 = vld [vmem:[%s3 + $0xc] sm:$0xf]
        %v594 = vld [vmem:[#allocation3] sm:$0x1]
        %v596 = vlaneseq
        %v597 = vshrl.u32 %v596, 7
        %v598 = vsub.s32 0, %v597
        %v599 = vrot.slane %v594, %v598
        %v605 = vunpack.c.l.b16 %v590
        %v606 = vunpack.c.l.b16 %v591
        %v607 = vunpack.c.l.b16 %v592
        %v608 = vunpack.c.l.b16 %v593
        %v609 = vpack.c.b16 %v606, %v605
        %v610 = vpack.c.b16 %v608, %v607
        %v614 = vsel %vm514, %v588, 0
        %v617 = vsel %vm514, %v589, 0
        %619 = vmatprep.subr.bf16.mxu0 0
        %620 = vmatpush1.bf16.msra.mxu0 %v609
        %621 = vmatprep.subr.bf16.mxu0 0
        %622 = vmatpush1.bf16.msra.mxu0 %v610
        %623 = vmatprep.subr.bf16.mxu0 0
        %624 = vmatpush1.bf16.msra.mxu0 0
        %625 = vmatprep.subr.bf16.mxu0 0
        %626 = vmatpush1.bf16.msra.mxu0 0
        %627 = vmatprep.subr.bf16.mxu0 0
        %628 = vmatpush1.bf16.msra.mxu0 0
        %629 = vmatprep.subr.bf16.mxu0 0
        %630 = vmatpush1.bf16.msra.mxu0 0
        %631 = vmatprep.subr.bf16.mxu0 0
        %632 = vmatpush1.bf16.msra.mxu0 0
        %633 = vmatprep.subr.bf16.mxu0 0
        %634 = vmatpush1.bf16.msra.mxu0 0
        %635 = vmatprep.subr.bf16.mxu0 0
        %636 = vmatpush1.bf16.msra.mxu0 0
        %637 = vmatprep.subr.bf16.mxu0 0
        %638 = vmatpush1.bf16.msra.mxu0 0
        %639 = vmatprep.subr.bf16.mxu0 0
        %640 = vmatpush1.bf16.msra.mxu0 0
        %641 = vmatprep.subr.bf16.mxu0 0
        %642 = vmatpush1.bf16.msra.mxu0 0
        %643 = vmatprep.subr.bf16.mxu0 0
        %644 = vmatpush1.bf16.msra.mxu0 0
        %645 = vmatprep.subr.bf16.mxu0 0
        %646 = vmatpush1.bf16.msra.mxu0 0
        %647 = vmatprep.subr.bf16.mxu0 0
        %648 = vmatpush1.bf16.msra.mxu0 0
        %649 = vmatprep.subr.bf16.mxu0 0
        %650 = vmatpush1.bf16.msra.mxu0 0
        %651 = vmatprep.mubr.bf16.mxu0 0
        %652 = vmatmul.mubr.bf16.gmra.mrb[0].mxu0 %v614
        %v653 = vpop.f32.mrb[0].mxu0
        %v654 = vadd.f32 %v599, %v653
        %v655 = vpop.f32.mrb[0].mxu0
        %v656 = vpop.f32.mrb[0].mxu0
        %v657 = vadd.f32 %v599, %v656
        %v658 = vpop.f32.mrb[0].mxu0
        %659 = vmatprep.mubr.bf16.mxu0 0
        %660 = vmatmul.mubr.bf16.gmra.mrb[0].mxu0 %v617
        %v661 = vpop.f32.mrb[0].mxu0
        %v662 = vadd.f32 %v599, %v661
        %v663 = vpop.f32.mrb[0].mxu0
        %v664 = vpop.f32.mrb[0].mxu0
        %v665 = vadd.f32 %v599, %v664
        %v666 = vpop.f32.mrb[0].mxu0
        %667 = vdwg.mxu0
        %v668 = vpack.c.bf16 %v657, %v654
        %v669 = vpack.c.bf16 %v665, %v662
        %v672 = vunpack.c.l.b16 %v668
        %v673 = vunpack.c.h.b16 %v668
        %v674 = vunpack.c.l.b16 %v669
        %v675 = vunpack.c.h.b16 %v669
        %v676 = vpack.c.b16 %v672, %v672
        %v677 = vpack.c.b16 %v673, %v673
        %v678 = vpack.c.b16 %v674, %v674
        %v679 = vpack.c.b16 %v675, %v675
        %680 = vrot.lane.b32.xlu0 %v676, 96
        %v681 = vpop.permute.xlu0 %680
        %vm682 = vcmask 64512
        %v684 = vsel %vm682, %v676, 0
        %v687 = vsel %vm682, %v681, 0
        %689 = vmatprep.subr.bf16.mxu0 0
        %690 = vmatpush1.bf16.xpose.msra.mxu0 %v687
        %691 = vmatprep.subr.bf16.mxu0 0
        %692 = vmatpush1.bf16.xpose.msra.mxu0 0
        %693 = vmatprep.subr.bf16.mxu0 0
        %694 = vmatpush1.bf16.xpose.msra.mxu0 0
        %695 = vmatprep.subr.bf16.mxu0 0
        %696 = vmatpush1.bf16.xpose.msra.mxu0 0
        %697 = vmatprep.subr.bf16.mxu0 0
        %698 = vmatpush1.bf16.xpose.msra.mxu0 0
        %699 = vmatprep.subr.bf16.mxu0 0
        %700 = vmatpush1.bf16.xpose.msra.mxu0 0
        %701 = vmatprep.subr.bf16.mxu0 0
        %702 = vmatpush1.bf16.xpose.msra.mxu0 0
        %703 = vmatprep.subr.bf16.mxu0 0
        %704 = vmatpush1.bf16.xpose.msra.mxu0 0
        %705 = vmatprep.subr.bf16.mxu0 0
        %706 = vmatpush1.bf16.xpose.msra.mxu0 0
        %707 = vmatprep.subr.bf16.mxu0 0
        %708 = vmatpush1.bf16.xpose.msra.mxu0 0
        %709 = vmatprep.subr.bf16.mxu0 0
        %710 = vmatpush1.bf16.xpose.msra.mxu0 0
        %711 = vmatprep.subr.bf16.mxu0 0
        %712 = vmatpush1.bf16.xpose.msra.mxu0 0
        %713 = vmatprep.subr.bf16.mxu0 0
        %714 = vmatpush1.bf16.xpose.msra.mxu0 0
        %715 = vmatprep.subr.bf16.mxu0 0
        %716 = vmatpush1.bf16.xpose.msra.mxu0 0
        %717 = vmatprep.subr.bf16.mxu0 0
        %718 = vmatpush1.bf16.xpose.msra.mxu0 0
        %719 = vmatprep.subr.bf16.mxu0 0
        %720 = vmatpush1.bf16.xpose.msra.mxu0 0
        %721 = vmatprep.mubr.bf16.mxu0 0
        %722 = vmatmul.mubr.bf16.gmra.mrb[0].mxu0 %v684
        %v723 = vpop.f32.mrb[0].mxu0
        %v724 = vadd.f32 0.0, %v723
        %v725 = vpop.f32.mrb[0].mxu0
        %v726 = vpop.f32.mrb[0].mxu0
        %v727 = vpop.f32.mrb[0].mxu0
        %728 = vdwg.mxu0
        %729 = vrot.lane.b32.xlu0 %v677, 96
        %v730 = vpop.permute.xlu0 %729
        %v732 = vsel %vm682, %v677, 0
        %v735 = vsel %vm682, %v730, 0
        %737 = vmatprep.subr.bf16.mxu0 0
        %738 = vmatpush1.bf16.xpose.msra.mxu0 %v735
        %739 = vmatprep.subr.bf16.mxu0 0
        %740 = vmatpush1.bf16.xpose.msra.mxu0 0
        %741 = vmatprep.subr.bf16.mxu0 0
        %742 = vmatpush1.bf16.xpose.msra.mxu0 0
        %743 = vmatprep.subr.bf16.mxu0 0
        %744 = vmatpush1.bf16.xpose.msra.mxu0 0
        %745 = vmatprep.subr.bf16.mxu0 0
        %746 = vmatpush1.bf16.xpose.msra.mxu0 0
        %747 = vmatprep.subr.bf16.mxu0 0
        %748 = vmatpush1.bf16.xpose.msra.mxu0 0
        %749 = vmatprep.subr.bf16.mxu0 0
        %750 = vmatpush1.bf16.xpose.msra.mxu0 0
        %751 = vmatprep.subr.bf16.mxu0 0
        %752 = vmatpush1.bf16.xpose.msra.mxu0 0
        %753 = vmatprep.subr.bf16.mxu0 0
        %754 = vmatpush1.bf16.xpose.msra.mxu0 0
        %755 = vmatprep.subr.bf16.mxu0 0
        %756 = vmatpush1.bf16.xpose.msra.mxu0 0
        %757 = vmatprep.subr.bf16.mxu0 0
        %758 = vmatpush1.bf16.xpose.msra.mxu0 0
        %759 = vmatprep.subr.bf16.mxu0 0
        %760 = vmatpush1.bf16.xpose.msra.mxu0 0
        %761 = vmatprep.subr.bf16.mxu0 0
        %762 = vmatpush1.bf16.xpose.msra.mxu0 0
        %763 = vmatprep.subr.bf16.mxu0 0
        %764 = vmatpush1.bf16.xpose.msra.mxu0 0
        %765 = vmatprep.subr.bf16.mxu0 0
        %766 = vmatpush1.bf16.xpose.msra.mxu0 0
        %767 = vmatprep.subr.bf16.mxu0 0
        %768 = vmatpush1.bf16.xpose.msra.mxu0 0
        %769 = vmatprep.mubr.bf16.mxu0 0
        %770 = vmatmul.mubr.bf16.gmra.mrb[0].mxu0 %v732
        %v771 = vpop.f32.mrb[0].mxu0
        %v772 = vadd.f32 0.0, %v771
        %v773 = vpop.f32.mrb[0].mxu0
        %v774 = vpop.f32.mrb[0].mxu0
        %v775 = vpop.f32.mrb[0].mxu0
        %776 = vdwg.mxu0
        %777 = vrot.lane.b32.xlu0 %v678, 96
        %v778 = vpop.permute.xlu0 %777
        %v780 = vsel %vm682, %v678, 0
        %v783 = vsel %vm682, %v778, 0
        %785 = vmatprep.subr.bf16.mxu0 0
        %786 = vmatpush1.bf16.xpose.msra.mxu0 %v783
        %787 = vmatprep.subr.bf16.mxu0 0
        %788 = vmatpush1.bf16.xpose.msra.mxu0 0
        %789 = vmatprep.subr.bf16.mxu0 0
        %790 = vmatpush1.bf16.xpose.msra.mxu0 0
        %791 = vmatprep.subr.bf16.mxu0 0
        %792 = vmatpush1.bf16.xpose.msra.mxu0 0
        %793 = vmatprep.subr.bf16.mxu0 0
        %794 = vmatpush1.bf16.xpose.msra.mxu0 0
        %795 = vmatprep.subr.bf16.mxu0 0
        %796 = vmatpush1.bf16.xpose.msra.mxu0 0
        %797 = vmatprep.subr.bf16.mxu0 0
        %798 = vmatpush1.bf16.xpose.msra.mxu0 0
        %799 = vmatprep.subr.bf16.mxu0 0
        %800 = vmatpush1.bf16.xpose.msra.mxu0 0
        %801 = vmatprep.subr.bf16.mxu0 0
        %802 = vmatpush1.bf16.xpose.msra.mxu0 0
        %803 = vmatprep.subr.bf16.mxu0 0
        %804 = vmatpush1.bf16.xpose.msra.mxu0 0
        %805 = vmatprep.subr.bf16.mxu0 0
        %806 = vmatpush1.bf16.xpose.msra.mxu0 0
        %807 = vmatprep.subr.bf16.mxu0 0
        %808 = vmatpush1.bf16.xpose.msra.mxu0 0
        %809 = vmatprep.subr.bf16.mxu0 0
        %810 = vmatpush1.bf16.xpose.msra.mxu0 0
        %811 = vmatprep.subr.bf16.mxu0 0
        %812 = vmatpush1.bf16.xpose.msra.mxu0 0
        %813 = vmatprep.subr.bf16.mxu0 0
        %814 = vmatpush1.bf16.xpose.msra.mxu0 0
        %815 = vmatprep.subr.bf16.mxu0 0
        %816 = vmatpush1.bf16.xpose.msra.mxu0 0
        %817 = vmatprep.mubr.bf16.mxu0 0
        %818 = vmatmul.mubr.bf16.gmra.mrb[0].mxu0 %v780
        %v819 = vpop.f32.mrb[0].mxu0
        %v820 = vadd.f32 0.0, %v819
        %v821 = vpop.f32.mrb[0].mxu0
        %v822 = vpop.f32.mrb[0].mxu0
        %v823 = vpop.f32.mrb[0].mxu0
        %824 = vdwg.mxu0
        %825 = vrot.lane.b32.xlu0 %v679, 96
        %v826 = vpop.permute.xlu0 %825
        %v828 = vsel %vm682, %v679, 0
        %v831 = vsel %vm682, %v826, 0
        %833 = vmatprep.subr.bf16.mxu0 0
        %834 = vmatpush1.bf16.xpose.msra.mxu0 %v831
        %835 = vmatprep.subr.bf16.mxu0 0
        %836 = vmatpush1.bf16.xpose.msra.mxu0 0
        %837 = vmatprep.subr.bf16.mxu0 0
        %838 = vmatpush1.bf16.xpose.msra.mxu0 0
        %839 = vmatprep.subr.bf16.mxu0 0
        %840 = vmatpush1.bf16.xpose.msra.mxu0 0
        %841 = vmatprep.subr.bf16.mxu0 0
        %842 = vmatpush1.bf16.xpose.msra.mxu0 0
        %843 = vmatprep.subr.bf16.mxu0 0
        %844 = vmatpush1.bf16.xpose.msra.mxu0 0
        %845 = vmatprep.subr.bf16.mxu0 0
        %846 = vmatpush1.bf16.xpose.msra.mxu0 0
        %847 = vmatprep.subr.bf16.mxu0 0
        %848 = vmatpush1.bf16.xpose.msra.mxu0 0
        %849 = vmatprep.subr.bf16.mxu0 0
        %850 = vmatpush1.bf16.xpose.msra.mxu0 0
        %851 = vmatprep.subr.bf16.mxu0 0
        %852 = vmatpush1.bf16.xpose.msra.mxu0 0
        %853 = vmatprep.subr.bf16.mxu0 0
        %854 = vmatpush1.bf16.xpose.msra.mxu0 0
        %855 = vmatprep.subr.bf16.mxu0 0
        %856 = vmatpush1.bf16.xpose.msra.mxu0 0
        %857 = vmatprep.subr.bf16.mxu0 0
        %858 = vmatpush1.bf16.xpose.msra.mxu0 0
        %859 = vmatprep.subr.bf16.mxu0 0
        %860 = vmatpush1.bf16.xpose.msra.mxu0 0
        %861 = vmatprep.subr.bf16.mxu0 0
        %862 = vmatpush1.bf16.xpose.msra.mxu0 0
        %863 = vmatprep.subr.bf16.mxu0 0
        %864 = vmatpush1.bf16.xpose.msra.mxu0 0
        %865 = vmatprep.mubr.bf16.mxu0 0
        %866 = vmatmul.mubr.bf16.gmra.mrb[0].mxu0 %v828
        %v867 = vpop.f32.mrb[0].mxu0
        %v868 = vadd.f32 0.0, %v867
        %v869 = vpop.f32.mrb[0].mxu0
        %v870 = vpop.f32.mrb[0].mxu0
        %v871 = vpop.f32.mrb[0].mxu0
        %872 = vdwg.mxu0
        %v873 = vsel %vm682, %v724, -inf
        %874 = vmax.xlane.f32.xlu0 %v873
        %v875 = vpop.xlane.xlu0 %874
        %v876 = vsel %vm682, %v772, -inf
        %877 = vmax.xlane.f32.xlu0 %v876
        %v878 = vpop.xlane.xlu0 %877
        %v879 = vsel %vm682, %v820, -inf
        %880 = vmax.xlane.f32.xlu0 %v879
        %v881 = vpop.xlane.xlu0 %880
        %v882 = vsel %vm682, %v868, -inf
        %883 = vmax.xlane.f32.xlu0 %v882
        %v884 = vpop.xlane.xlu0 %883
        %v885 = vsub.f32 %v724, %v875
        %v886 = vsub.f32 %v772, %v878
        %v887 = vsub.f32 %v820, %v881
        %v888 = vsub.f32 %v868, %v884
        %v889 = vmul.f32 %v885, 1.442695
        %v890 = vpow.pop %v889
        %v891 = vmul.f32 %v886, 1.442695
        %v892 = vpow.pop %v891
        %v893 = vmul.f32 %v887, 1.442695
        %v894 = vpow.pop %v893
        %v895 = vmul.f32 %v888, 1.442695
        %v896 = vpow.pop %v895
        %v897 = vsel %vm682, %v890, 0.0
        %898 = vadd.xlane.f32.xlu0 %v897
        %v899 = vpop.xlane.xlu0 %898
        %v900 = vsel %vm682, %v892, 0.0
        %901 = vadd.xlane.f32.xlu0 %v900
        %v902 = vpop.xlane.xlu0 %901
        %v903 = vsel %vm682, %v894, 0.0
        %904 = vadd.xlane.f32.xlu0 %v903
        %v905 = vpop.xlane.xlu0 %904
        %v906 = vsel %vm682, %v896, 0.0
        %907 = vadd.xlane.f32.xlu0 %v906
        %v908 = vpop.xlane.xlu0 %907
        %v909 = vrcp.pop %v899
        %v910 = vrcp.pop %v902
        %v911 = vrcp.pop %v905
        %v912 = vrcp.pop %v908
        %v913 = vmul.f32 %v890, %v909
        %v914 = vmul.f32 %v892, %v910
        %v915 = vmul.f32 %v894, %v911
        %v916 = vmul.f32 %v896, %v912
        %v917 = vpack.c.bf16 %v913, %v913
        %v918 = vpack.c.bf16 %v914, %v914
        %v919 = vpack.c.bf16 %v915, %v915
        %v920 = vpack.c.bf16 %v916, %v916
        %921 = vrot.lane.b32.xlu0 %v676, 64
        %v922 = vpop.permute.xlu0 %921
        %v924 = vsel %vm682, %v917, 0
        %vm926 = vcmask 1043456
        %v928 = vsel %vm926, %v922, 0
        %930 = vmatprep.subr.bf16.mxu0 0
        %931 = vmatpush1.bf16.msra.mxu0 %v928
        %932 = vmatprep.subr.bf16.mxu0 0
        %933 = vmatpush1.bf16.msra.mxu0 0
        %934 = vmatprep.subr.bf16.mxu0 0
        %935 = vmatpush1.bf16.msra.mxu0 0
        %936 = vmatprep.subr.bf16.mxu0 0
        %937 = vmatpush1.bf16.msra.mxu0 0
        %938 = vmatprep.subr.bf16.mxu0 0
        %939 = vmatpush1.bf16.msra.mxu0 0
        %940 = vmatprep.subr.bf16.mxu0 0
        %941 = vmatpush1.bf16.msra.mxu0 0
        %942 = vmatprep.subr.bf16.mxu0 0
        %943 = vmatpush1.bf16.msra.mxu0 0
        %944 = vmatprep.subr.bf16.mxu0 0
        %945 = vmatpush1.bf16.msra.mxu0 0
        %946 = vmatprep.subr.bf16.mxu0 0
        %947 = vmatpush1.bf16.msra.mxu0 0
        %948 = vmatprep.subr.bf16.mxu0 0
        %949 = vmatpush1.bf16.msra.mxu0 0
        %950 = vmatprep.subr.bf16.mxu0 0
        %951 = vmatpush1.bf16.msra.mxu0 0
        %952 = vmatprep.subr.bf16.mxu0 0
        %953 = vmatpush1.bf16.msra.mxu0 0
        %954 = vmatprep.subr.bf16.mxu0 0
        %955 = vmatpush1.bf16.msra.mxu0 0
        %956 = vmatprep.subr.bf16.mxu0 0
        %957 = vmatpush1.bf16.msra.mxu0 0
        %958 = vmatprep.subr.bf16.mxu0 0
        %959 = vmatpush1.bf16.msra.mxu0 0
        %960 = vmatprep.subr.bf16.mxu0 0
        %961 = vmatpush1.bf16.msra.mxu0 0
        %962 = vmatprep.mubr.bf16.mxu0 0
        %963 = vmatmul.mubr.bf16.gmra.mrb[0].mxu0 %v924
        %v964 = vpop.f32.mrb[0].mxu0
        %v965 = vadd.f32 0.0, %v964
        %v966 = vpop.f32.mrb[0].mxu0
        %v967 = vpop.f32.mrb[0].mxu0
        %v968 = vpop.f32.mrb[0].mxu0
        %969 = vdwg.mxu0
        %970 = vrot.lane.b32.xlu0 %v677, 64
        %v971 = vpop.permute.xlu0 %970
        %v973 = vsel %vm682, %v918, 0
        %v976 = vsel %vm926, %v971, 0
        %978 = vmatprep.subr.bf16.mxu0 0
        %979 = vmatpush1.bf16.msra.mxu0 %v976
        %980 = vmatprep.subr.bf16.mxu0 0
        %981 = vmatpush1.bf16.msra.mxu0 0
        %982 = vmatprep.subr.bf16.mxu0 0
        %983 = vmatpush1.bf16.msra.mxu0 0
        %984 = vmatprep.subr.bf16.mxu0 0
        %985 = vmatpush1.bf16.msra.mxu0 0
        %986 = vmatprep.subr.bf16.mxu0 0
        %987 = vmatpush1.bf16.msra.mxu0 0
        %988 = vmatprep.subr.bf16.mxu0 0
        %989 = vmatpush1.bf16.msra.mxu0 0
        %990 = vmatprep.subr.bf16.mxu0 0
        %991 = vmatpush1.bf16.msra.mxu0 0
        %992 = vmatprep.subr.bf16.mxu0 0
        %993 = vmatpush1.bf16.msra.mxu0 0
        %994 = vmatprep.subr.bf16.mxu0 0
        %995 = vmatpush1.bf16.msra.mxu0 0
        %996 = vmatprep.subr.bf16.mxu0 0
        %997 = vmatpush1.bf16.msra.mxu0 0
        %998 = vmatprep.subr.bf16.mxu0 0
        %999 = vmatpush1.bf16.msra.mxu0 0
        %1000 = vmatprep.subr.bf16.mxu0 0
        %1001 = vmatpush1.bf16.msra.mxu0 0
        %1002 = vmatprep.subr.bf16.mxu0 0
        %1003 = vmatpush1.bf16.msra.mxu0 0
        %1004 = vmatprep.subr.bf16.mxu0 0
        %1005 = vmatpush1.bf16.msra.mxu0 0
        %1006 = vmatprep.subr.bf16.mxu0 0
        %1007 = vmatpush1.bf16.msra.mxu0 0
        %1008 = vmatprep.subr.bf16.mxu0 0
        %1009 = vmatpush1.bf16.msra.mxu0 0
        %1010 = vmatprep.mubr.bf16.mxu0 0
        %1011 = vmatmul.mubr.bf16.gmra.mrb[0].mxu0 %v973
        %v1012 = vpop.f32.mrb[0].mxu0
        %v1013 = vadd.f32 0.0, %v1012
        %v1014 = vpop.f32.mrb[0].mxu0
        %v1015 = vpop.f32.mrb[0].mxu0
        %v1016 = vpop.f32.mrb[0].mxu0
        %1017 = vdwg.mxu0
        %1018 = vrot.lane.b32.xlu0 %v678, 64
        %v1019 = vpop.permute.xlu0 %1018
        %v1021 = vsel %vm682, %v919, 0
        %v1024 = vsel %vm926, %v1019, 0
        %1026 = vmatprep.subr.bf16.mxu0 0
        %1027 = vmatpush1.bf16.msra.mxu0 %v1024
        %1028 = vmatprep.subr.bf16.mxu0 0
        %1029 = vmatpush1.bf16.msra.mxu0 0
        %1030 = vmatprep.subr.bf16.mxu0 0
        %1031 = vmatpush1.bf16.msra.mxu0 0
        %1032 = vmatprep.subr.bf16.mxu0 0
        %1033 = vmatpush1.bf16.msra.mxu0 0
        %1034 = vmatprep.subr.bf16.mxu0 0
        %1035 = vmatpush1.bf16.msra.mxu0 0
        %1036 = vmatprep.subr.bf16.mxu0 0
        %1037 = vmatpush1.bf16.msra.mxu0 0
        %1038 = vmatprep.subr.bf16.mxu0 0
        %1039 = vmatpush1.bf16.msra.mxu0 0
        %1040 = vmatprep.subr.bf16.mxu0 0
        %1041 = vmatpush1.bf16.msra.mxu0 0
        %1042 = vmatprep.subr.bf16.mxu0 0
        %1043 = vmatpush1.bf16.msra.mxu0 0
        %1044 = vmatprep.subr.bf16.mxu0 0
        %1045 = vmatpush1.bf16.msra.mxu0 0
        %1046 = vmatprep.subr.bf16.mxu0 0
        %1047 = vmatpush1.bf16.msra.mxu0 0
        %1048 = vmatprep.subr.bf16.mxu0 0
        %1049 = vmatpush1.bf16.msra.mxu0 0
        %1050 = vmatprep.subr.bf16.mxu0 0
        %1051 = vmatpush1.bf16.msra.mxu0 0
        %1052 = vmatprep.subr.bf16.mxu0 0
        %1053 = vmatpush1.bf16.msra.mxu0 0
        %1054 = vmatprep.subr.bf16.mxu0 0
        %1055 = vmatpush1.bf16.msra.mxu0 0
        %1056 = vmatprep.subr.bf16.mxu0 0
        %1057 = vmatpush1.bf16.msra.mxu0 0
        %1058 = vmatprep.mubr.bf16.mxu0 0
        %1059 = vmatmul.mubr.bf16.gmra.mrb[0].mxu0 %v1021
        %v1060 = vpop.f32.mrb[0].mxu0
        %v1061 = vadd.f32 0.0, %v1060
        %v1062 = vpop.f32.mrb[0].mxu0
        %v1063 = vpop.f32.mrb[0].mxu0
        %v1064 = vpop.f32.mrb[0].mxu0
        %1065 = vdwg.mxu0
        %1066 = vrot.lane.b32.xlu0 %v679, 64
        %v1067 = vpop.permute.xlu0 %1066
        %v1069 = vsel %vm682, %v920, 0
        %v1072 = vsel %vm926, %v1067, 0
        %1074 = vmatprep.subr.bf16.mxu0 0
        %1075 = vmatpush1.bf16.msra.mxu0 %v1072
        %1076 = vmatprep.subr.bf16.mxu0 0
        %1077 = vmatpush1.bf16.msra.mxu0 0
        %1078 = vmatprep.subr.bf16.mxu0 0
        %1079 = vmatpush1.bf16.msra.mxu0 0
        %1080 = vmatprep.subr.bf16.mxu0 0
        %1081 = vmatpush1.bf16.msra.mxu0 0
        %1082 = vmatprep.subr.bf16.mxu0 0
        %1083 = vmatpush1.bf16.msra.mxu0 0
        %1084 = vmatprep.subr.bf16.mxu0 0
        %1085 = vmatpush1.bf16.msra.mxu0 0
        %1086 = vmatprep.subr.bf16.mxu0 0
        %1087 = vmatpush1.bf16.msra.mxu0 0
        %1088 = vmatprep.subr.bf16.mxu0 0
        %1089 = vmatpush1.bf16.msra.mxu0 0
        %1090 = vmatprep.subr.bf16.mxu0 0
        %1091 = vmatpush1.bf16.msra.mxu0 0
        %1092 = vmatprep.subr.bf16.mxu0 0
        %1093 = vmatpush1.bf16.msra.mxu0 0
        %1094 = vmatprep.subr.bf16.mxu0 0
        %1095 = vmatpush1.bf16.msra.mxu0 0
        %1096 = vmatprep.subr.bf16.mxu0 0
        %1097 = vmatpush1.bf16.msra.mxu0 0
        %1098 = vmatprep.subr.bf16.mxu0 0
        %1099 = vmatpush1.bf16.msra.mxu0 0
        %1100 = vmatprep.subr.bf16.mxu0 0
        %1101 = vmatpush1.bf16.msra.mxu0 0
        %1102 = vmatprep.subr.bf16.mxu0 0
        %1103 = vmatpush1.bf16.msra.mxu0 0
        %1104 = vmatprep.subr.bf16.mxu0 0
        %1105 = vmatpush1.bf16.msra.mxu0 0
        %1106 = vmatprep.mubr.bf16.mxu0 0
        %1107 = vmatmul.mubr.bf16.gmra.mrb[0].mxu0 %v1069
        %v1108 = vpop.f32.mrb[0].mxu0
        %v1109 = vadd.f32 0.0, %v1108
        %v1110 = vpop.f32.mrb[0].mxu0
        %v1111 = vpop.f32.mrb[0].mxu0
        %v1112 = vpop.f32.mrb[0].mxu0
        %1113 = vdwg.mxu0
        %1114 = vst.msk [vmem:[#allocation2] sm:$0xff] %vm682, %v965
        %1115 = vst.msk [vmem:[#allocation2 + $0x8] sm:$0xff] %vm682, %v1013
        %1116 = vst.msk [vmem:[#allocation2 + $0x10] sm:$0xff] %vm682, %v1061
        %1117 = vst.msk [vmem:[#allocation2 + $0x18] sm:$0xff] %vm682, %v1109
        %1118 = vrot.lane.b32.xlu0 %v676, 120
        %v1119 = vpop.permute.xlu0 %1118
        %1120 = vrot.lane.b32.xlu0 %v676, 88
        %v1121 = vpop.permute.xlu0 %1120
        %v1123 = vsel %vm682, %v1119, 0
        %v1126 = vsel %vm682, %v1121, 0
        %1128 = vmatprep.subr.bf16.mxu0 0
        %1129 = vmatpush1.bf16.xpose.msra.mxu0 %v1126
        %1130 = vmatprep.subr.bf16.mxu0 0
        %1131 = vmatpush1.bf16.xpose.msra.mxu0 0
        %1132 = vmatprep.subr.bf16.mxu0 0
        %1133 = vmatpush1.bf16.xpose.msra.mxu0 0
        %1134 = vmatprep.subr.bf16.mxu0 0
        %1135 = vmatpush1.bf16.xpose.msra.mxu0 0
        %1136 = vmatprep.subr.bf16.mxu0 0
        %1137 = vmatpush1.bf16.xpose.msra.mxu0 0
        %1138 = vmatprep.subr.bf16.mxu0 0
        %1139 = vmatpush1.bf16.xpose.msra.mxu0 0
        %1140 = vmatprep.subr.bf16.mxu0 0
        %1141 = vmatpush1.bf16.xpose.msra.mxu0 0
        %1142 = vmatprep.subr.bf16.mxu0 0
        %1143 = vmatpush1.bf16.xpose.msra.mxu0 0
        %1144 = vmatprep.subr.bf16.mxu0 0
        %1145 = vmatpush1.bf16.xpose.msra.mxu0 0
        %1146 = vmatprep.subr.bf16.mxu0 0
        %1147 = vmatpush1.bf16.xpose.msra.mxu0 0
        %1148 = vmatprep.subr.bf16.mxu0 0
        %1149 = vmatpush1.bf16.xpose.msra.mxu0 0
        %1150 = vmatprep.subr.bf16.mxu0 0
        %1151 = vmatpush1.bf16.xpose.msra.mxu0 0
        %1152 = vmatprep.subr.bf16.mxu0 0
        %1153 = vmatpush1.bf16.xpose.msra.mxu0 0
        %1154 = vmatprep.subr.bf16.mxu0 0
        %1155 = vmatpush1.bf16.xpose.msra.mxu0 0
        %1156 = vmatprep.subr.bf16.mxu0 0
        %1157 = vmatpush1.bf16.xpose.msra.mxu0 0
        %1158 = vmatprep.subr.bf16.mxu0 0
        %1159 = vmatpush1.bf16.xpose.msra.mxu0 0
        %1160 = vmatprep.mubr.bf16.mxu0 0
        %1161 = vmatmul.mubr.bf16.gmra.mrb[0].mxu0 %v1123
        %v1162 = vpop.f32.mrb[0].mxu0
        %v1163 = vadd.f32 0.0, %v1162
        %v1164 = vpop.f32.mrb[0].mxu0
        %v1165 = vpop.f32.mrb[0].mxu0
        %v1166 = vpop.f32.mrb[0].mxu0
        %1167 = vdwg.mxu0
        %1168 = vrot.lane.b32.xlu0 %v677, 120
        %v1169 = vpop.permute.xlu0 %1168
        %1170 = vrot.lane.b32.xlu0 %v677, 88
        %v1171 = vpop.permute.xlu0 %1170
        %v1173 = vsel %vm682, %v1169, 0
        %v1176 = vsel %vm682, %v1171, 0
        %1178 = vmatprep.subr.bf16.mxu0 0
        %1179 = vmatpush1.bf16.xpose.msra.mxu0 %v1176
        %1180 = vmatprep.subr.bf16.mxu0 0
        %1181 = vmatpush1.bf16.xpose.msra.mxu0 0
        %1182 = vmatprep.subr.bf16.mxu0 0
        %1183 = vmatpush1.bf16.xpose.msra.mxu0 0
        %1184 = vmatprep.subr.bf16.mxu0 0
        %1185 = vmatpush1.bf16.xpose.msra.mxu0 0
        %1186 = vmatprep.subr.bf16.mxu0 0
        %1187 = vmatpush1.bf16.xpose.msra.mxu0 0
        %1188 = vmatprep.subr.bf16.mxu0 0
        %1189 = vmatpush1.bf16.xpose.msra.mxu0 0
        %1190 = vmatprep.subr.bf16.mxu0 0
        %1191 = vmatpush1.bf16.xpose.msra.mxu0 0
        %1192 = vmatprep.subr.bf16.mxu0 0
        %1193 = vmatpush1.bf16.xpose.msra.mxu0 0
        %1194 = vmatprep.subr.bf16.mxu0 0
        %1195 = vmatpush1.bf16.xpose.msra.mxu0 0
        %1196 = vmatprep.subr.bf16.mxu0 0
        %1197 = vmatpush1.bf16.xpose.msra.mxu0 0
        %1198 = vmatprep.subr.bf16.mxu0 0
        %1199 = vmatpush1.bf16.xpose.msra.mxu0 0
        %1200 = vmatprep.subr.bf16.mxu0 0
        %1201 = vmatpush1.bf16.xpose.msra.mxu0 0
        %1202 = vmatprep.subr.bf16.mxu0 0
        %1203 = vmatpush1.bf16.xpose.msra.mxu0 0
        %1204 = vmatprep.subr.bf16.mxu0 0
        %1205 = vmatpush1.bf16.xpose.msra.mxu0 0
        %1206 = vmatprep.subr.bf16.mxu0 0
        %1207 = vmatpush1.bf16.xpose.msra.mxu0 0
        %1208 = vmatprep.subr.bf16.mxu0 0
        %1209 = vmatpush1.bf16.xpose.msra.mxu0 0
        %1210 = vmatprep.mubr.bf16.mxu0 0
        %1211 = vmatmul.mubr.bf16.gmra.mrb[0].mxu0 %v1173
        %v1212 = vpop.f32.mrb[0].mxu0
        %v1213 = vadd.f32 0.0, %v1212
        %v1214 = vpop.f32.mrb[0].mxu0
        %v1215 = vpop.f32.mrb[0].mxu0
        %v1216 = vpop.f32.mrb[0].mxu0
        %1217 = vdwg.mxu0
        %1218 = vrot.lane.b32.xlu0 %v678, 120
        %v1219 = vpop.permute.xlu0 %1218
        %1220 = vrot.lane.b32.xlu0 %v678, 88
        %v1221 = vpop.permute.xlu0 %1220
        %v1223 = vsel %vm682, %v1219, 0
        %v1226 = vsel %vm682, %v1221, 0
        %1228 = vmatprep.subr.bf16.mxu0 0
        %1229 = vmatpush1.bf16.xpose.msra.mxu0 %v1226
        %1230 = vmatprep.subr.bf16.mxu0 0
        %1231 = vmatpush1.bf16.xpose.msra.mxu0 0
        %1232 = vmatprep.subr.bf16.mxu0 0
        %1233 = vmatpush1.bf16.xpose.msra.mxu0 0
        %1234 = vmatprep.subr.bf16.mxu0 0
        %1235 = vmatpush1.bf16.xpose.msra.mxu0 0
        %1236 = vmatprep.subr.bf16.mxu0 0
        %1237 = vmatpush1.bf16.xpose.msra.mxu0 0
        %1238 = vmatprep.subr.bf16.mxu0 0
        %1239 = vmatpush1.bf16.xpose.msra.mxu0 0
        %1240 = vmatprep.subr.bf16.mxu0 0
        %1241 = vmatpush1.bf16.xpose.msra.mxu0 0
        %1242 = vmatprep.subr.bf16.mxu0 0
        %1243 = vmatpush1.bf16.xpose.msra.mxu0 0
        %1244 = vmatprep.subr.bf16.mxu0 0
        %1245 = vmatpush1.bf16.xpose.msra.mxu0 0
        %1246 = vmatprep.subr.bf16.mxu0 0
        %1247 = vmatpush1.bf16.xpose.msra.mxu0 0
        %1248 = vmatprep.subr.bf16.mxu0 0
        %1249 = vmatpush1.bf16.xpose.msra.mxu0 0
        %1250 = vmatprep.subr.bf16.mxu0 0
        %1251 = vmatpush1.bf16.xpose.msra.mxu0 0
        %1252 = vmatprep.subr.bf16.mxu0 0
        %1253 = vmatpush1.bf16.xpose.msra.mxu0 0
        %1254 = vmatprep.subr.bf16.mxu0 0
        %1255 = vmatpush1.bf16.xpose.msra.mxu0 0
        %1256 = vmatprep.subr.bf16.mxu0 0
        %1257 = vmatpush1.bf16.xpose.msra.mxu0 0
        %1258 = vmatprep.subr.bf16.mxu0 0
        %1259 = vmatpush1.bf16.xpose.msra.mxu0 0
        %1260 = vmatprep.mubr.bf16.mxu0 0
        %1261 = vmatmul.mubr.bf16.gmra.mrb[0].mxu0 %v1223
        %v1262 = vpop.f32.mrb[0].mxu0
        %v1263 = vadd.f32 0.0, %v1262
        %v1264 = vpop.f32.mrb[0].mxu0
        %v1265 = vpop.f32.mrb[0].mxu0
        %v1266 = vpop.f32.mrb[0].mxu0
        %1267 = vdwg.mxu0
        %1268 = vrot.lane.b32.xlu0 %v679, 120
        %v1269 = vpop.permute.xlu0 %1268
        %1270 = vrot.lane.b32.xlu0 %v679, 88
        %v1271 = vpop.permute.xlu0 %1270
        %v1273 = vsel %vm682, %v1269, 0
        %v1276 = vsel %vm682, %v1271, 0
        %1278 = vmatprep.subr.bf16.mxu0 0
        %1279 = vmatpush1.bf16.xpose.msra.mxu0 %v1276
        %1280 = vmatprep.subr.bf16.mxu0 0
        %1281 = vmatpush1.bf16.xpose.msra.mxu0 0
        %1282 = vmatprep.subr.bf16.mxu0 0
        %1283 = vmatpush1.bf16.xpose.msra.mxu0 0
        %1284 = vmatprep.subr.bf16.mxu0 0
        %1285 = vmatpush1.bf16.xpose.msra.mxu0 0
        %1286 = vmatprep.subr.bf16.mxu0 0
        %1287 = vmatpush1.bf16.xpose.msra.mxu0 0
        %1288 = vmatprep.subr.bf16.mxu0 0
        %1289 = vmatpush1.bf16.xpose.msra.mxu0 0
        %1290 = vmatprep.subr.bf16.mxu0 0
        %1291 = vmatpush1.bf16.xpose.msra.mxu0 0
        %1292 = vmatprep.subr.bf16.mxu0 0
        %1293 = vmatpush1.bf16.xpose.msra.mxu0 0
        %1294 = vmatprep.subr.bf16.mxu0 0
        %1295 = vmatpush1.bf16.xpose.msra.mxu0 0
        %1296 = vmatprep.subr.bf16.mxu0 0
        %1297 = vmatpush1.bf16.xpose.msra.mxu0 0
        %1298 = vmatprep.subr.bf16.mxu0 0
        %1299 = vmatpush1.bf16.xpose.msra.mxu0 0
        %1300 = vmatprep.subr.bf16.mxu0 0
        %1301 = vmatpush1.bf16.xpose.msra.mxu0 0
        %1302 = vmatprep.subr.bf16.mxu0 0
        %1303 = vmatpush1.bf16.xpose.msra.mxu0 0
        %1304 = vmatprep.subr.bf16.mxu0 0
        %1305 = vmatpush1.bf16.xpose.msra.mxu0 0
        %1306 = vmatprep.subr.bf16.mxu0 0
        %1307 = vmatpush1.bf16.xpose.msra.mxu0 0
        %1308 = vmatprep.subr.bf16.mxu0 0
        %1309 = vmatpush1.bf16.xpose.msra.mxu0 0
        %1310 = vmatprep.mubr.bf16.mxu0 0
        %1311 = vmatmul.mubr.bf16.gmra.mrb[0].mxu0 %v1273
        %v1312 = vpop.f32.mrb[0].mxu0
        %v1313 = vadd.f32 0.0, %v1312
        %v1314 = vpop.f32.mrb[0].mxu0
        %v1315 = vpop.f32.mrb[0].mxu0
        %v1316 = vpop.f32.mrb[0].mxu0
        %1317 = vdwg.mxu0
        %v1318 = vsel %vm682, %v1163, -inf
        %1319 = vmax.xlane.f32.xlu0 %v1318
        %v1320 = vpop.xlane.xlu0 %1319
        %v1321 = vsel %vm682, %v1213, -inf
        %1322 = vmax.xlane.f32.xlu0 %v1321
        %v1323 = vpop.xlane.xlu0 %1322
        %v1324 = vsel %vm682, %v1263, -inf
        %1325 = vmax.xlane.f32.xlu0 %v1324
        %v1326 = vpop.xlane.xlu0 %1325
        %v1327 = vsel %vm682, %v1313, -inf
        %1328 = vmax.xlane.f32.xlu0 %v1327
        %v1329 = vpop.xlane.xlu0 %1328
        %v1330 = vsub.f32 %v1163, %v1320
        %v1331 = vsub.f32 %v1213, %v1323
        %v1332 = vsub.f32 %v1263, %v1326
        %v1333 = vsub.f32 %v1313, %v1329
        %v1334 = vmul.f32 %v1330, 1.442695
        %v1335 = vpow.pop %v1334
        %v1336 = vmul.f32 %v1331, 1.442695
        %v1337 = vpow.pop %v1336
        %v1338 = vmul.f32 %v1332, 1.442695
        %v1339 = vpow.pop %v1338
        %v1340 = vmul.f32 %v1333, 1.442695
        %v1341 = vpow.pop %v1340
        %v1342 = vsel %vm682, %v1335, 0.0
        %1343 = vadd.xlane.f32.xlu0 %v1342
        %v1344 = vpop.xlane.xlu0 %1343
        %v1345 = vsel %vm682, %v1337, 0.0
        %1346 = vadd.xlane.f32.xlu0 %v1345
        %v1347 = vpop.xlane.xlu0 %1346
        %v1348 = vsel %vm682, %v1339, 0.0
        %1349 = vadd.xlane.f32.xlu0 %v1348
        %v1350 = vpop.xlane.xlu0 %1349
        %v1351 = vsel %vm682, %v1341, 0.0
        %1352 = vadd.xlane.f32.xlu0 %v1351
        %v1353 = vpop.xlane.xlu0 %1352
        %v1354 = vrcp.pop %v1344
        %v1355 = vrcp.pop %v1347
        %v1356 = vrcp.pop %v1350
        %v1357 = vrcp.pop %v1353
        %v1358 = vmul.f32 %v1335, %v1354
        %v1359 = vmul.f32 %v1337, %v1355
        %v1360 = vmul.f32 %v1339, %v1356
        %v1361 = vmul.f32 %v1341, %v1357
        %v1362 = vpack.c.bf16 %v1358, %v1358
        %v1363 = vpack.c.bf16 %v1359, %v1359
        %v1364 = vpack.c.bf16 %v1360, %v1360
        %v1365 = vpack.c.bf16 %v1361, %v1361
        %1366 = vrot.lane.b32.xlu0 %v676, 56
        %v1367 = vpop.permute.xlu0 %1366
        %v1369 = vsel %vm682, %v1362, 0
        %v1372 = vsel %vm926, %v1367, 0
        %1374 = vmatprep.subr.bf16.mxu0 0
        %1375 = vmatpush1.bf16.msra.mxu0 %v1372
        %1376 = vmatprep.subr.bf16.mxu0 0
        %1377 = vmatpush1.bf16.msra.mxu0 0
        %1378 = vmatprep.subr.bf16.mxu0 0
        %1379 = vmatpush1.bf16.msra.mxu0 0
        %1380 = vmatprep.subr.bf16.mxu0 0
        %1381 = vmatpush1.bf16.msra.mxu0 0
        %1382 = vmatprep.subr.bf16.mxu0 0
        %1383 = vmatpush1.bf16.msra.mxu0 0
        %1384 = vmatprep.subr.bf16.mxu0 0
        %1385 = vmatpush1.bf16.msra.mxu0 0
        %1386 = vmatprep.subr.bf16.mxu0 0
        %1387 = vmatpush1.bf16.msra.mxu0 0
        %1388 = vmatprep.subr.bf16.mxu0 0
        %1389 = vmatpush1.bf16.msra.mxu0 0
        %1390 = vmatprep.subr.bf16.mxu0 0
        %1391 = vmatpush1.bf16.msra.mxu0 0
        %1392 = vmatprep.subr.bf16.mxu0 0
        %1393 = vmatpush1.bf16.msra.mxu0 0
        %1394 = vmatprep.subr.bf16.mxu0 0
        %1395 = vmatpush1.bf16.msra.mxu0 0
        %1396 = vmatprep.subr.bf16.mxu0 0
        %1397 = vmatpush1.bf16.msra.mxu0 0
        %1398 = vmatprep.subr.bf16.mxu0 0
        %1399 = vmatpush1.bf16.msra.mxu0 0
        %1400 = vmatprep.subr.bf16.mxu0 0
        %1401 = vmatpush1.bf16.msra.mxu0 0
        %1402 = vmatprep.subr.bf16.mxu0 0
        %1403 = vmatpush1.bf16.msra.mxu0 0
        %1404 = vmatprep.subr.bf16.mxu0 0
        %1405 = vmatpush1.bf16.msra.mxu0 0
        %1406 = vmatprep.mubr.bf16.mxu0 0
        %1407 = vmatmul.mubr.bf16.gmra.mrb[0].mxu0 %v1369
        %v1408 = vpop.f32.mrb[0].mxu0
        %v1409 = vadd.f32 0.0, %v1408
        %v1410 = vpop.f32.mrb[0].mxu0
        %v1411 = vpop.f32.mrb[0].mxu0
        %v1412 = vpop.f32.mrb[0].mxu0
        %1413 = vdwg.mxu0
        %1414 = vrot.lane.b32.xlu0 %v677, 56
        %v1415 = vpop.permute.xlu0 %1414
        %v1417 = vsel %vm682, %v1363, 0
        %v1420 = vsel %vm926, %v1415, 0
        %1422 = vmatprep.subr.bf16.mxu0 0
        %1423 = vmatpush1.bf16.msra.mxu0 %v1420
        %1424 = vmatprep.subr.bf16.mxu0 0
        %1425 = vmatpush1.bf16.msra.mxu0 0
        %1426 = vmatprep.subr.bf16.mxu0 0
        %1427 = vmatpush1.bf16.msra.mxu0 0
        %1428 = vmatprep.subr.bf16.mxu0 0
        %1429 = vmatpush1.bf16.msra.mxu0 0
        %1430 = vmatprep.subr.bf16.mxu0 0
        %1431 = vmatpush1.bf16.msra.mxu0 0
        %1432 = vmatprep.subr.bf16.mxu0 0
        %1433 = vmatpush1.bf16.msra.mxu0 0
        %1434 = vmatprep.subr.bf16.mxu0 0
        %1435 = vmatpush1.bf16.msra.mxu0 0
        %1436 = vmatprep.subr.bf16.mxu0 0
        %1437 = vmatpush1.bf16.msra.mxu0 0
        %1438 = vmatprep.subr.bf16.mxu0 0
        %1439 = vmatpush1.bf16.msra.mxu0 0
        %1440 = vmatprep.subr.bf16.mxu0 0
        %1441 = vmatpush1.bf16.msra.mxu0 0
        %1442 = vmatprep.subr.bf16.mxu0 0
        %1443 = vmatpush1.bf16.msra.mxu0 0
        %1444 = vmatprep.subr.bf16.mxu0 0
        %1445 = vmatpush1.bf16.msra.mxu0 0
        %1446 = vmatprep.subr.bf16.mxu0 0
        %1447 = vmatpush1.bf16.msra.mxu0 0
        %1448 = vmatprep.subr.bf16.mxu0 0
        %1449 = vmatpush1.bf16.msra.mxu0 0
        %1450 = vmatprep.subr.bf16.mxu0 0
        %1451 = vmatpush1.bf16.msra.mxu0 0
        %1452 = vmatprep.subr.bf16.mxu0 0
        %1453 = vmatpush1.bf16.msra.mxu0 0
        %1454 = vmatprep.mubr.bf16.mxu0 0
        %1455 = vmatmul.mubr.bf16.gmra.mrb[0].mxu0 %v1417
        %v1456 = vpop.f32.mrb[0].mxu0
        %v1457 = vadd.f32 0.0, %v1456
        %v1458 = vpop.f32.mrb[0].mxu0
        %v1459 = vpop.f32.mrb[0].mxu0
        %v1460 = vpop.f32.mrb[0].mxu0
        %1461 = vdwg.mxu0
        %1462 = vrot.lane.b32.xlu0 %v678, 56
        %v1463 = vpop.permute.xlu0 %1462
        %v1465 = vsel %vm682, %v1364, 0
        %v1468 = vsel %vm926, %v1463, 0
        %1470 = vmatprep.subr.bf16.mxu0 0
        %1471 = vmatpush1.bf16.msra.mxu0 %v1468
        %1472 = vmatprep.subr.bf16.mxu0 0
        %1473 = vmatpush1.bf16.msra.mxu0 0
        %1474 = vmatprep.subr.bf16.mxu0 0
        %1475 = vmatpush1.bf16.msra.mxu0 0
        %1476 = vmatprep.subr.bf16.mxu0 0
        %1477 = vmatpush1.bf16.msra.mxu0 0
        %1478 = vmatprep.subr.bf16.mxu0 0
        %1479 = vmatpush1.bf16.msra.mxu0 0
        %1480 = vmatprep.subr.bf16.mxu0 0
        %1481 = vmatpush1.bf16.msra.mxu0 0
        %1482 = vmatprep.subr.bf16.mxu0 0
        %1483 = vmatpush1.bf16.msra.mxu0 0
        %1484 = vmatprep.subr.bf16.mxu0 0
        %1485 = vmatpush1.bf16.msra.mxu0 0
        %1486 = vmatprep.subr.bf16.mxu0 0
        %1487 = vmatpush1.bf16.msra.mxu0 0
        %1488 = vmatprep.subr.bf16.mxu0 0
        %1489 = vmatpush1.bf16.msra.mxu0 0
        %1490 = vmatprep.subr.bf16.mxu0 0
        %1491 = vmatpush1.bf16.msra.mxu0 0
        %1492 = vmatprep.subr.bf16.mxu0 0
        %1493 = vmatpush1.bf16.msra.mxu0 0
        %1494 = vmatprep.subr.bf16.mxu0 0
        %1495 = vmatpush1.bf16.msra.mxu0 0
        %1496 = vmatprep.subr.bf16.mxu0 0
        %1497 = vmatpush1.bf16.msra.mxu0 0
        %1498 = vmatprep.subr.bf16.mxu0 0
        %1499 = vmatpush1.bf16.msra.mxu0 0
        %1500 = vmatprep.subr.bf16.mxu0 0
        %1501 = vmatpush1.bf16.msra.mxu0 0
        %1502 = vmatprep.mubr.bf16.mxu0 0
        %1503 = vmatmul.mubr.bf16.gmra.mrb[0].mxu0 %v1465
        %v1504 = vpop.f32.mrb[0].mxu0
        %v1505 = vadd.f32 0.0, %v1504
        %v1506 = vpop.f32.mrb[0].mxu0
        %v1507 = vpop.f32.mrb[0].mxu0
        %v1508 = vpop.f32.mrb[0].mxu0
        %1509 = vdwg.mxu0
        %1510 = vrot.lane.b32.xlu0 %v679, 56
        %v1511 = vpop.permute.xlu0 %1510
        %v1513 = vsel %vm682, %v1365, 0
        %v1516 = vsel %vm926, %v1511, 0
        %1518 = vmatprep.subr.bf16.mxu0 0
        %1519 = vmatpush1.bf16.msra.mxu0 %v1516
        %1520 = vmatprep.subr.bf16.mxu0 0
        %1521 = vmatpush1.bf16.msra.mxu0 0
        %1522 = vmatprep.subr.bf16.mxu0 0
        %1523 = vmatpush1.bf16.msra.mxu0 0
        %1524 = vmatprep.subr.bf16.mxu0 0
        %1525 = vmatpush1.bf16.msra.mxu0 0
        %1526 = vmatprep.subr.bf16.mxu0 0
        %1527 = vmatpush1.bf16.msra.mxu0 0
        %1528 = vmatprep.subr.bf16.mxu0 0
        %1529 = vmatpush1.bf16.msra.mxu0 0
        %1530 = vmatprep.subr.bf16.mxu0 0
        %1531 = vmatpush1.bf16.msra.mxu0 0
        %1532 = vmatprep.subr.bf16.mxu0 0
        %1533 = vmatpush1.bf16.msra.mxu0 0
        %1534 = vmatprep.subr.bf16.mxu0 0
        %1535 = vmatpush1.bf16.msra.mxu0 0
        %1536 = vmatprep.subr.bf16.mxu0 0
        %1537 = vmatpush1.bf16.msra.mxu0 0
        %1538 = vmatprep.subr.bf16.mxu0 0
        %1539 = vmatpush1.bf16.msra.mxu0 0
        %1540 = vmatprep.subr.bf16.mxu0 0
        %1541 = vmatpush1.bf16.msra.mxu0 0
        %1542 = vmatprep.subr.bf16.mxu0 0
        %1543 = vmatpush1.bf16.msra.mxu0 0
        %1544 = vmatprep.subr.bf16.mxu0 0
        %1545 = vmatpush1.bf16.msra.mxu0 0
        %1546 = vmatprep.subr.bf16.mxu0 0
        %1547 = vmatpush1.bf16.msra.mxu0 0
        %1548 = vmatprep.subr.bf16.mxu0 0
        %1549 = vmatpush1.bf16.msra.mxu0 0
        %1550 = vmatprep.mubr.bf16.mxu0 0
        %1551 = vmatmul.mubr.bf16.gmra.mrb[0].mxu0 %v1513
        %v1552 = vpop.f32.mrb[0].mxu0
        %v1553 = vadd.f32 0.0, %v1552
        %v1554 = vpop.f32.mrb[0].mxu0
        %v1555 = vpop.f32.mrb[0].mxu0
        %v1556 = vpop.f32.mrb[0].mxu0
        %1557 = vdwg.mxu0
        %1562 = vrot.lane.b32.xlu0 %v1409, 8
        %v1563 = vpop.permute.xlu0 %1562
        %1564 = vrot.lane.b32.xlu0 %v1457, 8
        %v1565 = vpop.permute.xlu0 %1564
        %1566 = vrot.lane.b32.xlu0 %v1505, 8
        %v1567 = vpop.permute.xlu0 %1566
        %1568 = vrot.lane.b32.xlu0 %v1553, 8
        %v1569 = vpop.permute.xlu0 %1568
        %vm1574 = vcmask 130112
        %1575 = vst.msk [vmem:[#allocation2] sm:$0xff] %vm1574, %v1563
        %1576 = vst.msk [vmem:[#allocation2 + $0x8] sm:$0xff] %vm1574, %v1565
        %1577 = vst.msk [vmem:[#allocation2 + $0x10] sm:$0xff] %vm1574, %v1567
        %1578 = vst.msk [vmem:[#allocation2 + $0x18] sm:$0xff] %vm1574, %v1569
        %1579 = vrot.lane.b32.xlu0 %v676, 112
        %v1580 = vpop.permute.xlu0 %1579
        %1581 = vrot.lane.b32.xlu0 %v676, 80
        %v1582 = vpop.permute.xlu0 %1581
        %v1584 = vsel %vm682, %v1580, 0
        %v1587 = vsel %vm682, %v1582, 0
        %1589 = vmatprep.subr.bf16.mxu0 0
        %1590 = vmatpush1.bf16.xpose.msra.mxu0 %v1587
        %1591 = vmatprep.subr.bf16.mxu0 0
        %1592 = vmatpush1.bf16.xpose.msra.mxu0 0
        %1593 = vmatprep.subr.bf16.mxu0 0
        %1594 = vmatpush1.bf16.xpose.msra.mxu0 0
        %1595 = vmatprep.subr.bf16.mxu0 0
        %1596 = vmatpush1.bf16.xpose.msra.mxu0 0
        %1597 = vmatprep.subr.bf16.mxu0 0
        %1598 = vmatpush1.bf16.xpose.msra.mxu0 0
        %1599 = vmatprep.subr.bf16.mxu0 0
        %1600 = vmatpush1.bf16.xpose.msra.mxu0 0
        %1601 = vmatprep.subr.bf16.mxu0 0
        %1602 = vmatpush1.bf16.xpose.msra.mxu0 0
        %1603 = vmatprep.subr.bf16.mxu0 0
        %1604 = vmatpush1.bf16.xpose.msra.mxu0 0
        %1605 = vmatprep.subr.bf16.mxu0 0
        %1606 = vmatpush1.bf16.xpose.msra.mxu0 0
        %1607 = vmatprep.subr.bf16.mxu0 0
        %1608 = vmatpush1.bf16.xpose.msra.mxu0 0
        %1609 = vmatprep.subr.bf16.mxu0 0
        %1610 = vmatpush1.bf16.xpose.msra.mxu0 0
        %1611 = vmatprep.subr.bf16.mxu0 0
        %1612 = vmatpush1.bf16.xpose.msra.mxu0 0
        %1613 = vmatprep.subr.bf16.mxu0 0
        %1614 = vmatpush1.bf16.xpose.msra.mxu0 0
        %1615 = vmatprep.subr.bf16.mxu0 0
        %1616 = vmatpush1.bf16.xpose.msra.mxu0 0
        %1617 = vmatprep.subr.bf16.mxu0 0
        %1618 = vmatpush1.bf16.xpose.msra.mxu0 0
        %1619 = vmatprep.subr.bf16.mxu0 0
        %1620 = vmatpush1.bf16.xpose.msra.mxu0 0
        %1621 = vmatprep.mubr.bf16.mxu0 0
        %1622 = vmatmul.mubr.bf16.gmra.mrb[0].mxu0 %v1584
        %v1623 = vpop.f32.mrb[0].mxu0
        %v1624 = vadd.f32 0.0, %v1623
        %v1625 = vpop.f32.mrb[0].mxu0
        %v1626 = vpop.f32.mrb[0].mxu0
        %v1627 = vpop.f32.mrb[0].mxu0
        %1628 = vdwg.mxu0
        %1629 = vrot.lane.b32.xlu0 %v677, 112
        %v1630 = vpop.permute.xlu0 %1629
        %1631 = vrot.lane.b32.xlu0 %v677, 80
        %v1632 = vpop.permute.xlu0 %1631
        %v1634 = vsel %vm682, %v1630, 0
        %v1637 = vsel %vm682, %v1632, 0
        %1639 = vmatprep.subr.bf16.mxu0 0
        %1640 = vmatpush1.bf16.xpose.msra.mxu0 %v1637
        %1641 = vmatprep.subr.bf16.mxu0 0
        %1642 = vmatpush1.bf16.xpose.msra.mxu0 0
        %1643 = vmatprep.subr.bf16.mxu0 0
        %1644 = vmatpush1.bf16.xpose.msra.mxu0 0
        %1645 = vmatprep.subr.bf16.mxu0 0
        %1646 = vmatpush1.bf16.xpose.msra.mxu0 0
        %1647 = vmatprep.subr.bf16.mxu0 0
        %1648 = vmatpush1.bf16.xpose.msra.mxu0 0
        %1649 = vmatprep.subr.bf16.mxu0 0
        %1650 = vmatpush1.bf16.xpose.msra.mxu0 0
        %1651 = vmatprep.subr.bf16.mxu0 0
        %1652 = vmatpush1.bf16.xpose.msra.mxu0 0
        %1653 = vmatprep.subr.bf16.mxu0 0
        %1654 = vmatpush1.bf16.xpose.msra.mxu0 0
        %1655 = vmatprep.subr.bf16.mxu0 0
        %1656 = vmatpush1.bf16.xpose.msra.mxu0 0
        %1657 = vmatprep.subr.bf16.mxu0 0
        %1658 = vmatpush1.bf16.xpose.msra.mxu0 0
        %1659 = vmatprep.subr.bf16.mxu0 0
        %1660 = vmatpush1.bf16.xpose.msra.mxu0 0
        %1661 = vmatprep.subr.bf16.mxu0 0
        %1662 = vmatpush1.bf16.xpose.msra.mxu0 0
        %1663 = vmatprep.subr.bf16.mxu0 0
        %1664 = vmatpush1.bf16.xpose.msra.mxu0 0
        %1665 = vmatprep.subr.bf16.mxu0 0
        %1666 = vmatpush1.bf16.xpose.msra.mxu0 0
        %1667 = vmatprep.subr.bf16.mxu0 0
        %1668 = vmatpush1.bf16.xpose.msra.mxu0 0
        %1669 = vmatprep.subr.bf16.mxu0 0
        %1670 = vmatpush1.bf16.xpose.msra.mxu0 0
        %1671 = vmatprep.mubr.bf16.mxu0 0
        %1672 = vmatmul.mubr.bf16.gmra.mrb[0].mxu0 %v1634
        %v1673 = vpop.f32.mrb[0].mxu0
        %v1674 = vadd.f32 0.0, %v1673
        %v1675 = vpop.f32.mrb[0].mxu0
        %v1676 = vpop.f32.mrb[0].mxu0
        %v1677 = vpop.f32.mrb[0].mxu0
        %1678 = vdwg.mxu0
        %1679 = vrot.lane.b32.xlu0 %v678, 112
        %v1680 = vpop.permute.xlu0 %1679
        %1681 = vrot.lane.b32.xlu0 %v678, 80
        %v1682 = vpop.permute.xlu0 %1681
        %v1684 = vsel %vm682, %v1680, 0
        %v1687 = vsel %vm682, %v1682, 0
        %1689 = vmatprep.subr.bf16.mxu0 0
        %1690 = vmatpush1.bf16.xpose.msra.mxu0 %v1687
        %1691 = vmatprep.subr.bf16.mxu0 0
        %1692 = vmatpush1.bf16.xpose.msra.mxu0 0
        %1693 = vmatprep.subr.bf16.mxu0 0
        %1694 = vmatpush1.bf16.xpose.msra.mxu0 0
        %1695 = vmatprep.subr.bf16.mxu0 0
        %1696 = vmatpush1.bf16.xpose.msra.mxu0 0
        %1697 = vmatprep.subr.bf16.mxu0 0
        %1698 = vmatpush1.bf16.xpose.msra.mxu0 0
        %1699 = vmatprep.subr.bf16.mxu0 0
        %1700 = vmatpush1.bf16.xpose.msra.mxu0 0
        %1701 = vmatprep.subr.bf16.mxu0 0
        %1702 = vmatpush1.bf16.xpose.msra.mxu0 0
        %1703 = vmatprep.subr.bf16.mxu0 0
        %1704 = vmatpush1.bf16.xpose.msra.mxu0 0
        %1705 = vmatprep.subr.bf16.mxu0 0
        %1706 = vmatpush1.bf16.xpose.msra.mxu0 0
        %1707 = vmatprep.subr.bf16.mxu0 0
        %1708 = vmatpush1.bf16.xpose.msra.mxu0 0
        %1709 = vmatprep.subr.bf16.mxu0 0
        %1710 = vmatpush1.bf16.xpose.msra.mxu0 0
        %1711 = vmatprep.subr.bf16.mxu0 0
        %1712 = vmatpush1.bf16.xpose.msra.mxu0 0
        %1713 = vmatprep.subr.bf16.mxu0 0
        %1714 = vmatpush1.bf16.xpose.msra.mxu0 0
        %1715 = vmatprep.subr.bf16.mxu0 0
        %1716 = vmatpush1.bf16.xpose.msra.mxu0 0
        %1717 = vmatprep.subr.bf16.mxu0 0
        %1718 = vmatpush1.bf16.xpose.msra.mxu0 0
        %1719 = vmatprep.subr.bf16.mxu0 0
        %1720 = vmatpush1.bf16.xpose.msra.mxu0 0
        %1721 = vmatprep.mubr.bf16.mxu0 0
        %1722 = vmatmul.mubr.bf16.gmra.mrb[0].mxu0 %v1684
        %v1723 = vpop.f32.mrb[0].mxu0
        %v1724 = vadd.f32 0.0, %v1723
        %v1725 = vpop.f32.mrb[0].mxu0
        %v1726 = vpop.f32.mrb[0].mxu0
        %v1727 = vpop.f32.mrb[0].mxu0
        %1728 = vdwg.mxu0
        %1729 = vrot.lane.b32.xlu0 %v679, 112
        %v1730 = vpop.permute.xlu0 %1729
        %1731 = vrot.lane.b32.xlu0 %v679, 80
        %v1732 = vpop.permute.xlu0 %1731
        %v1734 = vsel %vm682, %v1730, 0
        %v1737 = vsel %vm682, %v1732, 0
        %1739 = vmatprep.subr.bf16.mxu0 0
        %1740 = vmatpush1.bf16.xpose.msra.mxu0 %v1737
        %1741 = vmatprep.subr.bf16.mxu0 0
        %1742 = vmatpush1.bf16.xpose.msra.mxu0 0
        %1743 = vmatprep.subr.bf16.mxu0 0
        %1744 = vmatpush1.bf16.xpose.msra.mxu0 0
        %1745 = vmatprep.subr.bf16.mxu0 0
        %1746 = vmatpush1.bf16.xpose.msra.mxu0 0
        %1747 = vmatprep.subr.bf16.mxu0 0
        %1748 = vmatpush1.bf16.xpose.msra.mxu0 0
        %1749 = vmatprep.subr.bf16.mxu0 0
        %1750 = vmatpush1.bf16.xpose.msra.mxu0 0
        %1751 = vmatprep.subr.bf16.mxu0 0
        %1752 = vmatpush1.bf16.xpose.msra.mxu0 0
        %1753 = vmatprep.subr.bf16.mxu0 0
        %1754 = vmatpush1.bf16.xpose.msra.mxu0 0
        %1755 = vmatprep.subr.bf16.mxu0 0
        %1756 = vmatpush1.bf16.xpose.msra.mxu0 0
        %1757 = vmatprep.subr.bf16.mxu0 0
        %1758 = vmatpush1.bf16.xpose.msra.mxu0 0
        %1759 = vmatprep.subr.bf16.mxu0 0
        %1760 = vmatpush1.bf16.xpose.msra.mxu0 0
        %1761 = vmatprep.subr.bf16.mxu0 0
        %1762 = vmatpush1.bf16.xpose.msra.mxu0 0
        %1763 = vmatprep.subr.bf16.mxu0 0
        %1764 = vmatpush1.bf16.xpose.msra.mxu0 0
        %1765 = vmatprep.subr.bf16.mxu0 0
        %1766 = vmatpush1.bf16.xpose.msra.mxu0 0
        %1767 = vmatprep.subr.bf16.mxu0 0
        %1768 = vmatpush1.bf16.xpose.msra.mxu0 0
        %1769 = vmatprep.subr.bf16.mxu0 0
        %1770 = vmatpush1.bf16.xpose.msra.mxu0 0
        %1771 = vmatprep.mubr.bf16.mxu0 0
        %1772 = vmatmul.mubr.bf16.gmra.mrb[0].mxu0 %v1734
        %v1773 = vpop.f32.mrb[0].mxu0
        %v1774 = vadd.f32 0.0, %v1773
        %v1775 = vpop.f32.mrb[0].mxu0
        %v1776 = vpop.f32.mrb[0].mxu0
        %v1777 = vpop.f32.mrb[0].mxu0
        %1778 = vdwg.mxu0
        %v1779 = vsel %vm682, %v1624, -inf
        %1780 = vmax.xlane.f32.xlu0 %v1779
        %v1781 = vpop.xlane.xlu0 %1780
        %v1782 = vsel %vm682, %v1674, -inf
        %1783 = vmax.xlane.f32.xlu0 %v1782
        %v1784 = vpop.xlane.xlu0 %1783
        %v1785 = vsel %vm682, %v1724, -inf
        %1786 = vmax.xlane.f32.xlu0 %v1785
        %v1787 = vpop.xlane.xlu0 %1786
        %v1788 = vsel %vm682, %v1774, -inf
        %1789 = vmax.xlane.f32.xlu0 %v1788
        %v1790 = vpop.xlane.xlu0 %1789
        %v1791 = vsub.f32 %v1624, %v1781
        %v1792 = vsub.f32 %v1674, %v1784
        %v1793 = vsub.f32 %v1724, %v1787
        %v1794 = vsub.f32 %v1774, %v1790
        %v1795 = vmul.f32 %v1791, 1.442695
        %v1796 = vpow.pop %v1795
        %v1797 = vmul.f32 %v1792, 1.442695
        %v1798 = vpow.pop %v1797
        %v1799 = vmul.f32 %v1793, 1.442695
        %v1800 = vpow.pop %v1799
        %v1801 = vmul.f32 %v1794, 1.442695
        %v1802 = vpow.pop %v1801
        %v1803 = vsel %vm682, %v1796, 0.0
        %1804 = vadd.xlane.f32.xlu0 %v1803
        %v1805 = vpop.xlane.xlu0 %1804
        %v1806 = vsel %vm682, %v1798, 0.0
        %1807 = vadd.xlane.f32.xlu0 %v1806
        %v1808 = vpop.xlane.xlu0 %1807
        %v1809 = vsel %vm682, %v1800, 0.0
        %1810 = vadd.xlane.f32.xlu0 %v1809
        %v1811 = vpop.xlane.xlu0 %1810
        %v1812 = vsel %vm682, %v1802, 0.0
        %1813 = vadd.xlane.f32.xlu0 %v1812
        %v1814 = vpop.xlane.xlu0 %1813
        %v1815 = vrcp.pop %v1805
        %v1816 = vrcp.pop %v1808
        %v1817 = vrcp.pop %v1811
        %v1818 = vrcp.pop %v1814
        %v1819 = vmul.f32 %v1796, %v1815
        %v1820 = vmul.f32 %v1798, %v1816
        %v1821 = vmul.f32 %v1800, %v1817
        %v1822 = vmul.f32 %v1802, %v1818
        %v1823 = vpack.c.bf16 %v1819, %v1819
        %v1824 = vpack.c.bf16 %v1820, %v1820
        %v1825 = vpack.c.bf16 %v1821, %v1821
        %v1826 = vpack.c.bf16 %v1822, %v1822
        %1827 = vrot.lane.b32.xlu0 %v676, 48
        %v1828 = vpop.permute.xlu0 %1827
        %v1830 = vsel %vm682, %v1823, 0
        %v1833 = vsel %vm926, %v1828, 0
        %1835 = vmatprep.subr.bf16.mxu0 0
        %1836 = vmatpush1.bf16.msra.mxu0 %v1833
        %1837 = vmatprep.subr.bf16.mxu0 0
        %1838 = vmatpush1.bf16.msra.mxu0 0
        %1839 = vmatprep.subr.bf16.mxu0 0
        %1840 = vmatpush1.bf16.msra.mxu0 0
        %1841 = vmatprep.subr.bf16.mxu0 0
        %1842 = vmatpush1.bf16.msra.mxu0 0
        %1843 = vmatprep.subr.bf16.mxu0 0
        %1844 = vmatpush1.bf16.msra.mxu0 0
        %1845 = vmatprep.subr.bf16.mxu0 0
        %1846 = vmatpush1.bf16.msra.mxu0 0
        %1847 = vmatprep.subr.bf16.mxu0 0
        %1848 = vmatpush1.bf16.msra.mxu0 0
        %1849 = vmatprep.subr.bf16.mxu0 0
        %1850 = vmatpush1.bf16.msra.mxu0 0
        %1851 = vmatprep.subr.bf16.mxu0 0
        %1852 = vmatpush1.bf16.msra.mxu0 0
        %1853 = vmatprep.subr.bf16.mxu0 0
        %1854 = vmatpush1.bf16.msra.mxu0 0
        %1855 = vmatprep.subr.bf16.mxu0 0
        %1856 = vmatpush1.bf16.msra.mxu0 0
        %1857 = vmatprep.subr.bf16.mxu0 0
        %1858 = vmatpush1.bf16.msra.mxu0 0
        %1859 = vmatprep.subr.bf16.mxu0 0
        %1860 = vmatpush1.bf16.msra.mxu0 0
        %1861 = vmatprep.subr.bf16.mxu0 0
        %1862 = vmatpush1.bf16.msra.mxu0 0
        %1863 = vmatprep.subr.bf16.mxu0 0
        %1864 = vmatpush1.bf16.msra.mxu0 0
        %1865 = vmatprep.subr.bf16.mxu0 0
        %1866 = vmatpush1.bf16.msra.mxu0 0
        %1867 = vmatprep.mubr.bf16.mxu0 0
        %1868 = vmatmul.mubr.bf16.gmra.mrb[0].mxu0 %v1830
        %v1869 = vpop.f32.mrb[0].mxu0
        %v1870 = vadd.f32 0.0, %v1869
        %v1871 = vpop.f32.mrb[0].mxu0
        %v1872 = vpop.f32.mrb[0].mxu0
        %v1873 = vpop.f32.mrb[0].mxu0
        %1874 = vdwg.mxu0
        %1875 = vrot.lane.b32.xlu0 %v677, 48
        %v1876 = vpop.permute.xlu0 %1875
        %v1878 = vsel %vm682, %v1824, 0
        %v1881 = vsel %vm926, %v1876, 0
        %1883 = vmatprep.subr.bf16.mxu0 0
        %1884 = vmatpush1.bf16.msra.mxu0 %v1881
        %1885 = vmatprep.subr.bf16.mxu0 0
        %1886 = vmatpush1.bf16.msra.mxu0 0
        %1887 = vmatprep.subr.bf16.mxu0 0
        %1888 = vmatpush1.bf16.msra.mxu0 0
        %1889 = vmatprep.subr.bf16.mxu0 0
        %1890 = vmatpush1.bf16.msra.mxu0 0
        %1891 = vmatprep.subr.bf16.mxu0 0
        %1892 = vmatpush1.bf16.msra.mxu0 0
        %1893 = vmatprep.subr.bf16.mxu0 0
        %1894 = vmatpush1.bf16.msra.mxu0 0
        %1895 = vmatprep.subr.bf16.mxu0 0
        %1896 = vmatpush1.bf16.msra.mxu0 0
        %1897 = vmatprep.subr.bf16.mxu0 0
        %1898 = vmatpush1.bf16.msra.mxu0 0
        %1899 = vmatprep.subr.bf16.mxu0 0
        %1900 = vmatpush1.bf16.msra.mxu0 0
        %1901 = vmatprep.subr.bf16.mxu0 0
        %1902 = vmatpush1.bf16.msra.mxu0 0
        %1903 = vmatprep.subr.bf16.mxu0 0
        %1904 = vmatpush1.bf16.msra.mxu0 0
        %1905 = vmatprep.subr.bf16.mxu0 0
        %1906 = vmatpush1.bf16.msra.mxu0 0
        %1907 = vmatprep.subr.bf16.mxu0 0
        %1908 = vmatpush1.bf16.msra.mxu0 0
        %1909 = vmatprep.subr.bf16.mxu0 0
        %1910 = vmatpush1.bf16.msra.mxu0 0
        %1911 = vmatprep.subr.bf16.mxu0 0
        %1912 = vmatpush1.bf16.msra.mxu0 0
        %1913 = vmatprep.subr.bf16.mxu0 0
        %1914 = vmatpush1.bf16.msra.mxu0 0
        %1915 = vmatprep.mubr.bf16.mxu0 0
        %1916 = vmatmul.mubr.bf16.gmra.mrb[0].mxu0 %v1878
        %v1917 = vpop.f32.mrb[0].mxu0
        %v1918 = vadd.f32 0.0, %v1917
        %v1919 = vpop.f32.mrb[0].mxu0
        %v1920 = vpop.f32.mrb[0].mxu0
        %v1921 = vpop.f32.mrb[0].mxu0
        %1922 = vdwg.mxu0
        %1923 = vrot.lane.b32.xlu0 %v678, 48
        %v1924 = vpop.permute.xlu0 %1923
        %v1926 = vsel %vm682, %v1825, 0
        %v1929 = vsel %vm926, %v1924, 0
        %1931 = vmatprep.subr.bf16.mxu0 0
        %1932 = vmatpush1.bf16.msra.mxu0 %v1929
        %1933 = vmatprep.subr.bf16.mxu0 0
        %1934 = vmatpush1.bf16.msra.mxu0 0
        %1935 = vmatprep.subr.bf16.mxu0 0
        %1936 = vmatpush1.bf16.msra.mxu0 0
        %1937 = vmatprep.subr.bf16.mxu0 0
        %1938 = vmatpush1.bf16.msra.mxu0 0
        %1939 = vmatprep.subr.bf16.mxu0 0
        %1940 = vmatpush1.bf16.msra.mxu0 0
        %1941 = vmatprep.subr.bf16.mxu0 0
        %1942 = vmatpush1.bf16.msra.mxu0 0
        %1943 = vmatprep.subr.bf16.mxu0 0
        %1944 = vmatpush1.bf16.msra.mxu0 0
        %1945 = vmatprep.subr.bf16.mxu0 0
        %1946 = vmatpush1.bf16.msra.mxu0 0
        %1947 = vmatprep.subr.bf16.mxu0 0
        %1948 = vmatpush1.bf16.msra.mxu0 0
        %1949 = vmatprep.subr.bf16.mxu0 0
        %1950 = vmatpush1.bf16.msra.mxu0 0
        %1951 = vmatprep.subr.bf16.mxu0 0
        %1952 = vmatpush1.bf16.msra.mxu0 0
        %1953 = vmatprep.subr.bf16.mxu0 0
        %1954 = vmatpush1.bf16.msra.mxu0 0
        %1955 = vmatprep.subr.bf16.mxu0 0
        %1956 = vmatpush1.bf16.msra.mxu0 0
        %1957 = vmatprep.subr.bf16.mxu0 0
        %1958 = vmatpush1.bf16.msra.mxu0 0
        %1959 = vmatprep.subr.bf16.mxu0 0
        %1960 = vmatpush1.bf16.msra.mxu0 0
        %1961 = vmatprep.subr.bf16.mxu0 0
        %1962 = vmatpush1.bf16.msra.mxu0 0
        %1963 = vmatprep.mubr.bf16.mxu0 0
        %1964 = vmatmul.mubr.bf16.gmra.mrb[0].mxu0 %v1926
        %v1965 = vpop.f32.mrb[0].mxu0
        %v1966 = vadd.f32 0.0, %v1965
        %v1967 = vpop.f32.mrb[0].mxu0
        %v1968 = vpop.f32.mrb[0].mxu0
        %v1969 = vpop.f32.mrb[0].mxu0
        %1970 = vdwg.mxu0
        %1971 = vrot.lane.b32.xlu0 %v679, 48
        %v1972 = vpop.permute.xlu0 %1971
        %v1974 = vsel %vm682, %v1826, 0
        %v1977 = vsel %vm926, %v1972, 0
        %1979 = vmatprep.subr.bf16.mxu0 0
        %1980 = vmatpush1.bf16.msra.mxu0 %v1977
        %1981 = vmatprep.subr.bf16.mxu0 0
        %1982 = vmatpush1.bf16.msra.mxu0 0
        %1983 = vmatprep.subr.bf16.mxu0 0
        %1984 = vmatpush1.bf16.msra.mxu0 0
        %1985 = vmatprep.subr.bf16.mxu0 0
        %1986 = vmatpush1.bf16.msra.mxu0 0
        %1987 = vmatprep.subr.bf16.mxu0 0
        %1988 = vmatpush1.bf16.msra.mxu0 0
        %1989 = vmatprep.subr.bf16.mxu0 0
        %1990 = vmatpush1.bf16.msra.mxu0 0
        %1991 = vmatprep.subr.bf16.mxu0 0
        %1992 = vmatpush1.bf16.msra.mxu0 0
        %1993 = vmatprep.subr.bf16.mxu0 0
        %1994 = vmatpush1.bf16.msra.mxu0 0
        %1995 = vmatprep.subr.bf16.mxu0 0
        %1996 = vmatpush1.bf16.msra.mxu0 0
        %1997 = vmatprep.subr.bf16.mxu0 0
        %1998 = vmatpush1.bf16.msra.mxu0 0
        %1999 = vmatprep.subr.bf16.mxu0 0
        %2000 = vmatpush1.bf16.msra.mxu0 0
        %2001 = vmatprep.subr.bf16.mxu0 0
        %2002 = vmatpush1.bf16.msra.mxu0 0
        %2003 = vmatprep.subr.bf16.mxu0 0
        %2004 = vmatpush1.bf16.msra.mxu0 0
        %2005 = vmatprep.subr.bf16.mxu0 0
        %2006 = vmatpush1.bf16.msra.mxu0 0
        %2007 = vmatprep.subr.bf16.mxu0 0
        %2008 = vmatpush1.bf16.msra.mxu0 0
        %2009 = vmatprep.subr.bf16.mxu0 0
        %2010 = vmatpush1.bf16.msra.mxu0 0
        %2011 = vmatprep.mubr.bf16.mxu0 0
        %2012 = vmatmul.mubr.bf16.gmra.mrb[0].mxu0 %v1974
        %v2013 = vpop.f32.mrb[0].mxu0
        %v2014 = vadd.f32 0.0, %v2013
        %v2015 = vpop.f32.mrb[0].mxu0
        %v2016 = vpop.f32.mrb[0].mxu0
        %v2017 = vpop.f32.mrb[0].mxu0
        %2018 = vdwg.mxu0
        %2023 = vrot.lane.b32.xlu0 %v1870, 16
        %v2024 = vpop.permute.xlu0 %2023
        %2025 = vrot.lane.b32.xlu0 %v1918, 16
        %v2026 = vpop.permute.xlu0 %2025
        %2027 = vrot.lane.b32.xlu0 %v1966, 16
        %v2028 = vpop.permute.xlu0 %2027
        %2029 = vrot.lane.b32.xlu0 %v2014, 16
        %v2030 = vpop.permute.xlu0 %2029
        %vm2035 = vcmask 195712
        %2036 = vst.msk [vmem:[#allocation2] sm:$0xff] %vm2035, %v2024
        %2037 = vst.msk [vmem:[#allocation2 + $0x8] sm:$0xff] %vm2035, %v2026
        %2038 = vst.msk [vmem:[#allocation2 + $0x10] sm:$0xff] %vm2035, %v2028
        %2039 = vst.msk [vmem:[#allocation2 + $0x18] sm:$0xff] %vm2035, %v2030
        %2040 = vrot.lane.b32.xlu0 %v676, 104
        %v2041 = vpop.permute.xlu0 %2040
        %2042 = vrot.lane.b32.xlu0 %v676, 72
        %v2043 = vpop.permute.xlu0 %2042
        %v2045 = vsel %vm682, %v2041, 0
        %v2048 = vsel %vm682, %v2043, 0
        %2050 = vmatprep.subr.bf16.mxu0 0
        %2051 = vmatpush1.bf16.xpose.msra.mxu0 %v2048
        %2052 = vmatprep.subr.bf16.mxu0 0
        %2053 = vmatpush1.bf16.xpose.msra.mxu0 0
        %2054 = vmatprep.subr.bf16.mxu0 0
        %2055 = vmatpush1.bf16.xpose.msra.mxu0 0
        %2056 = vmatprep.subr.bf16.mxu0 0
        %2057 = vmatpush1.bf16.xpose.msra.mxu0 0
        %2058 = vmatprep.subr.bf16.mxu0 0
        %2059 = vmatpush1.bf16.xpose.msra.mxu0 0
        %2060 = vmatprep.subr.bf16.mxu0 0
        %2061 = vmatpush1.bf16.xpose.msra.mxu0 0
        %2062 = vmatprep.subr.bf16.mxu0 0
        %2063 = vmatpush1.bf16.xpose.msra.mxu0 0
        %2064 = vmatprep.subr.bf16.mxu0 0
        %2065 = vmatpush1.bf16.xpose.msra.mxu0 0
        %2066 = vmatprep.subr.bf16.mxu0 0
        %2067 = vmatpush1.bf16.xpose.msra.mxu0 0
        %2068 = vmatprep.subr.bf16.mxu0 0
        %2069 = vmatpush1.bf16.xpose.msra.mxu0 0
        %2070 = vmatprep.subr.bf16.mxu0 0
        %2071 = vmatpush1.bf16.xpose.msra.mxu0 0
        %2072 = vmatprep.subr.bf16.mxu0 0
        %2073 = vmatpush1.bf16.xpose.msra.mxu0 0
        %2074 = vmatprep.subr.bf16.mxu0 0
        %2075 = vmatpush1.bf16.xpose.msra.mxu0 0
        %2076 = vmatprep.subr.bf16.mxu0 0
        %2077 = vmatpush1.bf16.xpose.msra.mxu0 0
        %2078 = vmatprep.subr.bf16.mxu0 0
        %2079 = vmatpush1.bf16.xpose.msra.mxu0 0
        %2080 = vmatprep.subr.bf16.mxu0 0
        %2081 = vmatpush1.bf16.xpose.msra.mxu0 0
        %2082 = vmatprep.mubr.bf16.mxu0 0
        %2083 = vmatmul.mubr.bf16.gmra.mrb[0].mxu0 %v2045
        %v2084 = vpop.f32.mrb[0].mxu0
        %v2085 = vadd.f32 0.0, %v2084
        %v2086 = vpop.f32.mrb[0].mxu0
        %v2087 = vpop.f32.mrb[0].mxu0
        %v2088 = vpop.f32.mrb[0].mxu0
        %2089 = vdwg.mxu0
        %2090 = vrot.lane.b32.xlu0 %v677, 104
        %v2091 = vpop.permute.xlu0 %2090
        %2092 = vrot.lane.b32.xlu0 %v677, 72
        %v2093 = vpop.permute.xlu0 %2092
        %v2095 = vsel %vm682, %v2091, 0
        %v2098 = vsel %vm682, %v2093, 0
        %2100 = vmatprep.subr.bf16.mxu0 0
        %2101 = vmatpush1.bf16.xpose.msra.mxu0 %v2098
        %2102 = vmatprep.subr.bf16.mxu0 0
        %2103 = vmatpush1.bf16.xpose.msra.mxu0 0
        %2104 = vmatprep.subr.bf16.mxu0 0
        %2105 = vmatpush1.bf16.xpose.msra.mxu0 0
        %2106 = vmatprep.subr.bf16.mxu0 0
        %2107 = vmatpush1.bf16.xpose.msra.mxu0 0
        %2108 = vmatprep.subr.bf16.mxu0 0
        %2109 = vmatpush1.bf16.xpose.msra.mxu0 0
        %2110 = vmatprep.subr.bf16.mxu0 0
        %2111 = vmatpush1.bf16.xpose.msra.mxu0 0
        %2112 = vmatprep.subr.bf16.mxu0 0
        %2113 = vmatpush1.bf16.xpose.msra.mxu0 0
        %2114 = vmatprep.subr.bf16.mxu0 0
        %2115 = vmatpush1.bf16.xpose.msra.mxu0 0
        %2116 = vmatprep.subr.bf16.mxu0 0
        %2117 = vmatpush1.bf16.xpose.msra.mxu0 0
        %2118 = vmatprep.subr.bf16.mxu0 0
        %2119 = vmatpush1.bf16.xpose.msra.mxu0 0
        %2120 = vmatprep.subr.bf16.mxu0 0
        %2121 = vmatpush1.bf16.xpose.msra.mxu0 0
        %2122 = vmatprep.subr.bf16.mxu0 0
        %2123 = vmatpush1.bf16.xpose.msra.mxu0 0
        %2124 = vmatprep.subr.bf16.mxu0 0
        %2125 = vmatpush1.bf16.xpose.msra.mxu0 0
        %2126 = vmatprep.subr.bf16.mxu0 0
        %2127 = vmatpush1.bf16.xpose.msra.mxu0 0
        %2128 = vmatprep.subr.bf16.mxu0 0
        %2129 = vmatpush1.bf16.xpose.msra.mxu0 0
        %2130 = vmatprep.subr.bf16.mxu0 0
        %2131 = vmatpush1.bf16.xpose.msra.mxu0 0
        %2132 = vmatprep.mubr.bf16.mxu0 0
        %2133 = vmatmul.mubr.bf16.gmra.mrb[0].mxu0 %v2095
        %v2134 = vpop.f32.mrb[0].mxu0
        %v2135 = vadd.f32 0.0, %v2134
        %v2136 = vpop.f32.mrb[0].mxu0
        %v2137 = vpop.f32.mrb[0].mxu0
        %v2138 = vpop.f32.mrb[0].mxu0
        %2139 = vdwg.mxu0
        %2140 = vrot.lane.b32.xlu0 %v678, 104
        %v2141 = vpop.permute.xlu0 %2140
        %2142 = vrot.lane.b32.xlu0 %v678, 72
        %v2143 = vpop.permute.xlu0 %2142
        %v2145 = vsel %vm682, %v2141, 0
        %v2148 = vsel %vm682, %v2143, 0
        %2150 = vmatprep.subr.bf16.mxu0 0
        %2151 = vmatpush1.bf16.xpose.msra.mxu0 %v2148
        %2152 = vmatprep.subr.bf16.mxu0 0
        %2153 = vmatpush1.bf16.xpose.msra.mxu0 0
        %2154 = vmatprep.subr.bf16.mxu0 0
        %2155 = vmatpush1.bf16.xpose.msra.mxu0 0
        %2156 = vmatprep.subr.bf16.mxu0 0
        %2157 = vmatpush1.bf16.xpose.msra.mxu0 0
        %2158 = vmatprep.subr.bf16.mxu0 0
        %2159 = vmatpush1.bf16.xpose.msra.mxu0 0
        %2160 = vmatprep.subr.bf16.mxu0 0
        %2161 = vmatpush1.bf16.xpose.msra.mxu0 0
        %2162 = vmatprep.subr.bf16.mxu0 0
        %2163 = vmatpush1.bf16.xpose.msra.mxu0 0
        %2164 = vmatprep.subr.bf16.mxu0 0
        %2165 = vmatpush1.bf16.xpose.msra.mxu0 0
        %2166 = vmatprep.subr.bf16.mxu0 0
        %2167 = vmatpush1.bf16.xpose.msra.mxu0 0
        %2168 = vmatprep.subr.bf16.mxu0 0
        %2169 = vmatpush1.bf16.xpose.msra.mxu0 0
        %2170 = vmatprep.subr.bf16.mxu0 0
        %2171 = vmatpush1.bf16.xpose.msra.mxu0 0
        %2172 = vmatprep.subr.bf16.mxu0 0
        %2173 = vmatpush1.bf16.xpose.msra.mxu0 0
        %2174 = vmatprep.subr.bf16.mxu0 0
        %2175 = vmatpush1.bf16.xpose.msra.mxu0 0
        %2176 = vmatprep.subr.bf16.mxu0 0
        %2177 = vmatpush1.bf16.xpose.msra.mxu0 0
        %2178 = vmatprep.subr.bf16.mxu0 0
        %2179 = vmatpush1.bf16.xpose.msra.mxu0 0
        %2180 = vmatprep.subr.bf16.mxu0 0
        %2181 = vmatpush1.bf16.xpose.msra.mxu0 0
        %2182 = vmatprep.mubr.bf16.mxu0 0
        %2183 = vmatmul.mubr.bf16.gmra.mrb[0].mxu0 %v2145
        %v2184 = vpop.f32.mrb[0].mxu0
        %v2185 = vadd.f32 0.0, %v2184
        %v2186 = vpop.f32.mrb[0].mxu0
        %v2187 = vpop.f32.mrb[0].mxu0
        %v2188 = vpop.f32.mrb[0].mxu0
        %2189 = vdwg.mxu0
        %2190 = vrot.lane.b32.xlu0 %v679, 104
        %v2191 = vpop.permute.xlu0 %2190
        %2192 = vrot.lane.b32.xlu0 %v679, 72
        %v2193 = vpop.permute.xlu0 %2192
        %v2195 = vsel %vm682, %v2191, 0
        %v2198 = vsel %vm682, %v2193, 0
        %2200 = vmatprep.subr.bf16.mxu0 0
        %2201 = vmatpush1.bf16.xpose.msra.mxu0 %v2198
        %2202 = vmatprep.subr.bf16.mxu0 0
        %2203 = vmatpush1.bf16.xpose.msra.mxu0 0
        %2204 = vmatprep.subr.bf16.mxu0 0
        %2205 = vmatpush1.bf16.xpose.msra.mxu0 0
        %2206 = vmatprep.subr.bf16.mxu0 0
        %2207 = vmatpush1.bf16.xpose.msra.mxu0 0
        %2208 = vmatprep.subr.bf16.mxu0 0
        %2209 = vmatpush1.bf16.xpose.msra.mxu0 0
        %2210 = vmatprep.subr.bf16.mxu0 0
        %2211 = vmatpush1.bf16.xpose.msra.mxu0 0
        %2212 = vmatprep.subr.bf16.mxu0 0
        %2213 = vmatpush1.bf16.xpose.msra.mxu0 0
        %2214 = vmatprep.subr.bf16.mxu0 0
        %2215 = vmatpush1.bf16.xpose.msra.mxu0 0
        %2216 = vmatprep.subr.bf16.mxu0 0
        %2217 = vmatpush1.bf16.xpose.msra.mxu0 0
        %2218 = vmatprep.subr.bf16.mxu0 0
        %2219 = vmatpush1.bf16.xpose.msra.mxu0 0
        %2220 = vmatprep.subr.bf16.mxu0 0
        %2221 = vmatpush1.bf16.xpose.msra.mxu0 0
        %2222 = vmatprep.subr.bf16.mxu0 0
        %2223 = vmatpush1.bf16.xpose.msra.mxu0 0
        %2224 = vmatprep.subr.bf16.mxu0 0
        %2225 = vmatpush1.bf16.xpose.msra.mxu0 0
        %2226 = vmatprep.subr.bf16.mxu0 0
        %2227 = vmatpush1.bf16.xpose.msra.mxu0 0
        %2228 = vmatprep.subr.bf16.mxu0 0
        %2229 = vmatpush1.bf16.xpose.msra.mxu0 0
        %2230 = vmatprep.subr.bf16.mxu0 0
        %2231 = vmatpush1.bf16.xpose.msra.mxu0 0
        %2232 = vmatprep.mubr.bf16.mxu0 0
        %2233 = vmatmul.mubr.bf16.gmra.mrb[0].mxu0 %v2195
        %v2234 = vpop.f32.mrb[0].mxu0
        %v2235 = vadd.f32 0.0, %v2234
        %v2236 = vpop.f32.mrb[0].mxu0
        %v2237 = vpop.f32.mrb[0].mxu0
        %v2238 = vpop.f32.mrb[0].mxu0
        %2239 = vdwg.mxu0
        %v2240 = vsel %vm682, %v2085, -inf
        %2241 = vmax.xlane.f32.xlu0 %v2240
        %v2242 = vpop.xlane.xlu0 %2241
        %v2243 = vsel %vm682, %v2135, -inf
        %2244 = vmax.xlane.f32.xlu0 %v2243
        %v2245 = vpop.xlane.xlu0 %2244
        %v2246 = vsel %vm682, %v2185, -inf
        %2247 = vmax.xlane.f32.xlu0 %v2246
        %v2248 = vpop.xlane.xlu0 %2247
        %v2249 = vsel %vm682, %v2235, -inf
        %2250 = vmax.xlane.f32.xlu0 %v2249
        %v2251 = vpop.xlane.xlu0 %2250
        %v2252 = vsub.f32 %v2085, %v2242
        %v2253 = vsub.f32 %v2135, %v2245
        %v2254 = vsub.f32 %v2185, %v2248
        %v2255 = vsub.f32 %v2235, %v2251
        %v2256 = vmul.f32 %v2252, 1.442695
        %v2257 = vpow.pop %v2256
        %v2258 = vmul.f32 %v2253, 1.442695
        %v2259 = vpow.pop %v2258
        %v2260 = vmul.f32 %v2254, 1.442695
        %v2261 = vpow.pop %v2260
        %v2262 = vmul.f32 %v2255, 1.442695
        %v2263 = vpow.pop %v2262
        %v2264 = vsel %vm682, %v2257, 0.0
        %2265 = vadd.xlane.f32.xlu0 %v2264
        %v2266 = vpop.xlane.xlu0 %2265
        %v2267 = vsel %vm682, %v2259, 0.0
        %2268 = vadd.xlane.f32.xlu0 %v2267
        %v2269 = vpop.xlane.xlu0 %2268
        %v2270 = vsel %vm682, %v2261, 0.0
        %2271 = vadd.xlane.f32.xlu0 %v2270
        %v2272 = vpop.xlane.xlu0 %2271
        %v2273 = vsel %vm682, %v2263, 0.0
        %2274 = vadd.xlane.f32.xlu0 %v2273
        %v2275 = vpop.xlane.xlu0 %2274
        %v2276 = vrcp.pop %v2266
        %v2277 = vrcp.pop %v2269
        %v2278 = vrcp.pop %v2272
        %v2279 = vrcp.pop %v2275
        %v2280 = vmul.f32 %v2257, %v2276
        %v2281 = vmul.f32 %v2259, %v2277
        %v2282 = vmul.f32 %v2261, %v2278
        %v2283 = vmul.f32 %v2263, %v2279
        %v2284 = vpack.c.bf16 %v2280, %v2280
        %v2285 = vpack.c.bf16 %v2281, %v2281
        %v2286 = vpack.c.bf16 %v2282, %v2282
        %v2287 = vpack.c.bf16 %v2283, %v2283
        %2288 = vrot.lane.b32.xlu0 %v676, 40
        %v2289 = vpop.permute.xlu0 %2288
        %v2291 = vsel %vm682, %v2284, 0
        %v2294 = vsel %vm926, %v2289, 0
        %2296 = vmatprep.subr.bf16.mxu0 0
        %2297 = vmatpush1.bf16.msra.mxu0 %v2294
        %2298 = vmatprep.subr.bf16.mxu0 0
        %2299 = vmatpush1.bf16.msra.mxu0 0
        %2300 = vmatprep.subr.bf16.mxu0 0
        %2301 = vmatpush1.bf16.msra.mxu0 0
        %2302 = vmatprep.subr.bf16.mxu0 0
        %2303 = vmatpush1.bf16.msra.mxu0 0
        %2304 = vmatprep.subr.bf16.mxu0 0
        %2305 = vmatpush1.bf16.msra.mxu0 0
        %2306 = vmatprep.subr.bf16.mxu0 0
        %2307 = vmatpush1.bf16.msra.mxu0 0
        %2308 = vmatprep.subr.bf16.mxu0 0
        %2309 = vmatpush1.bf16.msra.mxu0 0
        %2310 = vmatprep.subr.bf16.mxu0 0
        %2311 = vmatpush1.bf16.msra.mxu0 0
        %2312 = vmatprep.subr.bf16.mxu0 0
        %2313 = vmatpush1.bf16.msra.mxu0 0
        %2314 = vmatprep.subr.bf16.mxu0 0
        %2315 = vmatpush1.bf16.msra.mxu0 0
        %2316 = vmatprep.subr.bf16.mxu0 0
        %2317 = vmatpush1.bf16.msra.mxu0 0
        %2318 = vmatprep.subr.bf16.mxu0 0
        %2319 = vmatpush1.bf16.msra.mxu0 0
        %2320 = vmatprep.subr.bf16.mxu0 0
        %2321 = vmatpush1.bf16.msra.mxu0 0
        %2322 = vmatprep.subr.bf16.mxu0 0
        %2323 = vmatpush1.bf16.msra.mxu0 0
        %2324 = vmatprep.subr.bf16.mxu0 0
        %2325 = vmatpush1.bf16.msra.mxu0 0
        %2326 = vmatprep.subr.bf16.mxu0 0
        %2327 = vmatpush1.bf16.msra.mxu0 0
        %2328 = vmatprep.mubr.bf16.mxu0 0
        %2329 = vmatmul.mubr.bf16.gmra.mrb[0].mxu0 %v2291
        %v2330 = vpop.f32.mrb[0].mxu0
        %v2331 = vadd.f32 0.0, %v2330
        %v2332 = vpop.f32.mrb[0].mxu0
        %v2333 = vpop.f32.mrb[0].mxu0
        %v2334 = vpop.f32.mrb[0].mxu0
        %2335 = vdwg.mxu0
        %2336 = vrot.lane.b32.xlu0 %v677, 40
        %v2337 = vpop.permute.xlu0 %2336
        %v2339 = vsel %vm682, %v2285, 0
        %v2342 = vsel %vm926, %v2337, 0
        %2344 = vmatprep.subr.bf16.mxu0 0
        %2345 = vmatpush1.bf16.msra.mxu0 %v2342
        %2346 = vmatprep.subr.bf16.mxu0 0
        %2347 = vmatpush1.bf16.msra.mxu0 0
        %2348 = vmatprep.subr.bf16.mxu0 0
        %2349 = vmatpush1.bf16.msra.mxu0 0
        %2350 = vmatprep.subr.bf16.mxu0 0
        %2351 = vmatpush1.bf16.msra.mxu0 0
        %2352 = vmatprep.subr.bf16.mxu0 0
        %2353 = vmatpush1.bf16.msra.mxu0 0
        %2354 = vmatprep.subr.bf16.mxu0 0
        %2355 = vmatpush1.bf16.msra.mxu0 0
        %2356 = vmatprep.subr.bf16.mxu0 0
        %2357 = vmatpush1.bf16.msra.mxu0 0
        %2358 = vmatprep.subr.bf16.mxu0 0
        %2359 = vmatpush1.bf16.msra.mxu0 0
        %2360 = vmatprep.subr.bf16.mxu0 0
        %2361 = vmatpush1.bf16.msra.mxu0 0
        %2362 = vmatprep.subr.bf16.mxu0 0
        %2363 = vmatpush1.bf16.msra.mxu0 0
        %2364 = vmatprep.subr.bf16.mxu0 0
        %2365 = vmatpush1.bf16.msra.mxu0 0
        %2366 = vmatprep.subr.bf16.mxu0 0
        %2367 = vmatpush1.bf16.msra.mxu0 0
        %2368 = vmatprep.subr.bf16.mxu0 0
        %2369 = vmatpush1.bf16.msra.mxu0 0
        %2370 = vmatprep.subr.bf16.mxu0 0
        %2371 = vmatpush1.bf16.msra.mxu0 0
        %2372 = vmatprep.subr.bf16.mxu0 0
        %2373 = vmatpush1.bf16.msra.mxu0 0
        %2374 = vmatprep.subr.bf16.mxu0 0
        %2375 = vmatpush1.bf16.msra.mxu0 0
        %2376 = vmatprep.mubr.bf16.mxu0 0
        %2377 = vmatmul.mubr.bf16.gmra.mrb[0].mxu0 %v2339
        %v2378 = vpop.f32.mrb[0].mxu0
        %v2379 = vadd.f32 0.0, %v2378
        %v2380 = vpop.f32.mrb[0].mxu0
        %v2381 = vpop.f32.mrb[0].mxu0
        %v2382 = vpop.f32.mrb[0].mxu0
        %2383 = vdwg.mxu0
        %2384 = vrot.lane.b32.xlu0 %v678, 40
        %v2385 = vpop.permute.xlu0 %2384
        %v2387 = vsel %vm682, %v2286, 0
        %v2390 = vsel %vm926, %v2385, 0
        %2392 = vmatprep.subr.bf16.mxu0 0
        %2393 = vmatpush1.bf16.msra.mxu0 %v2390
        %2394 = vmatprep.subr.bf16.mxu0 0
        %2395 = vmatpush1.bf16.msra.mxu0 0
        %2396 = vmatprep.subr.bf16.mxu0 0
        %2397 = vmatpush1.bf16.msra.mxu0 0
        %2398 = vmatprep.subr.bf16.mxu0 0
        %2399 = vmatpush1.bf16.msra.mxu0 0
        %2400 = vmatprep.subr.bf16.mxu0 0
        %2401 = vmatpush1.bf16.msra.mxu0 0
        %2402 = vmatprep.subr.bf16.mxu0 0
        %2403 = vmatpush1.bf16.msra.mxu0 0
        %2404 = vmatprep.subr.bf16.mxu0 0
        %2405 = vmatpush1.bf16.msra.mxu0 0
        %2406 = vmatprep.subr.bf16.mxu0 0
        %2407 = vmatpush1.bf16.msra.mxu0 0
        %2408 = vmatprep.subr.bf16.mxu0 0
        %2409 = vmatpush1.bf16.msra.mxu0 0
        %2410 = vmatprep.subr.bf16.mxu0 0
        %2411 = vmatpush1.bf16.msra.mxu0 0
        %2412 = vmatprep.subr.bf16.mxu0 0
        %2413 = vmatpush1.bf16.msra.mxu0 0
        %2414 = vmatprep.subr.bf16.mxu0 0
        %2415 = vmatpush1.bf16.msra.mxu0 0
        %2416 = vmatprep.subr.bf16.mxu0 0
        %2417 = vmatpush1.bf16.msra.mxu0 0
        %2418 = vmatprep.subr.bf16.mxu0 0
        %2419 = vmatpush1.bf16.msra.mxu0 0
        %2420 = vmatprep.subr.bf16.mxu0 0
        %2421 = vmatpush1.bf16.msra.mxu0 0
        %2422 = vmatprep.subr.bf16.mxu0 0
        %2423 = vmatpush1.bf16.msra.mxu0 0
        %2424 = vmatprep.mubr.bf16.mxu0 0
        %2425 = vmatmul.mubr.bf16.gmra.mrb[0].mxu0 %v2387
        %v2426 = vpop.f32.mrb[0].mxu0
        %v2427 = vadd.f32 0.0, %v2426
        %v2428 = vpop.f32.mrb[0].mxu0
        %v2429 = vpop.f32.mrb[0].mxu0
        %v2430 = vpop.f32.mrb[0].mxu0
        %2431 = vdwg.mxu0
        %2432 = vrot.lane.b32.xlu0 %v679, 40
        %v2433 = vpop.permute.xlu0 %2432
        %v2435 = vsel %vm682, %v2287, 0
        %v2438 = vsel %vm926, %v2433, 0
        %2440 = vmatprep.subr.bf16.mxu0 0
        %2441 = vmatpush1.bf16.msra.mxu0 %v2438
        %2442 = vmatprep.subr.bf16.mxu0 0
        %2443 = vmatpush1.bf16.msra.mxu0 0
        %2444 = vmatprep.subr.bf16.mxu0 0
        %2445 = vmatpush1.bf16.msra.mxu0 0
        %2446 = vmatprep.subr.bf16.mxu0 0
        %2447 = vmatpush1.bf16.msra.mxu0 0
        %2448 = vmatprep.subr.bf16.mxu0 0
        %2449 = vmatpush1.bf16.msra.mxu0 0
        %2450 = vmatprep.subr.bf16.mxu0 0
        %2451 = vmatpush1.bf16.msra.mxu0 0
        %2452 = vmatprep.subr.bf16.mxu0 0
        %2453 = vmatpush1.bf16.msra.mxu0 0
        %2454 = vmatprep.subr.bf16.mxu0 0
        %2455 = vmatpush1.bf16.msra.mxu0 0
        %2456 = vmatprep.subr.bf16.mxu0 0
        %2457 = vmatpush1.bf16.msra.mxu0 0
        %2458 = vmatprep.subr.bf16.mxu0 0
        %2459 = vmatpush1.bf16.msra.mxu0 0
        %2460 = vmatprep.subr.bf16.mxu0 0
        %2461 = vmatpush1.bf16.msra.mxu0 0
        %2462 = vmatprep.subr.bf16.mxu0 0
        %2463 = vmatpush1.bf16.msra.mxu0 0
        %2464 = vmatprep.subr.bf16.mxu0 0
        %2465 = vmatpush1.bf16.msra.mxu0 0
        %2466 = vmatprep.subr.bf16.mxu0 0
        %2467 = vmatpush1.bf16.msra.mxu0 0
        %2468 = vmatprep.subr.bf16.mxu0 0
        %2469 = vmatpush1.bf16.msra.mxu0 0
        %2470 = vmatprep.subr.bf16.mxu0 0
        %2471 = vmatpush1.bf16.msra.mxu0 0
        %2472 = vmatprep.mubr.bf16.mxu0 0
        %2473 = vmatmul.mubr.bf16.gmra.mrb[0].mxu0 %v2435
        %v2474 = vpop.f32.mrb[0].mxu0
        %v2475 = vadd.f32 0.0, %v2474
        %v2476 = vpop.f32.mrb[0].mxu0
        %v2477 = vpop.f32.mrb[0].mxu0
        %v2478 = vpop.f32.mrb[0].mxu0
        %2479 = vdwg.mxu0
        %2484 = vrot.lane.b32.xlu0 %v2331, 24
        %v2485 = vpop.permute.xlu0 %2484
        %2486 = vrot.lane.b32.xlu0 %v2379, 24
        %v2487 = vpop.permute.xlu0 %2486
        %2488 = vrot.lane.b32.xlu0 %v2427, 24
        %v2489 = vpop.permute.xlu0 %2488
        %2490 = vrot.lane.b32.xlu0 %v2475, 24
        %v2491 = vpop.permute.xlu0 %2490
        %vm2496 = vcmask 261312
        %2497 = vst.msk [vmem:[#allocation2] sm:$0xff] %vm2496, %v2485
        %2498 = vst.msk [vmem:[#allocation2 + $0x8] sm:$0xff] %vm2496, %v2487
        %2499 = vst.msk [vmem:[#allocation2 + $0x10] sm:$0xff] %vm2496, %v2489
        %2500 = vst.msk [vmem:[#allocation2 + $0x18] sm:$0xff] %vm2496, %v2491
        %v2501 = vld [vmem:[#allocation2] sm:$0xff]
        %v2502 = vld [vmem:[#allocation2 + $0x8] sm:$0xff]
        %v2503 = vld [vmem:[#allocation2 + $0x10] sm:$0xff]
        %v2504 = vld [vmem:[#allocation2 + $0x18] sm:$0xff]
        %v2505 = vpack.c.bf16 %v2502, %v2501
        %v2506 = vpack.c.bf16 %v2504, %v2503
        %v2507 = vld [vmem:[#allocation6] sm:$0xf]
        %v2508 = vld [vmem:[#allocation6 + $0x4] sm:$0xf]
        %v2509 = vld [vmem:[#allocation6 + $0x8] sm:$0xf]
        %v2510 = vld [vmem:[#allocation6 + $0xc] sm:$0xf]
        %v2511 = vld [vmem:[#allocation8] sm:$0x1]
        %v2513 = vlaneseq
        %v2514 = vshrl.u32 %v2513, 7
        %v2515 = vsub.s32 0, %v2514
        %v2516 = vrot.slane %v2511, %v2515
        %v2522 = vunpack.c.l.b16 %v2507
        %v2523 = vunpack.c.l.b16 %v2508
        %v2524 = vunpack.c.l.b16 %v2509
        %v2525 = vunpack.c.l.b16 %v2510
        %v2526 = vpack.c.b16 %v2523, %v2522
        %v2527 = vpack.c.b16 %v2525, %v2524
        %v2531 = vsel %vm514, %v2505, 0
        %v2534 = vsel %vm514, %v2506, 0
        %2536 = vmatprep.subr.bf16.mxu0 0
        %2537 = vmatpush1.bf16.msra.mxu0 %v2526
        %2538 = vmatprep.subr.bf16.mxu0 0
        %2539 = vmatpush1.bf16.msra.mxu0 %v2527
        %2540 = vmatprep.subr.bf16.mxu0 0
        %2541 = vmatpush1.bf16.msra.mxu0 0
        %2542 = vmatprep.subr.bf16.mxu0 0
        %2543 = vmatpush1.bf16.msra.mxu0 0
        %2544 = vmatprep.subr.bf16.mxu0 0
        %2545 = vmatpush1.bf16.msra.mxu0 0
        %2546 = vmatprep.subr.bf16.mxu0 0
        %2547 = vmatpush1.bf16.msra.mxu0 0
        %2548 = vmatprep.subr.bf16.mxu0 0
        %2549 = vmatpush1.bf16.msra.mxu0 0
        %2550 = vmatprep.subr.bf16.mxu0 0
        %2551 = vmatpush1.bf16.msra.mxu0 0
        %2552 = vmatprep.subr.bf16.mxu0 0
        %2553 = vmatpush1.bf16.msra.mxu0 0
        %2554 = vmatprep.subr.bf16.mxu0 0
        %2555 = vmatpush1.bf16.msra.mxu0 0
        %2556 = vmatprep.subr.bf16.mxu0 0
        %2557 = vmatpush1.bf16.msra.mxu0 0
        %2558 = vmatprep.subr.bf16.mxu0 0
        %2559 = vmatpush1.bf16.msra.mxu0 0
        %2560 = vmatprep.subr.bf16.mxu0 0
        %2561 = vmatpush1.bf16.msra.mxu0 0
        %2562 = vmatprep.subr.bf16.mxu0 0
        %2563 = vmatpush1.bf16.msra.mxu0 0
        %2564 = vmatprep.subr.bf16.mxu0 0
        %2565 = vmatpush1.bf16.msra.mxu0 0
        %2566 = vmatprep.subr.bf16.mxu0 0
        %2567 = vmatpush1.bf16.msra.mxu0 0
        %2568 = vmatprep.mubr.bf16.mxu0 0
        %2569 = vmatmul.mubr.bf16.gmra.mrb[0].mxu0 %v2531
        %v2570 = vpop.f32.mrb[0].mxu0
        %v2571 = vadd.f32 %v2516, %v2570
        %v2572 = vpop.f32.mrb[0].mxu0
        %v2573 = vpop.f32.mrb[0].mxu0
        %v2574 = vadd.f32 %v2516, %v2573
        %v2575 = vpop.f32.mrb[0].mxu0
        %2576 = vmatprep.mubr.bf16.mxu0 0
        %2577 = vmatmul.mubr.bf16.gmra.mrb[0].mxu0 %v2534
        %v2578 = vpop.f32.mrb[0].mxu0
        %v2579 = vadd.f32 %v2516, %v2578
        %v2580 = vpop.f32.mrb[0].mxu0
        %v2581 = vpop.f32.mrb[0].mxu0
        %v2582 = vadd.f32 %v2516, %v2581
        %v2583 = vpop.f32.mrb[0].mxu0
        %2584 = vdwg.mxu0
        %v2585 = vadd.f32 %v508, %v2571
        %v2586 = vadd.f32 %v509, %v2574
        %v2587 = vadd.f32 %v510, %v2579
        %v2588 = vadd.f32 %v511, %v2582
        %v2589 = vld [vmem:[#allocation9] sm:$0x1]
        %v2590 = vld [vmem:[#allocation11] sm:$0x1]
        %v2591 = vsel %vm514, %v2585, 0.0
        %2592 = vadd.xlane.f32.xlu0 %v2591
        %v2593 = vpop.xlane.xlu0 %2592
        %v2594 = vsel %vm514, %v2586, 0.0
        %2595 = vadd.xlane.f32.xlu0 %v2594
        %v2596 = vpop.xlane.xlu0 %2595
        %v2597 = vsel %vm514, %v2587, 0.0
        %2598 = vadd.xlane.f32.xlu0 %v2597
        %v2599 = vpop.xlane.xlu0 %2598
        %v2600 = vsel %vm514, %v2588, 0.0
        %2601 = vadd.xlane.f32.xlu0 %v2600
        %v2602 = vpop.xlane.xlu0 %2601
        %v2603 = vmul.f32 %v2593, %v527
        %v2604 = vmul.f32 %v2596, %v527
        %v2605 = vmul.f32 %v2599, %v527
        %v2606 = vmul.f32 %v2602, %v527
        %v2607 = vsub.f32 %v2585, %v2603
        %v2608 = vsub.f32 %v2586, %v2604
        %v2609 = vsub.f32 %v2587, %v2605
        %v2610 = vsub.f32 %v2588, %v2606
        %v2611 = vmul.f32 %v2607, %v2607
        %v2612 = vmul.f32 %v2608, %v2608
        %v2613 = vmul.f32 %v2609, %v2609
        %v2614 = vmul.f32 %v2610, %v2610
        %v2615 = vsel %vm514, %v2611, 0.0
        %2616 = vadd.xlane.f32.xlu0 %v2615
        %v2617 = vpop.xlane.xlu0 %2616
        %v2618 = vsel %vm514, %v2612, 0.0
        %2619 = vadd.xlane.f32.xlu0 %v2618
        %v2620 = vpop.xlane.xlu0 %2619
        %v2621 = vsel %vm514, %v2613, 0.0
        %2622 = vadd.xlane.f32.xlu0 %v2621
        %v2623 = vpop.xlane.xlu0 %2622
        %v2624 = vsel %vm514, %v2614, 0.0
        %2625 = vadd.xlane.f32.xlu0 %v2624
        %v2626 = vpop.xlane.xlu0 %2625
        %v2627 = vmul.f32 %v2617, %v527
        %v2628 = vmul.f32 %v2620, %v527
        %v2629 = vmul.f32 %v2623, %v527
        %v2630 = vmul.f32 %v2626, %v527
        %v2631 = vadd.f32 %v2627, 1e-05
        %v2632 = vadd.f32 %v2628, 1e-05
        %v2633 = vadd.f32 %v2629, 1e-05
        %v2634 = vadd.f32 %v2630, 1e-05
        %v2635 = vrsqrt.pop %v2631
        %v2636 = vrsqrt.pop %v2632
        %v2637 = vrsqrt.pop %v2633
        %v2638 = vrsqrt.pop %v2634
        %v2639 = vmul.f32 %v2607, %v2635
        %v2640 = vmul.f32 %v2608, %v2636
        %v2641 = vmul.f32 %v2609, %v2637
        %v2642 = vmul.f32 %v2610, %v2638
        %v2644 = vlaneseq
        %v2645 = vshrl.u32 %v2644, 7
        %v2646 = vsub.s32 0, %v2645
        %v2647 = vrot.slane %v2589, %v2646
        %v2649 = vmul.f32 %v2639, %v2647
        %v2650 = vmul.f32 %v2640, %v2647
        %v2651 = vmul.f32 %v2641, %v2647
        %v2652 = vmul.f32 %v2642, %v2647
        %v2654 = vlaneseq
        %v2655 = vshrl.u32 %v2654, 7
        %v2656 = vsub.s32 0, %v2655
        %v2657 = vrot.slane %v2590, %v2656
        %v2659 = vadd.f32 %v2649, %v2657
        %v2660 = vadd.f32 %v2650, %v2657
        %v2661 = vadd.f32 %v2651, %v2657
        %v2662 = vadd.f32 %v2652, %v2657
        %v2663 = vpack.c.bf16 %v2660, %v2659
        %v2664 = vpack.c.bf16 %v2662, %v2661
        %v2665 = vld [vmem:[%s9] sm:$0xf]
        %v2666 = vld [vmem:[%s9 + $0x4] sm:$0xf]
        %v2667 = vld [vmem:[%s9 + $0x8] sm:$0xf]
        %v2668 = vld [vmem:[%s9 + $0xc] sm:$0xf]
        %v2669 = vld [vmem:[%s10] sm:$0x1]
        %v2671 = vlaneseq
        %v2672 = vshrl.u32 %v2671, 7
        %v2673 = vsub.s32 0, %v2672
        %v2674 = vrot.slane %v2669, %v2673
        %v2680 = vunpack.c.l.b16 %v2665
        %v2681 = vunpack.c.l.b16 %v2666
        %v2682 = vunpack.c.l.b16 %v2667
        %v2683 = vunpack.c.l.b16 %v2668
        %v2684 = vpack.c.b16 %v2681, %v2680
        %v2685 = vpack.c.b16 %v2683, %v2682
        %v2689 = vsel %vm514, %v2663, 0
        %v2692 = vsel %vm514, %v2664, 0
        %2694 = vmatprep.subr.bf16.mxu0 0
        %2695 = vmatpush1.bf16.msra.mxu0 %v2684
        %2696 = vmatprep.subr.bf16.mxu0 0
        %2697 = vmatpush1.bf16.msra.mxu0 %v2685
        %2698 = vmatprep.subr.bf16.mxu0 0
        %2699 = vmatpush1.bf16.msra.mxu0 0
        %2700 = vmatprep.subr.bf16.mxu0 0
        %2701 = vmatpush1.bf16.msra.mxu0 0
        %2702 = vmatprep.subr.bf16.mxu0 0
        %2703 = vmatpush1.bf16.msra.mxu0 0
        %2704 = vmatprep.subr.bf16.mxu0 0
        %2705 = vmatpush1.bf16.msra.mxu0 0
        %2706 = vmatprep.subr.bf16.mxu0 0
        %2707 = vmatpush1.bf16.msra.mxu0 0
        %2708 = vmatprep.subr.bf16.mxu0 0
        %2709 = vmatpush1.bf16.msra.mxu0 0
        %2710 = vmatprep.subr.bf16.mxu0 0
        %2711 = vmatpush1.bf16.msra.mxu0 0
        %2712 = vmatprep.subr.bf16.mxu0 0
        %2713 = vmatpush1.bf16.msra.mxu0 0
        %2714 = vmatprep.subr.bf16.mxu0 0
        %2715 = vmatpush1.bf16.msra.mxu0 0
        %2716 = vmatprep.subr.bf16.mxu0 0
        %2717 = vmatpush1.bf16.msra.mxu0 0
        %2718 = vmatprep.subr.bf16.mxu0 0
        %2719 = vmatpush1.bf16.msra.mxu0 0
        %2720 = vmatprep.subr.bf16.mxu0 0
        %2721 = vmatpush1.bf16.msra.mxu0 0
        %2722 = vmatprep.subr.bf16.mxu0 0
        %2723 = vmatpush1.bf16.msra.mxu0 0
        %2724 = vmatprep.subr.bf16.mxu0 0
        %2725 = vmatpush1.bf16.msra.mxu0 0
        %2726 = vmatprep.mubr.bf16.mxu0 0
        %2727 = vmatmul.mubr.bf16.gmra.mrb[0].mxu0 %v2689
        %v2728 = vpop.f32.mrb[0].mxu0
        %v2729 = vadd.f32 %v2674, %v2728
        %v2730 = vpop.f32.mrb[0].mxu0
        %v2731 = vpop.f32.mrb[0].mxu0
        %v2732 = vadd.f32 %v2674, %v2731
        %v2733 = vpop.f32.mrb[0].mxu0
        %2734 = vmatprep.mubr.bf16.mxu0 0
        %2735 = vmatmul.mubr.bf16.gmra.mrb[0].mxu0 %v2692
        %v2736 = vpop.f32.mrb[0].mxu0
        %v2737 = vadd.f32 %v2674, %v2736
        %v2738 = vpop.f32.mrb[0].mxu0
        %v2739 = vpop.f32.mrb[0].mxu0
        %v2740 = vadd.f32 %v2674, %v2739
        %v2741 = vpop.f32.mrb[0].mxu0
        %2742 = vdwg.mxu0
        %v2743 = vmul.f32 %v2729, 0.5
        %v2744 = vmul.f32 %v2732, 0.5
        %v2745 = vmul.f32 %v2737, 0.5
        %v2746 = vmul.f32 %v2740, 0.5
        %v2747 = vmul.f32 %v2729, 0.70710677
        %v2748 = vmul.f32 %v2732, 0.70710677
        %v2749 = vmul.f32 %v2737, 0.70710677
        %v2750 = vmul.f32 %v2740, 0.70710677
        %v2751 = vand.u32 2147483647, %v2747
        %v2752 = vand.u32 2147483647, %v2748
        %v2753 = vand.u32 2147483647, %v2749
        %v2754 = vand.u32 2147483647, %v2750
        %v2755 = vmul.f32 %v2751, 0.3275911
        %v2756 = vmul.f32 %v2752, 0.3275911
        %v2757 = vmul.f32 %v2753, 0.3275911
        %v2758 = vmul.f32 %v2754, 0.3275911
        %v2759 = vadd.f32 %v2755, 1.0
        %v2760 = vadd.f32 %v2756, 1.0
        %v2761 = vadd.f32 %v2757, 1.0
        %v2762 = vadd.f32 %v2758, 1.0
        %v2763 = vrcp.pop %v2759
        %v2764 = vrcp.pop %v2760
        %v2765 = vrcp.pop %v2761
        %v2766 = vrcp.pop %v2762
        %v2767 = vmul.f32 %v2763, 1.0614054
        %v2768 = vmul.f32 %v2764, 1.0614054
        %v2769 = vmul.f32 %v2765, 1.0614054
        %v2770 = vmul.f32 %v2766, 1.0614054
        %v2771 = vadd.f32 %v2767, -1.4531521
        %v2772 = vadd.f32 %v2768, -1.4531521
        %v2773 = vadd.f32 %v2769, -1.4531521
        %v2774 = vadd.f32 %v2770, -1.4531521
        %v2775 = vmul.f32 %v2771, %v2763
        %v2776 = vmul.f32 %v2772, %v2764
        %v2777 = vmul.f32 %v2773, %v2765
        %v2778 = vmul.f32 %v2774, %v2766
        %v2779 = vadd.f32 %v2775, 1.4214138
        %v2780 = vadd.f32 %v2776, 1.4214138
        %v2781 = vadd.f32 %v2777, 1.4214138
        %v2782 = vadd.f32 %v2778, 1.4214138
        %v2783 = vmul.f32 %v2779, %v2763
        %v2784 = vmul.f32 %v2780, %v2764
        %v2785 = vmul.f32 %v2781, %v2765
        %v2786 = vmul.f32 %v2782, %v2766
        %v2787 = vadd.f32 %v2783, -0.28449672
        %v2788 = vadd.f32 %v2784, -0.28449672
        %v2789 = vadd.f32 %v2785, -0.28449672
        %v2790 = vadd.f32 %v2786, -0.28449672
        %v2791 = vmul.f32 %v2787, %v2763
        %v2792 = vmul.f32 %v2788, %v2764
        %v2793 = vmul.f32 %v2789, %v2765
        %v2794 = vmul.f32 %v2790, %v2766
        %v2795 = vadd.f32 %v2791, 0.2548296
        %v2796 = vadd.f32 %v2792, 0.2548296
        %v2797 = vadd.f32 %v2793, 0.2548296
        %v2798 = vadd.f32 %v2794, 0.2548296
        %v2799 = vmul.f32 %v2795, %v2763
        %v2800 = vmul.f32 %v2796, %v2764
        %v2801 = vmul.f32 %v2797, %v2765
        %v2802 = vmul.f32 %v2798, %v2766
        %v2803 = vsub.f32 0.0, %v2751
        %v2804 = vsub.f32 0.0, %v2752
        %v2805 = vsub.f32 0.0, %v2753
        %v2806 = vsub.f32 0.0, %v2754
        %v2807 = vmul.f32 %v2803, %v2751
        %v2808 = vmul.f32 %v2804, %v2752
        %v2809 = vmul.f32 %v2805, %v2753
        %v2810 = vmul.f32 %v2806, %v2754
        %v2811 = vmul.f32 %v2807, 1.442695
        %v2812 = vpow.pop %v2811
        %v2813 = vmul.f32 %v2808, 1.442695
        %v2814 = vpow.pop %v2813
        %v2815 = vmul.f32 %v2809, 1.442695
        %v2816 = vpow.pop %v2815
        %v2817 = vmul.f32 %v2810, 1.442695
        %v2818 = vpow.pop %v2817
        %v2819 = vmul.f32 %v2799, %v2812
        %v2820 = vmul.f32 %v2800, %v2814
        %v2821 = vmul.f32 %v2801, %v2816
        %v2822 = vmul.f32 %v2802, %v2818
        %v2823 = vsub.f32 1.0, %v2819
        %v2824 = vsub.f32 1.0, %v2820
        %v2825 = vsub.f32 1.0, %v2821
        %v2826 = vsub.f32 1.0, %v2822
        %vm2827 = vcmp.ge.f32.partialorder %v2747, 0.0
        %vm2828 = vcmp.ge.f32.partialorder %v2748, 0.0
        %vm2829 = vcmp.ge.f32.partialorder %v2749, 0.0
        %vm2830 = vcmp.ge.f32.partialorder %v2750, 0.0
        %v2831 = vsub.f32 0.0, %v2823
        %v2832 = vsub.f32 0.0, %v2824
        %v2833 = vsub.f32 0.0, %v2825
        %v2834 = vsub.f32 0.0, %v2826
        %v2835 = vsel %vm2827, %v2823, %v2831
        %v2836 = vsel %vm2828, %v2824, %v2832
        %v2837 = vsel %vm2829, %v2825, %v2833
        %v2838 = vsel %vm2830, %v2826, %v2834
        %v2839 = vadd.f32 %v2835, 1.0
        %v2840 = vadd.f32 %v2836, 1.0
        %v2841 = vadd.f32 %v2837, 1.0
        %v2842 = vadd.f32 %v2838, 1.0
        %v2843 = vmul.f32 %v2743, %v2839
        %v2844 = vmul.f32 %v2744, %v2840
        %v2845 = vmul.f32 %v2745, %v2841
        %v2846 = vmul.f32 %v2746, %v2842
        %v2847 = vpack.c.bf16 %v2844, %v2843
        %v2848 = vpack.c.bf16 %v2846, %v2845
        %v2849 = vld [vmem:[%s11] sm:$0xf]
        %v2850 = vld [vmem:[%s11 + $0x4] sm:$0xf]
        %v2851 = vld [vmem:[%s11 + $0x8] sm:$0xf]
        %v2852 = vld [vmem:[%s11 + $0xc] sm:$0xf]
        %v2853 = vld [vmem:[%s11 + $0x10] sm:$0xf]
        %v2854 = vld [vmem:[%s11 + $0x14] sm:$0xf]
        %v2855 = vld [vmem:[%s11 + $0x18] sm:$0xf]
        %v2856 = vld [vmem:[%s11 + $0x1c] sm:$0xf]
        %v2857 = vld [vmem:[%s11 + $0x20] sm:$0xf]
        %v2858 = vld [vmem:[%s11 + $0x24] sm:$0xf]
        %v2859 = vld [vmem:[%s11 + $0x28] sm:$0xf]
        %v2860 = vld [vmem:[%s11 + $0x2c] sm:$0xf]
        %v2861 = vld [vmem:[%s11 + $0x30] sm:$0xf]
        %v2862 = vld [vmem:[%s11 + $0x34] sm:$0xf]
        %v2863 = vld [vmem:[%s11 + $0x38] sm:$0xf]
        %v2864 = vld [vmem:[%s11 + $0x3c] sm:$0xf]
        %v2865 = vld [vmem:[%s12] sm:$0x1]
        %v2867 = vlaneseq
        %v2868 = vshrl.u32 %v2867, 7
        %v2869 = vsub.s32 0, %v2868
        %v2870 = vrot.slane %v2865, %v2869
        %v2888 = vunpack.c.l.b16 %v2849
        %v2889 = vunpack.c.l.b16 %v2850
        %v2890 = vunpack.c.l.b16 %v2851
        %v2891 = vunpack.c.l.b16 %v2852
        %v2892 = vunpack.c.l.b16 %v2853
        %v2893 = vunpack.c.l.b16 %v2854
        %v2894 = vunpack.c.l.b16 %v2855
        %v2895 = vunpack.c.l.b16 %v2856
        %v2896 = vunpack.c.l.b16 %v2857
        %v2897 = vunpack.c.l.b16 %v2858
        %v2898 = vunpack.c.l.b16 %v2859
        %v2899 = vunpack.c.l.b16 %v2860
        %v2900 = vunpack.c.l.b16 %v2861
        %v2901 = vunpack.c.l.b16 %v2862
        %v2902 = vunpack.c.l.b16 %v2863
        %v2903 = vunpack.c.l.b16 %v2864
        %v2904 = vpack.c.b16 %v2889, %v2888
        %v2905 = vpack.c.b16 %v2891, %v2890
        %v2906 = vpack.c.b16 %v2893, %v2892
        %v2907 = vpack.c.b16 %v2895, %v2894
        %v2908 = vpack.c.b16 %v2897, %v2896
        %v2909 = vpack.c.b16 %v2899, %v2898
        %v2910 = vpack.c.b16 %v2901, %v2900
        %v2911 = vpack.c.b16 %v2903, %v2902
        %2920 = vmatprep.subr.bf16.mxu0 0
        %2921 = vmatpush1.bf16.msra.mxu0 %v2904
        %2922 = vmatprep.subr.bf16.mxu0 0
        %2923 = vmatpush1.bf16.msra.mxu0 %v2905
        %2924 = vmatprep.subr.bf16.mxu0 0
        %2925 = vmatpush1.bf16.msra.mxu0 %v2906
        %2926 = vmatprep.subr.bf16.mxu0 0
        %2927 = vmatpush1.bf16.msra.mxu0 %v2907
        %2928 = vmatprep.subr.bf16.mxu0 0
        %2929 = vmatpush1.bf16.msra.mxu0 %v2908
        %2930 = vmatprep.subr.bf16.mxu0 0
        %2931 = vmatpush1.bf16.msra.mxu0 %v2909
        %2932 = vmatprep.subr.bf16.mxu0 0
        %2933 = vmatpush1.bf16.msra.mxu0 %v2910
        %2934 = vmatprep.subr.bf16.mxu0 0
        %2935 = vmatpush1.bf16.msra.mxu0 %v2911
        %2936 = vmatprep.subr.bf16.mxu0 0
        %2937 = vmatpush1.bf16.msra.mxu0 0
        %2938 = vmatprep.subr.bf16.mxu0 0
        %2939 = vmatpush1.bf16.msra.mxu0 0
        %2940 = vmatprep.subr.bf16.mxu0 0
        %2941 = vmatpush1.bf16.msra.mxu0 0
        %2942 = vmatprep.subr.bf16.mxu0 0
        %2943 = vmatpush1.bf16.msra.mxu0 0
        %2944 = vmatprep.subr.bf16.mxu0 0
        %2945 = vmatpush1.bf16.msra.mxu0 0
        %2946 = vmatprep.subr.bf16.mxu0 0
        %2947 = vmatpush1.bf16.msra.mxu0 0
        %2948 = vmatprep.subr.bf16.mxu0 0
        %2949 = vmatpush1.bf16.msra.mxu0 0
        %2950 = vmatprep.subr.bf16.mxu0 0
        %2951 = vmatpush1.bf16.msra.mxu0 0
        %2952 = vmatprep.mubr.bf16.mxu0 0
        %2953 = vmatmul.mubr.bf16.gmra.mrb[0].mxu0 %v2847
        %v2954 = vpop.f32.mrb[0].mxu0
        %v2955 = vadd.f32 %v2870, %v2954
        %v2956 = vpop.f32.mrb[0].mxu0
        %v2957 = vpop.f32.mrb[0].mxu0
        %v2958 = vadd.f32 %v2870, %v2957
        %v2959 = vpop.f32.mrb[0].mxu0
        %2960 = vmatprep.mubr.bf16.mxu0 0
        %2961 = vmatmul.mubr.bf16.gmra.mrb[0].mxu0 %v2848
        %v2962 = vpop.f32.mrb[0].mxu0
        %v2963 = vadd.f32 %v2870, %v2962
        %v2964 = vpop.f32.mrb[0].mxu0
        %v2965 = vpop.f32.mrb[0].mxu0
        %v2966 = vadd.f32 %v2870, %v2965
        %v2967 = vpop.f32.mrb[0].mxu0
        %2968 = vdwg.mxu0
        %v2969 = vadd.f32 %v2585, %v2955
        %v2970 = vadd.f32 %v2586, %v2958
        %v2971 = vadd.f32 %v2587, %v2963
        %v2972 = vadd.f32 %v2588, %v2966
        %2973 = vst.msk [vmem:[%s499] sm:$0xff] %vm514, %v2969
        %2974 = vst.msk [vmem:[%s499 + $0x8] sm:$0xff] %vm514, %v2970
        %2975 = vst.msk [vmem:[%s499 + $0x10] sm:$0xff] %vm514, %v2971
        %2976 = vst.msk [vmem:[%s499 + $0x18] sm:$0xff] %vm514, %v2972
        %s2977 = sand.u32 %s316, 1
        %s2978 = scalar_lea.sflag [#allocation5], %s2977
        %s2979 = sand.u32 %s316, 1
        %s2980 = smul.addr %s2979, 32
        %s2981 = scalar_lea.vmem [#allocation12], %s2980
        // Predicated region
        $region93: #{tpu_custom_call.1} parent=71 // pred_check
          %p2982 = pneg %p326
        $region94: #{tpu_custom_call.1} parent=71 // pred_check_branch
          %2984 = sbr.rel (%p2982) target = $region96
        $region95: #{tpu_custom_call.1} parent=71 // pred_region
          %s2985 = smul.u32 4, %s30
          %s2987 = ssub.s32 512, 512
          %2988 = vsyncadd %s2978, %s2987
          %s2989 = smul.addr %s2985, 128
          %s2990 = scalar_lea.hbm %s13, %s2989
          %s2991 = sshll.u32 %s2981, 4
          %s2992 = int_to_ptr.vmem [resolvable:$true] %s2991
          %2997 = dma.vmem_to_hbm [thread:$0]  %s2992, 512, %s2990, %s2978, 128, 128, 8
        $region96: #{tpu_custom_call.1} parent=71 // pred_fallthru
          _
      $region72: #{tpu_custom_call.1} parent=5 // pred_fallthru
        _
      %p2998 = scmp.le.s32.totalorder 2, %s25
      // Predicated region
      $region97: #{tpu_custom_call.1} parent=5 // pred_check
        %p2999 = pneg %p2998
      $region98: #{tpu_custom_call.1} parent=5 // pred_check_branch
        %3001 = sbr.rel (%p2999) target = $region100
      $region99: #{tpu_custom_call.1} parent=5 // pred_region
        %s3002 = ssub.s32 %s25, 2
        // Predicated region
        $region101: #{tpu_custom_call.1} parent=99 // pred_check
          %p3003 = pneg %p332
        $region102: #{tpu_custom_call.1} parent=99 // pred_check_branch
          %3005 = sbr.rel (%p3003) target = $region104
        $region103: #{tpu_custom_call.1} parent=99 // pred_region
          %s3006 = sand.u32 %s317, 1
          %s3007 = scalar_lea.sflag [#allocation5], %s3006
          %s3008 = sand.u32 %s317, 1
          %s3009 = smul.addr %s3008, 32
          %s3010 = scalar_lea.vmem [#allocation12], %s3009
          %3011 = dma.done %s3007, 512
        $region104: #{tpu_custom_call.1} parent=99 // pred_fallthru
          _
      $region100: #{tpu_custom_call.1} parent=5 // pred_fallthru
        _
    $region6: #{tpu_custom_call.1} parent=1 // loop_footer
      %s29 = sadd.s32 1, %s25
    $region7: #{tpu_custom_call.1} parent=1 // loop_footer_branch
      %24 = sbr.rel target = $region3
    $region8: #{tpu_custom_call.1} parent=1 // loop_exit
      _
    %3012 = vsyncpa [#allocation4], 1
    %s3013 = scalar_lea.sflag [#allocation4], 1
    %3014 = vsyncpa %s3013, 1
    %3015 = vsyncpa [#allocation7], 1
    %3016 = vsyncpa [#allocation10], 1
    %3017 = vsyncpa [#allocation5], 1
    %s3018 = scalar_lea.sflag [#allocation5], 1
    %3019 = vsyncpa %s3018, 1

</llo_original>
